<compile_context>
chip_gen: v7x
topology: tpu7x:2x2x1
jax: 0.10.0
libtpu: 0.0.40
codegen_flags: <defaults>
</compile_context>

<pallas_src>
import functools

import numpy as np
import jax
import jax.numpy as jnp
from jax.experimental import pallas as pl
from jax.experimental.pallas import tpu as pltpu

_KSIZE = 4
_STRIDE = 2
_LANE = 128
_ROWS3 = 40                      # conv3 rows/image in the tail (36 real + 4 pad)
_VMEM_LIMIT = 48 * 1024 * 1024   # explicit ceiling: safe on v7x, trivial on v5e/v6e


def _round_up(x, m):
    return ((x + m - 1) // m) * m


# ---------------------------------------------------------------------------
# Kernel 1: one M-tile of  out = relu(x @ w + b)     (conv1 / conv2 as matmul)
# ---------------------------------------------------------------------------
def _mm_bias_relu_kernel(x_ref, w_ref, b_ref, o_ref):
    acc = jnp.dot(x_ref[...], w_ref[...], preferred_element_type=jnp.float32)
    o_ref[...] = jnp.maximum(acc + b_ref[...], 0.0).astype(o_ref.dtype)


def _pick_tm(M):
    """Large M-tiles (amortize ~0.35us/step pipeline overhead), but keep
    >= 2 grid steps so both v7x TensorCores get work."""
    if M <= 16:
        return _round_up(M, 8)
    return min(2048, _round_up((M + 1) // 2, 8))


def _conv_matmul_relu(patches, w, b):
    """relu(patches @ w + b).

    patches: (B, OH, OW, K) bf16 im2col patches.  w: (K, Np) bf16 pre-packed
    (N lane-padded to 128).  b: (1, Np) f32.  Returns the M/lane padded
    (Mp, Np) bf16 result; the consumer slices rows/channels lazily so there is
    no dedicated un-pad pass over HBM.
    """
    Bn, OH, OW, K = patches.shape
    M = Bn * OH * OW
    tm = _pick_tm(M)
    Mp = _round_up(M, tm)
    x = patches.reshape(M, K)
    if Mp != M:
        # M-pad folded into the same XLA fusion that materializes the patches.
        x = jnp.pad(x, ((0, Mp - M), (0, 0)))
    Kw, Np = w.shape
    assert Kw == K
    out = pl.pallas_call(
        _mm_bias_relu_kernel,
        out_shape=jax.ShapeDtypeStruct((Mp, Np), jnp.bfloat16),
        grid=(Mp // tm,),
        in_specs=[
            pl.BlockSpec((tm, K), lambda i: (i, 0)),
            pl.BlockSpec((K, Np), lambda i: (0, 0)),
            pl.BlockSpec((1, Np), lambda i: (0, 0)),
        ],
        out_specs=pl.BlockSpec((tm, Np), lambda i: (i, 0)),
        compiler_params=pltpu.CompilerParams(
            dimension_semantics=("parallel",),
            vmem_limit_bytes=_VMEM_LIMIT),
    )(x, w, b)
    return out      # (Mp, Np) bf16; rows >= M carry relu(bias), padded cols are 0


# ---------------------------------------------------------------------------
# Kernel 2: fused, image-batched tail
#   conv3 -> ReLU -> conv4 -> ReLU -> NCHW flatten -> fc
# One grid step processes TB images; everything stays in VMEM between stages.
# ---------------------------------------------------------------------------
def _pick_tb(B):
    """Images per tail grid step: power of two, <= 8, and small enough that
    the grid has >= 2 steps when B allows (v7x megacore)."""
    cap = min(8, max(1, B // 2))
    tb = 1
    while tb * 2 <= cap:
        tb *= 2
    return tb


def _make_sel(tb):
    """0/1 block-diagonal gather matrix for the conv4 patch gather.

    Row t*(4*tb) + p*tb + b picks conv3 row b*_ROWS3 + (2*oh+kh)*6 + (2*ow+kw)
    (t = kh*4+kw tap, p = oh*2+ow conv4 output position, b image within the
    step).  Rows 36.._ROWS3-1 of each image are padding and are never picked.
    """
    G = 4 * tb
    sel = np.zeros((16 * G, _ROWS3 * tb), np.float32)
    for kh in range(_KSIZE):
        for kw in range(_KSIZE):
            t = kh * _KSIZE + kw
            for oh in range(2):
                for ow in range(2):
                    p = oh * 2 + ow
                    for b in range(tb):
                        sel[t * G + p * tb + b,
                            b * _ROWS3 + (2 * oh + kh) * 6 + (2 * ow + kw)] = 1.0
    return jnp.asarray(sel, dtype=jnp.bfloat16)


def _tail_kernel(x3_ref, w3_ref, b3_ref, sel_ref, w4_ref, b4_ref,
                 wfc_ref, bfc_ref, o_ref, *, tb):
    G = 4 * tb
    # conv3: ONE (tb*40, 1024) @ (1024, 128) matmul + bias + ReLU.
    h3 = jnp.dot(x3_ref[...], w3_ref[...], preferred_element_type=jnp.float32)
    h3 = jnp.maximum(h3 + b3_ref[...], 0.0).astype(jnp.bfloat16)

    # conv4 patch gather: ONE 0/1 selection matmul (exact copy of bf16 rows).
    r = jnp.dot(sel_ref[...], h3, preferred_element_type=jnp.float32)
    r = r.astype(jnp.bfloat16)                                   # (16*G, 128)

    # conv4: 16 independent per-tap matmuls (tap t's rows are contiguous),
    # tree-summed so no serial accumulator chain blocks MXU overlap.
    taps = [jnp.dot(r[t * G:(t + 1) * G, :], w4_ref[t],
                    preferred_element_type=jnp.float32) for t in range(16)]
    while len(taps) > 1:
        taps = [taps[i] + taps[i + 1] for i in range(0, len(taps), 2)]
    h4 = jnp.maximum(taps[0] + b4_ref[...], 0.0).astype(jnp.bfloat16)  # (G,256)

    # fc: the PyTorch NCHW flatten (index = c*4 + p) is baked into wfc's
    # packing; 4 independent (tb,256)@(256,Np) matmuls, tree-summed.
    fcs = [jnp.dot(h4[p * tb:(p + 1) * tb, :], wfc_ref[p],
                   preferred_element_type=jnp.float32) for p in range(4)]
    o_ref[0] = (fcs[0] + fcs[1]) + (fcs[2] + fcs[3]) + bfc_ref[...]


def _tail_fused(x3, packed):
    """x3: (B, 36, 1024) bf16 conv3 im2col patches -> (B, np_out) f32."""
    B = x3.shape[0]
    np_out = packed["fc_w_p"].shape[-1]
    tb = _pick_tb(B)
    Bp = _round_up(B, tb)
    steps = Bp // tb
    # Pad rows 36 -> 40 (sublane-aligned per-image row groups for ANY tb) and
    # pad the batch to a tb multiple; padded rows/images are never gathered.
    x3p = jnp.pad(x3, ((0, Bp - B), (0, _ROWS3 - 36), (0, 0)))
    x3p = x3p.reshape(Bp * _ROWS3, 1024)
    sel = _make_sel(tb)     # trace-time constant (depends only on static tb)

    # NOTE: the weight blocks have constant index maps; pipeline_mode=
    # pl.Buffered(1) would save their second VMEM buffer, but VMEM is nowhere
    # near the limit here so we keep the default double buffering.
    out = pl.pallas_call(
        functools.partial(_tail_kernel, tb=tb),
        out_shape=jax.ShapeDtypeStruct((steps, tb, np_out), jnp.float32),
        grid=(steps,),
        in_specs=[
            pl.BlockSpec((tb * _ROWS3, 1024), lambda i: (i, 0)),
            pl.BlockSpec((1024, 128), lambda i: (0, 0)),
            pl.BlockSpec((1, 128), lambda i: (0, 0)),
            pl.BlockSpec((16 * 4 * tb, _ROWS3 * tb), lambda i: (0, 0)),
            pl.BlockSpec((16, 128, 256), lambda i: (0, 0, 0)),
            pl.BlockSpec((1, 256), lambda i: (0, 0)),
            pl.BlockSpec((4, 256, np_out), lambda i: (0, 0, 0)),
            pl.BlockSpec((1, np_out), lambda i: (0, 0)),
        ],
        # 3-D output block keeps the store lane-dense (np_out % 128 == 0) for
        # any tb; a 2-D (tb, Np) block would break the (8,128) rule for tb<8.
        out_specs=pl.BlockSpec((1, tb, np_out), lambda i: (i, 0, 0)),
        compiler_params=pltpu.CompilerParams(
            dimension_semantics=("parallel",),
            vmem_limit_bytes=_VMEM_LIMIT),
    )(x3p, packed["w3_p"], packed["b3_p"], sel, packed["w4_p"],
      packed["b4_p"], packed["fc_w_p"], packed["fc_b_p"])
    return out.reshape(Bp, np_out)[:B]


# ---------------------------------------------------------------------------
# im2col (outside the kernels): packed bf16 patch tensor, tap order (kh, kw, c)
# TODO(synk): the strided window gather itself still runs as XLA slices; doing
# it inside the conv kernels (strided sublane loads) would cut another HBM pass.
# ---------------------------------------------------------------------------
def _im2col(x, dtype=jnp.bfloat16):
    """x: (N, H, W, C) -> (N, OH, OW, KH*KW*C), column order (kh, kw, c)."""
    x = x.astype(dtype)
    n, h, w, c = x.shape
    oh = (h - _KSIZE) // _STRIDE + 1
    ow = (w - _KSIZE) // _STRIDE + 1
    cols = [x[:, kh:kh + _STRIDE * oh:_STRIDE, kw:kw + _STRIDE * ow:_STRIDE, :]
            for kh in range(_KSIZE) for kw in range(_KSIZE)]
    return jnp.concatenate(cols, axis=-1), (oh, ow)


# ---------------------------------------------------------------------------
# Parameter init (PyTorch-default-style) + one-time packing to kernel layouts
# ---------------------------------------------------------------------------
def init_params(key, in_channels, output_dimension):
    conv_cfg = [(in_channels, 32), (32, 64), (64, 128), (128, 256)]
    raw = {"convs": []}
    keys = jax.random.split(key, 2 * len(conv_cfg) + 2)
    for i, (cin, cout) in enumerate(conv_cfg):
        fan_in = cin * _KSIZE * _KSIZE
        bound = 1.0 / (fan_in ** 0.5)
        w = jax.random.uniform(keys[2 * i], (cout, cin, _KSIZE, _KSIZE),
                               jnp.float32, -bound, bound)
        b = jax.random.uniform(keys[2 * i + 1], (cout,),
                               jnp.float32, -bound, bound)
        raw["convs"].append((w, b))
    fc_in = 256 * 2 * 2
    bound = 1.0 / (fc_in ** 0.5)
    raw["fc_w"] = jax.random.uniform(keys[-2], (output_dimension, fc_in),
                                     jnp.float32, -bound, bound)
    raw["fc_b"] = jax.random.uniform(keys[-1], (output_dimension,),
                                     jnp.float32, -bound, bound)
    return raw


def _pack_conv_w(w_oihw, n_pad):
    cout, cin, kh, kw = w_oihw.shape
    wf = jnp.transpose(w_oihw, (2, 3, 1, 0)).reshape(kh * kw * cin, cout)
    if n_pad != cout:
        wf = jnp.zeros((wf.shape[0], n_pad), wf.dtype).at[:, :cout].set(wf)
    return wf.astype(jnp.bfloat16)


def _pack_bias(b, n_pad):
    return jnp.zeros((1, n_pad), jnp.float32).at[0, :b.shape[0]].set(
        b.astype(jnp.float32))


def pack_params(raw, output_dimension):
    """One-time repack into MXU-ready layouts (bf16 weights, f32 biases)."""
    (w1, b1), (w2, b2), (w3, b3), (w4, b4) = raw["convs"]
    out_pad = _round_up(output_dimension, _LANE)
    # fc weight with the NCHW flatten baked in: fc_w_p[p][c, o] = fc_w[o, c*4+p]
    fc_w = raw["fc_w"].reshape(output_dimension, 256, 4)
    fc_w = jnp.transpose(fc_w, (2, 1, 0))                      # (4, 256, out)
    if out_pad != output_dimension:
        fc_w = jnp.zeros((4, 256, out_pad), fc_w.dtype).at[
            :, :, :output_dimension].set(fc_w)
    return {
        "w1_p": _pack_conv_w(w1, _LANE), "b1_p": _pack_bias(b1, _LANE),
        "w2_p": _pack_conv_w(w2, _LANE), "b2_p": _pack_bias(b2, _LANE),
        "w3_p": _pack_conv_w(w3, _LANE), "b3_p": _pack_bias(b3, _LANE),
        "w4_p": jnp.transpose(w4, (2, 3, 1, 0))
                   .reshape(16, 128, 256).astype(jnp.bfloat16),
        "b4_p": _pack_bias(b4, 256),
        "fc_w_p": fc_w.astype(jnp.bfloat16),
        "fc_b_p": _pack_bias(raw["fc_b"], out_pad),
    }


# ---------------------------------------------------------------------------
# MultiEncoder forward (image path, 4-D channels-last input)
# ---------------------------------------------------------------------------
def multi_encoder_forward(packed, image_nhwc, *, output_dimension):
    """image_nhwc: (B, H, W, C), C in {1,3,4}.  PyTorch permutes to NCHW; we
    stay NHWC and reproduce the same math (incl. the NCHW flatten before fc).
    TODO(synk): the 5-D sequence / 3-D single-image / non-image fc branches are
    trivial reshape wrappers around this path and are not kernelized here."""
    B = image_nhwc.shape[0]
    # conv1 + ReLU
    p1, (oh1, ow1) = _im2col(image_nhwc)
    h1 = _conv_matmul_relu(p1, packed["w1_p"], packed["b1_p"])
    x1 = h1[:B * oh1 * ow1, :32].reshape(B, oh1, ow1, 32)   # lazy un-pad
    # conv2 + ReLU
    p2, (oh2, ow2) = _im2col(x1)
    h2 = _conv_matmul_relu(p2, packed["w2_p"], packed["b2_p"])
    x2 = h2[:B * oh2 * ow2, :64].reshape(B, oh2, ow2, 64)   # lazy un-pad
    # conv3 -> ReLU -> conv4 -> ReLU -> NCHW flatten -> fc: fused + batched
    p3, (oh3, ow3) = _im2col(x2)                            # (B, 6, 6, 1024)
    assert (oh3, ow3) == (6, 6), "fused tail expects 64x64 input (2x2 final)"
    out = _tail_fused(p3.reshape(B, 36, 16 * 64), packed)   # (B, out_pad) f32
    return out[:, :output_dimension]


if __name__ == "__main__":
    key = jax.random.PRNGKey(0)
    k_param, k_img = jax.random.split(key)

    batch = 2
    in_channels = 3
    # conv arithmetic (k=4, s=2, x4 layers) requires 64x64 -> 2x2 spatial
    height = width = 64
    output_dimension = 32

    raw = init_params(k_param, in_channels, output_dimension)
    packed = pack_params(raw, output_dimension)      # one-time weight repack
    image = jax.random.uniform(k_img, (batch, height, width, in_channels),
                               jnp.float32)

    fwd = jax.jit(functools.partial(multi_encoder_forward,
                                    output_dimension=output_dimension))
    out = jax.block_until_ready(fwd(packed, image))
    assert out.shape == (batch, output_dimension), out.shape
    assert bool(jnp.all(jnp.isfinite(out)))
    print("KERNEL_OK")
</pallas_src>

<mosaic_0001>
module attributes {stable_mosaic.version = 11 : i64} {
  func.func @_mm_bias_relu_kernel(%arg0: i32, %arg1: memref<968x48xbf16, #tpu.memory_space<vmem>>, %arg2: memref<48x128xbf16, #tpu.memory_space<vmem>>, %arg3: memref<1x128xf32, #tpu.memory_space<vmem>>, %arg4: memref<968x128xbf16, #tpu.memory_space<vmem>>) attributes {dimension_semantics = [#tpu.dimension_semantics<parallel>], iteration_bounds = array<i64: 2>, scalar_prefetch = 0 : i64, scratch_operands = 0 : i64, tpu.core_type = #tpu.core_type<tc>, window_params = [{transform_indices = @transform_0, window_bounds = array<i64: 968, 48>}, {pipeline_mode = #tpu.pipeline_mode<synchronous>, transform_indices = @transform_1, window_bounds = array<i64: 48, 128>}, {pipeline_mode = #tpu.pipeline_mode<synchronous>, transform_indices = @transform_2, window_bounds = array<i64: 1, 128>}, {transform_indices = @transform_3, window_bounds = array<i64: 968, 128>}]} {
    %c0 = arith.constant 0 : index
    %c0_0 = arith.constant 0 : index
    %0 = vector.load %arg1[%c0, %c0_0] : memref<968x48xbf16, #tpu.memory_space<vmem>>, vector<968x48xbf16>
    %c0_1 = arith.constant 0 : index
    %c0_2 = arith.constant 0 : index
    %1 = vector.load %arg2[%c0_1, %c0_2] : memref<48x128xbf16, #tpu.memory_space<vmem>>, vector<48x128xbf16>
    %cst = arith.constant dense<0.000000e+00> : vector<968x128xf32>
    %2 = tpu.matmul %0, %1, %cst {dimension_numbers = #tpu.dot_dimension_numbers<[1], [0], [0], [1], [0, 0, 1, 1], [], []>} : vector<968x48xbf16>, vector<48x128xbf16>, vector<968x128xf32> -> vector<968x128xf32>
    %c0_3 = arith.constant 0 : index
    %c0_4 = arith.constant 0 : index
    %3 = vector.load %arg3[%c0_3, %c0_4] : memref<1x128xf32, #tpu.memory_space<vmem>>, vector<1x128xf32>
    %4 = vector.broadcast %3 : vector<1x128xf32> to vector<968x128xf32>
    %5 = arith.addf %2, %4 : vector<968x128xf32>
    %cst_5 = arith.constant 0.000000e+00 : f32
    %6 = vector.broadcast %cst_5 : f32 to vector<968x128xf32>
    %7 = arith.maximumf %5, %6 : vector<968x128xf32>
    %8 = arith.truncf %7 : vector<968x128xf32> to vector<968x128xbf16>
    %c0_6 = arith.constant 0 : index
    %c0_7 = arith.constant 0 : index
    %9 = vector.load %arg4[%c0_6, %c0_7] : memref<968x128xbf16, #tpu.memory_space<vmem>>, vector<968x128xbf16>
    tpu.vector_store %arg4[%c0_6, %c0_7], %8 {strides = array<i32>} : memref<968x128xbf16, #tpu.memory_space<vmem>>, vector<968x128xbf16>,
    return
  }
  func.func @transform_0(%arg0: i32) -> (i32, i32) {
    %c0_i32 = arith.constant 0 : i32
    %c0_i32_0 = arith.constant 0 : i32
    return %arg0, %c0_i32 : i32, i32
  }
  func.func @transform_1(%arg0: i32) -> (i32, i32) {
    %c0_i32 = arith.constant 0 : i32
    %c0_i32_0 = arith.constant 0 : i32
    %c0_i32_1 = arith.constant 0 : i32
    return %c0_i32, %c0_i32_0 : i32, i32
  }
  func.func @transform_2(%arg0: i32) -> (i32, i32) {
    %c0_i32 = arith.constant 0 : i32
    %c0_i32_0 = arith.constant 0 : i32
    %c0_i32_1 = arith.constant 0 : i32
    return %c0_i32, %c0_i32_0 : i32, i32
  }
  func.func @transform_3(%arg0: i32) -> (i32, i32) {
    %c0_i32 = arith.constant 0 : i32
    %c0_i32_0 = arith.constant 0 : i32
    return %arg0, %c0_i32 : i32, i32
  }
}

module attributes {stable_mosaic.version = 11 : i64} {
  func.func @_mm_bias_relu_kernel(%arg0: i32, %arg1: memref<200x512xbf16, #tpu.memory_space<vmem>>, %arg2: memref<512x128xbf16, #tpu.memory_space<vmem>>, %arg3: memref<1x128xf32, #tpu.memory_space<vmem>>, %arg4: memref<200x128xbf16, #tpu.memory_space<vmem>>) attributes {dimension_semantics = [#tpu.dimension_semantics<parallel>], iteration_bounds = array<i64: 2>, scalar_prefetch = 0 : i64, scratch_operands = 0 : i64, tpu.core_type = #tpu.core_type<tc>, window_params = [{transform_indices = @transform_0, window_bounds = array<i64: 200, 512>}, {pipeline_mode = #tpu.pipeline_mode<synchronous>, transform_indices = @transform_1, window_bounds = array<i64: 512, 128>}, {pipeline_mode = #tpu.pipeline_mode<synchronous>, transform_indices = @transform_2, window_bounds = array<i64: 1, 128>}, {transform_indices = @transform_3, window_bounds = array<i64: 200, 128>}]} {
    %c0 = arith.constant 0 : index
    %c0_0 = arith.constant 0 : index
    %0 = vector.load %arg1[%c0, %c0_0] : memref<200x512xbf16, #tpu.memory_space<vmem>>, vector<200x512xbf16>
    %c0_1 = arith.constant 0 : index
    %c0_2 = arith.constant 0 : index
    %1 = vector.load %arg2[%c0_1, %c0_2] : memref<512x128xbf16, #tpu.memory_space<vmem>>, vector<512x128xbf16>
    %cst = arith.constant dense<0.000000e+00> : vector<200x128xf32>
    %2 = tpu.matmul %0, %1, %cst {dimension_numbers = #tpu.dot_dimension_numbers<[1], [0], [0], [1], [0, 0, 1, 1], [], []>} : vector<200x512xbf16>, vector<512x128xbf16>, vector<200x128xf32> -> vector<200x128xf32>
    %c0_3 = arith.constant 0 : index
    %c0_4 = arith.constant 0 : index
    %3 = vector.load %arg3[%c0_3, %c0_4] : memref<1x128xf32, #tpu.memory_space<vmem>>, vector<1x128xf32>
    %4 = vector.broadcast %3 : vector<1x128xf32> to vector<200x128xf32>
    %5 = arith.addf %2, %4 : vector<200x128xf32>
    %cst_5 = arith.constant 0.000000e+00 : f32
    %6 = vector.broadcast %cst_5 : f32 to vector<200x128xf32>
    %7 = arith.maximumf %5, %6 : vector<200x128xf32>
    %8 = arith.truncf %7 : vector<200x128xf32> to vector<200x128xbf16>
    %c0_6 = arith.constant 0 : index
    %c0_7 = arith.constant 0 : index
    %9 = vector.load %arg4[%c0_6, %c0_7] : memref<200x128xbf16, #tpu.memory_space<vmem>>, vector<200x128xbf16>
    tpu.vector_store %arg4[%c0_6, %c0_7], %8 {strides = array<i32>} : memref<200x128xbf16, #tpu.memory_space<vmem>>, vector<200x128xbf16>,
    return
  }
  func.func @transform_0(%arg0: i32) -> (i32, i32) {
    %c0_i32 = arith.constant 0 : i32
    %c0_i32_0 = arith.constant 0 : i32
    return %arg0, %c0_i32 : i32, i32
  }
  func.func @transform_1(%arg0: i32) -> (i32, i32) {
    %c0_i32 = arith.constant 0 : i32
    %c0_i32_0 = arith.constant 0 : i32
    %c0_i32_1 = arith.constant 0 : i32
    return %c0_i32, %c0_i32_0 : i32, i32
  }
  func.func @transform_2(%arg0: i32) -> (i32, i32) {
    %c0_i32 = arith.constant 0 : i32
    %c0_i32_0 = arith.constant 0 : i32
    %c0_i32_1 = arith.constant 0 : i32
    return %c0_i32, %c0_i32_0 : i32, i32
  }
  func.func @transform_3(%arg0: i32) -> (i32, i32) {
    %c0_i32 = arith.constant 0 : i32
    %c0_i32_0 = arith.constant 0 : i32
    return %arg0, %c0_i32 : i32, i32
  }
}

module attributes {stable_mosaic.version = 11 : i64} {
  func.func @_tail_kernel(%arg0: i32, %arg1: memref<40x1024xbf16, #tpu.memory_space<vmem>>, %arg2: memref<1024x128xbf16, #tpu.memory_space<vmem>>, %arg3: memref<1x128xf32, #tpu.memory_space<vmem>>, %arg4: memref<64x40xbf16, #tpu.memory_space<vmem>>, %arg5: memref<16x128x256xbf16, #tpu.memory_space<vmem>>, %arg6: memref<1x256xf32, #tpu.memory_space<vmem>>, %arg7: memref<4x256x128xbf16, #tpu.memory_space<vmem>>, %arg8: memref<1x128xf32, #tpu.memory_space<vmem>>, %arg9: memref<1x1x128xf32, #tpu.memory_space<vmem>>) attributes {dimension_semantics = [#tpu.dimension_semantics<parallel>], iteration_bounds = array<i64: 2>, scalar_prefetch = 0 : i64, scratch_operands = 0 : i64, tpu.core_type = #tpu.core_type<tc>, window_params = [{transform_indices = @transform_0, window_bounds = array<i64: 40, 1024>}, {pipeline_mode = #tpu.pipeline_mode<synchronous>, transform_indices = @transform_1, window_bounds = array<i64: 1024, 128>}, {pipeline_mode = #tpu.pipeline_mode<synchronous>, transform_indices = @transform_2, window_bounds = array<i64: 1, 128>}, {pipeline_mode = #tpu.pipeline_mode<synchronous>, transform_indices = @transform_3, window_bounds = array<i64: 64, 40>}, {pipeline_mode = #tpu.pipeline_mode<synchronous>, transform_indices = @transform_4, window_bounds = array<i64: 16, 128, 256>}, {pipeline_mode = #tpu.pipeline_mode<synchronous>, transform_indices = @transform_5, window_bounds = array<i64: 1, 256>}, {pipeline_mode = #tpu.pipeline_mode<synchronous>, transform_indices = @transform_6, window_bounds = array<i64: 4, 256, 128>}, {pipeline_mode = #tpu.pipeline_mode<synchronous>, transform_indices = @transform_7, window_bounds = array<i64: 1, 128>}, {transform_indices = @transform_8, window_bounds = array<i64: 1, 1, 128>}]} {
    %c0 = arith.constant 0 : index
    %c0_0 = arith.constant 0 : index
    %0 = vector.load %arg1[%c0, %c0_0] : memref<40x1024xbf16, #tpu.memory_space<vmem>>, vector<40x1024xbf16>
    %c0_1 = arith.constant 0 : index
    %c0_2 = arith.constant 0 : index
    %1 = vector.load %arg2[%c0_1, %c0_2] : memref<1024x128xbf16, #tpu.memory_space<vmem>>, vector<1024x128xbf16>
    %cst = arith.constant dense<0.000000e+00> : vector<40x128xf32>
    %2 = tpu.matmul %0, %1, %cst {dimension_numbers = #tpu.dot_dimension_numbers<[1], [0], [0], [1], [0, 0, 1, 1], [], []>} : vector<40x1024xbf16>, vector<1024x128xbf16>, vector<40x128xf32> -> vector<40x128xf32>
    %c0_3 = arith.constant 0 : index
    %c0_4 = arith.constant 0 : index
    %3 = vector.load %arg3[%c0_3, %c0_4] : memref<1x128xf32, #tpu.memory_space<vmem>>, vector<1x128xf32>
    %4 = vector.broadcast %3 : vector<1x128xf32> to vector<40x128xf32>
    %5 = arith.addf %2, %4 : vector<40x128xf32>
    %cst_5 = arith.constant 0.000000e+00 : f32
    %6 = vector.broadcast %cst_5 : f32 to vector<40x128xf32>
    %7 = arith.maximumf %5, %6 : vector<40x128xf32>
    %8 = arith.truncf %7 : vector<40x128xf32> to vector<40x128xbf16>
    %c0_6 = arith.constant 0 : index
    %c0_7 = arith.constant 0 : index
    %9 = vector.load %arg4[%c0_6, %c0_7] : memref<64x40xbf16, #tpu.memory_space<vmem>>, vector<64x40xbf16>
    %cst_8 = arith.constant dense<0.000000e+00> : vector<64x128xf32>
    %10 = tpu.matmul %9, %8, %cst_8 {dimension_numbers = #tpu.dot_dimension_numbers<[1], [0], [0], [1], [0, 0, 1, 1], [], []>} : vector<64x40xbf16>, vector<40x128xbf16>, vector<64x128xf32> -> vector<64x128xf32>
    %11 = arith.truncf %10 : vector<64x128xf32> to vector<64x128xbf16>
    %12 = vector.extract_strided_slice %11 {offsets = [0, 0], sizes = [4, 128], strides = [1, 1]} : vector<64x128xbf16> to vector<4x128xbf16>
    %c0_9 = arith.constant 0 : index
    %c0_10 = arith.constant 0 : index
    %c0_11 = arith.constant 0 : index
    %13 = vector.load %arg5[%c0_9, %c0_10, %c0_11] : memref<16x128x256xbf16, #tpu.memory_space<vmem>>, vector<1x128x256xbf16>
    %14 = vector.shape_cast %13 : vector<1x128x256xbf16> to vector<128x256xbf16>
    %cst_12 = arith.constant dense<0.000000e+00> : vector<4x256xf32>
    %15 = tpu.matmul %12, %14, %cst_12 {dimension_numbers = #tpu.dot_dimension_numbers<[1], [0], [0], [1], [0, 0, 1, 1], [], []>} : vector<4x128xbf16>, vector<128x256xbf16>, vector<4x256xf32> -> vector<4x256xf32>
    %16 = vector.extract_strided_slice %11 {offsets = [4, 0], sizes = [4, 128], strides = [1, 1]} : vector<64x128xbf16> to vector<4x128xbf16>
    %c1 = arith.constant 1 : index
    %c0_13 = arith.constant 0 : index
    %c0_14 = arith.constant 0 : index
    %17 = vector.load %arg5[%c1, %c0_13, %c0_14] : memref<16x128x256xbf16, #tpu.memory_space<vmem>>, vector<1x128x256xbf16>
    %18 = vector.shape_cast %17 : vector<1x128x256xbf16> to vector<128x256xbf16>
    %cst_15 = arith.constant dense<0.000000e+00> : vector<4x256xf32>
    %19 = tpu.matmul %16, %18, %cst_15 {dimension_numbers = #tpu.dot_dimension_numbers<[1], [0], [0], [1], [0, 0, 1, 1], [], []>} : vector<4x128xbf16>, vector<128x256xbf16>, vector<4x256xf32> -> vector<4x256xf32>
    %20 = vector.extract_strided_slice %11 {offsets = [8, 0], sizes = [4, 128], strides = [1, 1]} : vector<64x128xbf16> to vector<4x128xbf16>
    %c2 = arith.constant 2 : index
    %c0_16 = arith.constant 0 : index
    %c0_17 = arith.constant 0 : index
    %21 = vector.load %arg5[%c2, %c0_16, %c0_17] : memref<16x128x256xbf16, #tpu.memory_space<vmem>>, vector<1x128x256xbf16>
    %22 = vector.shape_cast %21 : vector<1x128x256xbf16> to vector<128x256xbf16>
    %cst_18 = arith.constant dense<0.000000e+00> : vector<4x256xf32>
    %23 = tpu.matmul %20, %22, %cst_18 {dimension_numbers = #tpu.dot_dimension_numbers<[1], [0], [0], [1], [0, 0, 1, 1], [], []>} : vector<4x128xbf16>, vector<128x256xbf16>, vector<4x256xf32> -> vector<4x256xf32>
    %24 = vector.extract_strided_slice %11 {offsets = [12, 0], sizes = [4, 128], strides = [1, 1]} : vector<64x128xbf16> to vector<4x128xbf16>
    %c3 = arith.constant 3 : index
    %c0_19 = arith.constant 0 : index
    %c0_20 = arith.constant 0 : index
    %25 = vector.load %arg5[%c3, %c0_19, %c0_20] : memref<16x128x256xbf16, #tpu.memory_space<vmem>>, vector<1x128x256xbf16>
    %26 = vector.shape_cast %25 : vector<1x128x256xbf16> to vector<128x256xbf16>
    %cst_21 = arith.constant dense<0.000000e+00> : vector<4x256xf32>
    %27 = tpu.matmul %24, %26, %cst_21 {dimension_numbers = #tpu.dot_dimension_numbers<[1], [0], [0], [1], [0, 0, 1, 1], [], []>} : vector<4x128xbf16>, vector<128x256xbf16>, vector<4x256xf32> -> vector<4x256xf32>
    %28 = vector.extract_strided_slice %11 {offsets = [16, 0], sizes = [4, 128], strides = [1, 1]} : vector<64x128xbf16> to vector<4x128xbf16>
    %c4 = arith.constant 4 : index
    %c0_22 = arith.constant 0 : index
    %c0_23 = arith.constant 0 : index
    %29 = vector.load %arg5[%c4, %c0_22, %c0_23] : memref<16x128x256xbf16, #tpu.memory_space<vmem>>, vector<1x128x256xbf16>
    %30 = vector.shape_cast %29 : vector<1x128x256xbf16> to vector<128x256xbf16>
    %cst_24 = arith.constant dense<0.000000e+00> : vector<4x256xf32>
    %31 = tpu.matmul %28, %30, %cst_24 {dimension_numbers = #tpu.dot_dimension_numbers<[1], [0], [0], [1], [0, 0, 1, 1], [], []>} : vector<4x128xbf16>, vector<128x256xbf16>, vector<4x256xf32> -> vector<4x256xf32>
    %32 = vector.extract_strided_slice %11 {offsets = [20, 0], sizes = [4, 128], strides = [1, 1]} : vector<64x128xbf16> to vector<4x128xbf16>
    %c5 = arith.constant 5 : index
    %c0_25 = arith.constant 0 : index
    %c0_26 = arith.constant 0 : index
    %33 = vector.load %arg5[%c5, %c0_25, %c0_26] : memref<16x128x256xbf16, #tpu.memory_space<vmem>>, vector<1x128x256xbf16>
    %34 = vector.shape_cast %33 : vector<1x128x256xbf16> to vector<128x256xbf16>
    %cst_27 = arith.constant dense<0.000000e+00> : vector<4x256xf32>
    %35 = tpu.matmul %32, %34, %cst_27 {dimension_numbers = #tpu.dot_dimension_numbers<[1], [0], [0], [1], [0, 0, 1, 1], [], []>} : vector<4x128xbf16>, vector<128x256xbf16>, vector<4x256xf32> -> vector<4x256xf32>
    %36 = vector.extract_strided_slice %11 {offsets = [24, 0], sizes = [4, 128], strides = [1, 1]} : vector<64x128xbf16> to vector<4x128xbf16>
    %c6 = arith.constant 6 : index
    %c0_28 = arith.constant 0 : index
    %c0_29 = arith.constant 0 : index
    %37 = vector.load %arg5[%c6, %c0_28, %c0_29] : memref<16x128x256xbf16, #tpu.memory_space<vmem>>, vector<1x128x256xbf16>
    %38 = vector.shape_cast %37 : vector<1x128x256xbf16> to vector<128x256xbf16>
    %cst_30 = arith.constant dense<0.000000e+00> : vector<4x256xf32>
    %39 = tpu.matmul %36, %38, %cst_30 {dimension_numbers = #tpu.dot_dimension_numbers<[1], [0], [0], [1], [0, 0, 1, 1], [], []>} : vector<4x128xbf16>, vector<128x256xbf16>, vector<4x256xf32> -> vector<4x256xf32>
    %40 = vector.extract_strided_slice %11 {offsets = [28, 0], sizes = [4, 128], strides = [1, 1]} : vector<64x128xbf16> to vector<4x128xbf16>
    %c7 = arith.constant 7 : index
    %c0_31 = arith.constant 0 : index
    %c0_32 = arith.constant 0 : index
    %41 = vector.load %arg5[%c7, %c0_31, %c0_32] : memref<16x128x256xbf16, #tpu.memory_space<vmem>>, vector<1x128x256xbf16>
    %42 = vector.shape_cast %41 : vector<1x128x256xbf16> to vector<128x256xbf16>
    %cst_33 = arith.constant dense<0.000000e+00> : vector<4x256xf32>
    %43 = tpu.matmul %40, %42, %cst_33 {dimension_numbers = #tpu.dot_dimension_numbers<[1], [0], [0], [1], [0, 0, 1, 1], [], []>} : vector<4x128xbf16>, vector<128x256xbf16>, vector<4x256xf32> -> vector<4x256xf32>
    %44 = vector.extract_strided_slice %11 {offsets = [32, 0], sizes = [4, 128], strides = [1, 1]} : vector<64x128xbf16> to vector<4x128xbf16>
    %c8 = arith.constant 8 : index
    %c0_34 = arith.constant 0 : index
    %c0_35 = arith.constant 0 : index
    %45 = vector.load %arg5[%c8, %c0_34, %c0_35] : memref<16x128x256xbf16, #tpu.memory_space<vmem>>, vector<1x128x256xbf16>
    %46 = vector.shape_cast %45 : vector<1x128x256xbf16> to vector<128x256xbf16>
    %cst_36 = arith.constant dense<0.000000e+00> : vector<4x256xf32>
    %47 = tpu.matmul %44, %46, %cst_36 {dimension_numbers = #tpu.dot_dimension_numbers<[1], [0], [0], [1], [0, 0, 1, 1], [], []>} : vector<4x128xbf16>, vector<128x256xbf16>, vector<4x256xf32> -> vector<4x256xf32>
    %48 = vector.extract_strided_slice %11 {offsets = [36, 0], sizes = [4, 128], strides = [1, 1]} : vector<64x128xbf16> to vector<4x128xbf16>
    %c9 = arith.constant 9 : index
    %c0_37 = arith.constant 0 : index
    %c0_38 = arith.constant 0 : index
    %49 = vector.load %arg5[%c9, %c0_37, %c0_38] : memref<16x128x256xbf16, #tpu.memory_space<vmem>>, vector<1x128x256xbf16>
    %50 = vector.shape_cast %49 : vector<1x128x256xbf16> to vector<128x256xbf16>
    %cst_39 = arith.constant dense<0.000000e+00> : vector<4x256xf32>
    %51 = tpu.matmul %48, %50, %cst_39 {dimension_numbers = #tpu.dot_dimension_numbers<[1], [0], [0], [1], [0, 0, 1, 1], [], []>} : vector<4x128xbf16>, vector<128x256xbf16>, vector<4x256xf32> -> vector<4x256xf32>
    %52 = vector.extract_strided_slice %11 {offsets = [40, 0], sizes = [4, 128], strides = [1, 1]} : vector<64x128xbf16> to vector<4x128xbf16>
    %c10 = arith.constant 10 : index
    %c0_40 = arith.constant 0 : index
    %c0_41 = arith.constant 0 : index
    %53 = vector.load %arg5[%c10, %c0_40, %c0_41] : memref<16x128x256xbf16, #tpu.memory_space<vmem>>, vector<1x128x256xbf16>
    %54 = vector.shape_cast %53 : vector<1x128x256xbf16> to vector<128x256xbf16>
    %cst_42 = arith.constant dense<0.000000e+00> : vector<4x256xf32>
    %55 = tpu.matmul %52, %54, %cst_42 {dimension_numbers = #tpu.dot_dimension_numbers<[1], [0], [0], [1], [0, 0, 1, 1], [], []>} : vector<4x128xbf16>, vector<128x256xbf16>, vector<4x256xf32> -> vector<4x256xf32>
    %56 = vector.extract_strided_slice %11 {offsets = [44, 0], sizes = [4, 128], strides = [1, 1]} : vector<64x128xbf16> to vector<4x128xbf16>
    %c11 = arith.constant 11 : index
    %c0_43 = arith.constant 0 : index
    %c0_44 = arith.constant 0 : index
    %57 = vector.load %arg5[%c11, %c0_43, %c0_44] : memref<16x128x256xbf16, #tpu.memory_space<vmem>>, vector<1x128x256xbf16>
    %58 = vector.shape_cast %57 : vector<1x128x256xbf16> to vector<128x256xbf16>
    %cst_45 = arith.constant dense<0.000000e+00> : vector<4x256xf32>
    %59 = tpu.matmul %56, %58, %cst_45 {dimension_numbers = #tpu.dot_dimension_numbers<[1], [0], [0], [1], [0, 0, 1, 1], [], []>} : vector<4x128xbf16>, vector<128x256xbf16>, vector<4x256xf32> -> vector<4x256xf32>
    %60 = vector.extract_strided_slice %11 {offsets = [48, 0], sizes = [4, 128], strides = [1, 1]} : vector<64x128xbf16> to vector<4x128xbf16>
    %c12 = arith.constant 12 : index
    %c0_46 = arith.constant 0 : index
    %c0_47 = arith.constant 0 : index
    %61 = vector.load %arg5[%c12, %c0_46, %c0_47] : memref<16x128x256xbf16, #tpu.memory_space<vmem>>, vector<1x128x256xbf16>
    %62 = vector.shape_cast %61 : vector<1x128x256xbf16> to vector<128x256xbf16>
    %cst_48 = arith.constant dense<0.000000e+00> : vector<4x256xf32>
    %63 = tpu.matmul %60, %62, %cst_48 {dimension_numbers = #tpu.dot_dimension_numbers<[1], [0], [0], [1], [0, 0, 1, 1], [], []>} : vector<4x128xbf16>, vector<128x256xbf16>, vector<4x256xf32> -> vector<4x256xf32>
    %64 = vector.extract_strided_slice %11 {offsets = [52, 0], sizes = [4, 128], strides = [1, 1]} : vector<64x128xbf16> to vector<4x128xbf16>
    %c13 = arith.constant 13 : index
    %c0_49 = arith.constant 0 : index
    %c0_50 = arith.constant 0 : index
    %65 = vector.load %arg5[%c13, %c0_49, %c0_50] : memref<16x128x256xbf16, #tpu.memory_space<vmem>>, vector<1x128x256xbf16>
    %66 = vector.shape_cast %65 : vector<1x128x256xbf16> to vector<128x256xbf16>
    %cst_51 = arith.constant dense<0.000000e+00> : vector<4x256xf32>
    %67 = tpu.matmul %64, %66, %cst_51 {dimension_numbers = #tpu.dot_dimension_numbers<[1], [0], [0], [1], [0, 0, 1, 1], [], []>} : vector<4x128xbf16>, vector<128x256xbf16>, vector<4x256xf32> -> vector<4x256xf32>
    %68 = vector.extract_strided_slice %11 {offsets = [56, 0], sizes = [4, 128], strides = [1, 1]} : vector<64x128xbf16> to vector<4x128xbf16>
    %c14 = arith.constant 14 : index
    %c0_52 = arith.constant 0 : index
    %c0_53 = arith.constant 0 : index
    %69 = vector.load %arg5[%c14, %c0_52, %c0_53] : memref<16x128x256xbf16, #tpu.memory_space<vmem>>, vector<1x128x256xbf16>
    %70 = vector.shape_cast %69 : vector<1x128x256xbf16> to vector<128x256xbf16>
    %cst_54 = arith.constant dense<0.000000e+00> : vector<4x256xf32>
    %71 = tpu.matmul %68, %70, %cst_54 {dimension_numbers = #tpu.dot_dimension_numbers<[1], [0], [0], [1], [0, 0, 1, 1], [], []>} : vector<4x128xbf16>, vector<128x256xbf16>, vector<4x256xf32> -> vector<4x256xf32>
    %72 = vector.extract_strided_slice %11 {offsets = [60, 0], sizes = [4, 128], strides = [1, 1]} : vector<64x128xbf16> to vector<4x128xbf16>
    %c15 = arith.constant 15 : index
    %c0_55 = arith.constant 0 : index
    %c0_56 = arith.constant 0 : index
    %73 = vector.load %arg5[%c15, %c0_55, %c0_56] : memref<16x128x256xbf16, #tpu.memory_space<vmem>>, vector<1x128x256xbf16>
    %74 = vector.shape_cast %73 : vector<1x128x256xbf16> to vector<128x256xbf16>
    %cst_57 = arith.constant dense<0.000000e+00> : vector<4x256xf32>
    %75 = tpu.matmul %72, %74, %cst_57 {dimension_numbers = #tpu.dot_dimension_numbers<[1], [0], [0], [1], [0, 0, 1, 1], [], []>} : vector<4x128xbf16>, vector<128x256xbf16>, vector<4x256xf32> -> vector<4x256xf32>
    %76 = arith.addf %15, %19 : vector<4x256xf32>
    %77 = arith.addf %23, %27 : vector<4x256xf32>
    %78 = arith.addf %31, %35 : vector<4x256xf32>
    %79 = arith.addf %39, %43 : vector<4x256xf32>
    %80 = arith.addf %47, %51 : vector<4x256xf32>
    %81 = arith.addf %55, %59 : vector<4x256xf32>
    %82 = arith.addf %63, %67 : vector<4x256xf32>
    %83 = arith.addf %71, %75 : vector<4x256xf32>
    %84 = arith.addf %76, %77 : vector<4x256xf32>
    %85 = arith.addf %78, %79 : vector<4x256xf32>
    %86 = arith.addf %80, %81 : vector<4x256xf32>
    %87 = arith.addf %82, %83 : vector<4x256xf32>
    %88 = arith.addf %84, %85 : vector<4x256xf32>
    %89 = arith.addf %86, %87 : vector<4x256xf32>
    %90 = arith.addf %88, %89 : vector<4x256xf32>
    %c0_58 = arith.constant 0 : index
    %c0_59 = arith.constant 0 : index
    %91 = vector.load %arg6[%c0_58, %c0_59] : memref<1x256xf32, #tpu.memory_space<vmem>>, vector<1x256xf32>
    %92 = vector.broadcast %91 : vector<1x256xf32> to vector<4x256xf32>
    %93 = arith.addf %90, %92 : vector<4x256xf32>
    %cst_60 = arith.constant 0.000000e+00 : f32
    %94 = vector.broadcast %cst_60 : f32 to vector<4x256xf32>
    %95 = arith.maximumf %93, %94 : vector<4x256xf32>
    %96 = arith.truncf %95 : vector<4x256xf32> to vector<4x256xbf16>
    %97 = vector.extract_strided_slice %96 {offsets = [0, 0], sizes = [1, 256], strides = [1, 1]} : vector<4x256xbf16> to vector<1x256xbf16>
    %c0_61 = arith.constant 0 : index
    %c0_62 = arith.constant 0 : index
    %c0_63 = arith.constant 0 : index
    %98 = vector.load %arg7[%c0_61, %c0_62, %c0_63] : memref<4x256x128xbf16, #tpu.memory_space<vmem>>, vector<1x256x128xbf16>
    %99 = vector.shape_cast %98 : vector<1x256x128xbf16> to vector<256x128xbf16>
    %cst_64 = arith.constant dense<0.000000e+00> : vector<1x128xf32>
    %100 = tpu.matmul %97, %99, %cst_64 {dimension_numbers = #tpu.dot_dimension_numbers<[1], [0], [0], [1], [0, 0, 1, 1], [], []>} : vector<1x256xbf16>, vector<256x128xbf16>, vector<1x128xf32> -> vector<1x128xf32>
    %101 = vector.extract_strided_slice %96 {offsets = [1, 0], sizes = [1, 256], strides = [1, 1]} : vector<4x256xbf16> to vector<1x256xbf16>
    %c1_65 = arith.constant 1 : index
    %c0_66 = arith.constant 0 : index
    %c0_67 = arith.constant 0 : index
    %102 = vector.load %arg7[%c1_65, %c0_66, %c0_67] : memref<4x256x128xbf16, #tpu.memory_space<vmem>>, vector<1x256x128xbf16>
    %103 = vector.shape_cast %102 : vector<1x256x128xbf16> to vector<256x128xbf16>
    %cst_68 = arith.constant dense<0.000000e+00> : vector<1x128xf32>
    %104 = tpu.matmul %101, %103, %cst_68 {dimension_numbers = #tpu.dot_dimension_numbers<[1], [0], [0], [1], [0, 0, 1, 1], [], []>} : vector<1x256xbf16>, vector<256x128xbf16>, vector<1x128xf32> -> vector<1x128xf32>
    %105 = vector.extract_strided_slice %96 {offsets = [2, 0], sizes = [1, 256], strides = [1, 1]} : vector<4x256xbf16> to vector<1x256xbf16>
    %c2_69 = arith.constant 2 : index
    %c0_70 = arith.constant 0 : index
    %c0_71 = arith.constant 0 : index
    %106 = vector.load %arg7[%c2_69, %c0_70, %c0_71] : memref<4x256x128xbf16, #tpu.memory_space<vmem>>, vector<1x256x128xbf16>
    %107 = vector.shape_cast %106 : vector<1x256x128xbf16> to vector<256x128xbf16>
    %cst_72 = arith.constant dense<0.000000e+00> : vector<1x128xf32>
    %108 = tpu.matmul %105, %107, %cst_72 {dimension_numbers = #tpu.dot_dimension_numbers<[1], [0], [0], [1], [0, 0, 1, 1], [], []>} : vector<1x256xbf16>, vector<256x128xbf16>, vector<1x128xf32> -> vector<1x128xf32>
    %109 = vector.extract_strided_slice %96 {offsets = [3, 0], sizes = [1, 256], strides = [1, 1]} : vector<4x256xbf16> to vector<1x256xbf16>
    %c3_73 = arith.constant 3 : index
    %c0_74 = arith.constant 0 : index
    %c0_75 = arith.constant 0 : index
    %110 = vector.load %arg7[%c3_73, %c0_74, %c0_75] : memref<4x256x128xbf16, #tpu.memory_space<vmem>>, vector<1x256x128xbf16>
    %111 = vector.shape_cast %110 : vector<1x256x128xbf16> to vector<256x128xbf16>
    %cst_76 = arith.constant dense<0.000000e+00> : vector<1x128xf32>
    %112 = tpu.matmul %109, %111, %cst_76 {dimension_numbers = #tpu.dot_dimension_numbers<[1], [0], [0], [1], [0, 0, 1, 1], [], []>} : vector<1x256xbf16>, vector<256x128xbf16>, vector<1x128xf32> -> vector<1x128xf32>
    %113 = arith.addf %100, %104 : vector<1x128xf32>
    %114 = arith.addf %108, %112 : vector<1x128xf32>
    %115 = arith.addf %113, %114 : vector<1x128xf32>
    %c0_77 = arith.constant 0 : index
    %c0_78 = arith.constant 0 : index
    %116 = vector.load %arg8[%c0_77, %c0_78] : memref<1x128xf32, #tpu.memory_space<vmem>>, vector<1x128xf32>
    %117 = arith.addf %115, %116 : vector<1x128xf32>
    %c0_79 = arith.constant 0 : index
    %c0_80 = arith.constant 0 : index
    %c0_81 = arith.constant 0 : index
    %118 = vector.load %arg9[%c0_79, %c0_80, %c0_81] : memref<1x1x128xf32, #tpu.memory_space<vmem>>, vector<1x1x128xf32>
    %119 = vector.shape_cast %118 : vector<1x1x128xf32> to vector<1x128xf32>
    %120 = vector.shape_cast %117 : vector<1x128xf32> to vector<1x1x128xf32>
    tpu.vector_store %arg9[%c0_79, %c0_80, %c0_81], %120 {strides = array<i32>} : memref<1x1x128xf32, #tpu.memory_space<vmem>>, vector<1x1x128xf32>,
    return
  }
  func.func @transform_0(%arg0: i32) -> (i32, i32) {
    %c0_i32 = arith.constant 0 : i32
    %c0_i32_0 = arith.constant 0 : i32
    return %arg0, %c0_i32 : i32, i32
  }
  func.func @transform_1(%arg0: i32) -> (i32, i32) {
    %c0_i32 = arith.constant 0 : i32
    %c0_i32_0 = arith.constant 0 : i32
    %c0_i32_1 = arith.constant 0 : i32
    return %c0_i32, %c0_i32_0 : i32, i32
  }
  func.func @transform_2(%arg0: i32) -> (i32, i32) {
    %c0_i32 = arith.constant 0 : i32
    %c0_i32_0 = arith.constant 0 : i32
    %c0_i32_1 = arith.constant 0 : i32
    return %c0_i32, %c0_i32_0 : i32, i32
  }
  func.func @transform_3(%arg0: i32) -> (i32, i32) {
    %c0_i32 = arith.constant 0 : i32
    %c0_i32_0 = arith.constant 0 : i32
    %c0_i32_1 = arith.constant 0 : i32
    return %c0_i32, %c0_i32_0 : i32, i32
  }
  func.func @transform_4(%arg0: i32) -> (i32, i32, i32) {
    %c0_i32 = arith.constant 0 : i32
    %c0_i32_0 = arith.constant 0 : i32
    %c0_i32_1 = arith.constant 0 : i32
    %c0_i32_2 = arith.constant 0 : i32
    return %c0_i32, %c0_i32_0, %c0_i32_1 : i32, i32, i32
  }
  func.func @transform_5(%arg0: i32) -> (i32, i32) {
    %c0_i32 = arith.constant 0 : i32
    %c0_i32_0 = arith.constant 0 : i32
    %c0_i32_1 = arith.constant 0 : i32
    return %c0_i32, %c0_i32_0 : i32, i32
  }
  func.func @transform_6(%arg0: i32) -> (i32, i32, i32) {
    %c0_i32 = arith.constant 0 : i32
    %c0_i32_0 = arith.constant 0 : i32
    %c0_i32_1 = arith.constant 0 : i32
    %c0_i32_2 = arith.constant 0 : i32
    return %c0_i32, %c0_i32_0, %c0_i32_1 : i32, i32, i32
  }
  func.func @transform_7(%arg0: i32) -> (i32, i32) {
    %c0_i32 = arith.constant 0 : i32
    %c0_i32_0 = arith.constant 0 : i32
    %c0_i32_1 = arith.constant 0 : i32
    return %c0_i32, %c0_i32_0 : i32, i32
  }
  func.func @transform_8(%arg0: i32) -> (i32, i32, i32) {
    %c0_i32 = arith.constant 0 : i32
    %c0_i32_0 = arith.constant 0 : i32
    %c0_i32_1 = arith.constant 0 : i32
    return %arg0, %c0_i32, %c0_i32_0 : i32, i32, i32
  }
}

</mosaic_0001>

<llo_original>
// kernel: multi_encoder_forward.3
$region0: #{multi_encoder_forward.3}
  #allocation0 [shape = 'u32[]', space=smem, size = 0x4, offset = 0x4, fixed_abs, tag = 'smem constant byte address 0x4 - core index']
  #allocation1 [shape = 'u32[144,128]{1,0:T(1,128)}', space=vmem, size = 0x12000, scoped, tag = 'internal scratch']
  %s0 = inlined_call_operand.vmem [shape: bf16[1936,48], index: 0, kind: input, shape index: {}]
  %s1 = inlined_call_operand.vmem [shape: bf16[48,128], index: 1, kind: input, shape index: {}]
  %s2 = inlined_call_operand.vmem [shape: f32[1,128], index: 2, kind: input, shape index: {}]
  %s3 = inlined_call_operand.vmem [shape: bf16[1936,128], index: 3, kind: output, shape index: {}]
  %s4 = sld [smem:[#allocation0]]
  $region45: #{multi_encoder_forward.3} parent=0
    _
  %s6 = ssub.s32 1, %s4
  %s7 = scalar_select 0, %s6, %s4
  loop: start=0, step=1, limit=4
  $region2: #{multi_encoder_forward.3} parent=0 // loop_pre_header
    _
  $region3: #{multi_encoder_forward.3} parent=0 // loop_header
    %s9 = sphi 0, %s13
    %p10 = scmp.ge.s32.totalorder %s9, 4
    %s19 = sphi 0, %s21
    %s22 = sphi 0, %s19
    %s23 = sphi 0, %s22
    %s39 = sphi 0, %s23
    %s43 = sphi 0, %s43
    %s45 = sphi 0, %s43
    %s46 = sphi 0, %s45
    %s60 = sphi 0, %s46
    %s64 = sphi 0, %s64
    %s66 = sphi 0, %s64
    %s67 = sphi 0, %s66
    %s81 = sphi 0, %s67
    %s87 = sphi 0, %s89
    %s90 = sphi 0, %s87
    %s91 = sphi 0, %s90
    %s107 = sphi 0, %s91
  $region4: #{multi_encoder_forward.3} parent=0 // loop_header_branch
    %12 = sbr.rel (%p10) target = $region8
  $region5: #{multi_encoder_forward.3} parent=0 // loop_body
    %s14 = ssub.s32 %s9, 1
    %s15 = ssub.s32 %s9, 2
    %s16 = sadd.s32 %s9, 1
    %s17 = ssub.s32 %s9, %s16
    %p18 = scmp.eq.s32.totalorder %s17, 0
    %s20 = sadd.s32 %s19, 1
    %s21 = scalar_select %p18, %s19, %s20
    %p24 = pneg %p18
    %p25 = scmp.eq.s32.totalorder %s9, 1
    %p26 = por %p24, %p25
    %p27 = scmp.ne.s32.totalorder %s19, %s22
    %p28 = scmp.eq.s32.totalorder %s9, 0
    %p29 = por %p27, %p28
    %p30 = scmp.ne.s32.totalorder %s19, %s22
    %p31 = scmp.eq.s32.totalorder %s14, 1
    %p32 = por %p30, %p31
    %p33 = scmp.ne.s32.totalorder %s22, %s23
    %p34 = scmp.eq.s32.totalorder %s14, 0
    %p35 = por %p33, %p34
    %p36 = scmp.ne.s32.totalorder %s22, %s23
    %p37 = scmp.eq.s32.totalorder %s15, 1
    %p38 = por %p36, %p37
    %p40 = scmp.ne.s32.totalorder %s23, %s39
    %p41 = scmp.eq.s32.totalorder %s15, 0
    %p42 = por %p40, %p41
    %s44 = sadd.s32 %s43, 1
    %p47 = scmp.eq.s32.totalorder %s9, 1
    %p48 = scmp.ne.s32.totalorder %s43, %s45
    %p49 = scmp.eq.s32.totalorder %s9, 0
    %p50 = por %p48, %p49
    %p51 = scmp.ne.s32.totalorder %s43, %s45
    %p52 = scmp.eq.s32.totalorder %s14, 1
    %p53 = por %p51, %p52
    %p54 = scmp.ne.s32.totalorder %s45, %s46
    %p55 = scmp.eq.s32.totalorder %s14, 0
    %p56 = por %p54, %p55
    %p57 = scmp.ne.s32.totalorder %s45, %s46
    %p58 = scmp.eq.s32.totalorder %s15, 1
    %p59 = por %p57, %p58
    %p61 = scmp.ne.s32.totalorder %s46, %s60
    %p62 = scmp.eq.s32.totalorder %s15, 0
    %p63 = por %p61, %p62
    %s65 = sadd.s32 %s64, 1
    %p68 = scmp.eq.s32.totalorder %s9, 1
    %p69 = scmp.ne.s32.totalorder %s64, %s66
    %p70 = scmp.eq.s32.totalorder %s9, 0
    %p71 = por %p69, %p70
    %p72 = scmp.ne.s32.totalorder %s64, %s66
    %p73 = scmp.eq.s32.totalorder %s14, 1
    %p74 = por %p72, %p73
    %p75 = scmp.ne.s32.totalorder %s66, %s67
    %p76 = scmp.eq.s32.totalorder %s14, 0
    %p77 = por %p75, %p76
    %p78 = scmp.ne.s32.totalorder %s66, %s67
    %p79 = scmp.eq.s32.totalorder %s15, 1
    %p80 = por %p78, %p79
    %p82 = scmp.ne.s32.totalorder %s67, %s81
    %p83 = scmp.eq.s32.totalorder %s15, 0
    %p84 = por %p82, %p83
    %s85 = ssub.s32 %s9, %s16
    %p86 = scmp.eq.s32.totalorder %s85, 0
    %s88 = sadd.s32 %s87, 1
    %s89 = scalar_select %p86, %s87, %s88
    %p92 = pneg %p86
    %p93 = scmp.eq.s32.totalorder %s9, 1
    %p94 = por %p92, %p93
    %p95 = scmp.ne.s32.totalorder %s87, %s90
    %p96 = scmp.eq.s32.totalorder %s9, 0
    %p97 = por %p95, %p96
    %p98 = scmp.ne.s32.totalorder %s87, %s90
    %p99 = scmp.eq.s32.totalorder %s14, 1
    %p100 = por %p98, %p99
    %p101 = scmp.ne.s32.totalorder %s90, %s91
    %p102 = scmp.eq.s32.totalorder %s14, 0
    %p103 = por %p101, %p102
    %p104 = scmp.ne.s32.totalorder %s90, %s91
    %p105 = scmp.eq.s32.totalorder %s15, 1
    %p106 = por %p104, %p105
    %p108 = scmp.ne.s32.totalorder %s91, %s107
    %p109 = scmp.eq.s32.totalorder %s15, 0
    %p110 = por %p108, %p109
    %p111 = scmp.le.s32.totalorder 1, %s9
    %p112 = scmp.lt.s32.totalorder %s9, 3
    %p113 = pnand %p111, %p112
    %p114 = pneg %p113
    // Predicated region
    $region9: #{multi_encoder_forward.3} parent=5 // pred_check
      _
    $region10: #{multi_encoder_forward.3} parent=5 // pred_check_branch
      %116 = sbr.rel (%p113) target = $region12
    $region11: #{multi_encoder_forward.3} parent=5 // pred_region
      %s117 = ssub.s32 %s9, 1
      // Predicated region
      $region13: #{multi_encoder_forward.3} parent=11 // pred_check
        %p118 = pneg %p56
      $region14: #{multi_encoder_forward.3} parent=11 // pred_check_branch
        %120 = sbr.rel (%p118) target = $region16
      $region15: #{multi_encoder_forward.3} parent=11 // pred_region
        _
      $region16: #{multi_encoder_forward.3} parent=11 // pred_fallthru
        _
      // Predicated region
      $region17: #{multi_encoder_forward.3} parent=11 // pred_check
        %p121 = pneg %p77
      $region18: #{multi_encoder_forward.3} parent=11 // pred_check_branch
        %123 = sbr.rel (%p121) target = $region20
      $region19: #{multi_encoder_forward.3} parent=11 // pred_region
        _
      $region20: #{multi_encoder_forward.3} parent=11 // pred_fallthru
        _
    $region12: #{multi_encoder_forward.3} parent=5 // pred_fallthru
      _
    %p124 = scmp.lt.s32.totalorder %s9, 2
    // Predicated region
    $region21: #{multi_encoder_forward.3} parent=5 // pred_check
      %p125 = pneg %p124
    $region22: #{multi_encoder_forward.3} parent=5 // pred_check_branch
      %127 = sbr.rel (%p125) target = $region24
    $region23: #{multi_encoder_forward.3} parent=5 // pred_region
      // Predicated region
      $region25: #{multi_encoder_forward.3} parent=23 // pred_check
        %p128 = pneg %p29
      $region26: #{multi_encoder_forward.3} parent=23 // pred_check_branch
        %130 = sbr.rel (%p128) target = $region28
      $region27: #{multi_encoder_forward.3} parent=23 // pred_region
        %s131 = smul.u32 121, %s9
        %p132 = scmp.lt.s32.totalorder %s131, 241
        %s133 = scalar_select %p132, %s131, 241
        %s134 = smul.addr %s133, 4
        %s135 = scalar_lea.vmem %s0, %s134
        %s136 = smul.u32 121, %s9
      $region28: #{multi_encoder_forward.3} parent=23 // pred_fallthru
        _
    $region24: #{multi_encoder_forward.3} parent=5 // pred_fallthru
      _
    %p137 = scmp.le.s32.totalorder 1, %s9
    %p138 = scmp.lt.s32.totalorder %s9, 3
    %p139 = pnand %p137, %p138
    %p140 = pneg %p139
    // Predicated region
    $region29: #{multi_encoder_forward.3} parent=5 // pred_check
      _
    $region30: #{multi_encoder_forward.3} parent=5 // pred_check_branch
      %142 = sbr.rel (%p139) target = $region32
    $region31: #{multi_encoder_forward.3} parent=5 // pred_region
      %s143 = ssub.s32 %s9, 1
      %s144 = smul.u32 121, %s14
      %p145 = scmp.lt.s32.totalorder %s144, 241
      %s146 = scalar_select %p145, %s144, 241
      %s147 = smul.addr %s146, 4
      %s148 = scalar_lea.vmem %s0, %s147
      %p149 = pneg %p35
      %p150 = pneg %p32
      %p151 = pneg %p56
      %p152 = pneg %p53
      %p153 = pneg %p77
      %p154 = pneg %p74
      %p155 = pneg %p103
      %p156 = pneg %p100
      %s157 = smul.u32 121, %s14
      %p158 = scmp.lt.s32.totalorder %s157, 241
      %s159 = scalar_select %p158, %s157, 241
      %s160 = smul.addr %s159, 4
      %s161 = scalar_lea.vmem %s3, %s160
      %s162 = smul.u32 121, %s14
      %p163 = scmp.lt.s32.totalorder %s162, 241
      %s164 = scalar_select %p163, %s162, 241
      %s165 = smul.addr %s164, 4
      %s166 = scalar_lea.vmem %s0, %s165
      %s167 = smul.u32 121, %s14
      %s168 = smul.u32 121, %s14
      %p169 = scmp.lt.s32.totalorder %s168, 241
      %s170 = scalar_select %p169, %s168, 241
      %s171 = smul.addr %s170, 4
      %s172 = scalar_lea.vmem %s3, %s171
      %s173 = smul.u32 121, %s14
      %v175 = vld [vmem:[%s166] sm:$0xf]
      %v176 = vld [vmem:[%s166 + $0x4] sm:$0xf]
      %v177 = vld [vmem:[%s166 + $0x8] sm:$0xf]
      %v178 = vld [vmem:[%s166 + $0xc] sm:$0xf]
      %v179 = vld [vmem:[%s166 + $0x10] sm:$0xf]
      %v180 = vld [vmem:[%s166 + $0x14] sm:$0xf]
      %v181 = vld [vmem:[%s166 + $0x18] sm:$0xf]
      %v182 = vld [vmem:[%s166 + $0x1c] sm:$0xf]
      %v183 = vld [vmem:[%s166 + $0x20] sm:$0xf]
      %v184 = vld [vmem:[%s166 + $0x24] sm:$0xf]
      %v185 = vld [vmem:[%s166 + $0x28] sm:$0xf]
      %v186 = vld [vmem:[%s166 + $0x2c] sm:$0xf]
      %v187 = vld [vmem:[%s166 + $0x30] sm:$0xf]
      %v188 = vld [vmem:[%s166 + $0x34] sm:$0xf]
      %v189 = vld [vmem:[%s166 + $0x38] sm:$0xf]
      %v190 = vld [vmem:[%s166 + $0x3c] sm:$0xf]
      %v191 = vld [vmem:[%s166 + $0x40] sm:$0xf]
      %v192 = vld [vmem:[%s166 + $0x44] sm:$0xf]
      %v193 = vld [vmem:[%s166 + $0x48] sm:$0xf]
      %v194 = vld [vmem:[%s166 + $0x4c] sm:$0xf]
      %v195 = vld [vmem:[%s166 + $0x50] sm:$0xf]
      %v196 = vld [vmem:[%s166 + $0x54] sm:$0xf]
      %v197 = vld [vmem:[%s166 + $0x58] sm:$0xf]
      %v198 = vld [vmem:[%s166 + $0x5c] sm:$0xf]
      %v199 = vld [vmem:[%s166 + $0x60] sm:$0xf]
      %v200 = vld [vmem:[%s166 + $0x64] sm:$0xf]
      %v201 = vld [vmem:[%s166 + $0x68] sm:$0xf]
      %v202 = vld [vmem:[%s166 + $0x6c] sm:$0xf]
      %v203 = vld [vmem:[%s166 + $0x70] sm:$0xf]
      %v204 = vld [vmem:[%s166 + $0x74] sm:$0xf]
      %v205 = vld [vmem:[%s166 + $0x78] sm:$0xf]
      %v206 = vld [vmem:[%s166 + $0x7c] sm:$0xf]
      %v207 = vld [vmem:[%s166 + $0x80] sm:$0xf]
      %v208 = vld [vmem:[%s166 + $0x84] sm:$0xf]
      %v209 = vld [vmem:[%s166 + $0x88] sm:$0xf]
      %v210 = vld [vmem:[%s166 + $0x8c] sm:$0xf]
      %v211 = vld [vmem:[%s166 + $0x90] sm:$0xf]
      %v212 = vld [vmem:[%s166 + $0x94] sm:$0xf]
      %v213 = vld [vmem:[%s166 + $0x98] sm:$0xf]
      %v214 = vld [vmem:[%s166 + $0x9c] sm:$0xf]
      %v215 = vld [vmem:[%s166 + $0xa0] sm:$0xf]
      %v216 = vld [vmem:[%s166 + $0xa4] sm:$0xf]
      %v217 = vld [vmem:[%s166 + $0xa8] sm:$0xf]
      %v218 = vld [vmem:[%s166 + $0xac] sm:$0xf]
      %v219 = vld [vmem:[%s166 + $0xb0] sm:$0xf]
      %v220 = vld [vmem:[%s166 + $0xb4] sm:$0xf]
      %v221 = vld [vmem:[%s166 + $0xb8] sm:$0xf]
      %v222 = vld [vmem:[%s166 + $0xbc] sm:$0xf]
      %v223 = vld [vmem:[%s166 + $0xc0] sm:$0xf]
      %v224 = vld [vmem:[%s166 + $0xc4] sm:$0xf]
      %v225 = vld [vmem:[%s166 + $0xc8] sm:$0xf]
      %v226 = vld [vmem:[%s166 + $0xcc] sm:$0xf]
      %v227 = vld [vmem:[%s166 + $0xd0] sm:$0xf]
      %v228 = vld [vmem:[%s166 + $0xd4] sm:$0xf]
      %v229 = vld [vmem:[%s166 + $0xd8] sm:$0xf]
      %v230 = vld [vmem:[%s166 + $0xdc] sm:$0xf]
      %v231 = vld [vmem:[%s166 + $0xe0] sm:$0xf]
      %v232 = vld [vmem:[%s166 + $0xe4] sm:$0xf]
      %v233 = vld [vmem:[%s166 + $0xe8] sm:$0xf]
      %v234 = vld [vmem:[%s166 + $0xec] sm:$0xf]
      %v235 = vld [vmem:[%s166 + $0xf0] sm:$0xf]
      %v236 = vld [vmem:[%s166 + $0xf4] sm:$0xf]
      %v237 = vld [vmem:[%s166 + $0xf8] sm:$0xf]
      %v238 = vld [vmem:[%s166 + $0xfc] sm:$0xf]
      %v239 = vld [vmem:[%s166 + $0x100] sm:$0xf]
      %v240 = vld [vmem:[%s166 + $0x104] sm:$0xf]
      %v241 = vld [vmem:[%s166 + $0x108] sm:$0xf]
      %v242 = vld [vmem:[%s166 + $0x10c] sm:$0xf]
      %v243 = vld [vmem:[%s166 + $0x110] sm:$0xf]
      %v244 = vld [vmem:[%s166 + $0x114] sm:$0xf]
      %v245 = vld [vmem:[%s166 + $0x118] sm:$0xf]
      %v246 = vld [vmem:[%s166 + $0x11c] sm:$0xf]
      %v247 = vld [vmem:[%s166 + $0x120] sm:$0xf]
      %v248 = vld [vmem:[%s166 + $0x124] sm:$0xf]
      %v249 = vld [vmem:[%s166 + $0x128] sm:$0xf]
      %v250 = vld [vmem:[%s166 + $0x12c] sm:$0xf]
      %v251 = vld [vmem:[%s166 + $0x130] sm:$0xf]
      %v252 = vld [vmem:[%s166 + $0x134] sm:$0xf]
      %v253 = vld [vmem:[%s166 + $0x138] sm:$0xf]
      %v254 = vld [vmem:[%s166 + $0x13c] sm:$0xf]
      %v255 = vld [vmem:[%s166 + $0x140] sm:$0xf]
      %v256 = vld [vmem:[%s166 + $0x144] sm:$0xf]
      %v257 = vld [vmem:[%s166 + $0x148] sm:$0xf]
      %v258 = vld [vmem:[%s166 + $0x14c] sm:$0xf]
      %v259 = vld [vmem:[%s166 + $0x150] sm:$0xf]
      %v260 = vld [vmem:[%s166 + $0x154] sm:$0xf]
      %v261 = vld [vmem:[%s166 + $0x158] sm:$0xf]
      %v262 = vld [vmem:[%s166 + $0x15c] sm:$0xf]
      %v263 = vld [vmem:[%s166 + $0x160] sm:$0xf]
      %v264 = vld [vmem:[%s166 + $0x164] sm:$0xf]
      %v265 = vld [vmem:[%s166 + $0x168] sm:$0xf]
      %v266 = vld [vmem:[%s166 + $0x16c] sm:$0xf]
      %v267 = vld [vmem:[%s166 + $0x170] sm:$0xf]
      %v268 = vld [vmem:[%s166 + $0x174] sm:$0xf]
      %v269 = vld [vmem:[%s166 + $0x178] sm:$0xf]
      %v270 = vld [vmem:[%s166 + $0x17c] sm:$0xf]
      %v271 = vld [vmem:[%s166 + $0x180] sm:$0xf]
      %v272 = vld [vmem:[%s166 + $0x184] sm:$0xf]
      %v273 = vld [vmem:[%s166 + $0x188] sm:$0xf]
      %v274 = vld [vmem:[%s166 + $0x18c] sm:$0xf]
      %v275 = vld [vmem:[%s166 + $0x190] sm:$0xf]
      %v276 = vld [vmem:[%s166 + $0x194] sm:$0xf]
      %v277 = vld [vmem:[%s166 + $0x198] sm:$0xf]
      %v278 = vld [vmem:[%s166 + $0x19c] sm:$0xf]
      %v279 = vld [vmem:[%s166 + $0x1a0] sm:$0xf]
      %v280 = vld [vmem:[%s166 + $0x1a4] sm:$0xf]
      %v281 = vld [vmem:[%s166 + $0x1a8] sm:$0xf]
      %v282 = vld [vmem:[%s166 + $0x1ac] sm:$0xf]
      %v283 = vld [vmem:[%s166 + $0x1b0] sm:$0xf]
      %v284 = vld [vmem:[%s166 + $0x1b4] sm:$0xf]
      %v285 = vld [vmem:[%s166 + $0x1b8] sm:$0xf]
      %v286 = vld [vmem:[%s166 + $0x1bc] sm:$0xf]
      %v287 = vld [vmem:[%s166 + $0x1c0] sm:$0xf]
      %v288 = vld [vmem:[%s166 + $0x1c4] sm:$0xf]
      %v289 = vld [vmem:[%s166 + $0x1c8] sm:$0xf]
      %v290 = vld [vmem:[%s166 + $0x1cc] sm:$0xf]
      %v291 = vld [vmem:[%s166 + $0x1d0] sm:$0xf]
      %v292 = vld [vmem:[%s166 + $0x1d4] sm:$0xf]
      %v293 = vld [vmem:[%s166 + $0x1d8] sm:$0xf]
      %v294 = vld [vmem:[%s166 + $0x1dc] sm:$0xf]
      %v295 = vld [vmem:[%s166 + $0x1e0] sm:$0xf]
      %v296 = vld [vmem:[%s1] sm:$0xf]
      %v297 = vld [vmem:[%s1 + $0x4] sm:$0xf]
      %v298 = vld [vmem:[%s1 + $0x8] sm:$0xf]
      %v299 = vld [vmem:[%s1 + $0xc] sm:$0xf]
      %v300 = vld [vmem:[%s1 + $0x10] sm:$0xf]
      %v301 = vld [vmem:[%s1 + $0x14] sm:$0xf]
      %v302 = vld [vmem:[%s2] sm:$0x1]
      %v304 = vlaneseq
      %v305 = vshrl.u32 %v304, 7
      %v306 = vsub.s32 0, %v305
      %v307 = vrot.slane %v302, %v306
      %v430 = vunpack.c.l.b16 %v175
      %v431 = vunpack.c.l.b16 %v176
      %v432 = vunpack.c.l.b16 %v177
      %v433 = vunpack.c.l.b16 %v178
      %v434 = vunpack.c.l.b16 %v179
      %v435 = vunpack.c.l.b16 %v180
      %v436 = vunpack.c.l.b16 %v181
      %v437 = vunpack.c.l.b16 %v182
      %v438 = vunpack.c.l.b16 %v183
      %v439 = vunpack.c.l.b16 %v184
      %v440 = vunpack.c.l.b16 %v185
      %v441 = vunpack.c.l.b16 %v186
      %v442 = vunpack.c.l.b16 %v187
      %v443 = vunpack.c.l.b16 %v188
      %v444 = vunpack.c.l.b16 %v189
      %v445 = vunpack.c.l.b16 %v190
      %v446 = vunpack.c.l.b16 %v191
      %v447 = vunpack.c.l.b16 %v192
      %v448 = vunpack.c.l.b16 %v193
      %v449 = vunpack.c.l.b16 %v194
      %v450 = vunpack.c.l.b16 %v195
      %v451 = vunpack.c.l.b16 %v196
      %v452 = vunpack.c.l.b16 %v197
      %v453 = vunpack.c.l.b16 %v198
      %v454 = vunpack.c.l.b16 %v199
      %v455 = vunpack.c.l.b16 %v200
      %v456 = vunpack.c.l.b16 %v201
      %v457 = vunpack.c.l.b16 %v202
      %v458 = vunpack.c.l.b16 %v203
      %v459 = vunpack.c.l.b16 %v204
      %v460 = vunpack.c.l.b16 %v205
      %v461 = vunpack.c.l.b16 %v206
      %v462 = vunpack.c.l.b16 %v207
      %v463 = vunpack.c.l.b16 %v208
      %v464 = vunpack.c.l.b16 %v209
      %v465 = vunpack.c.l.b16 %v210
      %v466 = vunpack.c.l.b16 %v211
      %v467 = vunpack.c.l.b16 %v212
      %v468 = vunpack.c.l.b16 %v213
      %v469 = vunpack.c.l.b16 %v214
      %v470 = vunpack.c.l.b16 %v215
      %v471 = vunpack.c.l.b16 %v216
      %v472 = vunpack.c.l.b16 %v217
      %v473 = vunpack.c.l.b16 %v218
      %v474 = vunpack.c.l.b16 %v219
      %v475 = vunpack.c.l.b16 %v220
      %v476 = vunpack.c.l.b16 %v221
      %v477 = vunpack.c.l.b16 %v222
      %v478 = vunpack.c.l.b16 %v223
      %v479 = vunpack.c.l.b16 %v224
      %v480 = vunpack.c.l.b16 %v225
      %v481 = vunpack.c.l.b16 %v226
      %v482 = vunpack.c.l.b16 %v227
      %v483 = vunpack.c.l.b16 %v228
      %v484 = vunpack.c.l.b16 %v229
      %v485 = vunpack.c.l.b16 %v230
      %v486 = vunpack.c.l.b16 %v231
      %v487 = vunpack.c.l.b16 %v232
      %v488 = vunpack.c.l.b16 %v233
      %v489 = vunpack.c.l.b16 %v234
      %v490 = vunpack.c.l.b16 %v235
      %v491 = vunpack.c.l.b16 %v236
      %v492 = vunpack.c.l.b16 %v237
      %v493 = vunpack.c.l.b16 %v238
      %v494 = vunpack.c.l.b16 %v239
      %v495 = vunpack.c.l.b16 %v240
      %v496 = vunpack.c.l.b16 %v241
      %v497 = vunpack.c.l.b16 %v242
      %v498 = vunpack.c.l.b16 %v243
      %v499 = vunpack.c.l.b16 %v244
      %v500 = vunpack.c.l.b16 %v245
      %v501 = vunpack.c.l.b16 %v246
      %v502 = vunpack.c.l.b16 %v247
      %v503 = vunpack.c.l.b16 %v248
      %v504 = vunpack.c.l.b16 %v249
      %v505 = vunpack.c.l.b16 %v250
      %v506 = vunpack.c.l.b16 %v251
      %v507 = vunpack.c.l.b16 %v252
      %v508 = vunpack.c.l.b16 %v253
      %v509 = vunpack.c.l.b16 %v254
      %v510 = vunpack.c.l.b16 %v255
      %v511 = vunpack.c.l.b16 %v256
      %v512 = vunpack.c.l.b16 %v257
      %v513 = vunpack.c.l.b16 %v258
      %v514 = vunpack.c.l.b16 %v259
      %v515 = vunpack.c.l.b16 %v260
      %v516 = vunpack.c.l.b16 %v261
      %v517 = vunpack.c.l.b16 %v262
      %v518 = vunpack.c.l.b16 %v263
      %v519 = vunpack.c.l.b16 %v264
      %v520 = vunpack.c.l.b16 %v265
      %v521 = vunpack.c.l.b16 %v266
      %v522 = vunpack.c.l.b16 %v267
      %v523 = vunpack.c.l.b16 %v268
      %v524 = vunpack.c.l.b16 %v269
      %v525 = vunpack.c.l.b16 %v270
      %v526 = vunpack.c.l.b16 %v271
      %v527 = vunpack.c.l.b16 %v272
      %v528 = vunpack.c.l.b16 %v273
      %v529 = vunpack.c.l.b16 %v274
      %v530 = vunpack.c.l.b16 %v275
      %v531 = vunpack.c.l.b16 %v276
      %v532 = vunpack.c.l.b16 %v277
      %v533 = vunpack.c.l.b16 %v278
      %v534 = vunpack.c.l.b16 %v279
      %v535 = vunpack.c.l.b16 %v280
      %v536 = vunpack.c.l.b16 %v281
      %v537 = vunpack.c.l.b16 %v282
      %v538 = vunpack.c.l.b16 %v283
      %v539 = vunpack.c.l.b16 %v284
      %v540 = vunpack.c.l.b16 %v285
      %v541 = vunpack.c.l.b16 %v286
      %v542 = vunpack.c.l.b16 %v287
      %v543 = vunpack.c.l.b16 %v288
      %v544 = vunpack.c.l.b16 %v289
      %v545 = vunpack.c.l.b16 %v290
      %v546 = vunpack.c.l.b16 %v291
      %v547 = vunpack.c.l.b16 %v292
      %v548 = vunpack.c.l.b16 %v293
      %v549 = vunpack.c.l.b16 %v294
      %v550 = vunpack.c.l.b16 %v295
      %v551 = vpack.c.b16 %v431, %v430
      %v552 = vpack.c.b16 %v433, %v432
      %v553 = vpack.c.b16 %v435, %v434
      %v554 = vpack.c.b16 %v437, %v436
      %v555 = vpack.c.b16 %v439, %v438
      %v556 = vpack.c.b16 %v441, %v440
      %v557 = vpack.c.b16 %v443, %v442
      %v558 = vpack.c.b16 %v445, %v444
      %v559 = vpack.c.b16 %v447, %v446
      %v560 = vpack.c.b16 %v449, %v448
      %v561 = vpack.c.b16 %v451, %v450
      %v562 = vpack.c.b16 %v453, %v452
      %v563 = vpack.c.b16 %v455, %v454
      %v564 = vpack.c.b16 %v457, %v456
      %v565 = vpack.c.b16 %v459, %v458
      %v566 = vpack.c.b16 %v461, %v460
      %v567 = vpack.c.b16 %v463, %v462
      %v568 = vpack.c.b16 %v465, %v464
      %v569 = vpack.c.b16 %v467, %v466
      %v570 = vpack.c.b16 %v469, %v468
      %v571 = vpack.c.b16 %v471, %v470
      %v572 = vpack.c.b16 %v473, %v472
      %v573 = vpack.c.b16 %v475, %v474
      %v574 = vpack.c.b16 %v477, %v476
      %v575 = vpack.c.b16 %v479, %v478
      %v576 = vpack.c.b16 %v481, %v480
      %v577 = vpack.c.b16 %v483, %v482
      %v578 = vpack.c.b16 %v485, %v484
      %v579 = vpack.c.b16 %v487, %v486
      %v580 = vpack.c.b16 %v489, %v488
      %v581 = vpack.c.b16 %v491, %v490
      %v582 = vpack.c.b16 %v493, %v492
      %v583 = vpack.c.b16 %v495, %v494
      %v584 = vpack.c.b16 %v497, %v496
      %v585 = vpack.c.b16 %v499, %v498
      %v586 = vpack.c.b16 %v501, %v500
      %v587 = vpack.c.b16 %v503, %v502
      %v588 = vpack.c.b16 %v505, %v504
      %v589 = vpack.c.b16 %v507, %v506
      %v590 = vpack.c.b16 %v509, %v508
      %v591 = vpack.c.b16 %v511, %v510
      %v592 = vpack.c.b16 %v513, %v512
      %v593 = vpack.c.b16 %v515, %v514
      %v594 = vpack.c.b16 %v517, %v516
      %v595 = vpack.c.b16 %v519, %v518
      %v596 = vpack.c.b16 %v521, %v520
      %v597 = vpack.c.b16 %v523, %v522
      %v598 = vpack.c.b16 %v525, %v524
      %v599 = vpack.c.b16 %v527, %v526
      %v600 = vpack.c.b16 %v529, %v528
      %v601 = vpack.c.b16 %v531, %v530
      %v602 = vpack.c.b16 %v533, %v532
      %v603 = vpack.c.b16 %v535, %v534
      %v604 = vpack.c.b16 %v537, %v536
      %v605 = vpack.c.b16 %v539, %v538
      %v606 = vpack.c.b16 %v541, %v540
      %v607 = vpack.c.b16 %v543, %v542
      %v608 = vpack.c.b16 %v545, %v544
      %v609 = vpack.c.b16 %v547, %v546
      %v610 = vpack.c.b16 %v549, %v548
      %v611 = vpack.c.b16 %v550, %v550
      %v618 = vunpack.c.l.b16 %v296
      %v619 = vunpack.c.l.b16 %v297
      %v620 = vunpack.c.l.b16 %v298
      %v621 = vunpack.c.l.b16 %v299
      %v622 = vunpack.c.l.b16 %v300
      %v623 = vunpack.c.l.b16 %v301
      %v624 = vpack.c.b16 %v619, %v618
      %v625 = vpack.c.b16 %v621, %v620
      %v626 = vpack.c.b16 %v623, %v622
      %vm630 = vcmask 392192
      %v632 = vsel %vm630, %v551, 0
      %v635 = vsel %vm630, %v552, 0
      %v638 = vsel %vm630, %v553, 0
      %v641 = vsel %vm630, %v554, 0
      %v644 = vsel %vm630, %v555, 0
      %v647 = vsel %vm630, %v556, 0
      %v650 = vsel %vm630, %v557, 0
      %v653 = vsel %vm630, %v558, 0
      %v656 = vsel %vm630, %v559, 0
      %v659 = vsel %vm630, %v560, 0
      %v662 = vsel %vm630, %v561, 0
      %v665 = vsel %vm630, %v562, 0
      %v668 = vsel %vm630, %v563, 0
      %v671 = vsel %vm630, %v564, 0
      %v674 = vsel %vm630, %v565, 0
      %v677 = vsel %vm630, %v566, 0
      %v680 = vsel %vm630, %v567, 0
      %v683 = vsel %vm630, %v568, 0
      %v686 = vsel %vm630, %v569, 0
      %v689 = vsel %vm630, %v570, 0
      %v692 = vsel %vm630, %v571, 0
      %v695 = vsel %vm630, %v572, 0
      %v698 = vsel %vm630, %v573, 0
      %v701 = vsel %vm630, %v574, 0
      %v704 = vsel %vm630, %v575, 0
      %v707 = vsel %vm630, %v576, 0
      %v710 = vsel %vm630, %v577, 0
      %v713 = vsel %vm630, %v578, 0
      %v716 = vsel %vm630, %v579, 0
      %v719 = vsel %vm630, %v580, 0
      %v722 = vsel %vm630, %v581, 0
      %v725 = vsel %vm630, %v582, 0
      %v728 = vsel %vm630, %v583, 0
      %v731 = vsel %vm630, %v584, 0
      %v734 = vsel %vm630, %v585, 0
      %v737 = vsel %vm630, %v586, 0
      %v740 = vsel %vm630, %v587, 0
      %v743 = vsel %vm630, %v588, 0
      %v746 = vsel %vm630, %v589, 0
      %v749 = vsel %vm630, %v590, 0
      %v752 = vsel %vm630, %v591, 0
      %v755 = vsel %vm630, %v592, 0
      %v758 = vsel %vm630, %v593, 0
      %v761 = vsel %vm630, %v594, 0
      %v764 = vsel %vm630, %v595, 0
      %v767 = vsel %vm630, %v596, 0
      %v770 = vsel %vm630, %v597, 0
      %v773 = vsel %vm630, %v598, 0
      %v776 = vsel %vm630, %v599, 0
      %v779 = vsel %vm630, %v600, 0
      %v782 = vsel %vm630, %v601, 0
      %v785 = vsel %vm630, %v602, 0
      %v788 = vsel %vm630, %v603, 0
      %v791 = vsel %vm630, %v604, 0
      %v794 = vsel %vm630, %v605, 0
      %v797 = vsel %vm630, %v606, 0
      %v800 = vsel %vm630, %v607, 0
      %v803 = vsel %vm630, %v608, 0
      %v806 = vsel %vm630, %v609, 0
      %v809 = vsel %vm630, %v610, 0
      %v812 = vsel %vm630, %v611, 0
      %814 = vmatprep.subr.bf16.mxu0 0
      %815 = vmatpush1.bf16.msra.mxu0 %v624
      %816 = vmatprep.subr.bf16.mxu0 0
      %817 = vmatpush1.bf16.msra.mxu0 %v625
      %818 = vmatprep.subr.bf16.mxu0 0
      %819 = vmatpush1.bf16.msra.mxu0 %v626
      %820 = vmatprep.subr.bf16.mxu0 0
      %821 = vmatpush1.bf16.msra.mxu0 0
      %822 = vmatprep.subr.bf16.mxu0 0
      %823 = vmatpush1.bf16.msra.mxu0 0
      %824 = vmatprep.subr.bf16.mxu0 0
      %825 = vmatpush1.bf16.msra.mxu0 0
      %826 = vmatprep.subr.bf16.mxu0 0
      %827 = vmatpush1.bf16.msra.mxu0 0
      %828 = vmatprep.subr.bf16.mxu0 0
      %829 = vmatpush1.bf16.msra.mxu0 0
      %830 = vmatprep.subr.bf16.mxu0 0
      %831 = vmatpush1.bf16.msra.mxu0 0
      %832 = vmatprep.subr.bf16.mxu0 0
      %833 = vmatpush1.bf16.msra.mxu0 0
      %834 = vmatprep.subr.bf16.mxu0 0
      %835 = vmatpush1.bf16.msra.mxu0 0
      %836 = vmatprep.subr.bf16.mxu0 0
      %837 = vmatpush1.bf16.msra.mxu0 0
      %838 = vmatprep.subr.bf16.mxu0 0
      %839 = vmatpush1.bf16.msra.mxu0 0
      %840 = vmatprep.subr.bf16.mxu0 0
      %841 = vmatpush1.bf16.msra.mxu0 0
      %842 = vmatprep.subr.bf16.mxu0 0
      %843 = vmatpush1.bf16.msra.mxu0 0
      %844 = vmatprep.subr.bf16.mxu0 0
      %845 = vmatpush1.bf16.msra.mxu0 0
      %846 = vmatprep.mubr.bf16.mxu0 0
      %847 = vmatmul.mubr.bf16.gmra.mrb[0].mxu0 %v632
      %v848 = vpop.f32.mrb[0].mxu0
      %v849 = vadd.f32 %v307, %v848
      %v850 = vpop.f32.mrb[0].mxu0
      %v851 = vpop.f32.mrb[0].mxu0
      %v852 = vadd.f32 %v307, %v851
      %v853 = vpop.f32.mrb[0].mxu0
      %854 = vmatprep.mubr.bf16.mxu0 0
      %855 = vmatmul.mubr.bf16.gmra.mrb[0].mxu0 %v635
      %v856 = vpop.f32.mrb[0].mxu0
      %v857 = vadd.f32 %v307, %v856
      %v858 = vpop.f32.mrb[0].mxu0
      %v859 = vpop.f32.mrb[0].mxu0
      %v860 = vadd.f32 %v307, %v859
      %v861 = vpop.f32.mrb[0].mxu0
      %862 = vmatprep.mubr.bf16.mxu0 0
      %863 = vmatmul.mubr.bf16.gmra.mrb[0].mxu0 %v638
      %v864 = vpop.f32.mrb[0].mxu0
      %v865 = vadd.f32 %v307, %v864
      %v866 = vpop.f32.mrb[0].mxu0
      %v867 = vpop.f32.mrb[0].mxu0
      %v868 = vadd.f32 %v307, %v867
      %v869 = vpop.f32.mrb[0].mxu0
      %870 = vmatprep.mubr.bf16.mxu0 0
      %871 = vmatmul.mubr.bf16.gmra.mrb[0].mxu0 %v641
      %v872 = vpop.f32.mrb[0].mxu0
      %v873 = vadd.f32 %v307, %v872
      %v874 = vpop.f32.mrb[0].mxu0
      %v875 = vpop.f32.mrb[0].mxu0
      %v876 = vadd.f32 %v307, %v875
      %v877 = vpop.f32.mrb[0].mxu0
      %878 = vmatprep.mubr.bf16.mxu0 0
      %879 = vmatmul.mubr.bf16.gmra.mrb[0].mxu0 %v644
      %v880 = vpop.f32.mrb[0].mxu0
      %v881 = vadd.f32 %v307, %v880
      %v882 = vpop.f32.mrb[0].mxu0
      %v883 = vpop.f32.mrb[0].mxu0
      %v884 = vadd.f32 %v307, %v883
      %v885 = vpop.f32.mrb[0].mxu0
      %886 = vmatprep.mubr.bf16.mxu0 0
      %887 = vmatmul.mubr.bf16.gmra.mrb[0].mxu0 %v647
      %v888 = vpop.f32.mrb[0].mxu0
      %v889 = vadd.f32 %v307, %v888
      %v890 = vpop.f32.mrb[0].mxu0
      %v891 = vpop.f32.mrb[0].mxu0
      %v892 = vadd.f32 %v307, %v891
      %v893 = vpop.f32.mrb[0].mxu0
      %894 = vmatprep.mubr.bf16.mxu0 0
      %895 = vmatmul.mubr.bf16.gmra.mrb[0].mxu0 %v650
      %v896 = vpop.f32.mrb[0].mxu0
      %v897 = vadd.f32 %v307, %v896
      %v898 = vpop.f32.mrb[0].mxu0
      %v899 = vpop.f32.mrb[0].mxu0
      %v900 = vadd.f32 %v307, %v899
      %v901 = vpop.f32.mrb[0].mxu0
      %902 = vmatprep.mubr.bf16.mxu0 0
      %903 = vmatmul.mubr.bf16.gmra.mrb[0].mxu0 %v653
      %v904 = vpop.f32.mrb[0].mxu0
      %v905 = vadd.f32 %v307, %v904
      %v906 = vpop.f32.mrb[0].mxu0
      %v907 = vpop.f32.mrb[0].mxu0
      %v908 = vadd.f32 %v307, %v907
      %v909 = vpop.f32.mrb[0].mxu0
      %910 = vmatprep.mubr.bf16.mxu0 0
      %911 = vmatmul.mubr.bf16.gmra.mrb[0].mxu0 %v656
      %v912 = vpop.f32.mrb[0].mxu0
      %v913 = vadd.f32 %v307, %v912
      %v914 = vpop.f32.mrb[0].mxu0
      %v915 = vpop.f32.mrb[0].mxu0
      %v916 = vadd.f32 %v307, %v915
      %v917 = vpop.f32.mrb[0].mxu0
      %918 = vmatprep.mubr.bf16.mxu0 0
      %919 = vmatmul.mubr.bf16.gmra.mrb[0].mxu0 %v659
      %v920 = vpop.f32.mrb[0].mxu0
      %v921 = vadd.f32 %v307, %v920
      %v922 = vpop.f32.mrb[0].mxu0
      %v923 = vpop.f32.mrb[0].mxu0
      %v924 = vadd.f32 %v307, %v923
      %v925 = vpop.f32.mrb[0].mxu0
      %926 = vmatprep.mubr.bf16.mxu0 0
      %927 = vmatmul.mubr.bf16.gmra.mrb[0].mxu0 %v662
      %v928 = vpop.f32.mrb[0].mxu0
      %v929 = vadd.f32 %v307, %v928
      %v930 = vpop.f32.mrb[0].mxu0
      %v931 = vpop.f32.mrb[0].mxu0
      %v932 = vadd.f32 %v307, %v931
      %v933 = vpop.f32.mrb[0].mxu0
      %934 = vmatprep.mubr.bf16.mxu0 0
      %935 = vmatmul.mubr.bf16.gmra.mrb[0].mxu0 %v665
      %v936 = vpop.f32.mrb[0].mxu0
      %v937 = vadd.f32 %v307, %v936
      %v938 = vpop.f32.mrb[0].mxu0
      %v939 = vpop.f32.mrb[0].mxu0
      %v940 = vadd.f32 %v307, %v939
      %v941 = vpop.f32.mrb[0].mxu0
      %942 = vmatprep.mubr.bf16.mxu0 0
      %943 = vmatmul.mubr.bf16.gmra.mrb[0].mxu0 %v668
      %v944 = vpop.f32.mrb[0].mxu0
      %v945 = vadd.f32 %v307, %v944
      %v946 = vpop.f32.mrb[0].mxu0
      %v947 = vpop.f32.mrb[0].mxu0
      %v948 = vadd.f32 %v307, %v947
      %v949 = vpop.f32.mrb[0].mxu0
      %950 = vmatprep.mubr.bf16.mxu0 0
      %951 = vmatmul.mubr.bf16.gmra.mrb[0].mxu0 %v671
      %v952 = vpop.f32.mrb[0].mxu0
      %v953 = vadd.f32 %v307, %v952
      %v954 = vpop.f32.mrb[0].mxu0
      %v955 = vpop.f32.mrb[0].mxu0
      %v956 = vadd.f32 %v307, %v955
      %v957 = vpop.f32.mrb[0].mxu0
      %958 = vmatprep.mubr.bf16.mxu0 0
      %959 = vmatmul.mubr.bf16.gmra.mrb[0].mxu0 %v674
      %v960 = vpop.f32.mrb[0].mxu0
      %v961 = vadd.f32 %v307, %v960
      %v962 = vpop.f32.mrb[0].mxu0
      %v963 = vpop.f32.mrb[0].mxu0
      %v964 = vadd.f32 %v307, %v963
      %v965 = vpop.f32.mrb[0].mxu0
      %966 = vmatprep.mubr.bf16.mxu0 0
      %967 = vmatmul.mubr.bf16.gmra.mrb[0].mxu0 %v677
      %v968 = vpop.f32.mrb[0].mxu0
      %v969 = vadd.f32 %v307, %v968
      %v970 = vpop.f32.mrb[0].mxu0
      %v971 = vpop.f32.mrb[0].mxu0
      %v972 = vadd.f32 %v307, %v971
      %v973 = vpop.f32.mrb[0].mxu0
      %974 = vmatprep.mubr.bf16.mxu0 0
      %975 = vmatmul.mubr.bf16.gmra.mrb[0].mxu0 %v680
      %v976 = vpop.f32.mrb[0].mxu0
      %v977 = vadd.f32 %v307, %v976
      %v978 = vpop.f32.mrb[0].mxu0
      %v979 = vpop.f32.mrb[0].mxu0
      %v980 = vadd.f32 %v307, %v979
      %v981 = vpop.f32.mrb[0].mxu0
      %982 = vmatprep.mubr.bf16.mxu0 0
      %983 = vmatmul.mubr.bf16.gmra.mrb[0].mxu0 %v683
      %v984 = vpop.f32.mrb[0].mxu0
      %v985 = vadd.f32 %v307, %v984
      %v986 = vpop.f32.mrb[0].mxu0
      %v987 = vpop.f32.mrb[0].mxu0
      %v988 = vadd.f32 %v307, %v987
      %v989 = vpop.f32.mrb[0].mxu0
      %990 = vmatprep.mubr.bf16.mxu0 0
      %991 = vmatmul.mubr.bf16.gmra.mrb[0].mxu0 %v686
      %v992 = vpop.f32.mrb[0].mxu0
      %v993 = vadd.f32 %v307, %v992
      %v994 = vpop.f32.mrb[0].mxu0
      %v995 = vpop.f32.mrb[0].mxu0
      %v996 = vadd.f32 %v307, %v995
      %v997 = vpop.f32.mrb[0].mxu0
      %998 = vmatprep.mubr.bf16.mxu0 0
      %999 = vmatmul.mubr.bf16.gmra.mrb[0].mxu0 %v689
      %v1000 = vpop.f32.mrb[0].mxu0
      %v1001 = vadd.f32 %v307, %v1000
      %v1002 = vpop.f32.mrb[0].mxu0
      %v1003 = vpop.f32.mrb[0].mxu0
      %v1004 = vadd.f32 %v307, %v1003
      %v1005 = vpop.f32.mrb[0].mxu0
      %1006 = vmatprep.mubr.bf16.mxu0 0
      %1007 = vmatmul.mubr.bf16.gmra.mrb[0].mxu0 %v692
      %v1008 = vpop.f32.mrb[0].mxu0
      %v1009 = vadd.f32 %v307, %v1008
      %v1010 = vpop.f32.mrb[0].mxu0
      %v1011 = vpop.f32.mrb[0].mxu0
      %v1012 = vadd.f32 %v307, %v1011
      %v1013 = vpop.f32.mrb[0].mxu0
      %1014 = vmatprep.mubr.bf16.mxu0 0
      %1015 = vmatmul.mubr.bf16.gmra.mrb[0].mxu0 %v695
      %v1016 = vpop.f32.mrb[0].mxu0
      %v1017 = vadd.f32 %v307, %v1016
      %v1018 = vpop.f32.mrb[0].mxu0
      %v1019 = vpop.f32.mrb[0].mxu0
      %v1020 = vadd.f32 %v307, %v1019
      %v1021 = vpop.f32.mrb[0].mxu0
      %1022 = vmatprep.mubr.bf16.mxu0 0
      %1023 = vmatmul.mubr.bf16.gmra.mrb[0].mxu0 %v698
      %v1024 = vpop.f32.mrb[0].mxu0
      %v1025 = vadd.f32 %v307, %v1024
      %v1026 = vpop.f32.mrb[0].mxu0
      %v1027 = vpop.f32.mrb[0].mxu0
      %v1028 = vadd.f32 %v307, %v1027
      %v1029 = vpop.f32.mrb[0].mxu0
      %1030 = vmatprep.mubr.bf16.mxu0 0
      %1031 = vmatmul.mubr.bf16.gmra.mrb[0].mxu0 %v701
      %v1032 = vpop.f32.mrb[0].mxu0
      %v1033 = vadd.f32 %v307, %v1032
      %v1034 = vpop.f32.mrb[0].mxu0
      %v1035 = vpop.f32.mrb[0].mxu0
      %v1036 = vadd.f32 %v307, %v1035
      %v1037 = vpop.f32.mrb[0].mxu0
      %1038 = vmatprep.mubr.bf16.mxu0 0
      %1039 = vmatmul.mubr.bf16.gmra.mrb[0].mxu0 %v704
      %v1040 = vpop.f32.mrb[0].mxu0
      %v1041 = vadd.f32 %v307, %v1040
      %v1042 = vpop.f32.mrb[0].mxu0
      %v1043 = vpop.f32.mrb[0].mxu0
      %v1044 = vadd.f32 %v307, %v1043
      %v1045 = vpop.f32.mrb[0].mxu0
      %1046 = vmatprep.mubr.bf16.mxu0 0
      %1047 = vmatmul.mubr.bf16.gmra.mrb[0].mxu0 %v707
      %v1048 = vpop.f32.mrb[0].mxu0
      %v1049 = vadd.f32 %v307, %v1048
      %v1050 = vpop.f32.mrb[0].mxu0
      %v1051 = vpop.f32.mrb[0].mxu0
      %v1052 = vadd.f32 %v307, %v1051
      %v1053 = vpop.f32.mrb[0].mxu0
      %1054 = vmatprep.mubr.bf16.mxu0 0
      %1055 = vmatmul.mubr.bf16.gmra.mrb[0].mxu0 %v710
      %v1056 = vpop.f32.mrb[0].mxu0
      %v1057 = vadd.f32 %v307, %v1056
      %v1058 = vpop.f32.mrb[0].mxu0
      %v1059 = vpop.f32.mrb[0].mxu0
      %v1060 = vadd.f32 %v307, %v1059
      %v1061 = vpop.f32.mrb[0].mxu0
      %1062 = vmatprep.mubr.bf16.mxu0 0
      %1063 = vmatmul.mubr.bf16.gmra.mrb[0].mxu0 %v713
      %v1064 = vpop.f32.mrb[0].mxu0
      %v1065 = vadd.f32 %v307, %v1064
      %v1066 = vpop.f32.mrb[0].mxu0
      %v1067 = vpop.f32.mrb[0].mxu0
      %v1068 = vadd.f32 %v307, %v1067
      %v1069 = vpop.f32.mrb[0].mxu0
      %1070 = vmatprep.mubr.bf16.mxu0 0
      %1071 = vmatmul.mubr.bf16.gmra.mrb[0].mxu0 %v716
      %v1072 = vpop.f32.mrb[0].mxu0
      %v1073 = vadd.f32 %v307, %v1072
      %v1074 = vpop.f32.mrb[0].mxu0
      %v1075 = vpop.f32.mrb[0].mxu0
      %v1076 = vadd.f32 %v307, %v1075
      %v1077 = vpop.f32.mrb[0].mxu0
      %1078 = vmatprep.mubr.bf16.mxu0 0
      %1079 = vmatmul.mubr.bf16.gmra.mrb[0].mxu0 %v719
      %v1080 = vpop.f32.mrb[0].mxu0
      %v1081 = vadd.f32 %v307, %v1080
      %v1082 = vpop.f32.mrb[0].mxu0
      %v1083 = vpop.f32.mrb[0].mxu0
      %v1084 = vadd.f32 %v307, %v1083
      %v1085 = vpop.f32.mrb[0].mxu0
      %1086 = vmatprep.mubr.bf16.mxu0 0
      %1087 = vmatmul.mubr.bf16.gmra.mrb[0].mxu0 %v722
      %v1088 = vpop.f32.mrb[0].mxu0
      %v1089 = vadd.f32 %v307, %v1088
      %v1090 = vpop.f32.mrb[0].mxu0
      %v1091 = vpop.f32.mrb[0].mxu0
      %v1092 = vadd.f32 %v307, %v1091
      %v1093 = vpop.f32.mrb[0].mxu0
      %1094 = vmatprep.mubr.bf16.mxu0 0
      %1095 = vmatmul.mubr.bf16.gmra.mrb[0].mxu0 %v725
      %v1096 = vpop.f32.mrb[0].mxu0
      %v1097 = vadd.f32 %v307, %v1096
      %v1098 = vpop.f32.mrb[0].mxu0
      %v1099 = vpop.f32.mrb[0].mxu0
      %v1100 = vadd.f32 %v307, %v1099
      %v1101 = vpop.f32.mrb[0].mxu0
      %1102 = vmatprep.mubr.bf16.mxu0 0
      %1103 = vmatmul.mubr.bf16.gmra.mrb[0].mxu0 %v728
      %v1104 = vpop.f32.mrb[0].mxu0
      %v1105 = vadd.f32 %v307, %v1104
      %v1106 = vpop.f32.mrb[0].mxu0
      %v1107 = vpop.f32.mrb[0].mxu0
      %v1108 = vadd.f32 %v307, %v1107
      %v1109 = vpop.f32.mrb[0].mxu0
      %1110 = vmatprep.mubr.bf16.mxu0 0
      %1111 = vmatmul.mubr.bf16.gmra.mrb[0].mxu0 %v731
      %v1112 = vpop.f32.mrb[0].mxu0
      %v1113 = vadd.f32 %v307, %v1112
      %v1114 = vpop.f32.mrb[0].mxu0
      %v1115 = vpop.f32.mrb[0].mxu0
      %v1116 = vadd.f32 %v307, %v1115
      %v1117 = vpop.f32.mrb[0].mxu0
      %1118 = vmatprep.mubr.bf16.mxu0 0
      %1119 = vmatmul.mubr.bf16.gmra.mrb[0].mxu0 %v734
      %v1120 = vpop.f32.mrb[0].mxu0
      %v1121 = vadd.f32 %v307, %v1120
      %v1122 = vpop.f32.mrb[0].mxu0
      %v1123 = vpop.f32.mrb[0].mxu0
      %v1124 = vadd.f32 %v307, %v1123
      %v1125 = vpop.f32.mrb[0].mxu0
      %1126 = vmatprep.mubr.bf16.mxu0 0
      %1127 = vmatmul.mubr.bf16.gmra.mrb[0].mxu0 %v737
      %v1128 = vpop.f32.mrb[0].mxu0
      %v1129 = vadd.f32 %v307, %v1128
      %v1130 = vpop.f32.mrb[0].mxu0
      %v1131 = vpop.f32.mrb[0].mxu0
      %v1132 = vadd.f32 %v307, %v1131
      %v1133 = vpop.f32.mrb[0].mxu0
      %1134 = vmatprep.mubr.bf16.mxu0 0
      %1135 = vmatmul.mubr.bf16.gmra.mrb[0].mxu0 %v740
      %v1136 = vpop.f32.mrb[0].mxu0
      %v1137 = vadd.f32 %v307, %v1136
      %v1138 = vpop.f32.mrb[0].mxu0
      %v1139 = vpop.f32.mrb[0].mxu0
      %v1140 = vadd.f32 %v307, %v1139
      %v1141 = vpop.f32.mrb[0].mxu0
      %1142 = vmatprep.mubr.bf16.mxu0 0
      %1143 = vmatmul.mubr.bf16.gmra.mrb[0].mxu0 %v743
      %v1144 = vpop.f32.mrb[0].mxu0
      %v1145 = vadd.f32 %v307, %v1144
      %v1146 = vpop.f32.mrb[0].mxu0
      %v1147 = vpop.f32.mrb[0].mxu0
      %v1148 = vadd.f32 %v307, %v1147
      %v1149 = vpop.f32.mrb[0].mxu0
      %1150 = vmatprep.mubr.bf16.mxu0 0
      %1151 = vmatmul.mubr.bf16.gmra.mrb[0].mxu0 %v746
      %v1152 = vpop.f32.mrb[0].mxu0
      %v1153 = vadd.f32 %v307, %v1152
      %v1154 = vpop.f32.mrb[0].mxu0
      %v1155 = vpop.f32.mrb[0].mxu0
      %v1156 = vadd.f32 %v307, %v1155
      %v1157 = vpop.f32.mrb[0].mxu0
      %1158 = vmatprep.mubr.bf16.mxu0 0
      %1159 = vmatmul.mubr.bf16.gmra.mrb[0].mxu0 %v749
      %v1160 = vpop.f32.mrb[0].mxu0
      %v1161 = vadd.f32 %v307, %v1160
      %v1162 = vpop.f32.mrb[0].mxu0
      %v1163 = vpop.f32.mrb[0].mxu0
      %v1164 = vadd.f32 %v307, %v1163
      %v1165 = vpop.f32.mrb[0].mxu0
      %1166 = vmatprep.mubr.bf16.mxu0 0
      %1167 = vmatmul.mubr.bf16.gmra.mrb[0].mxu0 %v752
      %v1168 = vpop.f32.mrb[0].mxu0
      %v1169 = vadd.f32 %v307, %v1168
      %v1170 = vpop.f32.mrb[0].mxu0
      %v1171 = vpop.f32.mrb[0].mxu0
      %v1172 = vadd.f32 %v307, %v1171
      %v1173 = vpop.f32.mrb[0].mxu0
      %1174 = vmatprep.mubr.bf16.mxu0 0
      %1175 = vmatmul.mubr.bf16.gmra.mrb[0].mxu0 %v755
      %v1176 = vpop.f32.mrb[0].mxu0
      %v1177 = vadd.f32 %v307, %v1176
      %v1178 = vpop.f32.mrb[0].mxu0
      %v1179 = vpop.f32.mrb[0].mxu0
      %v1180 = vadd.f32 %v307, %v1179
      %v1181 = vpop.f32.mrb[0].mxu0
      %1182 = vmatprep.mubr.bf16.mxu0 0
      %1183 = vmatmul.mubr.bf16.gmra.mrb[0].mxu0 %v758
      %v1184 = vpop.f32.mrb[0].mxu0
      %v1185 = vadd.f32 %v307, %v1184
      %v1186 = vpop.f32.mrb[0].mxu0
      %v1187 = vpop.f32.mrb[0].mxu0
      %v1188 = vadd.f32 %v307, %v1187
      %v1189 = vpop.f32.mrb[0].mxu0
      %1190 = vmatprep.mubr.bf16.mxu0 0
      %1191 = vmatmul.mubr.bf16.gmra.mrb[0].mxu0 %v761
      %v1192 = vpop.f32.mrb[0].mxu0
      %v1193 = vadd.f32 %v307, %v1192
      %v1194 = vpop.f32.mrb[0].mxu0
      %v1195 = vpop.f32.mrb[0].mxu0
      %v1196 = vadd.f32 %v307, %v1195
      %v1197 = vpop.f32.mrb[0].mxu0
      %1198 = vmatprep.mubr.bf16.mxu0 0
      %1199 = vmatmul.mubr.bf16.gmra.mrb[0].mxu0 %v764
      %v1200 = vpop.f32.mrb[0].mxu0
      %v1201 = vadd.f32 %v307, %v1200
      %v1202 = vpop.f32.mrb[0].mxu0
      %v1203 = vpop.f32.mrb[0].mxu0
      %v1204 = vadd.f32 %v307, %v1203
      %v1205 = vpop.f32.mrb[0].mxu0
      %1206 = vmatprep.mubr.bf16.mxu0 0
      %1207 = vmatmul.mubr.bf16.gmra.mrb[0].mxu0 %v767
      %v1208 = vpop.f32.mrb[0].mxu0
      %v1209 = vadd.f32 %v307, %v1208
      %v1210 = vpop.f32.mrb[0].mxu0
      %v1211 = vpop.f32.mrb[0].mxu0
      %v1212 = vadd.f32 %v307, %v1211
      %v1213 = vpop.f32.mrb[0].mxu0
      %1214 = vmatprep.mubr.bf16.mxu0 0
      %1215 = vmatmul.mubr.bf16.gmra.mrb[0].mxu0 %v770
      %v1216 = vpop.f32.mrb[0].mxu0
      %v1217 = vadd.f32 %v307, %v1216
      %v1218 = vpop.f32.mrb[0].mxu0
      %v1219 = vpop.f32.mrb[0].mxu0
      %v1220 = vadd.f32 %v307, %v1219
      %v1221 = vpop.f32.mrb[0].mxu0
      %1222 = vmatprep.mubr.bf16.mxu0 0
      %1223 = vmatmul.mubr.bf16.gmra.mrb[0].mxu0 %v773
      %v1224 = vpop.f32.mrb[0].mxu0
      %v1225 = vadd.f32 %v307, %v1224
      %v1226 = vpop.f32.mrb[0].mxu0
      %v1227 = vpop.f32.mrb[0].mxu0
      %v1228 = vadd.f32 %v307, %v1227
      %v1229 = vpop.f32.mrb[0].mxu0
      %1230 = vmatprep.mubr.bf16.mxu0 0
      %1231 = vmatmul.mubr.bf16.gmra.mrb[0].mxu0 %v776
      %v1232 = vpop.f32.mrb[0].mxu0
      %v1233 = vadd.f32 %v307, %v1232
      %v1234 = vpop.f32.mrb[0].mxu0
      %v1235 = vpop.f32.mrb[0].mxu0
      %v1236 = vadd.f32 %v307, %v1235
      %v1237 = vpop.f32.mrb[0].mxu0
      %1238 = vmatprep.mubr.bf16.mxu0 0
      %1239 = vmatmul.mubr.bf16.gmra.mrb[0].mxu0 %v779
      %v1240 = vpop.f32.mrb[0].mxu0
      %v1241 = vadd.f32 %v307, %v1240
      %v1242 = vpop.f32.mrb[0].mxu0
      %v1243 = vpop.f32.mrb[0].mxu0
      %v1244 = vadd.f32 %v307, %v1243
      %v1245 = vpop.f32.mrb[0].mxu0
      %1246 = vmatprep.mubr.bf16.mxu0 0
      %1247 = vmatmul.mubr.bf16.gmra.mrb[0].mxu0 %v782
      %v1248 = vpop.f32.mrb[0].mxu0
      %v1249 = vadd.f32 %v307, %v1248
      %v1250 = vpop.f32.mrb[0].mxu0
      %v1251 = vpop.f32.mrb[0].mxu0
      %v1252 = vadd.f32 %v307, %v1251
      %v1253 = vpop.f32.mrb[0].mxu0
      %1254 = vmatprep.mubr.bf16.mxu0 0
      %1255 = vmatmul.mubr.bf16.gmra.mrb[0].mxu0 %v785
      %v1256 = vpop.f32.mrb[0].mxu0
      %v1257 = vadd.f32 %v307, %v1256
      %v1258 = vpop.f32.mrb[0].mxu0
      %v1259 = vpop.f32.mrb[0].mxu0
      %v1260 = vadd.f32 %v307, %v1259
      %v1261 = vpop.f32.mrb[0].mxu0
      %1262 = vmatprep.mubr.bf16.mxu0 0
      %1263 = vmatmul.mubr.bf16.gmra.mrb[0].mxu0 %v788
      %v1264 = vpop.f32.mrb[0].mxu0
      %v1265 = vadd.f32 %v307, %v1264
      %v1266 = vpop.f32.mrb[0].mxu0
      %v1267 = vpop.f32.mrb[0].mxu0
      %v1268 = vadd.f32 %v307, %v1267
      %v1269 = vpop.f32.mrb[0].mxu0
      %1270 = vmatprep.mubr.bf16.mxu0 0
      %1271 = vmatmul.mubr.bf16.gmra.mrb[0].mxu0 %v791
      %v1272 = vpop.f32.mrb[0].mxu0
      %v1273 = vadd.f32 %v307, %v1272
      %v1274 = vpop.f32.mrb[0].mxu0
      %v1275 = vpop.f32.mrb[0].mxu0
      %v1276 = vadd.f32 %v307, %v1275
      %v1277 = vpop.f32.mrb[0].mxu0
      %1278 = vmatprep.mubr.bf16.mxu0 0
      %1279 = vmatmul.mubr.bf16.gmra.mrb[0].mxu0 %v794
      %v1280 = vpop.f32.mrb[0].mxu0
      %v1281 = vadd.f32 %v307, %v1280
      %v1282 = vpop.f32.mrb[0].mxu0
      %v1283 = vpop.f32.mrb[0].mxu0
      %v1284 = vadd.f32 %v307, %v1283
      %v1285 = vpop.f32.mrb[0].mxu0
      %1286 = vmatprep.mubr.bf16.mxu0 0
      %1287 = vmatmul.mubr.bf16.gmra.mrb[0].mxu0 %v797
      %v1288 = vpop.f32.mrb[0].mxu0
      %v1289 = vadd.f32 %v307, %v1288
      %v1290 = vpop.f32.mrb[0].mxu0
      %v1291 = vpop.f32.mrb[0].mxu0
      %v1292 = vadd.f32 %v307, %v1291
      %v1293 = vpop.f32.mrb[0].mxu0
      %1294 = vmatprep.mubr.bf16.mxu0 0
      %1295 = vmatmul.mubr.bf16.gmra.mrb[0].mxu0 %v800
      %v1296 = vpop.f32.mrb[0].mxu0
      %v1297 = vadd.f32 %v307, %v1296
      %v1298 = vpop.f32.mrb[0].mxu0
      %v1299 = vpop.f32.mrb[0].mxu0
      %v1300 = vadd.f32 %v307, %v1299
      %v1301 = vpop.f32.mrb[0].mxu0
      %1302 = vmatprep.mubr.bf16.mxu0 0
      %1303 = vmatmul.mubr.bf16.gmra.mrb[0].mxu0 %v803
      %v1304 = vpop.f32.mrb[0].mxu0
      %v1305 = vadd.f32 %v307, %v1304
      %v1306 = vpop.f32.mrb[0].mxu0
      %v1307 = vpop.f32.mrb[0].mxu0
      %v1308 = vadd.f32 %v307, %v1307
      %v1309 = vpop.f32.mrb[0].mxu0
      %1310 = vmatprep.mubr.bf16.mxu0 0
      %1311 = vmatmul.mubr.bf16.gmra.mrb[0].mxu0 %v806
      %v1312 = vpop.f32.mrb[0].mxu0
      %v1313 = vadd.f32 %v307, %v1312
      %v1314 = vpop.f32.mrb[0].mxu0
      %v1315 = vpop.f32.mrb[0].mxu0
      %v1316 = vadd.f32 %v307, %v1315
      %v1317 = vpop.f32.mrb[0].mxu0
      %1318 = vmatprep.mubr.bf16.mxu0 0
      %1319 = vmatmul.mubr.bf16.gmra.mrb[0].mxu0 %v809
      %v1320 = vpop.f32.mrb[0].mxu0
      %v1321 = vadd.f32 %v307, %v1320
      %v1322 = vpop.f32.mrb[0].mxu0
      %v1323 = vpop.f32.mrb[0].mxu0
      %v1324 = vadd.f32 %v307, %v1323
      %v1325 = vpop.f32.mrb[0].mxu0
      %1326 = vmatprep.mubr.bf16.mxu0 0
      %1327 = vmatmul.mubr.bf16.gmra.mrb[0].mxu0 %v812
      %v1328 = vpop.f32.mrb[0].mxu0
      %v1329 = vadd.f32 %v307, %v1328
      %v1330 = vpop.f32.mrb[0].mxu0
      %v1331 = vpop.f32.mrb[0].mxu0
      %v1332 = vpop.f32.mrb[0].mxu0
      %1333 = vdwg.mxu0
      %v1334 = vmax.f32 %v849, 0.0
      %v1335 = vmax.f32 %v852, 0.0
      %v1336 = vmax.f32 %v857, 0.0
      %v1337 = vmax.f32 %v860, 0.0
      %v1338 = vmax.f32 %v865, 0.0
      %v1339 = vmax.f32 %v868, 0.0
      %v1340 = vmax.f32 %v873, 0.0
      %v1341 = vmax.f32 %v876, 0.0
      %v1342 = vmax.f32 %v881, 0.0
      %v1343 = vmax.f32 %v884, 0.0
      %v1344 = vmax.f32 %v889, 0.0
      %v1345 = vmax.f32 %v892, 0.0
      %v1346 = vmax.f32 %v897, 0.0
      %v1347 = vmax.f32 %v900, 0.0
      %v1348 = vmax.f32 %v905, 0.0
      %v1349 = vmax.f32 %v908, 0.0
      %v1350 = vmax.f32 %v913, 0.0
      %v1351 = vmax.f32 %v916, 0.0
      %v1352 = vmax.f32 %v921, 0.0
      %v1353 = vmax.f32 %v924, 0.0
      %v1354 = vmax.f32 %v929, 0.0
      %v1355 = vmax.f32 %v932, 0.0
      %v1356 = vmax.f32 %v937, 0.0
      %v1357 = vmax.f32 %v940, 0.0
      %v1358 = vmax.f32 %v945, 0.0
      %v1359 = vmax.f32 %v948, 0.0
      %v1360 = vmax.f32 %v953, 0.0
      %v1361 = vmax.f32 %v956, 0.0
      %v1362 = vmax.f32 %v961, 0.0
      %v1363 = vmax.f32 %v964, 0.0
      %v1364 = vmax.f32 %v969, 0.0
      %v1365 = vmax.f32 %v972, 0.0
      %v1366 = vmax.f32 %v977, 0.0
      %v1367 = vmax.f32 %v980, 0.0
      %v1368 = vmax.f32 %v985, 0.0
      %v1369 = vmax.f32 %v988, 0.0
      %v1370 = vmax.f32 %v993, 0.0
      %v1371 = vmax.f32 %v996, 0.0
      %v1372 = vmax.f32 %v1001, 0.0
      %v1373 = vmax.f32 %v1004, 0.0
      %v1374 = vmax.f32 %v1009, 0.0
      %v1375 = vmax.f32 %v1012, 0.0
      %v1376 = vmax.f32 %v1017, 0.0
      %v1377 = vmax.f32 %v1020, 0.0
      %v1378 = vmax.f32 %v1025, 0.0
      %v1379 = vmax.f32 %v1028, 0.0
      %v1380 = vmax.f32 %v1033, 0.0
      %v1381 = vmax.f32 %v1036, 0.0
      %v1382 = vmax.f32 %v1041, 0.0
      %v1383 = vmax.f32 %v1044, 0.0
      %v1384 = vmax.f32 %v1049, 0.0
      %v1385 = vmax.f32 %v1052, 0.0
      %v1386 = vmax.f32 %v1057, 0.0
      %v1387 = vmax.f32 %v1060, 0.0
      %v1388 = vmax.f32 %v1065, 0.0
      %v1389 = vmax.f32 %v1068, 0.0
      %v1390 = vmax.f32 %v1073, 0.0
      %v1391 = vmax.f32 %v1076, 0.0
      %v1392 = vmax.f32 %v1081, 0.0
      %v1393 = vmax.f32 %v1084, 0.0
      %v1394 = vmax.f32 %v1089, 0.0
      %v1395 = vmax.f32 %v1092, 0.0
      %v1396 = vmax.f32 %v1097, 0.0
      %v1397 = vmax.f32 %v1100, 0.0
      %v1398 = vmax.f32 %v1105, 0.0
      %v1399 = vmax.f32 %v1108, 0.0
      %v1400 = vmax.f32 %v1113, 0.0
      %v1401 = vmax.f32 %v1116, 0.0
      %v1402 = vmax.f32 %v1121, 0.0
      %v1403 = vmax.f32 %v1124, 0.0
      %v1404 = vmax.f32 %v1129, 0.0
      %v1405 = vmax.f32 %v1132, 0.0
      %v1406 = vmax.f32 %v1137, 0.0
      %v1407 = vmax.f32 %v1140, 0.0
      %v1408 = vmax.f32 %v1145, 0.0
      %v1409 = vmax.f32 %v1148, 0.0
      %v1410 = vmax.f32 %v1153, 0.0
      %v1411 = vmax.f32 %v1156, 0.0
      %v1412 = vmax.f32 %v1161, 0.0
      %v1413 = vmax.f32 %v1164, 0.0
      %v1414 = vmax.f32 %v1169, 0.0
      %v1415 = vmax.f32 %v1172, 0.0
      %v1416 = vmax.f32 %v1177, 0.0
      %v1417 = vmax.f32 %v1180, 0.0
      %v1418 = vmax.f32 %v1185, 0.0
      %v1419 = vmax.f32 %v1188, 0.0
      %v1420 = vmax.f32 %v1193, 0.0
      %v1421 = vmax.f32 %v1196, 0.0
      %v1422 = vmax.f32 %v1201, 0.0
      %v1423 = vmax.f32 %v1204, 0.0
      %v1424 = vmax.f32 %v1209, 0.0
      %v1425 = vmax.f32 %v1212, 0.0
      %v1426 = vmax.f32 %v1217, 0.0
      %v1427 = vmax.f32 %v1220, 0.0
      %v1428 = vmax.f32 %v1225, 0.0
      %v1429 = vmax.f32 %v1228, 0.0
      %v1430 = vmax.f32 %v1233, 0.0
      %v1431 = vmax.f32 %v1236, 0.0
      %v1432 = vmax.f32 %v1241, 0.0
      %v1433 = vmax.f32 %v1244, 0.0
      %v1434 = vmax.f32 %v1249, 0.0
      %v1435 = vmax.f32 %v1252, 0.0
      %v1436 = vmax.f32 %v1257, 0.0
      %v1437 = vmax.f32 %v1260, 0.0
      %v1438 = vmax.f32 %v1265, 0.0
      %v1439 = vmax.f32 %v1268, 0.0
      %v1440 = vmax.f32 %v1273, 0.0
      %v1441 = vmax.f32 %v1276, 0.0
      %v1442 = vmax.f32 %v1281, 0.0
      %v1443 = vmax.f32 %v1284, 0.0
      %v1444 = vmax.f32 %v1289, 0.0
      %v1445 = vmax.f32 %v1292, 0.0
      %v1446 = vmax.f32 %v1297, 0.0
      %v1447 = vmax.f32 %v1300, 0.0
      %v1448 = vmax.f32 %v1305, 0.0
      %v1449 = vmax.f32 %v1308, 0.0
      %v1450 = vmax.f32 %v1313, 0.0
      %v1451 = vmax.f32 %v1316, 0.0
      %v1452 = vmax.f32 %v1321, 0.0
      %v1453 = vmax.f32 %v1324, 0.0
      %v1454 = vmax.f32 %v1329, 0.0
      %v1455 = vpack.c.bf16 %v1335, %v1334
      %v1456 = vpack.c.bf16 %v1337, %v1336
      %v1457 = vpack.c.bf16 %v1339, %v1338
      %v1458 = vpack.c.bf16 %v1341, %v1340
      %v1459 = vpack.c.bf16 %v1343, %v1342
      %v1460 = vpack.c.bf16 %v1345, %v1344
      %v1461 = vpack.c.bf16 %v1347, %v1346
      %v1462 = vpack.c.bf16 %v1349, %v1348
      %v1463 = vpack.c.bf16 %v1351, %v1350
      %v1464 = vpack.c.bf16 %v1353, %v1352
      %v1465 = vpack.c.bf16 %v1355, %v1354
      %v1466 = vpack.c.bf16 %v1357, %v1356
      %v1467 = vpack.c.bf16 %v1359, %v1358
      %v1468 = vpack.c.bf16 %v1361, %v1360
      %v1469 = vpack.c.bf16 %v1363, %v1362
      %v1470 = vpack.c.bf16 %v1365, %v1364
      %v1471 = vpack.c.bf16 %v1367, %v1366
      %v1472 = vpack.c.bf16 %v1369, %v1368
      %v1473 = vpack.c.bf16 %v1371, %v1370
      %v1474 = vpack.c.bf16 %v1373, %v1372
      %v1475 = vpack.c.bf16 %v1375, %v1374
      %v1476 = vpack.c.bf16 %v1377, %v1376
      %v1477 = vpack.c.bf16 %v1379, %v1378
      %v1478 = vpack.c.bf16 %v1381, %v1380
      %v1479 = vpack.c.bf16 %v1383, %v1382
      %v1480 = vpack.c.bf16 %v1385, %v1384
      %v1481 = vpack.c.bf16 %v1387, %v1386
      %v1482 = vpack.c.bf16 %v1389, %v1388
      %v1483 = vpack.c.bf16 %v1391, %v1390
      %v1484 = vpack.c.bf16 %v1393, %v1392
      %v1485 = vpack.c.bf16 %v1395, %v1394
      %v1486 = vpack.c.bf16 %v1397, %v1396
      %v1487 = vpack.c.bf16 %v1399, %v1398
      %v1488 = vpack.c.bf16 %v1401, %v1400
      %v1489 = vpack.c.bf16 %v1403, %v1402
      %v1490 = vpack.c.bf16 %v1405, %v1404
      %v1491 = vpack.c.bf16 %v1407, %v1406
      %v1492 = vpack.c.bf16 %v1409, %v1408
      %v1493 = vpack.c.bf16 %v1411, %v1410
      %v1494 = vpack.c.bf16 %v1413, %v1412
      %v1495 = vpack.c.bf16 %v1415, %v1414
      %v1496 = vpack.c.bf16 %v1417, %v1416
      %v1497 = vpack.c.bf16 %v1419, %v1418
      %v1498 = vpack.c.bf16 %v1421, %v1420
      %v1499 = vpack.c.bf16 %v1423, %v1422
      %v1500 = vpack.c.bf16 %v1425, %v1424
      %v1501 = vpack.c.bf16 %v1427, %v1426
      %v1502 = vpack.c.bf16 %v1429, %v1428
      %v1503 = vpack.c.bf16 %v1431, %v1430
      %v1504 = vpack.c.bf16 %v1433, %v1432
      %v1505 = vpack.c.bf16 %v1435, %v1434
      %v1506 = vpack.c.bf16 %v1437, %v1436
      %v1507 = vpack.c.bf16 %v1439, %v1438
      %v1508 = vpack.c.bf16 %v1441, %v1440
      %v1509 = vpack.c.bf16 %v1443, %v1442
      %v1510 = vpack.c.bf16 %v1445, %v1444
      %v1511 = vpack.c.bf16 %v1447, %v1446
      %v1512 = vpack.c.bf16 %v1449, %v1448
      %v1513 = vpack.c.bf16 %v1451, %v1450
      %v1514 = vpack.c.bf16 %v1453, %v1452
      %v1515 = vpack.c.bf16 %v1454, %v1454
      %v1577 = vunpack.c.l.b16 %v1455
      %v1578 = vunpack.c.h.b16 %v1455
      %v1579 = vunpack.c.l.b16 %v1456
      %v1580 = vunpack.c.h.b16 %v1456
      %v1581 = vunpack.c.l.b16 %v1457
      %v1582 = vunpack.c.h.b16 %v1457
      %v1583 = vunpack.c.l.b16 %v1458
      %v1584 = vunpack.c.h.b16 %v1458
      %v1585 = vunpack.c.l.b16 %v1459
      %v1586 = vunpack.c.h.b16 %v1459
      %v1587 = vunpack.c.l.b16 %v1460
      %v1588 = vunpack.c.h.b16 %v1460
      %v1589 = vunpack.c.l.b16 %v1461
      %v1590 = vunpack.c.h.b16 %v1461
      %v1591 = vunpack.c.l.b16 %v1462
      %v1592 = vunpack.c.h.b16 %v1462
      %v1593 = vunpack.c.l.b16 %v1463
      %v1594 = vunpack.c.h.b16 %v1463
      %v1595 = vunpack.c.l.b16 %v1464
      %v1596 = vunpack.c.h.b16 %v1464
      %v1597 = vunpack.c.l.b16 %v1465
      %v1598 = vunpack.c.h.b16 %v1465
      %v1599 = vunpack.c.l.b16 %v1466
      %v1600 = vunpack.c.h.b16 %v1466
      %v1601 = vunpack.c.l.b16 %v1467
      %v1602 = vunpack.c.h.b16 %v1467
      %v1603 = vunpack.c.l.b16 %v1468
      %v1604 = vunpack.c.h.b16 %v1468
      %v1605 = vunpack.c.l.b16 %v1469
      %v1606 = vunpack.c.h.b16 %v1469
      %v1607 = vunpack.c.l.b16 %v1470
      %v1608 = vunpack.c.h.b16 %v1470
      %v1609 = vunpack.c.l.b16 %v1471
      %v1610 = vunpack.c.h.b16 %v1471
      %v1611 = vunpack.c.l.b16 %v1472
      %v1612 = vunpack.c.h.b16 %v1472
      %v1613 = vunpack.c.l.b16 %v1473
      %v1614 = vunpack.c.h.b16 %v1473
      %v1615 = vunpack.c.l.b16 %v1474
      %v1616 = vunpack.c.h.b16 %v1474
      %v1617 = vunpack.c.l.b16 %v1475
      %v1618 = vunpack.c.h.b16 %v1475
      %v1619 = vunpack.c.l.b16 %v1476
      %v1620 = vunpack.c.h.b16 %v1476
      %v1621 = vunpack.c.l.b16 %v1477
      %v1622 = vunpack.c.h.b16 %v1477
      %v1623 = vunpack.c.l.b16 %v1478
      %v1624 = vunpack.c.h.b16 %v1478
      %v1625 = vunpack.c.l.b16 %v1479
      %v1626 = vunpack.c.h.b16 %v1479
      %v1627 = vunpack.c.l.b16 %v1480
      %v1628 = vunpack.c.h.b16 %v1480
      %v1629 = vunpack.c.l.b16 %v1481
      %v1630 = vunpack.c.h.b16 %v1481
      %v1631 = vunpack.c.l.b16 %v1482
      %v1632 = vunpack.c.h.b16 %v1482
      %v1633 = vunpack.c.l.b16 %v1483
      %v1634 = vunpack.c.h.b16 %v1483
      %v1635 = vunpack.c.l.b16 %v1484
      %v1636 = vunpack.c.h.b16 %v1484
      %v1637 = vunpack.c.l.b16 %v1485
      %v1638 = vunpack.c.h.b16 %v1485
      %v1639 = vunpack.c.l.b16 %v1486
      %v1640 = vunpack.c.h.b16 %v1486
      %v1641 = vunpack.c.l.b16 %v1487
      %v1642 = vunpack.c.h.b16 %v1487
      %v1643 = vunpack.c.l.b16 %v1488
      %v1644 = vunpack.c.h.b16 %v1488
      %v1645 = vunpack.c.l.b16 %v1489
      %v1646 = vunpack.c.h.b16 %v1489
      %v1647 = vunpack.c.l.b16 %v1490
      %v1648 = vunpack.c.h.b16 %v1490
      %v1649 = vunpack.c.l.b16 %v1491
      %v1650 = vunpack.c.h.b16 %v1491
      %v1651 = vunpack.c.l.b16 %v1492
      %v1652 = vunpack.c.h.b16 %v1492
      %v1653 = vunpack.c.l.b16 %v1493
      %v1654 = vunpack.c.h.b16 %v1493
      %v1655 = vunpack.c.l.b16 %v1494
      %v1656 = vunpack.c.h.b16 %v1494
      %v1657 = vunpack.c.l.b16 %v1495
      %v1658 = vunpack.c.h.b16 %v1495
      %v1659 = vunpack.c.l.b16 %v1496
      %v1660 = vunpack.c.h.b16 %v1496
      %v1661 = vunpack.c.l.b16 %v1497
      %v1662 = vunpack.c.h.b16 %v1497
      %v1663 = vunpack.c.l.b16 %v1498
      %v1664 = vunpack.c.h.b16 %v1498
      %v1665 = vunpack.c.l.b16 %v1499
      %v1666 = vunpack.c.h.b16 %v1499
      %v1667 = vunpack.c.l.b16 %v1500
      %v1668 = vunpack.c.h.b16 %v1500
      %v1669 = vunpack.c.l.b16 %v1501
      %v1670 = vunpack.c.h.b16 %v1501
      %v1671 = vunpack.c.l.b16 %v1502
      %v1672 = vunpack.c.h.b16 %v1502
      %v1673 = vunpack.c.l.b16 %v1503
      %v1674 = vunpack.c.h.b16 %v1503
      %v1675 = vunpack.c.l.b16 %v1504
      %v1676 = vunpack.c.h.b16 %v1504
      %v1677 = vunpack.c.l.b16 %v1505
      %v1678 = vunpack.c.h.b16 %v1505
      %v1679 = vunpack.c.l.b16 %v1506
      %v1680 = vunpack.c.h.b16 %v1506
      %v1681 = vunpack.c.l.b16 %v1507
      %v1682 = vunpack.c.h.b16 %v1507
      %v1683 = vunpack.c.l.b16 %v1508
      %v1684 = vunpack.c.h.b16 %v1508
      %v1685 = vunpack.c.l.b16 %v1509
      %v1686 = vunpack.c.h.b16 %v1509
      %v1687 = vunpack.c.l.b16 %v1510
      %v1688 = vunpack.c.h.b16 %v1510
      %v1689 = vunpack.c.l.b16 %v1511
      %v1690 = vunpack.c.h.b16 %v1511
      %v1691 = vunpack.c.l.b16 %v1512
      %v1692 = vunpack.c.h.b16 %v1512
      %v1693 = vunpack.c.l.b16 %v1513
      %v1694 = vunpack.c.h.b16 %v1513
      %v1695 = vunpack.c.l.b16 %v1514
      %v1696 = vunpack.c.h.b16 %v1514
      %v1697 = vunpack.c.l.b16 %v1515
      %v1698 = vpack.c.b16 %v1577, %v1577
      %v1699 = vpack.c.b16 %v1578, %v1578
      %v1700 = vpack.c.b16 %v1579, %v1579
      %v1701 = vpack.c.b16 %v1580, %v1580
      %v1702 = vpack.c.b16 %v1581, %v1581
      %v1703 = vpack.c.b16 %v1582, %v1582
      %v1704 = vpack.c.b16 %v1583, %v1583
      %v1705 = vpack.c.b16 %v1584, %v1584
      %v1706 = vpack.c.b16 %v1585, %v1585
      %v1707 = vpack.c.b16 %v1586, %v1586
      %v1708 = vpack.c.b16 %v1587, %v1587
      %v1709 = vpack.c.b16 %v1588, %v1588
      %v1710 = vpack.c.b16 %v1589, %v1589
      %v1711 = vpack.c.b16 %v1590, %v1590
      %v1712 = vpack.c.b16 %v1591, %v1591
      %v1713 = vpack.c.b16 %v1592, %v1592
      %v1714 = vpack.c.b16 %v1593, %v1593
      %v1715 = vpack.c.b16 %v1594, %v1594
      %v1716 = vpack.c.b16 %v1595, %v1595
      %v1717 = vpack.c.b16 %v1596, %v1596
      %v1718 = vpack.c.b16 %v1597, %v1597
      %v1719 = vpack.c.b16 %v1598, %v1598
      %v1720 = vpack.c.b16 %v1599, %v1599
      %v1721 = vpack.c.b16 %v1600, %v1600
      %v1722 = vpack.c.b16 %v1601, %v1601
      %v1723 = vpack.c.b16 %v1602, %v1602
      %v1724 = vpack.c.b16 %v1603, %v1603
      %v1725 = vpack.c.b16 %v1604, %v1604
      %v1726 = vpack.c.b16 %v1605, %v1605
      %v1727 = vpack.c.b16 %v1606, %v1606
      %v1728 = vpack.c.b16 %v1607, %v1607
      %v1729 = vpack.c.b16 %v1608, %v1608
      %v1730 = vpack.c.b16 %v1609, %v1609
      %v1731 = vpack.c.b16 %v1610, %v1610
      %v1732 = vpack.c.b16 %v1611, %v1611
      %v1733 = vpack.c.b16 %v1612, %v1612
      %v1734 = vpack.c.b16 %v1613, %v1613
      %v1735 = vpack.c.b16 %v1614, %v1614
      %v1736 = vpack.c.b16 %v1615, %v1615
      %v1737 = vpack.c.b16 %v1616, %v1616
      %v1738 = vpack.c.b16 %v1617, %v1617
      %v1739 = vpack.c.b16 %v1618, %v1618
      %v1740 = vpack.c.b16 %v1619, %v1619
      %v1741 = vpack.c.b16 %v1620, %v1620
      %v1742 = vpack.c.b16 %v1621, %v1621
      %v1743 = vpack.c.b16 %v1622, %v1622
      %v1744 = vpack.c.b16 %v1623, %v1623
      %v1745 = vpack.c.b16 %v1624, %v1624
      %v1746 = vpack.c.b16 %v1625, %v1625
      %v1747 = vpack.c.b16 %v1626, %v1626
      %v1748 = vpack.c.b16 %v1627, %v1627
      %v1749 = vpack.c.b16 %v1628, %v1628
      %v1750 = vpack.c.b16 %v1629, %v1629
      %v1751 = vpack.c.b16 %v1630, %v1630
      %v1752 = vpack.c.b16 %v1631, %v1631
      %v1753 = vpack.c.b16 %v1632, %v1632
      %v1754 = vpack.c.b16 %v1633, %v1633
      %v1755 = vpack.c.b16 %v1634, %v1634
      %v1756 = vpack.c.b16 %v1635, %v1635
      %v1757 = vpack.c.b16 %v1636, %v1636
      %v1758 = vpack.c.b16 %v1637, %v1637
      %v1759 = vpack.c.b16 %v1638, %v1638
      %v1760 = vpack.c.b16 %v1639, %v1639
      %v1761 = vpack.c.b16 %v1640, %v1640
      %v1762 = vpack.c.b16 %v1641, %v1641
      %v1763 = vpack.c.b16 %v1642, %v1642
      %v1764 = vpack.c.b16 %v1643, %v1643
      %v1765 = vpack.c.b16 %v1644, %v1644
      %v1766 = vpack.c.b16 %v1645, %v1645
      %v1767 = vpack.c.b16 %v1646, %v1646
      %v1768 = vpack.c.b16 %v1647, %v1647
      %v1769 = vpack.c.b16 %v1648, %v1648
      %v1770 = vpack.c.b16 %v1649, %v1649
      %v1771 = vpack.c.b16 %v1650, %v1650
      %v1772 = vpack.c.b16 %v1651, %v1651
      %v1773 = vpack.c.b16 %v1652, %v1652
      %v1774 = vpack.c.b16 %v1653, %v1653
      %v1775 = vpack.c.b16 %v1654, %v1654
      %v1776 = vpack.c.b16 %v1655, %v1655
      %v1777 = vpack.c.b16 %v1656, %v1656
      %v1778 = vpack.c.b16 %v1657, %v1657
      %v1779 = vpack.c.b16 %v1658, %v1658
      %v1780 = vpack.c.b16 %v1659, %v1659
      %v1781 = vpack.c.b16 %v1660, %v1660
      %v1782 = vpack.c.b16 %v1661, %v1661
      %v1783 = vpack.c.b16 %v1662, %v1662
      %v1784 = vpack.c.b16 %v1663, %v1663
      %v1785 = vpack.c.b16 %v1664, %v1664
      %v1786 = vpack.c.b16 %v1665, %v1665
      %v1787 = vpack.c.b16 %v1666, %v1666
      %v1788 = vpack.c.b16 %v1667, %v1667
      %v1789 = vpack.c.b16 %v1668, %v1668
      %v1790 = vpack.c.b16 %v1669, %v1669
      %v1791 = vpack.c.b16 %v1670, %v1670
      %v1792 = vpack.c.b16 %v1671, %v1671
      %v1793 = vpack.c.b16 %v1672, %v1672
      %v1794 = vpack.c.b16 %v1673, %v1673
      %v1795 = vpack.c.b16 %v1674, %v1674
      %v1796 = vpack.c.b16 %v1675, %v1675
      %v1797 = vpack.c.b16 %v1676, %v1676
      %v1798 = vpack.c.b16 %v1677, %v1677
      %v1799 = vpack.c.b16 %v1678, %v1678
      %v1800 = vpack.c.b16 %v1679, %v1679
      %v1801 = vpack.c.b16 %v1680, %v1680
      %v1802 = vpack.c.b16 %v1681, %v1681
      %v1803 = vpack.c.b16 %v1682, %v1682
      %v1804 = vpack.c.b16 %v1683, %v1683
      %v1805 = vpack.c.b16 %v1684, %v1684
      %v1806 = vpack.c.b16 %v1685, %v1685
      %v1807 = vpack.c.b16 %v1686, %v1686
      %v1808 = vpack.c.b16 %v1687, %v1687
      %v1809 = vpack.c.b16 %v1688, %v1688
      %v1810 = vpack.c.b16 %v1689, %v1689
      %v1811 = vpack.c.b16 %v1690, %v1690
      %v1812 = vpack.c.b16 %v1691, %v1691
      %v1813 = vpack.c.b16 %v1692, %v1692
      %v1814 = vpack.c.b16 %v1693, %v1693
      %v1815 = vpack.c.b16 %v1694, %v1694
      %v1816 = vpack.c.b16 %v1695, %v1695
      %v1817 = vpack.c.b16 %v1696, %v1696
      %v1818 = vpack.c.b16 %v1697, %v1697
      %1940 = vst [vmem:[%s172] sm:$0xf] %v1698
      %1941 = vst [vmem:[%s172 + $0x4] sm:$0xf] %v1699
      %1942 = vst [vmem:[%s172 + $0x8] sm:$0xf] %v1700
      %1943 = vst [vmem:[%s172 + $0xc] sm:$0xf] %v1701
      %1944 = vst [vmem:[%s172 + $0x10] sm:$0xf] %v1702
      %1945 = vst [vmem:[%s172 + $0x14] sm:$0xf] %v1703
      %1946 = vst [vmem:[%s172 + $0x18] sm:$0xf] %v1704
      %1947 = vst [vmem:[%s172 + $0x1c] sm:$0xf] %v1705
      %1948 = vst [vmem:[%s172 + $0x20] sm:$0xf] %v1706
      %1949 = vst [vmem:[%s172 + $0x24] sm:$0xf] %v1707
      %1950 = vst [vmem:[%s172 + $0x28] sm:$0xf] %v1708
      %1951 = vst [vmem:[%s172 + $0x2c] sm:$0xf] %v1709
      %1952 = vst [vmem:[%s172 + $0x30] sm:$0xf] %v1710
      %1953 = vst [vmem:[%s172 + $0x34] sm:$0xf] %v1711
      %1954 = vst [vmem:[%s172 + $0x38] sm:$0xf] %v1712
      %1955 = vst [vmem:[%s172 + $0x3c] sm:$0xf] %v1713
      %1956 = vst [vmem:[%s172 + $0x40] sm:$0xf] %v1714
      %1957 = vst [vmem:[%s172 + $0x44] sm:$0xf] %v1715
      %1958 = vst [vmem:[%s172 + $0x48] sm:$0xf] %v1716
      %1959 = vst [vmem:[%s172 + $0x4c] sm:$0xf] %v1717
      %1960 = vst [vmem:[%s172 + $0x50] sm:$0xf] %v1718
      %1961 = vst [vmem:[%s172 + $0x54] sm:$0xf] %v1719
      %1962 = vst [vmem:[%s172 + $0x58] sm:$0xf] %v1720
      %1963 = vst [vmem:[%s172 + $0x5c] sm:$0xf] %v1721
      %1964 = vst [vmem:[%s172 + $0x60] sm:$0xf] %v1722
      %1965 = vst [vmem:[%s172 + $0x64] sm:$0xf] %v1723
      %1966 = vst [vmem:[%s172 + $0x68] sm:$0xf] %v1724
      %1967 = vst [vmem:[%s172 + $0x6c] sm:$0xf] %v1725
      %1968 = vst [vmem:[%s172 + $0x70] sm:$0xf] %v1726
      %1969 = vst [vmem:[%s172 + $0x74] sm:$0xf] %v1727
      %1970 = vst [vmem:[%s172 + $0x78] sm:$0xf] %v1728
      %1971 = vst [vmem:[%s172 + $0x7c] sm:$0xf] %v1729
      %1972 = vst [vmem:[%s172 + $0x80] sm:$0xf] %v1730
      %1973 = vst [vmem:[%s172 + $0x84] sm:$0xf] %v1731
      %1974 = vst [vmem:[%s172 + $0x88] sm:$0xf] %v1732
      %1975 = vst [vmem:[%s172 + $0x8c] sm:$0xf] %v1733
      %1976 = vst [vmem:[%s172 + $0x90] sm:$0xf] %v1734
      %1977 = vst [vmem:[%s172 + $0x94] sm:$0xf] %v1735
      %1978 = vst [vmem:[%s172 + $0x98] sm:$0xf] %v1736
      %1979 = vst [vmem:[%s172 + $0x9c] sm:$0xf] %v1737
      %1980 = vst [vmem:[%s172 + $0xa0] sm:$0xf] %v1738
      %1981 = vst [vmem:[%s172 + $0xa4] sm:$0xf] %v1739
      %1982 = vst [vmem:[%s172 + $0xa8] sm:$0xf] %v1740
      %1983 = vst [vmem:[%s172 + $0xac] sm:$0xf] %v1741
      %1984 = vst [vmem:[%s172 + $0xb0] sm:$0xf] %v1742
      %1985 = vst [vmem:[%s172 + $0xb4] sm:$0xf] %v1743
      %1986 = vst [vmem:[%s172 + $0xb8] sm:$0xf] %v1744
      %1987 = vst [vmem:[%s172 + $0xbc] sm:$0xf] %v1745
      %1988 = vst [vmem:[%s172 + $0xc0] sm:$0xf] %v1746
      %1989 = vst [vmem:[%s172 + $0xc4] sm:$0xf] %v1747
      %1990 = vst [vmem:[%s172 + $0xc8] sm:$0xf] %v1748
      %1991 = vst [vmem:[%s172 + $0xcc] sm:$0xf] %v1749
      %1992 = vst [vmem:[%s172 + $0xd0] sm:$0xf] %v1750
      %1993 = vst [vmem:[%s172 + $0xd4] sm:$0xf] %v1751
      %1994 = vst [vmem:[%s172 + $0xd8] sm:$0xf] %v1752
      %1995 = vst [vmem:[%s172 + $0xdc] sm:$0xf] %v1753
      %1996 = vst [vmem:[%s172 + $0xe0] sm:$0xf] %v1754
      %1997 = vst [vmem:[%s172 + $0xe4] sm:$0xf] %v1755
      %1998 = vst [vmem:[%s172 + $0xe8] sm:$0xf] %v1756
      %1999 = vst [vmem:[%s172 + $0xec] sm:$0xf] %v1757
      %2000 = vst [vmem:[%s172 + $0xf0] sm:$0xf] %v1758
      %2001 = vst [vmem:[%s172 + $0xf4] sm:$0xf] %v1759
      %2002 = vst [vmem:[%s172 + $0xf8] sm:$0xf] %v1760
      %2003 = vst [vmem:[%s172 + $0xfc] sm:$0xf] %v1761
      %2004 = vst [vmem:[%s172 + $0x100] sm:$0xf] %v1762
      %2005 = vst [vmem:[%s172 + $0x104] sm:$0xf] %v1763
      %2006 = vst [vmem:[%s172 + $0x108] sm:$0xf] %v1764
      %2007 = vst [vmem:[%s172 + $0x10c] sm:$0xf] %v1765
      %2008 = vst [vmem:[%s172 + $0x110] sm:$0xf] %v1766
      %2009 = vst [vmem:[%s172 + $0x114] sm:$0xf] %v1767
      %2010 = vst [vmem:[%s172 + $0x118] sm:$0xf] %v1768
      %2011 = vst [vmem:[%s172 + $0x11c] sm:$0xf] %v1769
      %2012 = vst [vmem:[%s172 + $0x120] sm:$0xf] %v1770
      %2013 = vst [vmem:[%s172 + $0x124] sm:$0xf] %v1771
      %2014 = vst [vmem:[%s172 + $0x128] sm:$0xf] %v1772
      %2015 = vst [vmem:[%s172 + $0x12c] sm:$0xf] %v1773
      %2016 = vst [vmem:[%s172 + $0x130] sm:$0xf] %v1774
      %2017 = vst [vmem:[%s172 + $0x134] sm:$0xf] %v1775
      %2018 = vst [vmem:[%s172 + $0x138] sm:$0xf] %v1776
      %2019 = vst [vmem:[%s172 + $0x13c] sm:$0xf] %v1777
      %2020 = vst [vmem:[%s172 + $0x140] sm:$0xf] %v1778
      %2021 = vst [vmem:[%s172 + $0x144] sm:$0xf] %v1779
      %2022 = vst [vmem:[%s172 + $0x148] sm:$0xf] %v1780
      %2023 = vst [vmem:[%s172 + $0x14c] sm:$0xf] %v1781
      %2024 = vst [vmem:[%s172 + $0x150] sm:$0xf] %v1782
      %2025 = vst [vmem:[%s172 + $0x154] sm:$0xf] %v1783
      %2026 = vst [vmem:[%s172 + $0x158] sm:$0xf] %v1784
      %2027 = vst [vmem:[%s172 + $0x15c] sm:$0xf] %v1785
      %2028 = vst [vmem:[%s172 + $0x160] sm:$0xf] %v1786
      %2029 = vst [vmem:[%s172 + $0x164] sm:$0xf] %v1787
      %2030 = vst [vmem:[%s172 + $0x168] sm:$0xf] %v1788
      %2031 = vst [vmem:[%s172 + $0x16c] sm:$0xf] %v1789
      %2032 = vst [vmem:[%s172 + $0x170] sm:$0xf] %v1790
      %2033 = vst [vmem:[%s172 + $0x174] sm:$0xf] %v1791
      %2034 = vst [vmem:[%s172 + $0x178] sm:$0xf] %v1792
      %2035 = vst [vmem:[%s172 + $0x17c] sm:$0xf] %v1793
      %2036 = vst [vmem:[%s172 + $0x180] sm:$0xf] %v1794
      %2037 = vst [vmem:[%s172 + $0x184] sm:$0xf] %v1795
      %2038 = vst [vmem:[%s172 + $0x188] sm:$0xf] %v1796
      %2039 = vst [vmem:[%s172 + $0x18c] sm:$0xf] %v1797
      %2040 = vst [vmem:[%s172 + $0x190] sm:$0xf] %v1798
      %2041 = vst [vmem:[%s172 + $0x194] sm:$0xf] %v1799
      %2042 = vst [vmem:[%s172 + $0x198] sm:$0xf] %v1800
      %2043 = vst [vmem:[%s172 + $0x19c] sm:$0xf] %v1801
      %2044 = vst [vmem:[%s172 + $0x1a0] sm:$0xf] %v1802
      %2045 = vst [vmem:[%s172 + $0x1a4] sm:$0xf] %v1803
      %2046 = vst [vmem:[%s172 + $0x1a8] sm:$0xf] %v1804
      %2047 = vst [vmem:[%s172 + $0x1ac] sm:$0xf] %v1805
      %2048 = vst [vmem:[%s172 + $0x1b0] sm:$0xf] %v1806
      %2049 = vst [vmem:[%s172 + $0x1b4] sm:$0xf] %v1807
      %2050 = vst [vmem:[%s172 + $0x1b8] sm:$0xf] %v1808
      %2051 = vst [vmem:[%s172 + $0x1bc] sm:$0xf] %v1809
      %2052 = vst [vmem:[%s172 + $0x1c0] sm:$0xf] %v1810
      %2053 = vst [vmem:[%s172 + $0x1c4] sm:$0xf] %v1811
      %2054 = vst [vmem:[%s172 + $0x1c8] sm:$0xf] %v1812
      %2055 = vst [vmem:[%s172 + $0x1cc] sm:$0xf] %v1813
      %2056 = vst [vmem:[%s172 + $0x1d0] sm:$0xf] %v1814
      %2057 = vst [vmem:[%s172 + $0x1d4] sm:$0xf] %v1815
      %2058 = vst [vmem:[%s172 + $0x1d8] sm:$0xf] %v1816
      %2059 = vst [vmem:[%s172 + $0x1dc] sm:$0xf] %v1817
      %2060 = vst [vmem:[%s172 + $0x1e0] sm:$0xf] %v1818
      %s2061 = smul.u32 121, %s14
      %p2062 = scmp.lt.s32.totalorder %s2061, 241
      %s2063 = scalar_select %p2062, %s2061, 241
      %s2064 = smul.addr %s2063, 4
      %s2065 = scalar_lea.vmem %s3, %s2064
      // Predicated region
      $region33: #{multi_encoder_forward.3} parent=31 // pred_check
        %p2066 = pneg %p100
      $region34: #{multi_encoder_forward.3} parent=31 // pred_check_branch
        %2068 = sbr.rel (%p2066) target = $region36
      $region35: #{multi_encoder_forward.3} parent=31 // pred_region
        %s2069 = smul.u32 121, %s14
      $region36: #{multi_encoder_forward.3} parent=31 // pred_fallthru
        _
    $region32: #{multi_encoder_forward.3} parent=5 // pred_fallthru
      _
    %p2070 = scmp.le.s32.totalorder 2, %s9
    // Predicated region
    $region37: #{multi_encoder_forward.3} parent=5 // pred_check
      %p2071 = pneg %p2070
    $region38: #{multi_encoder_forward.3} parent=5 // pred_check_branch
      %2073 = sbr.rel (%p2071) target = $region40
    $region39: #{multi_encoder_forward.3} parent=5 // pred_region
      %s2074 = ssub.s32 %s9, 2
      // Predicated region
      $region41: #{multi_encoder_forward.3} parent=39 // pred_check
        %p2075 = pneg %p106
      $region42: #{multi_encoder_forward.3} parent=39 // pred_check_branch
        %2077 = sbr.rel (%p2075) target = $region44
      $region43: #{multi_encoder_forward.3} parent=39 // pred_region
        %s2078 = smul.u32 121, %s15
        %p2079 = scmp.lt.s32.totalorder %s2078, 241
        %s2080 = scalar_select %p2079, %s2078, 241
        %s2081 = smul.addr %s2080, 4
        %s2082 = scalar_lea.vmem %s3, %s2081
      $region44: #{multi_encoder_forward.3} parent=39 // pred_fallthru
        _
    $region40: #{multi_encoder_forward.3} parent=5 // pred_fallthru
      _
  $region6: #{multi_encoder_forward.3} parent=0 // loop_footer
    %s13 = sadd.s32 1, %s9
  $region7: #{multi_encoder_forward.3} parent=0 // loop_footer_branch
    %8 = sbr.rel target = $region3
  $region8: #{multi_encoder_forward.3} parent=0 // loop_exit
    _

// kernel: multi_encoder_forward.4
$region0: #{multi_encoder_forward.4}
  #allocation0 [shape = 'u32[]', space=smem, size = 0x4, offset = 0x4, fixed_abs, tag = 'smem constant byte address 0x4 - core index']
  #allocation1 [shape = 'u32[144,128]{1,0:T(1,128)}', space=vmem, size = 0x12000, scoped, tag = 'internal scratch']
  %s0 = inlined_call_operand.vmem [shape: bf16[400,512], index: 0, kind: input, shape index: {}]
  %s1 = inlined_call_operand.vmem [shape: bf16[512,128], index: 1, kind: input, shape index: {}]
  %s2 = inlined_call_operand.vmem [shape: f32[1,128], index: 2, kind: input, shape index: {}]
  %s3 = inlined_call_operand.vmem [shape: bf16[400,128], index: 3, kind: output, shape index: {}]
  %s4 = sld [smem:[#allocation0]]
  $region45: #{multi_encoder_forward.4} parent=0
    _
  %s6 = ssub.s32 1, %s4
  %s7 = scalar_select 0, %s6, %s4
  loop: start=0, step=1, limit=4
  $region2: #{multi_encoder_forward.4} parent=0 // loop_pre_header
    _
  $region3: #{multi_encoder_forward.4} parent=0 // loop_header
    %s9 = sphi 0, %s13
    %p10 = scmp.ge.s32.totalorder %s9, 4
    %s19 = sphi 0, %s21
    %s22 = sphi 0, %s19
    %s23 = sphi 0, %s22
    %s39 = sphi 0, %s23
    %s43 = sphi 0, %s43
    %s45 = sphi 0, %s43
    %s46 = sphi 0, %s45
    %s60 = sphi 0, %s46
    %s64 = sphi 0, %s64
    %s66 = sphi 0, %s64
    %s67 = sphi 0, %s66
    %s81 = sphi 0, %s67
    %s87 = sphi 0, %s89
    %s90 = sphi 0, %s87
    %s91 = sphi 0, %s90
    %s107 = sphi 0, %s91
  $region4: #{multi_encoder_forward.4} parent=0 // loop_header_branch
    %12 = sbr.rel (%p10) target = $region8
  $region5: #{multi_encoder_forward.4} parent=0 // loop_body
    %s14 = ssub.s32 %s9, 1
    %s15 = ssub.s32 %s9, 2
    %s16 = sadd.s32 %s9, 1
    %s17 = ssub.s32 %s9, %s16
    %p18 = scmp.eq.s32.totalorder %s17, 0
    %s20 = sadd.s32 %s19, 1
    %s21 = scalar_select %p18, %s19, %s20
    %p24 = pneg %p18
    %p25 = scmp.eq.s32.totalorder %s9, 1
    %p26 = por %p24, %p25
    %p27 = scmp.ne.s32.totalorder %s19, %s22
    %p28 = scmp.eq.s32.totalorder %s9, 0
    %p29 = por %p27, %p28
    %p30 = scmp.ne.s32.totalorder %s19, %s22
    %p31 = scmp.eq.s32.totalorder %s14, 1
    %p32 = por %p30, %p31
    %p33 = scmp.ne.s32.totalorder %s22, %s23
    %p34 = scmp.eq.s32.totalorder %s14, 0
    %p35 = por %p33, %p34
    %p36 = scmp.ne.s32.totalorder %s22, %s23
    %p37 = scmp.eq.s32.totalorder %s15, 1
    %p38 = por %p36, %p37
    %p40 = scmp.ne.s32.totalorder %s23, %s39
    %p41 = scmp.eq.s32.totalorder %s15, 0
    %p42 = por %p40, %p41
    %s44 = sadd.s32 %s43, 1
    %p47 = scmp.eq.s32.totalorder %s9, 1
    %p48 = scmp.ne.s32.totalorder %s43, %s45
    %p49 = scmp.eq.s32.totalorder %s9, 0
    %p50 = por %p48, %p49
    %p51 = scmp.ne.s32.totalorder %s43, %s45
    %p52 = scmp.eq.s32.totalorder %s14, 1
    %p53 = por %p51, %p52
    %p54 = scmp.ne.s32.totalorder %s45, %s46
    %p55 = scmp.eq.s32.totalorder %s14, 0
    %p56 = por %p54, %p55
    %p57 = scmp.ne.s32.totalorder %s45, %s46
    %p58 = scmp.eq.s32.totalorder %s15, 1
    %p59 = por %p57, %p58
    %p61 = scmp.ne.s32.totalorder %s46, %s60
    %p62 = scmp.eq.s32.totalorder %s15, 0
    %p63 = por %p61, %p62
    %s65 = sadd.s32 %s64, 1
    %p68 = scmp.eq.s32.totalorder %s9, 1
    %p69 = scmp.ne.s32.totalorder %s64, %s66
    %p70 = scmp.eq.s32.totalorder %s9, 0
    %p71 = por %p69, %p70
    %p72 = scmp.ne.s32.totalorder %s64, %s66
    %p73 = scmp.eq.s32.totalorder %s14, 1
    %p74 = por %p72, %p73
    %p75 = scmp.ne.s32.totalorder %s66, %s67
    %p76 = scmp.eq.s32.totalorder %s14, 0
    %p77 = por %p75, %p76
    %p78 = scmp.ne.s32.totalorder %s66, %s67
    %p79 = scmp.eq.s32.totalorder %s15, 1
    %p80 = por %p78, %p79
    %p82 = scmp.ne.s32.totalorder %s67, %s81
    %p83 = scmp.eq.s32.totalorder %s15, 0
    %p84 = por %p82, %p83
    %s85 = ssub.s32 %s9, %s16
    %p86 = scmp.eq.s32.totalorder %s85, 0
    %s88 = sadd.s32 %s87, 1
    %s89 = scalar_select %p86, %s87, %s88
    %p92 = pneg %p86
    %p93 = scmp.eq.s32.totalorder %s9, 1
    %p94 = por %p92, %p93
    %p95 = scmp.ne.s32.totalorder %s87, %s90
    %p96 = scmp.eq.s32.totalorder %s9, 0
    %p97 = por %p95, %p96
    %p98 = scmp.ne.s32.totalorder %s87, %s90
    %p99 = scmp.eq.s32.totalorder %s14, 1
    %p100 = por %p98, %p99
    %p101 = scmp.ne.s32.totalorder %s90, %s91
    %p102 = scmp.eq.s32.totalorder %s14, 0
    %p103 = por %p101, %p102
    %p104 = scmp.ne.s32.totalorder %s90, %s91
    %p105 = scmp.eq.s32.totalorder %s15, 1
    %p106 = por %p104, %p105
    %p108 = scmp.ne.s32.totalorder %s91, %s107
    %p109 = scmp.eq.s32.totalorder %s15, 0
    %p110 = por %p108, %p109
    %p111 = scmp.le.s32.totalorder 1, %s9
    %p112 = scmp.lt.s32.totalorder %s9, 3
    %p113 = pnand %p111, %p112
    %p114 = pneg %p113
    // Predicated region
    $region9: #{multi_encoder_forward.4} parent=5 // pred_check
      _
    $region10: #{multi_encoder_forward.4} parent=5 // pred_check_branch
      %116 = sbr.rel (%p113) target = $region12
    $region11: #{multi_encoder_forward.4} parent=5 // pred_region
      %s117 = ssub.s32 %s9, 1
      // Predicated region
      $region13: #{multi_encoder_forward.4} parent=11 // pred_check
        %p118 = pneg %p56
      $region14: #{multi_encoder_forward.4} parent=11 // pred_check_branch
        %120 = sbr.rel (%p118) target = $region16
      $region15: #{multi_encoder_forward.4} parent=11 // pred_region
        _
      $region16: #{multi_encoder_forward.4} parent=11 // pred_fallthru
        _
      // Predicated region
      $region17: #{multi_encoder_forward.4} parent=11 // pred_check
        %p121 = pneg %p77
      $region18: #{multi_encoder_forward.4} parent=11 // pred_check_branch
        %123 = sbr.rel (%p121) target = $region20
      $region19: #{multi_encoder_forward.4} parent=11 // pred_region
        _
      $region20: #{multi_encoder_forward.4} parent=11 // pred_fallthru
        _
    $region12: #{multi_encoder_forward.4} parent=5 // pred_fallthru
      _
    %p124 = scmp.lt.s32.totalorder %s9, 2
    // Predicated region
    $region21: #{multi_encoder_forward.4} parent=5 // pred_check
      %p125 = pneg %p124
    $region22: #{multi_encoder_forward.4} parent=5 // pred_check_branch
      %127 = sbr.rel (%p125) target = $region24
    $region23: #{multi_encoder_forward.4} parent=5 // pred_region
      // Predicated region
      $region25: #{multi_encoder_forward.4} parent=23 // pred_check
        %p128 = pneg %p29
      $region26: #{multi_encoder_forward.4} parent=23 // pred_check_branch
        %130 = sbr.rel (%p128) target = $region28
      $region27: #{multi_encoder_forward.4} parent=23 // pred_region
        %s131 = smul.u32 25, %s9
        %p132 = scmp.lt.s32.totalorder %s131, 49
        %s133 = scalar_select %p132, %s131, 49
        %s134 = smul.addr %s133, 4
        %s135 = smul.addr %s134, 4
        %s136 = scalar_lea.vmem %s0, %s135
        %s137 = smul.u32 25, %s9
      $region28: #{multi_encoder_forward.4} parent=23 // pred_fallthru
        _
    $region24: #{multi_encoder_forward.4} parent=5 // pred_fallthru
      _
    %p138 = scmp.le.s32.totalorder 1, %s9
    %p139 = scmp.lt.s32.totalorder %s9, 3
    %p140 = pnand %p138, %p139
    %p141 = pneg %p140
    // Predicated region
    $region29: #{multi_encoder_forward.4} parent=5 // pred_check
      _
    $region30: #{multi_encoder_forward.4} parent=5 // pred_check_branch
      %143 = sbr.rel (%p140) target = $region32
    $region31: #{multi_encoder_forward.4} parent=5 // pred_region
      %s144 = ssub.s32 %s9, 1
      %s145 = smul.u32 25, %s14
      %p146 = scmp.lt.s32.totalorder %s145, 49
      %s147 = scalar_select %p146, %s145, 49
      %s148 = smul.addr %s147, 4
      %s149 = smul.addr %s148, 4
      %s150 = scalar_lea.vmem %s0, %s149
      %p151 = pneg %p35
      %p152 = pneg %p32
      %p153 = pneg %p56
      %p154 = pneg %p53
      %p155 = pneg %p77
      %p156 = pneg %p74
      %p157 = pneg %p103
      %p158 = pneg %p100
      %s159 = smul.u32 25, %s14
      %p160 = scmp.lt.s32.totalorder %s159, 49
      %s161 = scalar_select %p160, %s159, 49
      %s162 = smul.addr %s161, 4
      %s163 = scalar_lea.vmem %s3, %s162
      %s164 = smul.u32 25, %s14
      %p165 = scmp.lt.s32.totalorder %s164, 49
      %s166 = scalar_select %p165, %s164, 49
      %s167 = smul.addr %s166, 4
      %s168 = smul.addr %s167, 4
      %s169 = scalar_lea.vmem %s0, %s168
      %s170 = smul.u32 25, %s14
      %s171 = smul.u32 25, %s14
      %p172 = scmp.lt.s32.totalorder %s171, 49
      %s173 = scalar_select %p172, %s171, 49
      %s174 = smul.addr %s173, 4
      %s175 = scalar_lea.vmem %s3, %s174
      %s176 = smul.u32 25, %s14
      %v178 = vld [vmem:[%s169] sm:$0xff]
      %v179 = vld [vmem:[%s169 + $0x8] sm:$0xff]
      %v180 = vld [vmem:[%s169 + $0x10] sm:$0xff]
      %v181 = vld [vmem:[%s169 + $0x18] sm:$0xff]
      %v182 = vld [vmem:[%s169 + $0x20] sm:$0xff]
      %v183 = vld [vmem:[%s169 + $0x28] sm:$0xff]
      %v184 = vld [vmem:[%s169 + $0x30] sm:$0xff]
      %v185 = vld [vmem:[%s169 + $0x38] sm:$0xff]
      %v186 = vld [vmem:[%s169 + $0x40] sm:$0xff]
      %v187 = vld [vmem:[%s169 + $0x48] sm:$0xff]
      %v188 = vld [vmem:[%s169 + $0x50] sm:$0xff]
      %v189 = vld [vmem:[%s169 + $0x58] sm:$0xff]
      %v190 = vld [vmem:[%s169 + $0x60] sm:$0xff]
      %v191 = vld [vmem:[%s169 + $0x68] sm:$0xff]
      %v192 = vld [vmem:[%s169 + $0x70] sm:$0xff]
      %v193 = vld [vmem:[%s169 + $0x78] sm:$0xff]
      %v194 = vld [vmem:[%s169 + $0x80] sm:$0xff]
      %v195 = vld [vmem:[%s169 + $0x88] sm:$0xff]
      %v196 = vld [vmem:[%s169 + $0x90] sm:$0xff]
      %v197 = vld [vmem:[%s169 + $0x98] sm:$0xff]
      %v198 = vld [vmem:[%s169 + $0xa0] sm:$0xff]
      %v199 = vld [vmem:[%s169 + $0xa8] sm:$0xff]
      %v200 = vld [vmem:[%s169 + $0xb0] sm:$0xff]
      %v201 = vld [vmem:[%s169 + $0xb8] sm:$0xff]
      %v202 = vld [vmem:[%s169 + $0xc0] sm:$0xff]
      %v203 = vld [vmem:[%s169 + $0xc8] sm:$0xff]
      %v204 = vld [vmem:[%s169 + $0xd0] sm:$0xff]
      %v205 = vld [vmem:[%s169 + $0xd8] sm:$0xff]
      %v206 = vld [vmem:[%s169 + $0xe0] sm:$0xff]
      %v207 = vld [vmem:[%s169 + $0xe8] sm:$0xff]
      %v208 = vld [vmem:[%s169 + $0xf0] sm:$0xff]
      %v209 = vld [vmem:[%s169 + $0xf8] sm:$0xff]
      %v210 = vld [vmem:[%s169 + $0x100] sm:$0xff]
      %v211 = vld [vmem:[%s169 + $0x108] sm:$0xff]
      %v212 = vld [vmem:[%s169 + $0x110] sm:$0xff]
      %v213 = vld [vmem:[%s169 + $0x118] sm:$0xff]
      %v214 = vld [vmem:[%s169 + $0x120] sm:$0xff]
      %v215 = vld [vmem:[%s169 + $0x128] sm:$0xff]
      %v216 = vld [vmem:[%s169 + $0x130] sm:$0xff]
      %v217 = vld [vmem:[%s169 + $0x138] sm:$0xff]
      %v218 = vld [vmem:[%s169 + $0x140] sm:$0xff]
      %v219 = vld [vmem:[%s169 + $0x148] sm:$0xff]
      %v220 = vld [vmem:[%s169 + $0x150] sm:$0xff]
      %v221 = vld [vmem:[%s169 + $0x158] sm:$0xff]
      %v222 = vld [vmem:[%s169 + $0x160] sm:$0xff]
      %v223 = vld [vmem:[%s169 + $0x168] sm:$0xff]
      %v224 = vld [vmem:[%s169 + $0x170] sm:$0xff]
      %v225 = vld [vmem:[%s169 + $0x178] sm:$0xff]
      %v226 = vld [vmem:[%s169 + $0x180] sm:$0xff]
      %v227 = vld [vmem:[%s169 + $0x188] sm:$0xff]
      %v228 = vld [vmem:[%s1] sm:$0xf]
      %v229 = vld [vmem:[%s1 + $0x4] sm:$0xf]
      %v230 = vld [vmem:[%s1 + $0x8] sm:$0xf]
      %v231 = vld [vmem:[%s1 + $0xc] sm:$0xf]
      %v232 = vld [vmem:[%s1 + $0x10] sm:$0xf]
      %v233 = vld [vmem:[%s1 + $0x14] sm:$0xf]
      %v234 = vld [vmem:[%s1 + $0x18] sm:$0xf]
      %v235 = vld [vmem:[%s1 + $0x1c] sm:$0xf]
      %v236 = vld [vmem:[%s1 + $0x20] sm:$0xf]
      %v237 = vld [vmem:[%s1 + $0x24] sm:$0xf]
      %v238 = vld [vmem:[%s1 + $0x28] sm:$0xf]
      %v239 = vld [vmem:[%s1 + $0x2c] sm:$0xf]
      %v240 = vld [vmem:[%s1 + $0x30] sm:$0xf]
      %v241 = vld [vmem:[%s1 + $0x34] sm:$0xf]
      %v242 = vld [vmem:[%s1 + $0x38] sm:$0xf]
      %v243 = vld [vmem:[%s1 + $0x3c] sm:$0xf]
      %v244 = vld [vmem:[%s1 + $0x40] sm:$0xf]
      %v245 = vld [vmem:[%s1 + $0x44] sm:$0xf]
      %v246 = vld [vmem:[%s1 + $0x48] sm:$0xf]
      %v247 = vld [vmem:[%s1 + $0x4c] sm:$0xf]
      %v248 = vld [vmem:[%s1 + $0x50] sm:$0xf]
      %v249 = vld [vmem:[%s1 + $0x54] sm:$0xf]
      %v250 = vld [vmem:[%s1 + $0x58] sm:$0xf]
      %v251 = vld [vmem:[%s1 + $0x5c] sm:$0xf]
      %v252 = vld [vmem:[%s1 + $0x60] sm:$0xf]
      %v253 = vld [vmem:[%s1 + $0x64] sm:$0xf]
      %v254 = vld [vmem:[%s1 + $0x68] sm:$0xf]
      %v255 = vld [vmem:[%s1 + $0x6c] sm:$0xf]
      %v256 = vld [vmem:[%s1 + $0x70] sm:$0xf]
      %v257 = vld [vmem:[%s1 + $0x74] sm:$0xf]
      %v258 = vld [vmem:[%s1 + $0x78] sm:$0xf]
      %v259 = vld [vmem:[%s1 + $0x7c] sm:$0xf]
      %v260 = vld [vmem:[%s1 + $0x80] sm:$0xf]
      %v261 = vld [vmem:[%s1 + $0x84] sm:$0xf]
      %v262 = vld [vmem:[%s1 + $0x88] sm:$0xf]
      %v263 = vld [vmem:[%s1 + $0x8c] sm:$0xf]
      %v264 = vld [vmem:[%s1 + $0x90] sm:$0xf]
      %v265 = vld [vmem:[%s1 + $0x94] sm:$0xf]
      %v266 = vld [vmem:[%s1 + $0x98] sm:$0xf]
      %v267 = vld [vmem:[%s1 + $0x9c] sm:$0xf]
      %v268 = vld [vmem:[%s1 + $0xa0] sm:$0xf]
      %v269 = vld [vmem:[%s1 + $0xa4] sm:$0xf]
      %v270 = vld [vmem:[%s1 + $0xa8] sm:$0xf]
      %v271 = vld [vmem:[%s1 + $0xac] sm:$0xf]
      %v272 = vld [vmem:[%s1 + $0xb0] sm:$0xf]
      %v273 = vld [vmem:[%s1 + $0xb4] sm:$0xf]
      %v274 = vld [vmem:[%s1 + $0xb8] sm:$0xf]
      %v275 = vld [vmem:[%s1 + $0xbc] sm:$0xf]
      %v276 = vld [vmem:[%s1 + $0xc0] sm:$0xf]
      %v277 = vld [vmem:[%s1 + $0xc4] sm:$0xf]
      %v278 = vld [vmem:[%s1 + $0xc8] sm:$0xf]
      %v279 = vld [vmem:[%s1 + $0xcc] sm:$0xf]
      %v280 = vld [vmem:[%s1 + $0xd0] sm:$0xf]
      %v281 = vld [vmem:[%s1 + $0xd4] sm:$0xf]
      %v282 = vld [vmem:[%s1 + $0xd8] sm:$0xf]
      %v283 = vld [vmem:[%s1 + $0xdc] sm:$0xf]
      %v284 = vld [vmem:[%s1 + $0xe0] sm:$0xf]
      %v285 = vld [vmem:[%s1 + $0xe4] sm:$0xf]
      %v286 = vld [vmem:[%s1 + $0xe8] sm:$0xf]
      %v287 = vld [vmem:[%s1 + $0xec] sm:$0xf]
      %v288 = vld [vmem:[%s1 + $0xf0] sm:$0xf]
      %v289 = vld [vmem:[%s1 + $0xf4] sm:$0xf]
      %v290 = vld [vmem:[%s1 + $0xf8] sm:$0xf]
      %v291 = vld [vmem:[%s1 + $0xfc] sm:$0xf]
      %v292 = vld [vmem:[%s2] sm:$0x1]
      %v294 = vlaneseq
      %v295 = vshrl.u32 %v294, 7
      %v296 = vsub.s32 0, %v295
      %v297 = vrot.slane %v292, %v296
      %v349 = vunpack.c.l.b16 %v178
      %v350 = vunpack.c.h.b16 %v178
      %v351 = vunpack.c.l.b16 %v179
      %v352 = vunpack.c.h.b16 %v179
      %v353 = vunpack.c.l.b16 %v180
      %v354 = vunpack.c.h.b16 %v180
      %v355 = vunpack.c.l.b16 %v181
      %v356 = vunpack.c.h.b16 %v181
      %v357 = vunpack.c.l.b16 %v182
      %v358 = vunpack.c.h.b16 %v182
      %v359 = vunpack.c.l.b16 %v183
      %v360 = vunpack.c.h.b16 %v183
      %v361 = vunpack.c.l.b16 %v184
      %v362 = vunpack.c.h.b16 %v184
      %v363 = vunpack.c.l.b16 %v185
      %v364 = vunpack.c.h.b16 %v185
      %v365 = vunpack.c.l.b16 %v186
      %v366 = vunpack.c.h.b16 %v186
      %v367 = vunpack.c.l.b16 %v187
      %v368 = vunpack.c.h.b16 %v187
      %v369 = vunpack.c.l.b16 %v188
      %v370 = vunpack.c.h.b16 %v188
      %v371 = vunpack.c.l.b16 %v189
      %v372 = vunpack.c.h.b16 %v189
      %v373 = vunpack.c.l.b16 %v190
      %v374 = vunpack.c.h.b16 %v190
      %v375 = vunpack.c.l.b16 %v191
      %v376 = vunpack.c.h.b16 %v191
      %v377 = vunpack.c.l.b16 %v192
      %v378 = vunpack.c.h.b16 %v192
      %v379 = vunpack.c.l.b16 %v193
      %v380 = vunpack.c.h.b16 %v193
      %v381 = vunpack.c.l.b16 %v194
      %v382 = vunpack.c.h.b16 %v194
      %v383 = vunpack.c.l.b16 %v195
      %v384 = vunpack.c.h.b16 %v195
      %v385 = vunpack.c.l.b16 %v196
      %v386 = vunpack.c.h.b16 %v196
      %v387 = vunpack.c.l.b16 %v197
      %v388 = vunpack.c.h.b16 %v197
      %v389 = vunpack.c.l.b16 %v198
      %v390 = vunpack.c.h.b16 %v198
      %v391 = vunpack.c.l.b16 %v199
      %v392 = vunpack.c.h.b16 %v199
      %v393 = vunpack.c.l.b16 %v200
      %v394 = vunpack.c.h.b16 %v200
      %v395 = vunpack.c.l.b16 %v201
      %v396 = vunpack.c.h.b16 %v201
      %v397 = vunpack.c.l.b16 %v202
      %v398 = vunpack.c.h.b16 %v202
      %v399 = vunpack.c.l.b16 %v203
      %v400 = vunpack.c.h.b16 %v203
      %v401 = vunpack.c.l.b16 %v204
      %v402 = vunpack.c.h.b16 %v204
      %v403 = vunpack.c.l.b16 %v205
      %v404 = vunpack.c.h.b16 %v205
      %v405 = vunpack.c.l.b16 %v206
      %v406 = vunpack.c.h.b16 %v206
      %v407 = vunpack.c.l.b16 %v207
      %v408 = vunpack.c.h.b16 %v207
      %v409 = vunpack.c.l.b16 %v208
      %v410 = vunpack.c.h.b16 %v208
      %v411 = vunpack.c.l.b16 %v209
      %v412 = vunpack.c.h.b16 %v209
      %v413 = vunpack.c.l.b16 %v210
      %v414 = vunpack.c.h.b16 %v210
      %v415 = vunpack.c.l.b16 %v211
      %v416 = vunpack.c.h.b16 %v211
      %v417 = vunpack.c.l.b16 %v212
      %v418 = vunpack.c.h.b16 %v212
      %v419 = vunpack.c.l.b16 %v213
      %v420 = vunpack.c.h.b16 %v213
      %v421 = vunpack.c.l.b16 %v214
      %v422 = vunpack.c.h.b16 %v214
      %v423 = vunpack.c.l.b16 %v215
      %v424 = vunpack.c.h.b16 %v215
      %v425 = vunpack.c.l.b16 %v216
      %v426 = vunpack.c.h.b16 %v216
      %v427 = vunpack.c.l.b16 %v217
      %v428 = vunpack.c.h.b16 %v217
      %v429 = vunpack.c.l.b16 %v218
      %v430 = vunpack.c.h.b16 %v218
      %v431 = vunpack.c.l.b16 %v219
      %v432 = vunpack.c.h.b16 %v219
      %v433 = vunpack.c.l.b16 %v220
      %v434 = vunpack.c.h.b16 %v220
      %v435 = vunpack.c.l.b16 %v221
      %v436 = vunpack.c.h.b16 %v221
      %v437 = vunpack.c.l.b16 %v222
      %v438 = vunpack.c.h.b16 %v222
      %v439 = vunpack.c.l.b16 %v223
      %v440 = vunpack.c.h.b16 %v223
      %v441 = vunpack.c.l.b16 %v224
      %v442 = vunpack.c.h.b16 %v224
      %v443 = vunpack.c.l.b16 %v225
      %v444 = vunpack.c.h.b16 %v225
      %v445 = vunpack.c.l.b16 %v226
      %v446 = vunpack.c.h.b16 %v226
      %v447 = vunpack.c.l.b16 %v227
      %v448 = vunpack.c.h.b16 %v227
      %v449 = vpack.c.b16 %v353, %v349
      %v450 = vpack.c.b16 %v354, %v350
      %v451 = vpack.c.b16 %v355, %v351
      %v452 = vpack.c.b16 %v356, %v352
      %v453 = vpack.c.b16 %v361, %v357
      %v454 = vpack.c.b16 %v362, %v358
      %v455 = vpack.c.b16 %v363, %v359
      %v456 = vpack.c.b16 %v364, %v360
      %v457 = vpack.c.b16 %v369, %v365
      %v458 = vpack.c.b16 %v370, %v366
      %v459 = vpack.c.b16 %v371, %v367
      %v460 = vpack.c.b16 %v372, %v368
      %v461 = vpack.c.b16 %v377, %v373
      %v462 = vpack.c.b16 %v378, %v374
      %v463 = vpack.c.b16 %v379, %v375
      %v464 = vpack.c.b16 %v380, %v376
      %v465 = vpack.c.b16 %v385, %v381
      %v466 = vpack.c.b16 %v386, %v382
      %v467 = vpack.c.b16 %v387, %v383
      %v468 = vpack.c.b16 %v388, %v384
      %v469 = vpack.c.b16 %v393, %v389
      %v470 = vpack.c.b16 %v394, %v390
      %v471 = vpack.c.b16 %v395, %v391
      %v472 = vpack.c.b16 %v396, %v392
      %v473 = vpack.c.b16 %v401, %v397
      %v474 = vpack.c.b16 %v402, %v398
      %v475 = vpack.c.b16 %v403, %v399
      %v476 = vpack.c.b16 %v404, %v400
      %v477 = vpack.c.b16 %v409, %v405
      %v478 = vpack.c.b16 %v410, %v406
      %v479 = vpack.c.b16 %v411, %v407
      %v480 = vpack.c.b16 %v412, %v408
      %v481 = vpack.c.b16 %v417, %v413
      %v482 = vpack.c.b16 %v418, %v414
      %v483 = vpack.c.b16 %v419, %v415
      %v484 = vpack.c.b16 %v420, %v416
      %v485 = vpack.c.b16 %v425, %v421
      %v486 = vpack.c.b16 %v426, %v422
      %v487 = vpack.c.b16 %v427, %v423
      %v488 = vpack.c.b16 %v428, %v424
      %v489 = vpack.c.b16 %v433, %v429
      %v490 = vpack.c.b16 %v434, %v430
      %v491 = vpack.c.b16 %v435, %v431
      %v492 = vpack.c.b16 %v436, %v432
      %v493 = vpack.c.b16 %v441, %v437
      %v494 = vpack.c.b16 %v442, %v438
      %v495 = vpack.c.b16 %v443, %v439
      %v496 = vpack.c.b16 %v444, %v440
      %v497 = vpack.c.b16 %v445, %v445
      %v498 = vpack.c.b16 %v446, %v446
      %v499 = vpack.c.b16 %v447, %v447
      %v500 = vpack.c.b16 %v448, %v448
      %v617 = vunpack.c.l.b16 %v228
      %v618 = vunpack.c.l.b16 %v229
      %v619 = vunpack.c.l.b16 %v230
      %v620 = vunpack.c.l.b16 %v231
      %v621 = vunpack.c.l.b16 %v232
      %v622 = vunpack.c.l.b16 %v233
      %v623 = vunpack.c.l.b16 %v234
      %v624 = vunpack.c.l.b16 %v235
      %v625 = vunpack.c.l.b16 %v236
      %v626 = vunpack.c.l.b16 %v237
      %v627 = vunpack.c.l.b16 %v238
      %v628 = vunpack.c.l.b16 %v239
      %v629 = vunpack.c.l.b16 %v240
      %v630 = vunpack.c.l.b16 %v241
      %v631 = vunpack.c.l.b16 %v242
      %v632 = vunpack.c.l.b16 %v243
      %v633 = vunpack.c.l.b16 %v244
      %v634 = vunpack.c.l.b16 %v245
      %v635 = vunpack.c.l.b16 %v246
      %v636 = vunpack.c.l.b16 %v247
      %v637 = vunpack.c.l.b16 %v248
      %v638 = vunpack.c.l.b16 %v249
      %v639 = vunpack.c.l.b16 %v250
      %v640 = vunpack.c.l.b16 %v251
      %v641 = vunpack.c.l.b16 %v252
      %v642 = vunpack.c.l.b16 %v253
      %v643 = vunpack.c.l.b16 %v254
      %v644 = vunpack.c.l.b16 %v255
      %v645 = vunpack.c.l.b16 %v256
      %v646 = vunpack.c.l.b16 %v257
      %v647 = vunpack.c.l.b16 %v258
      %v648 = vunpack.c.l.b16 %v259
      %v649 = vunpack.c.l.b16 %v260
      %v650 = vunpack.c.l.b16 %v261
      %v651 = vunpack.c.l.b16 %v262
      %v652 = vunpack.c.l.b16 %v263
      %v653 = vunpack.c.l.b16 %v264
      %v654 = vunpack.c.l.b16 %v265
      %v655 = vunpack.c.l.b16 %v266
      %v656 = vunpack.c.l.b16 %v267
      %v657 = vunpack.c.l.b16 %v268
      %v658 = vunpack.c.l.b16 %v269
      %v659 = vunpack.c.l.b16 %v270
      %v660 = vunpack.c.l.b16 %v271
      %v661 = vunpack.c.l.b16 %v272
      %v662 = vunpack.c.l.b16 %v273
      %v663 = vunpack.c.l.b16 %v274
      %v664 = vunpack.c.l.b16 %v275
      %v665 = vunpack.c.l.b16 %v276
      %v666 = vunpack.c.l.b16 %v277
      %v667 = vunpack.c.l.b16 %v278
      %v668 = vunpack.c.l.b16 %v279
      %v669 = vunpack.c.l.b16 %v280
      %v670 = vunpack.c.l.b16 %v281
      %v671 = vunpack.c.l.b16 %v282
      %v672 = vunpack.c.l.b16 %v283
      %v673 = vunpack.c.l.b16 %v284
      %v674 = vunpack.c.l.b16 %v285
      %v675 = vunpack.c.l.b16 %v286
      %v676 = vunpack.c.l.b16 %v287
      %v677 = vunpack.c.l.b16 %v288
      %v678 = vunpack.c.l.b16 %v289
      %v679 = vunpack.c.l.b16 %v290
      %v680 = vunpack.c.l.b16 %v291
      %v681 = vpack.c.b16 %v618, %v617
      %v682 = vpack.c.b16 %v620, %v619
      %v683 = vpack.c.b16 %v622, %v621
      %v684 = vpack.c.b16 %v624, %v623
      %v685 = vpack.c.b16 %v626, %v625
      %v686 = vpack.c.b16 %v628, %v627
      %v687 = vpack.c.b16 %v630, %v629
      %v688 = vpack.c.b16 %v632, %v631
      %v689 = vpack.c.b16 %v634, %v633
      %v690 = vpack.c.b16 %v636, %v635
      %v691 = vpack.c.b16 %v638, %v637
      %v692 = vpack.c.b16 %v640, %v639
      %v693 = vpack.c.b16 %v642, %v641
      %v694 = vpack.c.b16 %v644, %v643
      %v695 = vpack.c.b16 %v646, %v645
      %v696 = vpack.c.b16 %v648, %v647
      %v697 = vpack.c.b16 %v650, %v649
      %v698 = vpack.c.b16 %v652, %v651
      %v699 = vpack.c.b16 %v654, %v653
      %v700 = vpack.c.b16 %v656, %v655
      %v701 = vpack.c.b16 %v658, %v657
      %v702 = vpack.c.b16 %v660, %v659
      %v703 = vpack.c.b16 %v662, %v661
      %v704 = vpack.c.b16 %v664, %v663
      %v705 = vpack.c.b16 %v666, %v665
      %v706 = vpack.c.b16 %v668, %v667
      %v707 = vpack.c.b16 %v670, %v669
      %v708 = vpack.c.b16 %v672, %v671
      %v709 = vpack.c.b16 %v674, %v673
      %v710 = vpack.c.b16 %v676, %v675
      %v711 = vpack.c.b16 %v678, %v677
      %v712 = vpack.c.b16 %v680, %v679
      %745 = vmatprep.subr.bf16.mxu0 0
      %746 = vmatpush1.bf16.msra.mxu0 %v681
      %747 = vmatprep.subr.bf16.mxu0 0
      %748 = vmatpush1.bf16.msra.mxu0 %v682
      %749 = vmatprep.subr.bf16.mxu0 0
      %750 = vmatpush1.bf16.msra.mxu0 %v683
      %751 = vmatprep.subr.bf16.mxu0 0
      %752 = vmatpush1.bf16.msra.mxu0 %v684
      %753 = vmatprep.subr.bf16.mxu0 0
      %754 = vmatpush1.bf16.msra.mxu0 %v685
      %755 = vmatprep.subr.bf16.mxu0 0
      %756 = vmatpush1.bf16.msra.mxu0 %v686
      %757 = vmatprep.subr.bf16.mxu0 0
      %758 = vmatpush1.bf16.msra.mxu0 %v687
      %759 = vmatprep.subr.bf16.mxu0 0
      %760 = vmatpush1.bf16.msra.mxu0 %v688
      %761 = vmatprep.subr.bf16.mxu0 0
      %762 = vmatpush1.bf16.msra.mxu0 %v689
      %763 = vmatprep.subr.bf16.mxu0 0
      %764 = vmatpush1.bf16.msra.mxu0 %v690
      %765 = vmatprep.subr.bf16.mxu0 0
      %766 = vmatpush1.bf16.msra.mxu0 %v691
      %767 = vmatprep.subr.bf16.mxu0 0
      %768 = vmatpush1.bf16.msra.mxu0 %v692
      %769 = vmatprep.subr.bf16.mxu0 0
      %770 = vmatpush1.bf16.msra.mxu0 %v693
      %771 = vmatprep.subr.bf16.mxu0 0
      %772 = vmatpush1.bf16.msra.mxu0 %v694
      %773 = vmatprep.subr.bf16.mxu0 0
      %774 = vmatpush1.bf16.msra.mxu0 %v695
      %775 = vmatprep.subr.bf16.mxu0 0
      %776 = vmatpush1.bf16.msra.mxu0 %v696
      %777 = vmatprep.mubr.bf16.mxu0 %v450
      %778 = vmatmul.mubr.bf16.gmra.mrb[0].mxu0 %v449
      %v779 = vpop.f32.mrb[0].mxu0
      %v780 = vadd.f32 %v297, %v779
      %v781 = vpop.f32.mrb[0].mxu0
      %v782 = vpop.f32.mrb[0].mxu0
      %v783 = vadd.f32 %v297, %v782
      %v784 = vpop.f32.mrb[0].mxu0
      %785 = vmatprep.mubr.bf16.mxu0 %v454
      %786 = vmatmul.mubr.bf16.gmra.mrb[0].mxu0 %v453
      %v787 = vpop.f32.mrb[0].mxu0
      %v788 = vadd.f32 %v297, %v787
      %v789 = vpop.f32.mrb[0].mxu0
      %v790 = vpop.f32.mrb[0].mxu0
      %v791 = vadd.f32 %v297, %v790
      %v792 = vpop.f32.mrb[0].mxu0
      %793 = vmatprep.mubr.bf16.mxu0 %v458
      %794 = vmatmul.mubr.bf16.gmra.mrb[0].mxu0 %v457
      %v795 = vpop.f32.mrb[0].mxu0
      %v796 = vadd.f32 %v297, %v795
      %v797 = vpop.f32.mrb[0].mxu0
      %v798 = vpop.f32.mrb[0].mxu0
      %v799 = vadd.f32 %v297, %v798
      %v800 = vpop.f32.mrb[0].mxu0
      %801 = vmatprep.mubr.bf16.mxu0 %v462
      %802 = vmatmul.mubr.bf16.gmra.mrb[0].mxu0 %v461
      %v803 = vpop.f32.mrb[0].mxu0
      %v804 = vadd.f32 %v297, %v803
      %v805 = vpop.f32.mrb[0].mxu0
      %v806 = vpop.f32.mrb[0].mxu0
      %v807 = vadd.f32 %v297, %v806
      %v808 = vpop.f32.mrb[0].mxu0
      %809 = vmatprep.mubr.bf16.mxu0 %v466
      %810 = vmatmul.mubr.bf16.gmra.mrb[0].mxu0 %v465
      %v811 = vpop.f32.mrb[0].mxu0
      %v812 = vadd.f32 %v297, %v811
      %v813 = vpop.f32.mrb[0].mxu0
      %v814 = vpop.f32.mrb[0].mxu0
      %v815 = vadd.f32 %v297, %v814
      %v816 = vpop.f32.mrb[0].mxu0
      %817 = vmatprep.mubr.bf16.mxu0 %v470
      %818 = vmatmul.mubr.bf16.gmra.mrb[0].mxu0 %v469
      %v819 = vpop.f32.mrb[0].mxu0
      %v820 = vadd.f32 %v297, %v819
      %v821 = vpop.f32.mrb[0].mxu0
      %v822 = vpop.f32.mrb[0].mxu0
      %v823 = vadd.f32 %v297, %v822
      %v824 = vpop.f32.mrb[0].mxu0
      %825 = vmatprep.mubr.bf16.mxu0 %v474
      %826 = vmatmul.mubr.bf16.gmra.mrb[0].mxu0 %v473
      %v827 = vpop.f32.mrb[0].mxu0
      %v828 = vadd.f32 %v297, %v827
      %v829 = vpop.f32.mrb[0].mxu0
      %v830 = vpop.f32.mrb[0].mxu0
      %v831 = vadd.f32 %v297, %v830
      %v832 = vpop.f32.mrb[0].mxu0
      %833 = vmatprep.mubr.bf16.mxu0 %v478
      %834 = vmatmul.mubr.bf16.gmra.mrb[0].mxu0 %v477
      %v835 = vpop.f32.mrb[0].mxu0
      %v836 = vadd.f32 %v297, %v835
      %v837 = vpop.f32.mrb[0].mxu0
      %v838 = vpop.f32.mrb[0].mxu0
      %v839 = vadd.f32 %v297, %v838
      %v840 = vpop.f32.mrb[0].mxu0
      %841 = vmatprep.mubr.bf16.mxu0 %v482
      %842 = vmatmul.mubr.bf16.gmra.mrb[0].mxu0 %v481
      %v843 = vpop.f32.mrb[0].mxu0
      %v844 = vadd.f32 %v297, %v843
      %v845 = vpop.f32.mrb[0].mxu0
      %v846 = vpop.f32.mrb[0].mxu0
      %v847 = vadd.f32 %v297, %v846
      %v848 = vpop.f32.mrb[0].mxu0
      %849 = vmatprep.mubr.bf16.mxu0 %v486
      %850 = vmatmul.mubr.bf16.gmra.mrb[0].mxu0 %v485
      %v851 = vpop.f32.mrb[0].mxu0
      %v852 = vadd.f32 %v297, %v851
      %v853 = vpop.f32.mrb[0].mxu0
      %v854 = vpop.f32.mrb[0].mxu0
      %v855 = vadd.f32 %v297, %v854
      %v856 = vpop.f32.mrb[0].mxu0
      %857 = vmatprep.mubr.bf16.mxu0 %v490
      %858 = vmatmul.mubr.bf16.gmra.mrb[0].mxu0 %v489
      %v859 = vpop.f32.mrb[0].mxu0
      %v860 = vadd.f32 %v297, %v859
      %v861 = vpop.f32.mrb[0].mxu0
      %v862 = vpop.f32.mrb[0].mxu0
      %v863 = vadd.f32 %v297, %v862
      %v864 = vpop.f32.mrb[0].mxu0
      %865 = vmatprep.mubr.bf16.mxu0 %v494
      %866 = vmatmul.mubr.bf16.gmra.mrb[0].mxu0 %v493
      %v867 = vpop.f32.mrb[0].mxu0
      %v868 = vadd.f32 %v297, %v867
      %v869 = vpop.f32.mrb[0].mxu0
      %v870 = vpop.f32.mrb[0].mxu0
      %v871 = vadd.f32 %v297, %v870
      %v872 = vpop.f32.mrb[0].mxu0
      %873 = vmatprep.mubr.bf16.mxu0 %v498
      %874 = vmatmul.mubr.bf16.gmra.mrb[0].mxu0 %v497
      %v875 = vpop.f32.mrb[0].mxu0
      %v876 = vadd.f32 %v297, %v875
      %v877 = vpop.f32.mrb[0].mxu0
      %v878 = vpop.f32.mrb[0].mxu0
      %v879 = vpop.f32.mrb[0].mxu0
      %880 = vdwg.mxu0
      %881 = vmatprep.subr.bf16.mxu0 0
      %882 = vmatpush1.bf16.msra.mxu0 %v697
      %883 = vmatprep.subr.bf16.mxu0 0
      %884 = vmatpush1.bf16.msra.mxu0 %v698
      %885 = vmatprep.subr.bf16.mxu0 0
      %886 = vmatpush1.bf16.msra.mxu0 %v699
      %887 = vmatprep.subr.bf16.mxu0 0
      %888 = vmatpush1.bf16.msra.mxu0 %v700
      %889 = vmatprep.subr.bf16.mxu0 0
      %890 = vmatpush1.bf16.msra.mxu0 %v701
      %891 = vmatprep.subr.bf16.mxu0 0
      %892 = vmatpush1.bf16.msra.mxu0 %v702
      %893 = vmatprep.subr.bf16.mxu0 0
      %894 = vmatpush1.bf16.msra.mxu0 %v703
      %895 = vmatprep.subr.bf16.mxu0 0
      %896 = vmatpush1.bf16.msra.mxu0 %v704
      %897 = vmatprep.subr.bf16.mxu0 0
      %898 = vmatpush1.bf16.msra.mxu0 %v705
      %899 = vmatprep.subr.bf16.mxu0 0
      %900 = vmatpush1.bf16.msra.mxu0 %v706
      %901 = vmatprep.subr.bf16.mxu0 0
      %902 = vmatpush1.bf16.msra.mxu0 %v707
      %903 = vmatprep.subr.bf16.mxu0 0
      %904 = vmatpush1.bf16.msra.mxu0 %v708
      %905 = vmatprep.subr.bf16.mxu0 0
      %906 = vmatpush1.bf16.msra.mxu0 %v709
      %907 = vmatprep.subr.bf16.mxu0 0
      %908 = vmatpush1.bf16.msra.mxu0 %v710
      %909 = vmatprep.subr.bf16.mxu0 0
      %910 = vmatpush1.bf16.msra.mxu0 %v711
      %911 = vmatprep.subr.bf16.mxu0 0
      %912 = vmatpush1.bf16.msra.mxu0 %v712
      %913 = vmatprep.mubr.bf16.mxu0 %v452
      %914 = vmatmul.mubr.bf16.gmra.mrb[0].mxu0 %v451
      %v915 = vpop.f32.mrb[0].mxu0
      %v916 = vadd.f32 %v780, %v915
      %v917 = vpop.f32.mrb[0].mxu0
      %v918 = vpop.f32.mrb[0].mxu0
      %v919 = vadd.f32 %v783, %v918
      %v920 = vpop.f32.mrb[0].mxu0
      %921 = vmatprep.mubr.bf16.mxu0 %v456
      %922 = vmatmul.mubr.bf16.gmra.mrb[0].mxu0 %v455
      %v923 = vpop.f32.mrb[0].mxu0
      %v924 = vadd.f32 %v788, %v923
      %v925 = vpop.f32.mrb[0].mxu0
      %v926 = vpop.f32.mrb[0].mxu0
      %v927 = vadd.f32 %v791, %v926
      %v928 = vpop.f32.mrb[0].mxu0
      %929 = vmatprep.mubr.bf16.mxu0 %v460
      %930 = vmatmul.mubr.bf16.gmra.mrb[0].mxu0 %v459
      %v931 = vpop.f32.mrb[0].mxu0
      %v932 = vadd.f32 %v796, %v931
      %v933 = vpop.f32.mrb[0].mxu0
      %v934 = vpop.f32.mrb[0].mxu0
      %v935 = vadd.f32 %v799, %v934
      %v936 = vpop.f32.mrb[0].mxu0
      %937 = vmatprep.mubr.bf16.mxu0 %v464
      %938 = vmatmul.mubr.bf16.gmra.mrb[0].mxu0 %v463
      %v939 = vpop.f32.mrb[0].mxu0
      %v940 = vadd.f32 %v804, %v939
      %v941 = vpop.f32.mrb[0].mxu0
      %v942 = vpop.f32.mrb[0].mxu0
      %v943 = vadd.f32 %v807, %v942
      %v944 = vpop.f32.mrb[0].mxu0
      %945 = vmatprep.mubr.bf16.mxu0 %v468
      %946 = vmatmul.mubr.bf16.gmra.mrb[0].mxu0 %v467
      %v947 = vpop.f32.mrb[0].mxu0
      %v948 = vadd.f32 %v812, %v947
      %v949 = vpop.f32.mrb[0].mxu0
      %v950 = vpop.f32.mrb[0].mxu0
      %v951 = vadd.f32 %v815, %v950
      %v952 = vpop.f32.mrb[0].mxu0
      %953 = vmatprep.mubr.bf16.mxu0 %v472
      %954 = vmatmul.mubr.bf16.gmra.mrb[0].mxu0 %v471
      %v955 = vpop.f32.mrb[0].mxu0
      %v956 = vadd.f32 %v820, %v955
      %v957 = vpop.f32.mrb[0].mxu0
      %v958 = vpop.f32.mrb[0].mxu0
      %v959 = vadd.f32 %v823, %v958
      %v960 = vpop.f32.mrb[0].mxu0
      %961 = vmatprep.mubr.bf16.mxu0 %v476
      %962 = vmatmul.mubr.bf16.gmra.mrb[0].mxu0 %v475
      %v963 = vpop.f32.mrb[0].mxu0
      %v964 = vadd.f32 %v828, %v963
      %v965 = vpop.f32.mrb[0].mxu0
      %v966 = vpop.f32.mrb[0].mxu0
      %v967 = vadd.f32 %v831, %v966
      %v968 = vpop.f32.mrb[0].mxu0
      %969 = vmatprep.mubr.bf16.mxu0 %v480
      %970 = vmatmul.mubr.bf16.gmra.mrb[0].mxu0 %v479
      %v971 = vpop.f32.mrb[0].mxu0
      %v972 = vadd.f32 %v836, %v971
      %v973 = vpop.f32.mrb[0].mxu0
      %v974 = vpop.f32.mrb[0].mxu0
      %v975 = vadd.f32 %v839, %v974
      %v976 = vpop.f32.mrb[0].mxu0
      %977 = vmatprep.mubr.bf16.mxu0 %v484
      %978 = vmatmul.mubr.bf16.gmra.mrb[0].mxu0 %v483
      %v979 = vpop.f32.mrb[0].mxu0
      %v980 = vadd.f32 %v844, %v979
      %v981 = vpop.f32.mrb[0].mxu0
      %v982 = vpop.f32.mrb[0].mxu0
      %v983 = vadd.f32 %v847, %v982
      %v984 = vpop.f32.mrb[0].mxu0
      %985 = vmatprep.mubr.bf16.mxu0 %v488
      %986 = vmatmul.mubr.bf16.gmra.mrb[0].mxu0 %v487
      %v987 = vpop.f32.mrb[0].mxu0
      %v988 = vadd.f32 %v852, %v987
      %v989 = vpop.f32.mrb[0].mxu0
      %v990 = vpop.f32.mrb[0].mxu0
      %v991 = vadd.f32 %v855, %v990
      %v992 = vpop.f32.mrb[0].mxu0
      %993 = vmatprep.mubr.bf16.mxu0 %v492
      %994 = vmatmul.mubr.bf16.gmra.mrb[0].mxu0 %v491
      %v995 = vpop.f32.mrb[0].mxu0
      %v996 = vadd.f32 %v860, %v995
      %v997 = vpop.f32.mrb[0].mxu0
      %v998 = vpop.f32.mrb[0].mxu0
      %v999 = vadd.f32 %v863, %v998
      %v1000 = vpop.f32.mrb[0].mxu0
      %1001 = vmatprep.mubr.bf16.mxu0 %v496
      %1002 = vmatmul.mubr.bf16.gmra.mrb[0].mxu0 %v495
      %v1003 = vpop.f32.mrb[0].mxu0
      %v1004 = vadd.f32 %v868, %v1003
      %v1005 = vpop.f32.mrb[0].mxu0
      %v1006 = vpop.f32.mrb[0].mxu0
      %v1007 = vadd.f32 %v871, %v1006
      %v1008 = vpop.f32.mrb[0].mxu0
      %1009 = vmatprep.mubr.bf16.mxu0 %v500
      %1010 = vmatmul.mubr.bf16.gmra.mrb[0].mxu0 %v499
      %v1011 = vpop.f32.mrb[0].mxu0
      %v1012 = vadd.f32 %v876, %v1011
      %v1013 = vpop.f32.mrb[0].mxu0
      %v1014 = vpop.f32.mrb[0].mxu0
      %v1015 = vpop.f32.mrb[0].mxu0
      %1016 = vdwg.mxu0
      %v1017 = vmax.f32 %v916, 0.0
      %v1018 = vmax.f32 %v919, 0.0
      %v1019 = vmax.f32 %v924, 0.0
      %v1020 = vmax.f32 %v927, 0.0
      %v1021 = vmax.f32 %v932, 0.0
      %v1022 = vmax.f32 %v935, 0.0
      %v1023 = vmax.f32 %v940, 0.0
      %v1024 = vmax.f32 %v943, 0.0
      %v1025 = vmax.f32 %v948, 0.0
      %v1026 = vmax.f32 %v951, 0.0
      %v1027 = vmax.f32 %v956, 0.0
      %v1028 = vmax.f32 %v959, 0.0
      %v1029 = vmax.f32 %v964, 0.0
      %v1030 = vmax.f32 %v967, 0.0
      %v1031 = vmax.f32 %v972, 0.0
      %v1032 = vmax.f32 %v975, 0.0
      %v1033 = vmax.f32 %v980, 0.0
      %v1034 = vmax.f32 %v983, 0.0
      %v1035 = vmax.f32 %v988, 0.0
      %v1036 = vmax.f32 %v991, 0.0
      %v1037 = vmax.f32 %v996, 0.0
      %v1038 = vmax.f32 %v999, 0.0
      %v1039 = vmax.f32 %v1004, 0.0
      %v1040 = vmax.f32 %v1007, 0.0
      %v1041 = vmax.f32 %v1012, 0.0
      %v1042 = vpack.c.bf16 %v1018, %v1017
      %v1043 = vpack.c.bf16 %v1020, %v1019
      %v1044 = vpack.c.bf16 %v1022, %v1021
      %v1045 = vpack.c.bf16 %v1024, %v1023
      %v1046 = vpack.c.bf16 %v1026, %v1025
      %v1047 = vpack.c.bf16 %v1028, %v1027
      %v1048 = vpack.c.bf16 %v1030, %v1029
      %v1049 = vpack.c.bf16 %v1032, %v1031
      %v1050 = vpack.c.bf16 %v1034, %v1033
      %v1051 = vpack.c.bf16 %v1036, %v1035
      %v1052 = vpack.c.bf16 %v1038, %v1037
      %v1053 = vpack.c.bf16 %v1040, %v1039
      %v1054 = vpack.c.bf16 %v1041, %v1041
      %v1068 = vunpack.c.l.b16 %v1042
      %v1069 = vunpack.c.h.b16 %v1042
      %v1070 = vunpack.c.l.b16 %v1043
      %v1071 = vunpack.c.h.b16 %v1043
      %v1072 = vunpack.c.l.b16 %v1044
      %v1073 = vunpack.c.h.b16 %v1044
      %v1074 = vunpack.c.l.b16 %v1045
      %v1075 = vunpack.c.h.b16 %v1045
      %v1076 = vunpack.c.l.b16 %v1046
      %v1077 = vunpack.c.h.b16 %v1046
      %v1078 = vunpack.c.l.b16 %v1047
      %v1079 = vunpack.c.h.b16 %v1047
      %v1080 = vunpack.c.l.b16 %v1048
      %v1081 = vunpack.c.h.b16 %v1048
      %v1082 = vunpack.c.l.b16 %v1049
      %v1083 = vunpack.c.h.b16 %v1049
      %v1084 = vunpack.c.l.b16 %v1050
      %v1085 = vunpack.c.h.b16 %v1050
      %v1086 = vunpack.c.l.b16 %v1051
      %v1087 = vunpack.c.h.b16 %v1051
      %v1088 = vunpack.c.l.b16 %v1052
      %v1089 = vunpack.c.h.b16 %v1052
      %v1090 = vunpack.c.l.b16 %v1053
      %v1091 = vunpack.c.h.b16 %v1053
      %v1092 = vunpack.c.l.b16 %v1054
      %v1093 = vpack.c.b16 %v1068, %v1068
      %v1094 = vpack.c.b16 %v1069, %v1069
      %v1095 = vpack.c.b16 %v1070, %v1070
      %v1096 = vpack.c.b16 %v1071, %v1071
      %v1097 = vpack.c.b16 %v1072, %v1072
      %v1098 = vpack.c.b16 %v1073, %v1073
      %v1099 = vpack.c.b16 %v1074, %v1074
      %v1100 = vpack.c.b16 %v1075, %v1075
      %v1101 = vpack.c.b16 %v1076, %v1076
      %v1102 = vpack.c.b16 %v1077, %v1077
      %v1103 = vpack.c.b16 %v1078, %v1078
      %v1104 = vpack.c.b16 %v1079, %v1079
      %v1105 = vpack.c.b16 %v1080, %v1080
      %v1106 = vpack.c.b16 %v1081, %v1081
      %v1107 = vpack.c.b16 %v1082, %v1082
      %v1108 = vpack.c.b16 %v1083, %v1083
      %v1109 = vpack.c.b16 %v1084, %v1084
      %v1110 = vpack.c.b16 %v1085, %v1085
      %v1111 = vpack.c.b16 %v1086, %v1086
      %v1112 = vpack.c.b16 %v1087, %v1087
      %v1113 = vpack.c.b16 %v1088, %v1088
      %v1114 = vpack.c.b16 %v1089, %v1089
      %v1115 = vpack.c.b16 %v1090, %v1090
      %v1116 = vpack.c.b16 %v1091, %v1091
      %v1117 = vpack.c.b16 %v1092, %v1092
      %1143 = vst [vmem:[%s175] sm:$0xf] %v1093
      %1144 = vst [vmem:[%s175 + $0x4] sm:$0xf] %v1094
      %1145 = vst [vmem:[%s175 + $0x8] sm:$0xf] %v1095
      %1146 = vst [vmem:[%s175 + $0xc] sm:$0xf] %v1096
      %1147 = vst [vmem:[%s175 + $0x10] sm:$0xf] %v1097
      %1148 = vst [vmem:[%s175 + $0x14] sm:$0xf] %v1098
      %1149 = vst [vmem:[%s175 + $0x18] sm:$0xf] %v1099
      %1150 = vst [vmem:[%s175 + $0x1c] sm:$0xf] %v1100
      %1151 = vst [vmem:[%s175 + $0x20] sm:$0xf] %v1101
      %1152 = vst [vmem:[%s175 + $0x24] sm:$0xf] %v1102
      %1153 = vst [vmem:[%s175 + $0x28] sm:$0xf] %v1103
      %1154 = vst [vmem:[%s175 + $0x2c] sm:$0xf] %v1104
      %1155 = vst [vmem:[%s175 + $0x30] sm:$0xf] %v1105
      %1156 = vst [vmem:[%s175 + $0x34] sm:$0xf] %v1106
      %1157 = vst [vmem:[%s175 + $0x38] sm:$0xf] %v1107
      %1158 = vst [vmem:[%s175 + $0x3c] sm:$0xf] %v1108
      %1159 = vst [vmem:[%s175 + $0x40] sm:$0xf] %v1109
      %1160 = vst [vmem:[%s175 + $0x44] sm:$0xf] %v1110
      %1161 = vst [vmem:[%s175 + $0x48] sm:$0xf] %v1111
      %1162 = vst [vmem:[%s175 + $0x4c] sm:$0xf] %v1112
      %1163 = vst [vmem:[%s175 + $0x50] sm:$0xf] %v1113
      %1164 = vst [vmem:[%s175 + $0x54] sm:$0xf] %v1114
      %1165 = vst [vmem:[%s175 + $0x58] sm:$0xf] %v1115
      %1166 = vst [vmem:[%s175 + $0x5c] sm:$0xf] %v1116
      %1167 = vst [vmem:[%s175 + $0x60] sm:$0xf] %v1117
      %s1168 = smul.u32 25, %s14
      %p1169 = scmp.lt.s32.totalorder %s1168, 49
      %s1170 = scalar_select %p1169, %s1168, 49
      %s1171 = smul.addr %s1170, 4
      %s1172 = scalar_lea.vmem %s3, %s1171
      // Predicated region
      $region33: #{multi_encoder_forward.4} parent=31 // pred_check
        %p1173 = pneg %p100
      $region34: #{multi_encoder_forward.4} parent=31 // pred_check_branch
        %1175 = sbr.rel (%p1173) target = $region36
      $region35: #{multi_encoder_forward.4} parent=31 // pred_region
        %s1176 = smul.u32 25, %s14
      $region36: #{multi_encoder_forward.4} parent=31 // pred_fallthru
        _
    $region32: #{multi_encoder_forward.4} parent=5 // pred_fallthru
      _
    %p1177 = scmp.le.s32.totalorder 2, %s9
    // Predicated region
    $region37: #{multi_encoder_forward.4} parent=5 // pred_check
      %p1178 = pneg %p1177
    $region38: #{multi_encoder_forward.4} parent=5 // pred_check_branch
      %1180 = sbr.rel (%p1178) target = $region40
    $region39: #{multi_encoder_forward.4} parent=5 // pred_region
      %s1181 = ssub.s32 %s9, 2
      // Predicated region
      $region41: #{multi_encoder_forward.4} parent=39 // pred_check
        %p1182 = pneg %p106
      $region42: #{multi_encoder_forward.4} parent=39 // pred_check_branch
        %1184 = sbr.rel (%p1182) target = $region44
      $region43: #{multi_encoder_forward.4} parent=39 // pred_region
        %s1185 = smul.u32 25, %s15
        %p1186 = scmp.lt.s32.totalorder %s1185, 49
        %s1187 = scalar_select %p1186, %s1185, 49
        %s1188 = smul.addr %s1187, 4
        %s1189 = scalar_lea.vmem %s3, %s1188
      $region44: #{multi_encoder_forward.4} parent=39 // pred_fallthru
        _
    $region40: #{multi_encoder_forward.4} parent=5 // pred_fallthru
      _
  $region6: #{multi_encoder_forward.4} parent=0 // loop_footer
    %s13 = sadd.s32 1, %s9
  $region7: #{multi_encoder_forward.4} parent=0 // loop_footer_branch
    %8 = sbr.rel target = $region3
  $region8: #{multi_encoder_forward.4} parent=0 // loop_exit
    _

// kernel: multi_encoder_forward.5
$region0: #{multi_encoder_forward.5}
  #allocation0 [shape = 'u32[]', space=smem, size = 0x4, offset = 0x4, fixed_abs, tag = 'smem constant byte address 0x4 - core index']
  #allocation1 [shape = 'u32[144,128]{1,0:T(1,128)}', space=vmem, size = 0x12000, scoped, tag = 'internal scratch']
  %s0 = inlined_call_operand.vmem [shape: bf16[80,1024], index: 0, kind: input, shape index: {}]
  %s1 = inlined_call_operand.vmem [shape: bf16[1024,128], index: 1, kind: input, shape index: {}]
  %s2 = inlined_call_operand.vmem [shape: f32[1,128], index: 2, kind: input, shape index: {}]
  %s3 = inlined_call_operand.vmem [shape: bf16[64,40], index: 3, kind: input, shape index: {}]
  %s4 = inlined_call_operand.vmem [shape: bf16[16,128,256], index: 4, kind: input, shape index: {}]
  %s5 = inlined_call_operand.vmem [shape: f32[1,256], index: 5, kind: input, shape index: {}]
  %s6 = inlined_call_operand.vmem [shape: bf16[4,256,128], index: 6, kind: input, shape index: {}]
  %s7 = inlined_call_operand.vmem [shape: f32[1,128], index: 7, kind: input, shape index: {}]
  %s8 = inlined_call_operand.hbm [shape: f32[2,1,128], index: 8, kind: output, shape index: {}]
  %s9 = sld [smem:[#allocation0]]
  $region65: #{multi_encoder_forward.5} parent=0
    _
  %s11 = ssub.s32 1, %s9
  %s12 = scalar_select 0, %s11, %s9
  $region1: #{multi_encoder_forward.5} parent=0
    #allocation2 [shape = 'u8[1024]{0}', space=vmem, size = 0x400, scoped, tag = 'output window, operand 0']
    #allocation3 [shape = 's32[2]{0}', space=sflag, size = 0x8, scoped, tag = 'scoped memory for multi_encoder_forward.5']
    %13 = vsyncpa [#allocation3], 0
    %s14 = scalar_lea.sflag [#allocation3], 1
    %15 = vsyncpa %s14, 0
    loop: start=0, step=1, limit=4
    $region2: #{multi_encoder_forward.5} parent=1 // loop_pre_header
      _
    $region3: #{multi_encoder_forward.5} parent=1 // loop_header
      %s17 = sphi 0, %s21
      %p18 = scmp.ge.s32.totalorder %s17, 4
      %s27 = sphi 0, %s29
      %s30 = sphi 0, %s27
      %s31 = sphi 0, %s30
      %s47 = sphi 0, %s31
      %s51 = sphi 0, %s51
      %s53 = sphi 0, %s51
      %s54 = sphi 0, %s53
      %s68 = sphi 0, %s54
      %s72 = sphi 0, %s72
      %s74 = sphi 0, %s72
      %s75 = sphi 0, %s74
      %s89 = sphi 0, %s75
      %s93 = sphi 0, %s93
      %s95 = sphi 0, %s93
      %s96 = sphi 0, %s95
      %s110 = sphi 0, %s96
      %s114 = sphi 0, %s114
      %s116 = sphi 0, %s114
      %s117 = sphi 0, %s116
      %s131 = sphi 0, %s117
      %s135 = sphi 0, %s135
      %s137 = sphi 0, %s135
      %s138 = sphi 0, %s137
      %s152 = sphi 0, %s138
      %s156 = sphi 0, %s156
      %s158 = sphi 0, %s156
      %s159 = sphi 0, %s158
      %s173 = sphi 0, %s159
      %s177 = sphi 0, %s177
      %s179 = sphi 0, %s177
      %s180 = sphi 0, %s179
      %s194 = sphi 0, %s180
      %s200 = sphi 0, %s202
      %s203 = sphi 0, %s200
      %s204 = sphi 0, %s203
      %s220 = sphi 0, %s204
    $region4: #{multi_encoder_forward.5} parent=1 // loop_header_branch
      %20 = sbr.rel (%p18) target = $region8
    $region5: #{multi_encoder_forward.5} parent=1 // loop_body
      %s22 = ssub.s32 %s17, 1
      %s23 = ssub.s32 %s17, 2
      %s24 = sadd.s32 %s17, 1
      %s25 = ssub.s32 %s17, %s24
      %p26 = scmp.eq.s32.totalorder %s25, 0
      %s28 = sadd.s32 %s27, 1
      %s29 = scalar_select %p26, %s27, %s28
      %p32 = pneg %p26
      %p33 = scmp.eq.s32.totalorder %s17, 1
      %p34 = por %p32, %p33
      %p35 = scmp.ne.s32.totalorder %s27, %s30
      %p36 = scmp.eq.s32.totalorder %s17, 0
      %p37 = por %p35, %p36
      %p38 = scmp.ne.s32.totalorder %s27, %s30
      %p39 = scmp.eq.s32.totalorder %s22, 1
      %p40 = por %p38, %p39
      %p41 = scmp.ne.s32.totalorder %s30, %s31
      %p42 = scmp.eq.s32.totalorder %s22, 0
      %p43 = por %p41, %p42
      %p44 = scmp.ne.s32.totalorder %s30, %s31
      %p45 = scmp.eq.s32.totalorder %s23, 1
      %p46 = por %p44, %p45
      %p48 = scmp.ne.s32.totalorder %s31, %s47
      %p49 = scmp.eq.s32.totalorder %s23, 0
      %p50 = por %p48, %p49
      %s52 = sadd.s32 %s51, 1
      %p55 = scmp.eq.s32.totalorder %s17, 1
      %p56 = scmp.ne.s32.totalorder %s51, %s53
      %p57 = scmp.eq.s32.totalorder %s17, 0
      %p58 = por %p56, %p57
      %p59 = scmp.ne.s32.totalorder %s51, %s53
      %p60 = scmp.eq.s32.totalorder %s22, 1
      %p61 = por %p59, %p60
      %p62 = scmp.ne.s32.totalorder %s53, %s54
      %p63 = scmp.eq.s32.totalorder %s22, 0
      %p64 = por %p62, %p63
      %p65 = scmp.ne.s32.totalorder %s53, %s54
      %p66 = scmp.eq.s32.totalorder %s23, 1
      %p67 = por %p65, %p66
      %p69 = scmp.ne.s32.totalorder %s54, %s68
      %p70 = scmp.eq.s32.totalorder %s23, 0
      %p71 = por %p69, %p70
      %s73 = sadd.s32 %s72, 1
      %p76 = scmp.eq.s32.totalorder %s17, 1
      %p77 = scmp.ne.s32.totalorder %s72, %s74
      %p78 = scmp.eq.s32.totalorder %s17, 0
      %p79 = por %p77, %p78
      %p80 = scmp.ne.s32.totalorder %s72, %s74
      %p81 = scmp.eq.s32.totalorder %s22, 1
      %p82 = por %p80, %p81
      %p83 = scmp.ne.s32.totalorder %s74, %s75
      %p84 = scmp.eq.s32.totalorder %s22, 0
      %p85 = por %p83, %p84
      %p86 = scmp.ne.s32.totalorder %s74, %s75
      %p87 = scmp.eq.s32.totalorder %s23, 1
      %p88 = por %p86, %p87
      %p90 = scmp.ne.s32.totalorder %s75, %s89
      %p91 = scmp.eq.s32.totalorder %s23, 0
      %p92 = por %p90, %p91
      %s94 = sadd.s32 %s93, 1
      %p97 = scmp.eq.s32.totalorder %s17, 1
      %p98 = scmp.ne.s32.totalorder %s93, %s95
      %p99 = scmp.eq.s32.totalorder %s17, 0
      %p100 = por %p98, %p99
      %p101 = scmp.ne.s32.totalorder %s93, %s95
      %p102 = scmp.eq.s32.totalorder %s22, 1
      %p103 = por %p101, %p102
      %p104 = scmp.ne.s32.totalorder %s95, %s96
      %p105 = scmp.eq.s32.totalorder %s22, 0
      %p106 = por %p104, %p105
      %p107 = scmp.ne.s32.totalorder %s95, %s96
      %p108 = scmp.eq.s32.totalorder %s23, 1
      %p109 = por %p107, %p108
      %p111 = scmp.ne.s32.totalorder %s96, %s110
      %p112 = scmp.eq.s32.totalorder %s23, 0
      %p113 = por %p111, %p112
      %s115 = sadd.s32 %s114, 1
      %p118 = scmp.eq.s32.totalorder %s17, 1
      %p119 = scmp.ne.s32.totalorder %s114, %s116
      %p120 = scmp.eq.s32.totalorder %s17, 0
      %p121 = por %p119, %p120
      %p122 = scmp.ne.s32.totalorder %s114, %s116
      %p123 = scmp.eq.s32.totalorder %s22, 1
      %p124 = por %p122, %p123
      %p125 = scmp.ne.s32.totalorder %s116, %s117
      %p126 = scmp.eq.s32.totalorder %s22, 0
      %p127 = por %p125, %p126
      %p128 = scmp.ne.s32.totalorder %s116, %s117
      %p129 = scmp.eq.s32.totalorder %s23, 1
      %p130 = por %p128, %p129
      %p132 = scmp.ne.s32.totalorder %s117, %s131
      %p133 = scmp.eq.s32.totalorder %s23, 0
      %p134 = por %p132, %p133
      %s136 = sadd.s32 %s135, 1
      %p139 = scmp.eq.s32.totalorder %s17, 1
      %p140 = scmp.ne.s32.totalorder %s135, %s137
      %p141 = scmp.eq.s32.totalorder %s17, 0
      %p142 = por %p140, %p141
      %p143 = scmp.ne.s32.totalorder %s135, %s137
      %p144 = scmp.eq.s32.totalorder %s22, 1
      %p145 = por %p143, %p144
      %p146 = scmp.ne.s32.totalorder %s137, %s138
      %p147 = scmp.eq.s32.totalorder %s22, 0
      %p148 = por %p146, %p147
      %p149 = scmp.ne.s32.totalorder %s137, %s138
      %p150 = scmp.eq.s32.totalorder %s23, 1
      %p151 = por %p149, %p150
      %p153 = scmp.ne.s32.totalorder %s138, %s152
      %p154 = scmp.eq.s32.totalorder %s23, 0
      %p155 = por %p153, %p154
      %s157 = sadd.s32 %s156, 1
      %p160 = scmp.eq.s32.totalorder %s17, 1
      %p161 = scmp.ne.s32.totalorder %s156, %s158
      %p162 = scmp.eq.s32.totalorder %s17, 0
      %p163 = por %p161, %p162
      %p164 = scmp.ne.s32.totalorder %s156, %s158
      %p165 = scmp.eq.s32.totalorder %s22, 1
      %p166 = por %p164, %p165
      %p167 = scmp.ne.s32.totalorder %s158, %s159
      %p168 = scmp.eq.s32.totalorder %s22, 0
      %p169 = por %p167, %p168
      %p170 = scmp.ne.s32.totalorder %s158, %s159
      %p171 = scmp.eq.s32.totalorder %s23, 1
      %p172 = por %p170, %p171
      %p174 = scmp.ne.s32.totalorder %s159, %s173
      %p175 = scmp.eq.s32.totalorder %s23, 0
      %p176 = por %p174, %p175
      %s178 = sadd.s32 %s177, 1
      %p181 = scmp.eq.s32.totalorder %s17, 1
      %p182 = scmp.ne.s32.totalorder %s177, %s179
      %p183 = scmp.eq.s32.totalorder %s17, 0
      %p184 = por %p182, %p183
      %p185 = scmp.ne.s32.totalorder %s177, %s179
      %p186 = scmp.eq.s32.totalorder %s22, 1
      %p187 = por %p185, %p186
      %p188 = scmp.ne.s32.totalorder %s179, %s180
      %p189 = scmp.eq.s32.totalorder %s22, 0
      %p190 = por %p188, %p189
      %p191 = scmp.ne.s32.totalorder %s179, %s180
      %p192 = scmp.eq.s32.totalorder %s23, 1
      %p193 = por %p191, %p192
      %p195 = scmp.ne.s32.totalorder %s180, %s194
      %p196 = scmp.eq.s32.totalorder %s23, 0
      %p197 = por %p195, %p196
      %s198 = ssub.s32 %s17, %s24
      %p199 = scmp.eq.s32.totalorder %s198, 0
      %s201 = sadd.s32 %s200, 1
      %s202 = scalar_select %p199, %s200, %s201
      %p205 = pneg %p199
      %p206 = scmp.eq.s32.totalorder %s17, 1
      %p207 = por %p205, %p206
      %p208 = scmp.ne.s32.totalorder %s200, %s203
      %p209 = scmp.eq.s32.totalorder %s17, 0
      %p210 = por %p208, %p209
      %p211 = scmp.ne.s32.totalorder %s200, %s203
      %p212 = scmp.eq.s32.totalorder %s22, 1
      %p213 = por %p211, %p212
      %p214 = scmp.ne.s32.totalorder %s203, %s204
      %p215 = scmp.eq.s32.totalorder %s22, 0
      %p216 = por %p214, %p215
      %p217 = scmp.ne.s32.totalorder %s203, %s204
      %p218 = scmp.eq.s32.totalorder %s23, 1
      %p219 = por %p217, %p218
      %p221 = scmp.ne.s32.totalorder %s204, %s220
      %p222 = scmp.eq.s32.totalorder %s23, 0
      %p223 = por %p221, %p222
      %p224 = scmp.le.s32.totalorder 1, %s17
      %p225 = scmp.lt.s32.totalorder %s17, 3
      %p226 = pnand %p224, %p225
      %p227 = pneg %p226
      // Predicated region
      $region9: #{multi_encoder_forward.5} parent=5 // pred_check
        _
      $region10: #{multi_encoder_forward.5} parent=5 // pred_check_branch
        %229 = sbr.rel (%p226) target = $region12
      $region11: #{multi_encoder_forward.5} parent=5 // pred_region
        %s230 = ssub.s32 %s17, 1
        // Predicated region
        $region13: #{multi_encoder_forward.5} parent=11 // pred_check
          %p231 = pneg %p64
        $region14: #{multi_encoder_forward.5} parent=11 // pred_check_branch
          %233 = sbr.rel (%p231) target = $region16
        $region15: #{multi_encoder_forward.5} parent=11 // pred_region
          _
        $region16: #{multi_encoder_forward.5} parent=11 // pred_fallthru
          _
        // Predicated region
        $region17: #{multi_encoder_forward.5} parent=11 // pred_check
          %p234 = pneg %p85
        $region18: #{multi_encoder_forward.5} parent=11 // pred_check_branch
          %236 = sbr.rel (%p234) target = $region20
        $region19: #{multi_encoder_forward.5} parent=11 // pred_region
          _
        $region20: #{multi_encoder_forward.5} parent=11 // pred_fallthru
          _
        // Predicated region
        $region21: #{multi_encoder_forward.5} parent=11 // pred_check
          %p237 = pneg %p106
        $region22: #{multi_encoder_forward.5} parent=11 // pred_check_branch
          %239 = sbr.rel (%p237) target = $region24
        $region23: #{multi_encoder_forward.5} parent=11 // pred_region
          _
        $region24: #{multi_encoder_forward.5} parent=11 // pred_fallthru
          _
        // Predicated region
        $region25: #{multi_encoder_forward.5} parent=11 // pred_check
          %p240 = pneg %p127
        $region26: #{multi_encoder_forward.5} parent=11 // pred_check_branch
          %242 = sbr.rel (%p240) target = $region28
        $region27: #{multi_encoder_forward.5} parent=11 // pred_region
          _
        $region28: #{multi_encoder_forward.5} parent=11 // pred_fallthru
          _
        // Predicated region
        $region29: #{multi_encoder_forward.5} parent=11 // pred_check
          %p243 = pneg %p148
        $region30: #{multi_encoder_forward.5} parent=11 // pred_check_branch
          %245 = sbr.rel (%p243) target = $region32
        $region31: #{multi_encoder_forward.5} parent=11 // pred_region
          _
        $region32: #{multi_encoder_forward.5} parent=11 // pred_fallthru
          _
        // Predicated region
        $region33: #{multi_encoder_forward.5} parent=11 // pred_check
          %p246 = pneg %p169
        $region34: #{multi_encoder_forward.5} parent=11 // pred_check_branch
          %248 = sbr.rel (%p246) target = $region36
        $region35: #{multi_encoder_forward.5} parent=11 // pred_region
          _
        $region36: #{multi_encoder_forward.5} parent=11 // pred_fallthru
          _
        // Predicated region
        $region37: #{multi_encoder_forward.5} parent=11 // pred_check
          %p249 = pneg %p190
        $region38: #{multi_encoder_forward.5} parent=11 // pred_check_branch
          %251 = sbr.rel (%p249) target = $region40
        $region39: #{multi_encoder_forward.5} parent=11 // pred_region
          _
        $region40: #{multi_encoder_forward.5} parent=11 // pred_fallthru
          _
      $region12: #{multi_encoder_forward.5} parent=5 // pred_fallthru
        _
      %p252 = scmp.lt.s32.totalorder %s17, 2
      // Predicated region
      $region41: #{multi_encoder_forward.5} parent=5 // pred_check
        %p253 = pneg %p252
      $region42: #{multi_encoder_forward.5} parent=5 // pred_check_branch
        %255 = sbr.rel (%p253) target = $region44
      $region43: #{multi_encoder_forward.5} parent=5 // pred_region
        // Predicated region
        $region45: #{multi_encoder_forward.5} parent=43 // pred_check
          %p256 = pneg %p37
        $region46: #{multi_encoder_forward.5} parent=43 // pred_check_branch
          %258 = sbr.rel (%p256) target = $region48
        $region47: #{multi_encoder_forward.5} parent=43 // pred_region
          %s259 = smul.u32 5, %s17
          %p260 = scmp.lt.s32.totalorder %s259, 9
          %s261 = scalar_select %p260, %s259, 9
          %s262 = smul.addr %s261, 8
          %s263 = smul.addr %s262, 4
          %s264 = scalar_lea.vmem %s0, %s263
          %s265 = smul.u32 5, %s17
        $region48: #{multi_encoder_forward.5} parent=43 // pred_fallthru
          _
      $region44: #{multi_encoder_forward.5} parent=5 // pred_fallthru
        _
      %p266 = scmp.le.s32.totalorder 1, %s17
      %p267 = scmp.lt.s32.totalorder %s17, 3
      %p268 = pnand %p266, %p267
      %p269 = pneg %p268
      // Predicated region
      $region49: #{multi_encoder_forward.5} parent=5 // pred_check
        _
      $region50: #{multi_encoder_forward.5} parent=5 // pred_check_branch
        %271 = sbr.rel (%p268) target = $region52
      $region51: #{multi_encoder_forward.5} parent=5 // pred_region
        %s272 = ssub.s32 %s17, 1
        %s273 = smul.u32 5, %s22
        %p274 = scmp.lt.s32.totalorder %s273, 9
        %s275 = scalar_select %p274, %s273, 9
        %s276 = smul.addr %s275, 8
        %s277 = smul.addr %s276, 4
        %s278 = scalar_lea.vmem %s0, %s277
        %p279 = pneg %p43
        %p280 = pneg %p40
        %p281 = pneg %p64
        %p282 = pneg %p61
        %p283 = pneg %p85
        %p284 = pneg %p82
        %p285 = pneg %p106
        %p286 = pneg %p103
        %p287 = pneg %p127
        %p288 = pneg %p124
        %p289 = pneg %p148
        %p290 = pneg %p145
        %p291 = pneg %p169
        %p292 = pneg %p166
        %p293 = pneg %p190
        %p294 = pneg %p187
        %p295 = pneg %p216
        %p296 = pneg %p213
        %s297 = sand.u32 %s203, 1
        %s298 = scalar_lea.sflag [#allocation3], %s297
        %s299 = sand.u32 %s203, 1
        %s300 = scalar_lea.vmem [#allocation2], %s299
        %s301 = smul.u32 5, %s22
        %p302 = scmp.lt.s32.totalorder %s301, 9
        %s303 = scalar_select %p302, %s301, 9
        %s304 = smul.addr %s303, 8
        %s305 = smul.addr %s304, 4
        %s306 = scalar_lea.vmem %s0, %s305
        %s307 = smul.u32 5, %s22
        %v309 = vld [vmem:[%s306] sm:$0xff]
        %v310 = vld [vmem:[%s306 + $0x8] sm:$0xff]
        %v311 = vld [vmem:[%s306 + $0x10] sm:$0xff]
        %v312 = vld [vmem:[%s306 + $0x18] sm:$0xff]
        %v313 = vld [vmem:[%s306 + $0x20] sm:$0xff]
        %v314 = vld [vmem:[%s306 + $0x28] sm:$0xff]
        %v315 = vld [vmem:[%s306 + $0x30] sm:$0xff]
        %v316 = vld [vmem:[%s306 + $0x38] sm:$0xff]
        %v317 = vld [vmem:[%s306 + $0x40] sm:$0xff]
        %v318 = vld [vmem:[%s306 + $0x48] sm:$0xff]
        %v319 = vld [vmem:[%s306 + $0x50] sm:$0xff]
        %v320 = vld [vmem:[%s306 + $0x58] sm:$0xff]
        %v321 = vld [vmem:[%s306 + $0x60] sm:$0xff]
        %v322 = vld [vmem:[%s306 + $0x68] sm:$0xff]
        %v323 = vld [vmem:[%s306 + $0x70] sm:$0xff]
        %v324 = vld [vmem:[%s306 + $0x78] sm:$0xff]
        %v325 = vld [vmem:[%s306 + $0x80] sm:$0xff]
        %v326 = vld [vmem:[%s306 + $0x88] sm:$0xff]
        %v327 = vld [vmem:[%s306 + $0x90] sm:$0xff]
        %v328 = vld [vmem:[%s306 + $0x98] sm:$0xff]
        %v329 = vld [vmem:[%s1] sm:$0xf]
        %v330 = vld [vmem:[%s1 + $0x4] sm:$0xf]
        %v331 = vld [vmem:[%s1 + $0x8] sm:$0xf]
        %v332 = vld [vmem:[%s1 + $0xc] sm:$0xf]
        %v333 = vld [vmem:[%s1 + $0x10] sm:$0xf]
        %v334 = vld [vmem:[%s1 + $0x14] sm:$0xf]
        %v335 = vld [vmem:[%s1 + $0x18] sm:$0xf]
        %v336 = vld [vmem:[%s1 + $0x1c] sm:$0xf]
        %v337 = vld [vmem:[%s1 + $0x20] sm:$0xf]
        %v338 = vld [vmem:[%s1 + $0x24] sm:$0xf]
        %v339 = vld [vmem:[%s1 + $0x28] sm:$0xf]
        %v340 = vld [vmem:[%s1 + $0x2c] sm:$0xf]
        %v341 = vld [vmem:[%s1 + $0x30] sm:$0xf]
        %v342 = vld [vmem:[%s1 + $0x34] sm:$0xf]
        %v343 = vld [vmem:[%s1 + $0x38] sm:$0xf]
        %v344 = vld [vmem:[%s1 + $0x3c] sm:$0xf]
        %v345 = vld [vmem:[%s1 + $0x40] sm:$0xf]
        %v346 = vld [vmem:[%s1 + $0x44] sm:$0xf]
        %v347 = vld [vmem:[%s1 + $0x48] sm:$0xf]
        %v348 = vld [vmem:[%s1 + $0x4c] sm:$0xf]
        %v349 = vld [vmem:[%s1 + $0x50] sm:$0xf]
        %v350 = vld [vmem:[%s1 + $0x54] sm:$0xf]
        %v351 = vld [vmem:[%s1 + $0x58] sm:$0xf]
        %v352 = vld [vmem:[%s1 + $0x5c] sm:$0xf]
        %v353 = vld [vmem:[%s1 + $0x60] sm:$0xf]
        %v354 = vld [vmem:[%s1 + $0x64] sm:$0xf]
        %v355 = vld [vmem:[%s1 + $0x68] sm:$0xf]
        %v356 = vld [vmem:[%s1 + $0x6c] sm:$0xf]
        %v357 = vld [vmem:[%s1 + $0x70] sm:$0xf]
        %v358 = vld [vmem:[%s1 + $0x74] sm:$0xf]
        %v359 = vld [vmem:[%s1 + $0x78] sm:$0xf]
        %v360 = vld [vmem:[%s1 + $0x7c] sm:$0xf]
        %v361 = vld [vmem:[%s1 + $0x80] sm:$0xf]
        %v362 = vld [vmem:[%s1 + $0x84] sm:$0xf]
        %v363 = vld [vmem:[%s1 + $0x88] sm:$0xf]
        %v364 = vld [vmem:[%s1 + $0x8c] sm:$0xf]
        %v365 = vld [vmem:[%s1 + $0x90] sm:$0xf]
        %v366 = vld [vmem:[%s1 + $0x94] sm:$0xf]
        %v367 = vld [vmem:[%s1 + $0x98] sm:$0xf]
        %v368 = vld [vmem:[%s1 + $0x9c] sm:$0xf]
        %v369 = vld [vmem:[%s1 + $0xa0] sm:$0xf]
        %v370 = vld [vmem:[%s1 + $0xa4] sm:$0xf]
        %v371 = vld [vmem:[%s1 + $0xa8] sm:$0xf]
        %v372 = vld [vmem:[%s1 + $0xac] sm:$0xf]
        %v373 = vld [vmem:[%s1 + $0xb0] sm:$0xf]
        %v374 = vld [vmem:[%s1 + $0xb4] sm:$0xf]
        %v375 = vld [vmem:[%s1 + $0xb8] sm:$0xf]
        %v376 = vld [vmem:[%s1 + $0xbc] sm:$0xf]
        %v377 = vld [vmem:[%s1 + $0xc0] sm:$0xf]
        %v378 = vld [vmem:[%s1 + $0xc4] sm:$0xf]
        %v379 = vld [vmem:[%s1 + $0xc8] sm:$0xf]
        %v380 = vld [vmem:[%s1 + $0xcc] sm:$0xf]
        %v381 = vld [vmem:[%s1 + $0xd0] sm:$0xf]
        %v382 = vld [vmem:[%s1 + $0xd4] sm:$0xf]
        %v383 = vld [vmem:[%s1 + $0xd8] sm:$0xf]
        %v384 = vld [vmem:[%s1 + $0xdc] sm:$0xf]
        %v385 = vld [vmem:[%s1 + $0xe0] sm:$0xf]
        %v386 = vld [vmem:[%s1 + $0xe4] sm:$0xf]
        %v387 = vld [vmem:[%s1 + $0xe8] sm:$0xf]
        %v388 = vld [vmem:[%s1 + $0xec] sm:$0xf]
        %v389 = vld [vmem:[%s1 + $0xf0] sm:$0xf]
        %v390 = vld [vmem:[%s1 + $0xf4] sm:$0xf]
        %v391 = vld [vmem:[%s1 + $0xf8] sm:$0xf]
        %v392 = vld [vmem:[%s1 + $0xfc] sm:$0xf]
        %v393 = vld [vmem:[%s1 + $0x100] sm:$0xf]
        %v394 = vld [vmem:[%s1 + $0x104] sm:$0xf]
        %v395 = vld [vmem:[%s1 + $0x108] sm:$0xf]
        %v396 = vld [vmem:[%s1 + $0x10c] sm:$0xf]
        %v397 = vld [vmem:[%s1 + $0x110] sm:$0xf]
        %v398 = vld [vmem:[%s1 + $0x114] sm:$0xf]
        %v399 = vld [vmem:[%s1 + $0x118] sm:$0xf]
        %v400 = vld [vmem:[%s1 + $0x11c] sm:$0xf]
        %v401 = vld [vmem:[%s1 + $0x120] sm:$0xf]
        %v402 = vld [vmem:[%s1 + $0x124] sm:$0xf]
        %v403 = vld [vmem:[%s1 + $0x128] sm:$0xf]
        %v404 = vld [vmem:[%s1 + $0x12c] sm:$0xf]
        %v405 = vld [vmem:[%s1 + $0x130] sm:$0xf]
        %v406 = vld [vmem:[%s1 + $0x134] sm:$0xf]
        %v407 = vld [vmem:[%s1 + $0x138] sm:$0xf]
        %v408 = vld [vmem:[%s1 + $0x13c] sm:$0xf]
        %v409 = vld [vmem:[%s1 + $0x140] sm:$0xf]
        %v410 = vld [vmem:[%s1 + $0x144] sm:$0xf]
        %v411 = vld [vmem:[%s1 + $0x148] sm:$0xf]
        %v412 = vld [vmem:[%s1 + $0x14c] sm:$0xf]
        %v413 = vld [vmem:[%s1 + $0x150] sm:$0xf]
        %v414 = vld [vmem:[%s1 + $0x154] sm:$0xf]
        %v415 = vld [vmem:[%s1 + $0x158] sm:$0xf]
        %v416 = vld [vmem:[%s1 + $0x15c] sm:$0xf]
        %v417 = vld [vmem:[%s1 + $0x160] sm:$0xf]
        %v418 = vld [vmem:[%s1 + $0x164] sm:$0xf]
        %v419 = vld [vmem:[%s1 + $0x168] sm:$0xf]
        %v420 = vld [vmem:[%s1 + $0x16c] sm:$0xf]
        %v421 = vld [vmem:[%s1 + $0x170] sm:$0xf]
        %v422 = vld [vmem:[%s1 + $0x174] sm:$0xf]
        %v423 = vld [vmem:[%s1 + $0x178] sm:$0xf]
        %v424 = vld [vmem:[%s1 + $0x17c] sm:$0xf]
        %v425 = vld [vmem:[%s1 + $0x180] sm:$0xf]
        %v426 = vld [vmem:[%s1 + $0x184] sm:$0xf]
        %v427 = vld [vmem:[%s1 + $0x188] sm:$0xf]
        %v428 = vld [vmem:[%s1 + $0x18c] sm:$0xf]
        %v429 = vld [vmem:[%s1 + $0x190] sm:$0xf]
        %v430 = vld [vmem:[%s1 + $0x194] sm:$0xf]
        %v431 = vld [vmem:[%s1 + $0x198] sm:$0xf]
        %v432 = vld [vmem:[%s1 + $0x19c] sm:$0xf]
        %v433 = vld [vmem:[%s1 + $0x1a0] sm:$0xf]
        %v434 = vld [vmem:[%s1 + $0x1a4] sm:$0xf]
        %v435 = vld [vmem:[%s1 + $0x1a8] sm:$0xf]
        %v436 = vld [vmem:[%s1 + $0x1ac] sm:$0xf]
        %v437 = vld [vmem:[%s1 + $0x1b0] sm:$0xf]
        %v438 = vld [vmem:[%s1 + $0x1b4] sm:$0xf]
        %v439 = vld [vmem:[%s1 + $0x1b8] sm:$0xf]
        %v440 = vld [vmem:[%s1 + $0x1bc] sm:$0xf]
        %v441 = vld [vmem:[%s1 + $0x1c0] sm:$0xf]
        %v442 = vld [vmem:[%s1 + $0x1c4] sm:$0xf]
        %v443 = vld [vmem:[%s1 + $0x1c8] sm:$0xf]
        %v444 = vld [vmem:[%s1 + $0x1cc] sm:$0xf]
        %v445 = vld [vmem:[%s1 + $0x1d0] sm:$0xf]
        %v446 = vld [vmem:[%s1 + $0x1d4] sm:$0xf]
        %v447 = vld [vmem:[%s1 + $0x1d8] sm:$0xf]
        %v448 = vld [vmem:[%s1 + $0x1dc] sm:$0xf]
        %v449 = vld [vmem:[%s1 + $0x1e0] sm:$0xf]
        %v450 = vld [vmem:[%s1 + $0x1e4] sm:$0xf]
        %v451 = vld [vmem:[%s1 + $0x1e8] sm:$0xf]
        %v452 = vld [vmem:[%s1 + $0x1ec] sm:$0xf]
        %v453 = vld [vmem:[%s1 + $0x1f0] sm:$0xf]
        %v454 = vld [vmem:[%s1 + $0x1f4] sm:$0xf]
        %v455 = vld [vmem:[%s1 + $0x1f8] sm:$0xf]
        %v456 = vld [vmem:[%s1 + $0x1fc] sm:$0xf]
        %v457 = vld [vmem:[%s2] sm:$0x1]
        %v459 = vlaneseq
        %v460 = vshrl.u32 %v459, 7
        %v461 = vsub.s32 0, %v460
        %v462 = vrot.slane %v457, %v461
        %v484 = vunpack.c.l.b16 %v309
        %v485 = vunpack.c.h.b16 %v309
        %v486 = vunpack.c.l.b16 %v310
        %v487 = vunpack.c.h.b16 %v310
        %v488 = vunpack.c.l.b16 %v311
        %v489 = vunpack.c.h.b16 %v311
        %v490 = vunpack.c.l.b16 %v312
        %v491 = vunpack.c.h.b16 %v312
        %v492 = vunpack.c.l.b16 %v313
        %v493 = vunpack.c.h.b16 %v313
        %v494 = vunpack.c.l.b16 %v314
        %v495 = vunpack.c.h.b16 %v314
        %v496 = vunpack.c.l.b16 %v315
        %v497 = vunpack.c.h.b16 %v315
        %v498 = vunpack.c.l.b16 %v316
        %v499 = vunpack.c.h.b16 %v316
        %v500 = vunpack.c.l.b16 %v317
        %v501 = vunpack.c.h.b16 %v317
        %v502 = vunpack.c.l.b16 %v318
        %v503 = vunpack.c.h.b16 %v318
        %v504 = vunpack.c.l.b16 %v319
        %v505 = vunpack.c.h.b16 %v319
        %v506 = vunpack.c.l.b16 %v320
        %v507 = vunpack.c.h.b16 %v320
        %v508 = vunpack.c.l.b16 %v321
        %v509 = vunpack.c.h.b16 %v321
        %v510 = vunpack.c.l.b16 %v322
        %v511 = vunpack.c.h.b16 %v322
        %v512 = vunpack.c.l.b16 %v323
        %v513 = vunpack.c.h.b16 %v323
        %v514 = vunpack.c.l.b16 %v324
        %v515 = vunpack.c.h.b16 %v324
        %v516 = vunpack.c.l.b16 %v325
        %v517 = vunpack.c.h.b16 %v325
        %v518 = vunpack.c.l.b16 %v326
        %v519 = vunpack.c.h.b16 %v326
        %v520 = vunpack.c.l.b16 %v327
        %v521 = vunpack.c.h.b16 %v327
        %v522 = vunpack.c.l.b16 %v328
        %v523 = vunpack.c.h.b16 %v328
        %v524 = vpack.c.b16 %v492, %v484
        %v525 = vpack.c.b16 %v493, %v485
        %v526 = vpack.c.b16 %v494, %v486
        %v527 = vpack.c.b16 %v495, %v487
        %v528 = vpack.c.b16 %v496, %v488
        %v529 = vpack.c.b16 %v497, %v489
        %v530 = vpack.c.b16 %v498, %v490
        %v531 = vpack.c.b16 %v499, %v491
        %v532 = vpack.c.b16 %v508, %v500
        %v533 = vpack.c.b16 %v509, %v501
        %v534 = vpack.c.b16 %v510, %v502
        %v535 = vpack.c.b16 %v511, %v503
        %v536 = vpack.c.b16 %v512, %v504
        %v537 = vpack.c.b16 %v513, %v505
        %v538 = vpack.c.b16 %v514, %v506
        %v539 = vpack.c.b16 %v515, %v507
        %v540 = vpack.c.b16 %v516, %v516
        %v541 = vpack.c.b16 %v517, %v517
        %v542 = vpack.c.b16 %v518, %v518
        %v543 = vpack.c.b16 %v519, %v519
        %v544 = vpack.c.b16 %v520, %v520
        %v545 = vpack.c.b16 %v521, %v521
        %v546 = vpack.c.b16 %v522, %v522
        %v547 = vpack.c.b16 %v523, %v523
        %v700 = vunpack.c.l.b16 %v329
        %v701 = vunpack.c.l.b16 %v330
        %v702 = vunpack.c.l.b16 %v331
        %v703 = vunpack.c.l.b16 %v332
        %v704 = vunpack.c.l.b16 %v333
        %v705 = vunpack.c.l.b16 %v334
        %v706 = vunpack.c.l.b16 %v335
        %v707 = vunpack.c.l.b16 %v336
        %v708 = vunpack.c.l.b16 %v337
        %v709 = vunpack.c.l.b16 %v338
        %v710 = vunpack.c.l.b16 %v339
        %v711 = vunpack.c.l.b16 %v340
        %v712 = vunpack.c.l.b16 %v341
        %v713 = vunpack.c.l.b16 %v342
        %v714 = vunpack.c.l.b16 %v343
        %v715 = vunpack.c.l.b16 %v344
        %v716 = vunpack.c.l.b16 %v345
        %v717 = vunpack.c.l.b16 %v346
        %v718 = vunpack.c.l.b16 %v347
        %v719 = vunpack.c.l.b16 %v348
        %v720 = vunpack.c.l.b16 %v349
        %v721 = vunpack.c.l.b16 %v350
        %v722 = vunpack.c.l.b16 %v351
        %v723 = vunpack.c.l.b16 %v352
        %v724 = vunpack.c.l.b16 %v353
        %v725 = vunpack.c.l.b16 %v354
        %v726 = vunpack.c.l.b16 %v355
        %v727 = vunpack.c.l.b16 %v356
        %v728 = vunpack.c.l.b16 %v357
        %v729 = vunpack.c.l.b16 %v358
        %v730 = vunpack.c.l.b16 %v359
        %v731 = vunpack.c.l.b16 %v360
        %v732 = vunpack.c.l.b16 %v361
        %v733 = vunpack.c.l.b16 %v362
        %v734 = vunpack.c.l.b16 %v363
        %v735 = vunpack.c.l.b16 %v364
        %v736 = vunpack.c.l.b16 %v365
        %v737 = vunpack.c.l.b16 %v366
        %v738 = vunpack.c.l.b16 %v367
        %v739 = vunpack.c.l.b16 %v368
        %v740 = vunpack.c.l.b16 %v369
        %v741 = vunpack.c.l.b16 %v370
        %v742 = vunpack.c.l.b16 %v371
        %v743 = vunpack.c.l.b16 %v372
        %v744 = vunpack.c.l.b16 %v373
        %v745 = vunpack.c.l.b16 %v374
        %v746 = vunpack.c.l.b16 %v375
        %v747 = vunpack.c.l.b16 %v376
        %v748 = vunpack.c.l.b16 %v377
        %v749 = vunpack.c.l.b16 %v378
        %v750 = vunpack.c.l.b16 %v379
        %v751 = vunpack.c.l.b16 %v380
        %v752 = vunpack.c.l.b16 %v381
        %v753 = vunpack.c.l.b16 %v382
        %v754 = vunpack.c.l.b16 %v383
        %v755 = vunpack.c.l.b16 %v384
        %v756 = vunpack.c.l.b16 %v385
        %v757 = vunpack.c.l.b16 %v386
        %v758 = vunpack.c.l.b16 %v387
        %v759 = vunpack.c.l.b16 %v388
        %v760 = vunpack.c.l.b16 %v389
        %v761 = vunpack.c.l.b16 %v390
        %v762 = vunpack.c.l.b16 %v391
        %v763 = vunpack.c.l.b16 %v392
        %v764 = vunpack.c.l.b16 %v393
        %v765 = vunpack.c.l.b16 %v394
        %v766 = vunpack.c.l.b16 %v395
        %v767 = vunpack.c.l.b16 %v396
        %v768 = vunpack.c.l.b16 %v397
        %v769 = vunpack.c.l.b16 %v398
        %v770 = vunpack.c.l.b16 %v399
        %v771 = vunpack.c.l.b16 %v400
        %v772 = vunpack.c.l.b16 %v401
        %v773 = vunpack.c.l.b16 %v402
        %v774 = vunpack.c.l.b16 %v403
        %v775 = vunpack.c.l.b16 %v404
        %v776 = vunpack.c.l.b16 %v405
        %v777 = vunpack.c.l.b16 %v406
        %v778 = vunpack.c.l.b16 %v407
        %v779 = vunpack.c.l.b16 %v408
        %v780 = vunpack.c.l.b16 %v409
        %v781 = vunpack.c.l.b16 %v410
        %v782 = vunpack.c.l.b16 %v411
        %v783 = vunpack.c.l.b16 %v412
        %v784 = vunpack.c.l.b16 %v413
        %v785 = vunpack.c.l.b16 %v414
        %v786 = vunpack.c.l.b16 %v415
        %v787 = vunpack.c.l.b16 %v416
        %v788 = vunpack.c.l.b16 %v417
        %v789 = vunpack.c.l.b16 %v418
        %v790 = vunpack.c.l.b16 %v419
        %v791 = vunpack.c.l.b16 %v420
        %v792 = vunpack.c.l.b16 %v421
        %v793 = vunpack.c.l.b16 %v422
        %v794 = vunpack.c.l.b16 %v423
        %v795 = vunpack.c.l.b16 %v424
        %v796 = vunpack.c.l.b16 %v425
        %v797 = vunpack.c.l.b16 %v426
        %v798 = vunpack.c.l.b16 %v427
        %v799 = vunpack.c.l.b16 %v428
        %v800 = vunpack.c.l.b16 %v429
        %v801 = vunpack.c.l.b16 %v430
        %v802 = vunpack.c.l.b16 %v431
        %v803 = vunpack.c.l.b16 %v432
        %v804 = vunpack.c.l.b16 %v433
        %v805 = vunpack.c.l.b16 %v434
        %v806 = vunpack.c.l.b16 %v435
        %v807 = vunpack.c.l.b16 %v436
        %v808 = vunpack.c.l.b16 %v437
        %v809 = vunpack.c.l.b16 %v438
        %v810 = vunpack.c.l.b16 %v439
        %v811 = vunpack.c.l.b16 %v440
        %v812 = vunpack.c.l.b16 %v441
        %v813 = vunpack.c.l.b16 %v442
        %v814 = vunpack.c.l.b16 %v443
        %v815 = vunpack.c.l.b16 %v444
        %v816 = vunpack.c.l.b16 %v445
        %v817 = vunpack.c.l.b16 %v446
        %v818 = vunpack.c.l.b16 %v447
        %v819 = vunpack.c.l.b16 %v448
        %v820 = vunpack.c.l.b16 %v449
        %v821 = vunpack.c.l.b16 %v450
        %v822 = vunpack.c.l.b16 %v451
        %v823 = vunpack.c.l.b16 %v452
        %v824 = vunpack.c.l.b16 %v453
        %v825 = vunpack.c.l.b16 %v454
        %v826 = vunpack.c.l.b16 %v455
        %v827 = vunpack.c.l.b16 %v456
        %v828 = vpack.c.b16 %v701, %v700
        %v829 = vpack.c.b16 %v703, %v702
        %v830 = vpack.c.b16 %v705, %v704
        %v831 = vpack.c.b16 %v707, %v706
        %v832 = vpack.c.b16 %v709, %v708
        %v833 = vpack.c.b16 %v711, %v710
        %v834 = vpack.c.b16 %v713, %v712
        %v835 = vpack.c.b16 %v715, %v714
        %v836 = vpack.c.b16 %v717, %v716
        %v837 = vpack.c.b16 %v719, %v718
        %v838 = vpack.c.b16 %v721, %v720
        %v839 = vpack.c.b16 %v723, %v722
        %v840 = vpack.c.b16 %v725, %v724
        %v841 = vpack.c.b16 %v727, %v726
        %v842 = vpack.c.b16 %v729, %v728
        %v843 = vpack.c.b16 %v731, %v730
        %v844 = vpack.c.b16 %v733, %v732
        %v845 = vpack.c.b16 %v735, %v734
        %v846 = vpack.c.b16 %v737, %v736
        %v847 = vpack.c.b16 %v739, %v738
        %v848 = vpack.c.b16 %v741, %v740
        %v849 = vpack.c.b16 %v743, %v742
        %v850 = vpack.c.b16 %v745, %v744
        %v851 = vpack.c.b16 %v747, %v746
        %v852 = vpack.c.b16 %v749, %v748
        %v853 = vpack.c.b16 %v751, %v750
        %v854 = vpack.c.b16 %v753, %v752
        %v855 = vpack.c.b16 %v755, %v754
        %v856 = vpack.c.b16 %v757, %v756
        %v857 = vpack.c.b16 %v759, %v758
        %v858 = vpack.c.b16 %v761, %v760
        %v859 = vpack.c.b16 %v763, %v762
        %v860 = vpack.c.b16 %v765, %v764
        %v861 = vpack.c.b16 %v767, %v766
        %v862 = vpack.c.b16 %v769, %v768
        %v863 = vpack.c.b16 %v771, %v770
        %v864 = vpack.c.b16 %v773, %v772
        %v865 = vpack.c.b16 %v775, %v774
        %v866 = vpack.c.b16 %v777, %v776
        %v867 = vpack.c.b16 %v779, %v778
        %v868 = vpack.c.b16 %v781, %v780
        %v869 = vpack.c.b16 %v783, %v782
        %v870 = vpack.c.b16 %v785, %v784
        %v871 = vpack.c.b16 %v787, %v786
        %v872 = vpack.c.b16 %v789, %v788
        %v873 = vpack.c.b16 %v791, %v790
        %v874 = vpack.c.b16 %v793, %v792
        %v875 = vpack.c.b16 %v795, %v794
        %v876 = vpack.c.b16 %v797, %v796
        %v877 = vpack.c.b16 %v799, %v798
        %v878 = vpack.c.b16 %v801, %v800
        %v879 = vpack.c.b16 %v803, %v802
        %v880 = vpack.c.b16 %v805, %v804
        %v881 = vpack.c.b16 %v807, %v806
        %v882 = vpack.c.b16 %v809, %v808
        %v883 = vpack.c.b16 %v811, %v810
        %v884 = vpack.c.b16 %v813, %v812
        %v885 = vpack.c.b16 %v815, %v814
        %v886 = vpack.c.b16 %v817, %v816
        %v887 = vpack.c.b16 %v819, %v818
        %v888 = vpack.c.b16 %v821, %v820
        %v889 = vpack.c.b16 %v823, %v822
        %v890 = vpack.c.b16 %v825, %v824
        %v891 = vpack.c.b16 %v827, %v826
        %956 = vmatprep.subr.bf16.mxu0 0
        %957 = vmatpush1.bf16.msra.mxu0 %v828
        %958 = vmatprep.subr.bf16.mxu0 0
        %959 = vmatpush1.bf16.msra.mxu0 %v829
        %960 = vmatprep.subr.bf16.mxu0 0
        %961 = vmatpush1.bf16.msra.mxu0 %v830
        %962 = vmatprep.subr.bf16.mxu0 0
        %963 = vmatpush1.bf16.msra.mxu0 %v831
        %964 = vmatprep.subr.bf16.mxu0 0
        %965 = vmatpush1.bf16.msra.mxu0 %v832
        %966 = vmatprep.subr.bf16.mxu0 0
        %967 = vmatpush1.bf16.msra.mxu0 %v833
        %968 = vmatprep.subr.bf16.mxu0 0
        %969 = vmatpush1.bf16.msra.mxu0 %v834
        %970 = vmatprep.subr.bf16.mxu0 0
        %971 = vmatpush1.bf16.msra.mxu0 %v835
        %972 = vmatprep.subr.bf16.mxu0 0
        %973 = vmatpush1.bf16.msra.mxu0 %v836
        %974 = vmatprep.subr.bf16.mxu0 0
        %975 = vmatpush1.bf16.msra.mxu0 %v837
        %976 = vmatprep.subr.bf16.mxu0 0
        %977 = vmatpush1.bf16.msra.mxu0 %v838
        %978 = vmatprep.subr.bf16.mxu0 0
        %979 = vmatpush1.bf16.msra.mxu0 %v839
        %980 = vmatprep.subr.bf16.mxu0 0
        %981 = vmatpush1.bf16.msra.mxu0 %v840
        %982 = vmatprep.subr.bf16.mxu0 0
        %983 = vmatpush1.bf16.msra.mxu0 %v841
        %984 = vmatprep.subr.bf16.mxu0 0
        %985 = vmatpush1.bf16.msra.mxu0 %v842
        %986 = vmatprep.subr.bf16.mxu0 0
        %987 = vmatpush1.bf16.msra.mxu0 %v843
        %988 = vmatprep.mubr.bf16.mxu0 %v525
        %989 = vmatmul.mubr.bf16.gmra.mrb[0].mxu0 %v524
        %v990 = vpop.f32.mrb[0].mxu0
        %v991 = vadd.f32 %v462, %v990
        %v992 = vpop.f32.mrb[0].mxu0
        %v993 = vpop.f32.mrb[0].mxu0
        %v994 = vadd.f32 %v462, %v993
        %v995 = vpop.f32.mrb[0].mxu0
        %996 = vmatprep.mubr.bf16.mxu0 %v533
        %997 = vmatmul.mubr.bf16.gmra.mrb[0].mxu0 %v532
        %v998 = vpop.f32.mrb[0].mxu0
        %v999 = vadd.f32 %v462, %v998
        %v1000 = vpop.f32.mrb[0].mxu0
        %v1001 = vpop.f32.mrb[0].mxu0
        %v1002 = vadd.f32 %v462, %v1001
        %v1003 = vpop.f32.mrb[0].mxu0
        %1004 = vmatprep.mubr.bf16.mxu0 %v541
        %1005 = vmatmul.mubr.bf16.gmra.mrb[0].mxu0 %v540
        %v1006 = vpop.f32.mrb[0].mxu0
        %v1007 = vadd.f32 %v462, %v1006
        %v1008 = vpop.f32.mrb[0].mxu0
        %v1009 = vpop.f32.mrb[0].mxu0
        %v1010 = vpop.f32.mrb[0].mxu0
        %1011 = vdwg.mxu0
        %1012 = vmatprep.subr.bf16.mxu0 0
        %1013 = vmatpush1.bf16.msra.mxu0 %v844
        %1014 = vmatprep.subr.bf16.mxu0 0
        %1015 = vmatpush1.bf16.msra.mxu0 %v845
        %1016 = vmatprep.subr.bf16.mxu0 0
        %1017 = vmatpush1.bf16.msra.mxu0 %v846
        %1018 = vmatprep.subr.bf16.mxu0 0
        %1019 = vmatpush1.bf16.msra.mxu0 %v847
        %1020 = vmatprep.subr.bf16.mxu0 0
        %1021 = vmatpush1.bf16.msra.mxu0 %v848
        %1022 = vmatprep.subr.bf16.mxu0 0
        %1023 = vmatpush1.bf16.msra.mxu0 %v849
        %1024 = vmatprep.subr.bf16.mxu0 0
        %1025 = vmatpush1.bf16.msra.mxu0 %v850
        %1026 = vmatprep.subr.bf16.mxu0 0
        %1027 = vmatpush1.bf16.msra.mxu0 %v851
        %1028 = vmatprep.subr.bf16.mxu0 0
        %1029 = vmatpush1.bf16.msra.mxu0 %v852
        %1030 = vmatprep.subr.bf16.mxu0 0
        %1031 = vmatpush1.bf16.msra.mxu0 %v853
        %1032 = vmatprep.subr.bf16.mxu0 0
        %1033 = vmatpush1.bf16.msra.mxu0 %v854
        %1034 = vmatprep.subr.bf16.mxu0 0
        %1035 = vmatpush1.bf16.msra.mxu0 %v855
        %1036 = vmatprep.subr.bf16.mxu0 0
        %1037 = vmatpush1.bf16.msra.mxu0 %v856
        %1038 = vmatprep.subr.bf16.mxu0 0
        %1039 = vmatpush1.bf16.msra.mxu0 %v857
        %1040 = vmatprep.subr.bf16.mxu0 0
        %1041 = vmatpush1.bf16.msra.mxu0 %v858
        %1042 = vmatprep.subr.bf16.mxu0 0
        %1043 = vmatpush1.bf16.msra.mxu0 %v859
        %1044 = vmatprep.mubr.bf16.mxu0 %v527
        %1045 = vmatmul.mubr.bf16.gmra.mrb[0].mxu0 %v526
        %v1046 = vpop.f32.mrb[0].mxu0
        %v1047 = vadd.f32 %v991, %v1046
        %v1048 = vpop.f32.mrb[0].mxu0
        %v1049 = vpop.f32.mrb[0].mxu0
        %v1050 = vadd.f32 %v994, %v1049
        %v1051 = vpop.f32.mrb[0].mxu0
        %1052 = vmatprep.mubr.bf16.mxu0 %v535
        %1053 = vmatmul.mubr.bf16.gmra.mrb[0].mxu0 %v534
        %v1054 = vpop.f32.mrb[0].mxu0
        %v1055 = vadd.f32 %v999, %v1054
        %v1056 = vpop.f32.mrb[0].mxu0
        %v1057 = vpop.f32.mrb[0].mxu0
        %v1058 = vadd.f32 %v1002, %v1057
        %v1059 = vpop.f32.mrb[0].mxu0
        %1060 = vmatprep.mubr.bf16.mxu0 %v543
        %1061 = vmatmul.mubr.bf16.gmra.mrb[0].mxu0 %v542
        %v1062 = vpop.f32.mrb[0].mxu0
        %v1063 = vadd.f32 %v1007, %v1062
        %v1064 = vpop.f32.mrb[0].mxu0
        %v1065 = vpop.f32.mrb[0].mxu0
        %v1066 = vpop.f32.mrb[0].mxu0
        %1067 = vdwg.mxu0
        %1068 = vmatprep.subr.bf16.mxu0 0
        %1069 = vmatpush1.bf16.msra.mxu0 %v860
        %1070 = vmatprep.subr.bf16.mxu0 0
        %1071 = vmatpush1.bf16.msra.mxu0 %v861
        %1072 = vmatprep.subr.bf16.mxu0 0
        %1073 = vmatpush1.bf16.msra.mxu0 %v862
        %1074 = vmatprep.subr.bf16.mxu0 0
        %1075 = vmatpush1.bf16.msra.mxu0 %v863
        %1076 = vmatprep.subr.bf16.mxu0 0
        %1077 = vmatpush1.bf16.msra.mxu0 %v864
        %1078 = vmatprep.subr.bf16.mxu0 0
        %1079 = vmatpush1.bf16.msra.mxu0 %v865
        %1080 = vmatprep.subr.bf16.mxu0 0
        %1081 = vmatpush1.bf16.msra.mxu0 %v866
        %1082 = vmatprep.subr.bf16.mxu0 0
        %1083 = vmatpush1.bf16.msra.mxu0 %v867
        %1084 = vmatprep.subr.bf16.mxu0 0
        %1085 = vmatpush1.bf16.msra.mxu0 %v868
        %1086 = vmatprep.subr.bf16.mxu0 0
        %1087 = vmatpush1.bf16.msra.mxu0 %v869
        %1088 = vmatprep.subr.bf16.mxu0 0
        %1089 = vmatpush1.bf16.msra.mxu0 %v870
        %1090 = vmatprep.subr.bf16.mxu0 0
        %1091 = vmatpush1.bf16.msra.mxu0 %v871
        %1092 = vmatprep.subr.bf16.mxu0 0
        %1093 = vmatpush1.bf16.msra.mxu0 %v872
        %1094 = vmatprep.subr.bf16.mxu0 0
        %1095 = vmatpush1.bf16.msra.mxu0 %v873
        %1096 = vmatprep.subr.bf16.mxu0 0
        %1097 = vmatpush1.bf16.msra.mxu0 %v874
        %1098 = vmatprep.subr.bf16.mxu0 0
        %1099 = vmatpush1.bf16.msra.mxu0 %v875
        %1100 = vmatprep.mubr.bf16.mxu0 %v529
        %1101 = vmatmul.mubr.bf16.gmra.mrb[0].mxu0 %v528
        %v1102 = vpop.f32.mrb[0].mxu0
        %v1103 = vadd.f32 %v1047, %v1102
        %v1104 = vpop.f32.mrb[0].mxu0
        %v1105 = vpop.f32.mrb[0].mxu0
        %v1106 = vadd.f32 %v1050, %v1105
        %v1107 = vpop.f32.mrb[0].mxu0
        %1108 = vmatprep.mubr.bf16.mxu0 %v537
        %1109 = vmatmul.mubr.bf16.gmra.mrb[0].mxu0 %v536
        %v1110 = vpop.f32.mrb[0].mxu0
        %v1111 = vadd.f32 %v1055, %v1110
        %v1112 = vpop.f32.mrb[0].mxu0
        %v1113 = vpop.f32.mrb[0].mxu0
        %v1114 = vadd.f32 %v1058, %v1113
        %v1115 = vpop.f32.mrb[0].mxu0
        %1116 = vmatprep.mubr.bf16.mxu0 %v545
        %1117 = vmatmul.mubr.bf16.gmra.mrb[0].mxu0 %v544
        %v1118 = vpop.f32.mrb[0].mxu0
        %v1119 = vadd.f32 %v1063, %v1118
        %v1120 = vpop.f32.mrb[0].mxu0
        %v1121 = vpop.f32.mrb[0].mxu0
        %v1122 = vpop.f32.mrb[0].mxu0
        %1123 = vdwg.mxu0
        %1124 = vmatprep.subr.bf16.mxu0 0
        %1125 = vmatpush1.bf16.msra.mxu0 %v876
        %1126 = vmatprep.subr.bf16.mxu0 0
        %1127 = vmatpush1.bf16.msra.mxu0 %v877
        %1128 = vmatprep.subr.bf16.mxu0 0
        %1129 = vmatpush1.bf16.msra.mxu0 %v878
        %1130 = vmatprep.subr.bf16.mxu0 0
        %1131 = vmatpush1.bf16.msra.mxu0 %v879
        %1132 = vmatprep.subr.bf16.mxu0 0
        %1133 = vmatpush1.bf16.msra.mxu0 %v880
        %1134 = vmatprep.subr.bf16.mxu0 0
        %1135 = vmatpush1.bf16.msra.mxu0 %v881
        %1136 = vmatprep.subr.bf16.mxu0 0
        %1137 = vmatpush1.bf16.msra.mxu0 %v882
        %1138 = vmatprep.subr.bf16.mxu0 0
        %1139 = vmatpush1.bf16.msra.mxu0 %v883
        %1140 = vmatprep.subr.bf16.mxu0 0
        %1141 = vmatpush1.bf16.msra.mxu0 %v884
        %1142 = vmatprep.subr.bf16.mxu0 0
        %1143 = vmatpush1.bf16.msra.mxu0 %v885
        %1144 = vmatprep.subr.bf16.mxu0 0
        %1145 = vmatpush1.bf16.msra.mxu0 %v886
        %1146 = vmatprep.subr.bf16.mxu0 0
        %1147 = vmatpush1.bf16.msra.mxu0 %v887
        %1148 = vmatprep.subr.bf16.mxu0 0
        %1149 = vmatpush1.bf16.msra.mxu0 %v888
        %1150 = vmatprep.subr.bf16.mxu0 0
        %1151 = vmatpush1.bf16.msra.mxu0 %v889
        %1152 = vmatprep.subr.bf16.mxu0 0
        %1153 = vmatpush1.bf16.msra.mxu0 %v890
        %1154 = vmatprep.subr.bf16.mxu0 0
        %1155 = vmatpush1.bf16.msra.mxu0 %v891
        %1156 = vmatprep.mubr.bf16.mxu0 %v531
        %1157 = vmatmul.mubr.bf16.gmra.mrb[0].mxu0 %v530
        %v1158 = vpop.f32.mrb[0].mxu0
        %v1159 = vadd.f32 %v1103, %v1158
        %v1160 = vpop.f32.mrb[0].mxu0
        %v1161 = vpop.f32.mrb[0].mxu0
        %v1162 = vadd.f32 %v1106, %v1161
        %v1163 = vpop.f32.mrb[0].mxu0
        %1164 = vmatprep.mubr.bf16.mxu0 %v539
        %1165 = vmatmul.mubr.bf16.gmra.mrb[0].mxu0 %v538
        %v1166 = vpop.f32.mrb[0].mxu0
        %v1167 = vadd.f32 %v1111, %v1166
        %v1168 = vpop.f32.mrb[0].mxu0
        %v1169 = vpop.f32.mrb[0].mxu0
        %v1170 = vadd.f32 %v1114, %v1169
        %v1171 = vpop.f32.mrb[0].mxu0
        %1172 = vmatprep.mubr.bf16.mxu0 %v547
        %1173 = vmatmul.mubr.bf16.gmra.mrb[0].mxu0 %v546
        %v1174 = vpop.f32.mrb[0].mxu0
        %v1175 = vadd.f32 %v1119, %v1174
        %v1176 = vpop.f32.mrb[0].mxu0
        %v1177 = vpop.f32.mrb[0].mxu0
        %v1178 = vpop.f32.mrb[0].mxu0
        %1179 = vdwg.mxu0
        %v1180 = vmax.f32 %v1159, 0.0
        %v1181 = vmax.f32 %v1162, 0.0
        %v1182 = vmax.f32 %v1167, 0.0
        %v1183 = vmax.f32 %v1170, 0.0
        %v1184 = vmax.f32 %v1175, 0.0
        %v1185 = vpack.c.bf16 %v1181, %v1180
        %v1186 = vpack.c.bf16 %v1183, %v1182
        %v1187 = vpack.c.bf16 %v1184, %v1184
        %v1188 = vld [vmem:[%s3] sm:$0xf]
        %v1189 = vld [vmem:[%s3 + $0x4] sm:$0xf]
        %v1190 = vld [vmem:[%s3 + $0x8] sm:$0xf]
        %v1191 = vld [vmem:[%s3 + $0xc] sm:$0xf]
        %v1192 = vld [vmem:[%s3 + $0x10] sm:$0xf]
        %v1193 = vld [vmem:[%s3 + $0x14] sm:$0xf]
        %v1194 = vld [vmem:[%s3 + $0x18] sm:$0xf]
        %v1195 = vld [vmem:[%s3 + $0x1c] sm:$0xf]
        %v1204 = vunpack.c.l.b16 %v1188
        %v1205 = vunpack.c.l.b16 %v1189
        %v1206 = vunpack.c.l.b16 %v1190
        %v1207 = vunpack.c.l.b16 %v1191
        %v1208 = vunpack.c.l.b16 %v1192
        %v1209 = vunpack.c.l.b16 %v1193
        %v1210 = vunpack.c.l.b16 %v1194
        %v1211 = vunpack.c.l.b16 %v1195
        %v1212 = vpack.c.b16 %v1205, %v1204
        %v1213 = vpack.c.b16 %v1207, %v1206
        %v1214 = vpack.c.b16 %v1209, %v1208
        %v1215 = vpack.c.b16 %v1211, %v1210
        %vm1216 = vcmask 326656
        %v1218 = vsel %vm1216, %v1212, 0
        %v1221 = vsel %vm1216, %v1213, 0
        %v1224 = vsel %vm1216, %v1214, 0
        %v1227 = vsel %vm1216, %v1215, 0
        %vm1229 = vcmask 1043456
        %v1231 = vsel %vm1229, %v1187, 0
        %1233 = vmatprep.subr.bf16.mxu0 0
        %1234 = vmatpush1.bf16.msra.mxu0 %v1185
        %1235 = vmatprep.subr.bf16.mxu0 0
        %1236 = vmatpush1.bf16.msra.mxu0 %v1186
        %1237 = vmatprep.subr.bf16.mxu0 0
        %1238 = vmatpush1.bf16.msra.mxu0 %v1231
        %1239 = vmatprep.subr.bf16.mxu0 0
        %1240 = vmatpush1.bf16.msra.mxu0 0
        %1241 = vmatprep.subr.bf16.mxu0 0
        %1242 = vmatpush1.bf16.msra.mxu0 0
        %1243 = vmatprep.subr.bf16.mxu0 0
        %1244 = vmatpush1.bf16.msra.mxu0 0
        %1245 = vmatprep.subr.bf16.mxu0 0
        %1246 = vmatpush1.bf16.msra.mxu0 0
        %1247 = vmatprep.subr.bf16.mxu0 0
        %1248 = vmatpush1.bf16.msra.mxu0 0
        %1249 = vmatprep.subr.bf16.mxu0 0
        %1250 = vmatpush1.bf16.msra.mxu0 0
        %1251 = vmatprep.subr.bf16.mxu0 0
        %1252 = vmatpush1.bf16.msra.mxu0 0
        %1253 = vmatprep.subr.bf16.mxu0 0
        %1254 = vmatpush1.bf16.msra.mxu0 0
        %1255 = vmatprep.subr.bf16.mxu0 0
        %1256 = vmatpush1.bf16.msra.mxu0 0
        %1257 = vmatprep.subr.bf16.mxu0 0
        %1258 = vmatpush1.bf16.msra.mxu0 0
        %1259 = vmatprep.subr.bf16.mxu0 0
        %1260 = vmatpush1.bf16.msra.mxu0 0
        %1261 = vmatprep.subr.bf16.mxu0 0
        %1262 = vmatpush1.bf16.msra.mxu0 0
        %1263 = vmatprep.subr.bf16.mxu0 0
        %1264 = vmatpush1.bf16.msra.mxu0 0
        %1265 = vmatprep.mubr.bf16.mxu0 0
        %1266 = vmatmul.mubr.bf16.gmra.mrb[0].mxu0 %v1218
        %v1267 = vpop.f32.mrb[0].mxu0
        %v1268 = vadd.f32 0.0, %v1267
        %v1269 = vpop.f32.mrb[0].mxu0
        %v1270 = vpop.f32.mrb[0].mxu0
        %v1271 = vadd.f32 0.0, %v1270
        %v1272 = vpop.f32.mrb[0].mxu0
        %1273 = vmatprep.mubr.bf16.mxu0 0
        %1274 = vmatmul.mubr.bf16.gmra.mrb[0].mxu0 %v1221
        %v1275 = vpop.f32.mrb[0].mxu0
        %v1276 = vadd.f32 0.0, %v1275
        %v1277 = vpop.f32.mrb[0].mxu0
        %v1278 = vpop.f32.mrb[0].mxu0
        %v1279 = vadd.f32 0.0, %v1278
        %v1280 = vpop.f32.mrb[0].mxu0
        %1281 = vmatprep.mubr.bf16.mxu0 0
        %1282 = vmatmul.mubr.bf16.gmra.mrb[0].mxu0 %v1224
        %v1283 = vpop.f32.mrb[0].mxu0
        %v1284 = vadd.f32 0.0, %v1283
        %v1285 = vpop.f32.mrb[0].mxu0
        %v1286 = vpop.f32.mrb[0].mxu0
        %v1287 = vadd.f32 0.0, %v1286
        %v1288 = vpop.f32.mrb[0].mxu0
        %1289 = vmatprep.mubr.bf16.mxu0 0
        %1290 = vmatmul.mubr.bf16.gmra.mrb[0].mxu0 %v1227
        %v1291 = vpop.f32.mrb[0].mxu0
        %v1292 = vadd.f32 0.0, %v1291
        %v1293 = vpop.f32.mrb[0].mxu0
        %v1294 = vpop.f32.mrb[0].mxu0
        %v1295 = vadd.f32 0.0, %v1294
        %v1296 = vpop.f32.mrb[0].mxu0
        %1297 = vdwg.mxu0
        %v1298 = vpack.c.bf16 %v1271, %v1268
        %v1299 = vpack.c.bf16 %v1279, %v1276
        %v1300 = vpack.c.bf16 %v1287, %v1284
        %v1301 = vpack.c.bf16 %v1295, %v1292
        %v1302 = vld [vmem:[%s4] sm:$0xff]
        %v1303 = vld [vmem:[%s4 + $0x8] sm:$0xff]
        %v1304 = vld [vmem:[%s4 + $0x10] sm:$0xff]
        %v1305 = vld [vmem:[%s4 + $0x18] sm:$0xff]
        %v1306 = vld [vmem:[%s4 + $0x20] sm:$0xff]
        %v1307 = vld [vmem:[%s4 + $0x28] sm:$0xff]
        %v1308 = vld [vmem:[%s4 + $0x30] sm:$0xff]
        %v1309 = vld [vmem:[%s4 + $0x38] sm:$0xff]
        %v1310 = vld [vmem:[%s4 + $0x40] sm:$0xff]
        %v1311 = vld [vmem:[%s4 + $0x48] sm:$0xff]
        %v1312 = vld [vmem:[%s4 + $0x50] sm:$0xff]
        %v1313 = vld [vmem:[%s4 + $0x58] sm:$0xff]
        %v1314 = vld [vmem:[%s4 + $0x60] sm:$0xff]
        %v1315 = vld [vmem:[%s4 + $0x68] sm:$0xff]
        %v1316 = vld [vmem:[%s4 + $0x70] sm:$0xff]
        %v1317 = vld [vmem:[%s4 + $0x78] sm:$0xff]
        %s1318 = scalar_lea.vmem %s4, 128
        %v1319 = vld [vmem:[%s1318] sm:$0xff]
        %v1320 = vld [vmem:[%s1318 + $0x8] sm:$0xff]
        %v1321 = vld [vmem:[%s1318 + $0x10] sm:$0xff]
        %v1322 = vld [vmem:[%s1318 + $0x18] sm:$0xff]
        %v1323 = vld [vmem:[%s1318 + $0x20] sm:$0xff]
        %v1324 = vld [vmem:[%s1318 + $0x28] sm:$0xff]
        %v1325 = vld [vmem:[%s1318 + $0x30] sm:$0xff]
        %v1326 = vld [vmem:[%s1318 + $0x38] sm:$0xff]
        %v1327 = vld [vmem:[%s1318 + $0x40] sm:$0xff]
        %v1328 = vld [vmem:[%s1318 + $0x48] sm:$0xff]
        %v1329 = vld [vmem:[%s1318 + $0x50] sm:$0xff]
        %v1330 = vld [vmem:[%s1318 + $0x58] sm:$0xff]
        %v1331 = vld [vmem:[%s1318 + $0x60] sm:$0xff]
        %v1332 = vld [vmem:[%s1318 + $0x68] sm:$0xff]
        %v1333 = vld [vmem:[%s1318 + $0x70] sm:$0xff]
        %v1334 = vld [vmem:[%s1318 + $0x78] sm:$0xff]
        %v1336 = vrot.slane %v1298, 2
        %v1354 = vunpack.c.l.b16 %v1319
        %v1355 = vunpack.c.h.b16 %v1319
        %v1356 = vunpack.c.l.b16 %v1320
        %v1357 = vunpack.c.h.b16 %v1320
        %v1358 = vunpack.c.l.b16 %v1321
        %v1359 = vunpack.c.h.b16 %v1321
        %v1360 = vunpack.c.l.b16 %v1322
        %v1361 = vunpack.c.h.b16 %v1322
        %v1362 = vunpack.c.l.b16 %v1323
        %v1363 = vunpack.c.h.b16 %v1323
        %v1364 = vunpack.c.l.b16 %v1324
        %v1365 = vunpack.c.h.b16 %v1324
        %v1366 = vunpack.c.l.b16 %v1325
        %v1367 = vunpack.c.h.b16 %v1325
        %v1368 = vunpack.c.l.b16 %v1326
        %v1369 = vunpack.c.h.b16 %v1326
        %v1370 = vunpack.c.l.b16 %v1327
        %v1371 = vunpack.c.h.b16 %v1327
        %v1372 = vunpack.c.l.b16 %v1328
        %v1373 = vunpack.c.h.b16 %v1328
        %v1374 = vunpack.c.l.b16 %v1329
        %v1375 = vunpack.c.h.b16 %v1329
        %v1376 = vunpack.c.l.b16 %v1330
        %v1377 = vunpack.c.h.b16 %v1330
        %v1378 = vunpack.c.l.b16 %v1331
        %v1379 = vunpack.c.h.b16 %v1331
        %v1380 = vunpack.c.l.b16 %v1332
        %v1381 = vunpack.c.h.b16 %v1332
        %v1382 = vunpack.c.l.b16 %v1333
        %v1383 = vunpack.c.h.b16 %v1333
        %v1384 = vunpack.c.l.b16 %v1334
        %v1385 = vunpack.c.h.b16 %v1334
        %v1386 = vpack.c.b16 %v1356, %v1354
        %v1387 = vpack.c.b16 %v1357, %v1355
        %v1388 = vpack.c.b16 %v1360, %v1358
        %v1389 = vpack.c.b16 %v1361, %v1359
        %v1390 = vpack.c.b16 %v1364, %v1362
        %v1391 = vpack.c.b16 %v1365, %v1363
        %v1392 = vpack.c.b16 %v1368, %v1366
        %v1393 = vpack.c.b16 %v1369, %v1367
        %v1394 = vpack.c.b16 %v1372, %v1370
        %v1395 = vpack.c.b16 %v1373, %v1371
        %v1396 = vpack.c.b16 %v1376, %v1374
        %v1397 = vpack.c.b16 %v1377, %v1375
        %v1398 = vpack.c.b16 %v1380, %v1378
        %v1399 = vpack.c.b16 %v1381, %v1379
        %v1400 = vpack.c.b16 %v1384, %v1382
        %v1401 = vpack.c.b16 %v1385, %v1383
        %1418 = vmatprep.subr.bf16.mxu0 %v1387
        %1419 = vmatpush1.bf16.msra.mxu0 %v1386
        %1420 = vmatprep.subr.bf16.mxu0 %v1389
        %1421 = vmatpush1.bf16.msra.mxu0 %v1388
        %1422 = vmatprep.subr.bf16.mxu0 %v1391
        %1423 = vmatpush1.bf16.msra.mxu0 %v1390
        %1424 = vmatprep.subr.bf16.mxu0 %v1393
        %1425 = vmatpush1.bf16.msra.mxu0 %v1392
        %1426 = vmatprep.subr.bf16.mxu0 %v1395
        %1427 = vmatpush1.bf16.msra.mxu0 %v1394
        %1428 = vmatprep.subr.bf16.mxu0 %v1397
        %1429 = vmatpush1.bf16.msra.mxu0 %v1396
        %1430 = vmatprep.subr.bf16.mxu0 %v1399
        %1431 = vmatpush1.bf16.msra.mxu0 %v1398
        %1432 = vmatprep.subr.bf16.mxu0 %v1401
        %1433 = vmatpush1.bf16.msra.mxu0 %v1400
        %1434 = vmatprep.subr.bf16.mxu0 0
        %1435 = vmatpush1.bf16.msra.mxu0 0
        %1436 = vmatprep.subr.bf16.mxu0 0
        %1437 = vmatpush1.bf16.msra.mxu0 0
        %1438 = vmatprep.subr.bf16.mxu0 0
        %1439 = vmatpush1.bf16.msra.mxu0 0
        %1440 = vmatprep.subr.bf16.mxu0 0
        %1441 = vmatpush1.bf16.msra.mxu0 0
        %1442 = vmatprep.subr.bf16.mxu0 0
        %1443 = vmatpush1.bf16.msra.mxu0 0
        %1444 = vmatprep.subr.bf16.mxu0 0
        %1445 = vmatpush1.bf16.msra.mxu0 0
        %1446 = vmatprep.subr.bf16.mxu0 0
        %1447 = vmatpush1.bf16.msra.mxu0 0
        %1448 = vmatprep.subr.bf16.mxu0 0
        %1449 = vmatpush1.bf16.msra.mxu0 0
        %1450 = vmatprep.mubr.bf16.mxu0 0
        %1451 = vmatmul.mubr.bf16.gmra.mrb[0].mxu0 %v1336
        %v1452 = vpop.f32.mrb[0].mxu0
        %v1453 = vadd.f32 0.0, %v1452
        %v1454 = vpop.f32.mrb[0].mxu0
        %v1455 = vadd.f32 0.0, %v1454
        %v1456 = vpop.f32.mrb[0].mxu0
        %v1457 = vpop.f32.mrb[0].mxu0
        %1458 = vdwg.mxu0
        %s1459 = scalar_lea.vmem %s4, 256
        %v1460 = vld [vmem:[%s1459] sm:$0xff]
        %v1461 = vld [vmem:[%s1459 + $0x8] sm:$0xff]
        %v1462 = vld [vmem:[%s1459 + $0x10] sm:$0xff]
        %v1463 = vld [vmem:[%s1459 + $0x18] sm:$0xff]
        %v1464 = vld [vmem:[%s1459 + $0x20] sm:$0xff]
        %v1465 = vld [vmem:[%s1459 + $0x28] sm:$0xff]
        %v1466 = vld [vmem:[%s1459 + $0x30] sm:$0xff]
        %v1467 = vld [vmem:[%s1459 + $0x38] sm:$0xff]
        %v1468 = vld [vmem:[%s1459 + $0x40] sm:$0xff]
        %v1469 = vld [vmem:[%s1459 + $0x48] sm:$0xff]
        %v1470 = vld [vmem:[%s1459 + $0x50] sm:$0xff]
        %v1471 = vld [vmem:[%s1459 + $0x58] sm:$0xff]
        %v1472 = vld [vmem:[%s1459 + $0x60] sm:$0xff]
        %v1473 = vld [vmem:[%s1459 + $0x68] sm:$0xff]
        %v1474 = vld [vmem:[%s1459 + $0x70] sm:$0xff]
        %v1475 = vld [vmem:[%s1459 + $0x78] sm:$0xff]
        %s1476 = scalar_lea.vmem %s4, 384
        %v1477 = vld [vmem:[%s1476] sm:$0xff]
        %v1478 = vld [vmem:[%s1476 + $0x8] sm:$0xff]
        %v1479 = vld [vmem:[%s1476 + $0x10] sm:$0xff]
        %v1480 = vld [vmem:[%s1476 + $0x18] sm:$0xff]
        %v1481 = vld [vmem:[%s1476 + $0x20] sm:$0xff]
        %v1482 = vld [vmem:[%s1476 + $0x28] sm:$0xff]
        %v1483 = vld [vmem:[%s1476 + $0x30] sm:$0xff]
        %v1484 = vld [vmem:[%s1476 + $0x38] sm:$0xff]
        %v1485 = vld [vmem:[%s1476 + $0x40] sm:$0xff]
        %v1486 = vld [vmem:[%s1476 + $0x48] sm:$0xff]
        %v1487 = vld [vmem:[%s1476 + $0x50] sm:$0xff]
        %v1488 = vld [vmem:[%s1476 + $0x58] sm:$0xff]
        %v1489 = vld [vmem:[%s1476 + $0x60] sm:$0xff]
        %v1490 = vld [vmem:[%s1476 + $0x68] sm:$0xff]
        %v1491 = vld [vmem:[%s1476 + $0x70] sm:$0xff]
        %v1492 = vld [vmem:[%s1476 + $0x78] sm:$0xff]
        %v1493 = vrot.slane %v1298, 6
        %v1511 = vunpack.c.l.b16 %v1477
        %v1512 = vunpack.c.h.b16 %v1477
        %v1513 = vunpack.c.l.b16 %v1478
        %v1514 = vunpack.c.h.b16 %v1478
        %v1515 = vunpack.c.l.b16 %v1479
        %v1516 = vunpack.c.h.b16 %v1479
        %v1517 = vunpack.c.l.b16 %v1480
        %v1518 = vunpack.c.h.b16 %v1480
        %v1519 = vunpack.c.l.b16 %v1481
        %v1520 = vunpack.c.h.b16 %v1481
        %v1521 = vunpack.c.l.b16 %v1482
        %v1522 = vunpack.c.h.b16 %v1482
        %v1523 = vunpack.c.l.b16 %v1483
        %v1524 = vunpack.c.h.b16 %v1483
        %v1525 = vunpack.c.l.b16 %v1484
        %v1526 = vunpack.c.h.b16 %v1484
        %v1527 = vunpack.c.l.b16 %v1485
        %v1528 = vunpack.c.h.b16 %v1485
        %v1529 = vunpack.c.l.b16 %v1486
        %v1530 = vunpack.c.h.b16 %v1486
        %v1531 = vunpack.c.l.b16 %v1487
        %v1532 = vunpack.c.h.b16 %v1487
        %v1533 = vunpack.c.l.b16 %v1488
        %v1534 = vunpack.c.h.b16 %v1488
        %v1535 = vunpack.c.l.b16 %v1489
        %v1536 = vunpack.c.h.b16 %v1489
        %v1537 = vunpack.c.l.b16 %v1490
        %v1538 = vunpack.c.h.b16 %v1490
        %v1539 = vunpack.c.l.b16 %v1491
        %v1540 = vunpack.c.h.b16 %v1491
        %v1541 = vunpack.c.l.b16 %v1492
        %v1542 = vunpack.c.h.b16 %v1492
        %v1543 = vpack.c.b16 %v1513, %v1511
        %v1544 = vpack.c.b16 %v1514, %v1512
        %v1545 = vpack.c.b16 %v1517, %v1515
        %v1546 = vpack.c.b16 %v1518, %v1516
        %v1547 = vpack.c.b16 %v1521, %v1519
        %v1548 = vpack.c.b16 %v1522, %v1520
        %v1549 = vpack.c.b16 %v1525, %v1523
        %v1550 = vpack.c.b16 %v1526, %v1524
        %v1551 = vpack.c.b16 %v1529, %v1527
        %v1552 = vpack.c.b16 %v1530, %v1528
        %v1553 = vpack.c.b16 %v1533, %v1531
        %v1554 = vpack.c.b16 %v1534, %v1532
        %v1555 = vpack.c.b16 %v1537, %v1535
        %v1556 = vpack.c.b16 %v1538, %v1536
        %v1557 = vpack.c.b16 %v1541, %v1539
        %v1558 = vpack.c.b16 %v1542, %v1540
        %1575 = vmatprep.subr.bf16.mxu0 %v1544
        %1576 = vmatpush1.bf16.msra.mxu0 %v1543
        %1577 = vmatprep.subr.bf16.mxu0 %v1546
        %1578 = vmatpush1.bf16.msra.mxu0 %v1545
        %1579 = vmatprep.subr.bf16.mxu0 %v1548
        %1580 = vmatpush1.bf16.msra.mxu0 %v1547
        %1581 = vmatprep.subr.bf16.mxu0 %v1550
        %1582 = vmatpush1.bf16.msra.mxu0 %v1549
        %1583 = vmatprep.subr.bf16.mxu0 %v1552
        %1584 = vmatpush1.bf16.msra.mxu0 %v1551
        %1585 = vmatprep.subr.bf16.mxu0 %v1554
        %1586 = vmatpush1.bf16.msra.mxu0 %v1553
        %1587 = vmatprep.subr.bf16.mxu0 %v1556
        %1588 = vmatpush1.bf16.msra.mxu0 %v1555
        %1589 = vmatprep.subr.bf16.mxu0 %v1558
        %1590 = vmatpush1.bf16.msra.mxu0 %v1557
        %1591 = vmatprep.subr.bf16.mxu0 0
        %1592 = vmatpush1.bf16.msra.mxu0 0
        %1593 = vmatprep.subr.bf16.mxu0 0
        %1594 = vmatpush1.bf16.msra.mxu0 0
        %1595 = vmatprep.subr.bf16.mxu0 0
        %1596 = vmatpush1.bf16.msra.mxu0 0
        %1597 = vmatprep.subr.bf16.mxu0 0
        %1598 = vmatpush1.bf16.msra.mxu0 0
        %1599 = vmatprep.subr.bf16.mxu0 0
        %1600 = vmatpush1.bf16.msra.mxu0 0
        %1601 = vmatprep.subr.bf16.mxu0 0
        %1602 = vmatpush1.bf16.msra.mxu0 0
        %1603 = vmatprep.subr.bf16.mxu0 0
        %1604 = vmatpush1.bf16.msra.mxu0 0
        %1605 = vmatprep.subr.bf16.mxu0 0
        %1606 = vmatpush1.bf16.msra.mxu0 0
        %1607 = vmatprep.mubr.bf16.mxu0 0
        %1608 = vmatmul.mubr.bf16.gmra.mrb[0].mxu0 %v1493
        %v1609 = vpop.f32.mrb[0].mxu0
        %v1610 = vadd.f32 0.0, %v1609
        %v1611 = vpop.f32.mrb[0].mxu0
        %v1612 = vadd.f32 0.0, %v1611
        %v1613 = vpop.f32.mrb[0].mxu0
        %v1614 = vpop.f32.mrb[0].mxu0
        %1615 = vdwg.mxu0
        %s1616 = scalar_lea.vmem %s4, 512
        %v1617 = vld [vmem:[%s1616] sm:$0xff]
        %v1618 = vld [vmem:[%s1616 + $0x8] sm:$0xff]
        %v1619 = vld [vmem:[%s1616 + $0x10] sm:$0xff]
        %v1620 = vld [vmem:[%s1616 + $0x18] sm:$0xff]
        %v1621 = vld [vmem:[%s1616 + $0x20] sm:$0xff]
        %v1622 = vld [vmem:[%s1616 + $0x28] sm:$0xff]
        %v1623 = vld [vmem:[%s1616 + $0x30] sm:$0xff]
        %v1624 = vld [vmem:[%s1616 + $0x38] sm:$0xff]
        %v1625 = vld [vmem:[%s1616 + $0x40] sm:$0xff]
        %v1626 = vld [vmem:[%s1616 + $0x48] sm:$0xff]
        %v1627 = vld [vmem:[%s1616 + $0x50] sm:$0xff]
        %v1628 = vld [vmem:[%s1616 + $0x58] sm:$0xff]
        %v1629 = vld [vmem:[%s1616 + $0x60] sm:$0xff]
        %v1630 = vld [vmem:[%s1616 + $0x68] sm:$0xff]
        %v1631 = vld [vmem:[%s1616 + $0x70] sm:$0xff]
        %v1632 = vld [vmem:[%s1616 + $0x78] sm:$0xff]
        %s1633 = scalar_lea.vmem %s4, 640
        %v1634 = vld [vmem:[%s1633] sm:$0xff]
        %v1635 = vld [vmem:[%s1633 + $0x8] sm:$0xff]
        %v1636 = vld [vmem:[%s1633 + $0x10] sm:$0xff]
        %v1637 = vld [vmem:[%s1633 + $0x18] sm:$0xff]
        %v1638 = vld [vmem:[%s1633 + $0x20] sm:$0xff]
        %v1639 = vld [vmem:[%s1633 + $0x28] sm:$0xff]
        %v1640 = vld [vmem:[%s1633 + $0x30] sm:$0xff]
        %v1641 = vld [vmem:[%s1633 + $0x38] sm:$0xff]
        %v1642 = vld [vmem:[%s1633 + $0x40] sm:$0xff]
        %v1643 = vld [vmem:[%s1633 + $0x48] sm:$0xff]
        %v1644 = vld [vmem:[%s1633 + $0x50] sm:$0xff]
        %v1645 = vld [vmem:[%s1633 + $0x58] sm:$0xff]
        %v1646 = vld [vmem:[%s1633 + $0x60] sm:$0xff]
        %v1647 = vld [vmem:[%s1633 + $0x68] sm:$0xff]
        %v1648 = vld [vmem:[%s1633 + $0x70] sm:$0xff]
        %v1649 = vld [vmem:[%s1633 + $0x78] sm:$0xff]
        %v1651 = vrot.slane %v1299, 2
        %v1669 = vunpack.c.l.b16 %v1634
        %v1670 = vunpack.c.h.b16 %v1634
        %v1671 = vunpack.c.l.b16 %v1635
        %v1672 = vunpack.c.h.b16 %v1635
        %v1673 = vunpack.c.l.b16 %v1636
        %v1674 = vunpack.c.h.b16 %v1636
        %v1675 = vunpack.c.l.b16 %v1637
        %v1676 = vunpack.c.h.b16 %v1637
        %v1677 = vunpack.c.l.b16 %v1638
        %v1678 = vunpack.c.h.b16 %v1638
        %v1679 = vunpack.c.l.b16 %v1639
        %v1680 = vunpack.c.h.b16 %v1639
        %v1681 = vunpack.c.l.b16 %v1640
        %v1682 = vunpack.c.h.b16 %v1640
        %v1683 = vunpack.c.l.b16 %v1641
        %v1684 = vunpack.c.h.b16 %v1641
        %v1685 = vunpack.c.l.b16 %v1642
        %v1686 = vunpack.c.h.b16 %v1642
        %v1687 = vunpack.c.l.b16 %v1643
        %v1688 = vunpack.c.h.b16 %v1643
        %v1689 = vunpack.c.l.b16 %v1644
        %v1690 = vunpack.c.h.b16 %v1644
        %v1691 = vunpack.c.l.b16 %v1645
        %v1692 = vunpack.c.h.b16 %v1645
        %v1693 = vunpack.c.l.b16 %v1646
        %v1694 = vunpack.c.h.b16 %v1646
        %v1695 = vunpack.c.l.b16 %v1647
        %v1696 = vunpack.c.h.b16 %v1647
        %v1697 = vunpack.c.l.b16 %v1648
        %v1698 = vunpack.c.h.b16 %v1648
        %v1699 = vunpack.c.l.b16 %v1649
        %v1700 = vunpack.c.h.b16 %v1649
        %v1701 = vpack.c.b16 %v1671, %v1669
        %v1702 = vpack.c.b16 %v1672, %v1670
        %v1703 = vpack.c.b16 %v1675, %v1673
        %v1704 = vpack.c.b16 %v1676, %v1674
        %v1705 = vpack.c.b16 %v1679, %v1677
        %v1706 = vpack.c.b16 %v1680, %v1678
        %v1707 = vpack.c.b16 %v1683, %v1681
        %v1708 = vpack.c.b16 %v1684, %v1682
        %v1709 = vpack.c.b16 %v1687, %v1685
        %v1710 = vpack.c.b16 %v1688, %v1686
        %v1711 = vpack.c.b16 %v1691, %v1689
        %v1712 = vpack.c.b16 %v1692, %v1690
        %v1713 = vpack.c.b16 %v1695, %v1693
        %v1714 = vpack.c.b16 %v1696, %v1694
        %v1715 = vpack.c.b16 %v1699, %v1697
        %v1716 = vpack.c.b16 %v1700, %v1698
        %1733 = vmatprep.subr.bf16.mxu0 %v1702
        %1734 = vmatpush1.bf16.msra.mxu0 %v1701
        %1735 = vmatprep.subr.bf16.mxu0 %v1704
        %1736 = vmatpush1.bf16.msra.mxu0 %v1703
        %1737 = vmatprep.subr.bf16.mxu0 %v1706
        %1738 = vmatpush1.bf16.msra.mxu0 %v1705
        %1739 = vmatprep.subr.bf16.mxu0 %v1708
        %1740 = vmatpush1.bf16.msra.mxu0 %v1707
        %1741 = vmatprep.subr.bf16.mxu0 %v1710
        %1742 = vmatpush1.bf16.msra.mxu0 %v1709
        %1743 = vmatprep.subr.bf16.mxu0 %v1712
        %1744 = vmatpush1.bf16.msra.mxu0 %v1711
        %1745 = vmatprep.subr.bf16.mxu0 %v1714
        %1746 = vmatpush1.bf16.msra.mxu0 %v1713
        %1747 = vmatprep.subr.bf16.mxu0 %v1716
        %1748 = vmatpush1.bf16.msra.mxu0 %v1715
        %1749 = vmatprep.subr.bf16.mxu0 0
        %1750 = vmatpush1.bf16.msra.mxu0 0
        %1751 = vmatprep.subr.bf16.mxu0 0
        %1752 = vmatpush1.bf16.msra.mxu0 0
        %1753 = vmatprep.subr.bf16.mxu0 0
        %1754 = vmatpush1.bf16.msra.mxu0 0
        %1755 = vmatprep.subr.bf16.mxu0 0
        %1756 = vmatpush1.bf16.msra.mxu0 0
        %1757 = vmatprep.subr.bf16.mxu0 0
        %1758 = vmatpush1.bf16.msra.mxu0 0
        %1759 = vmatprep.subr.bf16.mxu0 0
        %1760 = vmatpush1.bf16.msra.mxu0 0
        %1761 = vmatprep.subr.bf16.mxu0 0
        %1762 = vmatpush1.bf16.msra.mxu0 0
        %1763 = vmatprep.subr.bf16.mxu0 0
        %1764 = vmatpush1.bf16.msra.mxu0 0
        %1765 = vmatprep.mubr.bf16.mxu0 0
        %1766 = vmatmul.mubr.bf16.gmra.mrb[0].mxu0 %v1651
        %v1767 = vpop.f32.mrb[0].mxu0
        %v1768 = vadd.f32 0.0, %v1767
        %v1769 = vpop.f32.mrb[0].mxu0
        %v1770 = vadd.f32 0.0, %v1769
        %v1771 = vpop.f32.mrb[0].mxu0
        %v1772 = vpop.f32.mrb[0].mxu0
        %1773 = vdwg.mxu0
        %s1774 = scalar_lea.vmem %s4, 768
        %v1775 = vld [vmem:[%s1774] sm:$0xff]
        %v1776 = vld [vmem:[%s1774 + $0x8] sm:$0xff]
        %v1777 = vld [vmem:[%s1774 + $0x10] sm:$0xff]
        %v1778 = vld [vmem:[%s1774 + $0x18] sm:$0xff]
        %v1779 = vld [vmem:[%s1774 + $0x20] sm:$0xff]
        %v1780 = vld [vmem:[%s1774 + $0x28] sm:$0xff]
        %v1781 = vld [vmem:[%s1774 + $0x30] sm:$0xff]
        %v1782 = vld [vmem:[%s1774 + $0x38] sm:$0xff]
        %v1783 = vld [vmem:[%s1774 + $0x40] sm:$0xff]
        %v1784 = vld [vmem:[%s1774 + $0x48] sm:$0xff]
        %v1785 = vld [vmem:[%s1774 + $0x50] sm:$0xff]
        %v1786 = vld [vmem:[%s1774 + $0x58] sm:$0xff]
        %v1787 = vld [vmem:[%s1774 + $0x60] sm:$0xff]
        %v1788 = vld [vmem:[%s1774 + $0x68] sm:$0xff]
        %v1789 = vld [vmem:[%s1774 + $0x70] sm:$0xff]
        %v1790 = vld [vmem:[%s1774 + $0x78] sm:$0xff]
        %s1791 = scalar_lea.vmem %s4, 896
        %v1792 = vld [vmem:[%s1791] sm:$0xff]
        %v1793 = vld [vmem:[%s1791 + $0x8] sm:$0xff]
        %v1794 = vld [vmem:[%s1791 + $0x10] sm:$0xff]
        %v1795 = vld [vmem:[%s1791 + $0x18] sm:$0xff]
        %v1796 = vld [vmem:[%s1791 + $0x20] sm:$0xff]
        %v1797 = vld [vmem:[%s1791 + $0x28] sm:$0xff]
        %v1798 = vld [vmem:[%s1791 + $0x30] sm:$0xff]
        %v1799 = vld [vmem:[%s1791 + $0x38] sm:$0xff]
        %v1800 = vld [vmem:[%s1791 + $0x40] sm:$0xff]
        %v1801 = vld [vmem:[%s1791 + $0x48] sm:$0xff]
        %v1802 = vld [vmem:[%s1791 + $0x50] sm:$0xff]
        %v1803 = vld [vmem:[%s1791 + $0x58] sm:$0xff]
        %v1804 = vld [vmem:[%s1791 + $0x60] sm:$0xff]
        %v1805 = vld [vmem:[%s1791 + $0x68] sm:$0xff]
        %v1806 = vld [vmem:[%s1791 + $0x70] sm:$0xff]
        %v1807 = vld [vmem:[%s1791 + $0x78] sm:$0xff]
        %v1808 = vrot.slane %v1299, 6
        %v1826 = vunpack.c.l.b16 %v1792
        %v1827 = vunpack.c.h.b16 %v1792
        %v1828 = vunpack.c.l.b16 %v1793
        %v1829 = vunpack.c.h.b16 %v1793
        %v1830 = vunpack.c.l.b16 %v1794
        %v1831 = vunpack.c.h.b16 %v1794
        %v1832 = vunpack.c.l.b16 %v1795
        %v1833 = vunpack.c.h.b16 %v1795
        %v1834 = vunpack.c.l.b16 %v1796
        %v1835 = vunpack.c.h.b16 %v1796
        %v1836 = vunpack.c.l.b16 %v1797
        %v1837 = vunpack.c.h.b16 %v1797
        %v1838 = vunpack.c.l.b16 %v1798
        %v1839 = vunpack.c.h.b16 %v1798
        %v1840 = vunpack.c.l.b16 %v1799
        %v1841 = vunpack.c.h.b16 %v1799
        %v1842 = vunpack.c.l.b16 %v1800
        %v1843 = vunpack.c.h.b16 %v1800
        %v1844 = vunpack.c.l.b16 %v1801
        %v1845 = vunpack.c.h.b16 %v1801
        %v1846 = vunpack.c.l.b16 %v1802
        %v1847 = vunpack.c.h.b16 %v1802
        %v1848 = vunpack.c.l.b16 %v1803
        %v1849 = vunpack.c.h.b16 %v1803
        %v1850 = vunpack.c.l.b16 %v1804
        %v1851 = vunpack.c.h.b16 %v1804
        %v1852 = vunpack.c.l.b16 %v1805
        %v1853 = vunpack.c.h.b16 %v1805
        %v1854 = vunpack.c.l.b16 %v1806
        %v1855 = vunpack.c.h.b16 %v1806
        %v1856 = vunpack.c.l.b16 %v1807
        %v1857 = vunpack.c.h.b16 %v1807
        %v1858 = vpack.c.b16 %v1828, %v1826
        %v1859 = vpack.c.b16 %v1829, %v1827
        %v1860 = vpack.c.b16 %v1832, %v1830
        %v1861 = vpack.c.b16 %v1833, %v1831
        %v1862 = vpack.c.b16 %v1836, %v1834
        %v1863 = vpack.c.b16 %v1837, %v1835
        %v1864 = vpack.c.b16 %v1840, %v1838
        %v1865 = vpack.c.b16 %v1841, %v1839
        %v1866 = vpack.c.b16 %v1844, %v1842
        %v1867 = vpack.c.b16 %v1845, %v1843
        %v1868 = vpack.c.b16 %v1848, %v1846
        %v1869 = vpack.c.b16 %v1849, %v1847
        %v1870 = vpack.c.b16 %v1852, %v1850
        %v1871 = vpack.c.b16 %v1853, %v1851
        %v1872 = vpack.c.b16 %v1856, %v1854
        %v1873 = vpack.c.b16 %v1857, %v1855
        %1890 = vmatprep.subr.bf16.mxu0 %v1859
        %1891 = vmatpush1.bf16.msra.mxu0 %v1858
        %1892 = vmatprep.subr.bf16.mxu0 %v1861
        %1893 = vmatpush1.bf16.msra.mxu0 %v1860
        %1894 = vmatprep.subr.bf16.mxu0 %v1863
        %1895 = vmatpush1.bf16.msra.mxu0 %v1862
        %1896 = vmatprep.subr.bf16.mxu0 %v1865
        %1897 = vmatpush1.bf16.msra.mxu0 %v1864
        %1898 = vmatprep.subr.bf16.mxu0 %v1867
        %1899 = vmatpush1.bf16.msra.mxu0 %v1866
        %1900 = vmatprep.subr.bf16.mxu0 %v1869
        %1901 = vmatpush1.bf16.msra.mxu0 %v1868
        %1902 = vmatprep.subr.bf16.mxu0 %v1871
        %1903 = vmatpush1.bf16.msra.mxu0 %v1870
        %1904 = vmatprep.subr.bf16.mxu0 %v1873
        %1905 = vmatpush1.bf16.msra.mxu0 %v1872
        %1906 = vmatprep.subr.bf16.mxu0 0
        %1907 = vmatpush1.bf16.msra.mxu0 0
        %1908 = vmatprep.subr.bf16.mxu0 0
        %1909 = vmatpush1.bf16.msra.mxu0 0
        %1910 = vmatprep.subr.bf16.mxu0 0
        %1911 = vmatpush1.bf16.msra.mxu0 0
        %1912 = vmatprep.subr.bf16.mxu0 0
        %1913 = vmatpush1.bf16.msra.mxu0 0
        %1914 = vmatprep.subr.bf16.mxu0 0
        %1915 = vmatpush1.bf16.msra.mxu0 0
        %1916 = vmatprep.subr.bf16.mxu0 0
        %1917 = vmatpush1.bf16.msra.mxu0 0
        %1918 = vmatprep.subr.bf16.mxu0 0
        %1919 = vmatpush1.bf16.msra.mxu0 0
        %1920 = vmatprep.subr.bf16.mxu0 0
        %1921 = vmatpush1.bf16.msra.mxu0 0
        %1922 = vmatprep.mubr.bf16.mxu0 0
        %1923 = vmatmul.mubr.bf16.gmra.mrb[0].mxu0 %v1808
        %v1924 = vpop.f32.mrb[0].mxu0
        %v1925 = vadd.f32 0.0, %v1924
        %v1926 = vpop.f32.mrb[0].mxu0
        %v1927 = vadd.f32 0.0, %v1926
        %v1928 = vpop.f32.mrb[0].mxu0
        %v1929 = vpop.f32.mrb[0].mxu0
        %1930 = vdwg.mxu0
        %s1931 = scalar_lea.vmem %s4, 1024
        %v1932 = vld [vmem:[%s1931] sm:$0xff]
        %v1933 = vld [vmem:[%s1931 + $0x8] sm:$0xff]
        %v1934 = vld [vmem:[%s1931 + $0x10] sm:$0xff]
        %v1935 = vld [vmem:[%s1931 + $0x18] sm:$0xff]
        %v1936 = vld [vmem:[%s1931 + $0x20] sm:$0xff]
        %v1937 = vld [vmem:[%s1931 + $0x28] sm:$0xff]
        %v1938 = vld [vmem:[%s1931 + $0x30] sm:$0xff]
        %v1939 = vld [vmem:[%s1931 + $0x38] sm:$0xff]
        %v1940 = vld [vmem:[%s1931 + $0x40] sm:$0xff]
        %v1941 = vld [vmem:[%s1931 + $0x48] sm:$0xff]
        %v1942 = vld [vmem:[%s1931 + $0x50] sm:$0xff]
        %v1943 = vld [vmem:[%s1931 + $0x58] sm:$0xff]
        %v1944 = vld [vmem:[%s1931 + $0x60] sm:$0xff]
        %v1945 = vld [vmem:[%s1931 + $0x68] sm:$0xff]
        %v1946 = vld [vmem:[%s1931 + $0x70] sm:$0xff]
        %v1947 = vld [vmem:[%s1931 + $0x78] sm:$0xff]
        %s1948 = scalar_lea.vmem %s4, 1152
        %v1949 = vld [vmem:[%s1948] sm:$0xff]
        %v1950 = vld [vmem:[%s1948 + $0x8] sm:$0xff]
        %v1951 = vld [vmem:[%s1948 + $0x10] sm:$0xff]
        %v1952 = vld [vmem:[%s1948 + $0x18] sm:$0xff]
        %v1953 = vld [vmem:[%s1948 + $0x20] sm:$0xff]
        %v1954 = vld [vmem:[%s1948 + $0x28] sm:$0xff]
        %v1955 = vld [vmem:[%s1948 + $0x30] sm:$0xff]
        %v1956 = vld [vmem:[%s1948 + $0x38] sm:$0xff]
        %v1957 = vld [vmem:[%s1948 + $0x40] sm:$0xff]
        %v1958 = vld [vmem:[%s1948 + $0x48] sm:$0xff]
        %v1959 = vld [vmem:[%s1948 + $0x50] sm:$0xff]
        %v1960 = vld [vmem:[%s1948 + $0x58] sm:$0xff]
        %v1961 = vld [vmem:[%s1948 + $0x60] sm:$0xff]
        %v1962 = vld [vmem:[%s1948 + $0x68] sm:$0xff]
        %v1963 = vld [vmem:[%s1948 + $0x70] sm:$0xff]
        %v1964 = vld [vmem:[%s1948 + $0x78] sm:$0xff]
        %v1966 = vrot.slane %v1300, 2
        %v1984 = vunpack.c.l.b16 %v1949
        %v1985 = vunpack.c.h.b16 %v1949
        %v1986 = vunpack.c.l.b16 %v1950
        %v1987 = vunpack.c.h.b16 %v1950
        %v1988 = vunpack.c.l.b16 %v1951
        %v1989 = vunpack.c.h.b16 %v1951
        %v1990 = vunpack.c.l.b16 %v1952
        %v1991 = vunpack.c.h.b16 %v1952
        %v1992 = vunpack.c.l.b16 %v1953
        %v1993 = vunpack.c.h.b16 %v1953
        %v1994 = vunpack.c.l.b16 %v1954
        %v1995 = vunpack.c.h.b16 %v1954
        %v1996 = vunpack.c.l.b16 %v1955
        %v1997 = vunpack.c.h.b16 %v1955
        %v1998 = vunpack.c.l.b16 %v1956
        %v1999 = vunpack.c.h.b16 %v1956
        %v2000 = vunpack.c.l.b16 %v1957
        %v2001 = vunpack.c.h.b16 %v1957
        %v2002 = vunpack.c.l.b16 %v1958
        %v2003 = vunpack.c.h.b16 %v1958
        %v2004 = vunpack.c.l.b16 %v1959
        %v2005 = vunpack.c.h.b16 %v1959
        %v2006 = vunpack.c.l.b16 %v1960
        %v2007 = vunpack.c.h.b16 %v1960
        %v2008 = vunpack.c.l.b16 %v1961
        %v2009 = vunpack.c.h.b16 %v1961
        %v2010 = vunpack.c.l.b16 %v1962
        %v2011 = vunpack.c.h.b16 %v1962
        %v2012 = vunpack.c.l.b16 %v1963
        %v2013 = vunpack.c.h.b16 %v1963
        %v2014 = vunpack.c.l.b16 %v1964
        %v2015 = vunpack.c.h.b16 %v1964
        %v2016 = vpack.c.b16 %v1986, %v1984
        %v2017 = vpack.c.b16 %v1987, %v1985
        %v2018 = vpack.c.b16 %v1990, %v1988
        %v2019 = vpack.c.b16 %v1991, %v1989
        %v2020 = vpack.c.b16 %v1994, %v1992
        %v2021 = vpack.c.b16 %v1995, %v1993
        %v2022 = vpack.c.b16 %v1998, %v1996
        %v2023 = vpack.c.b16 %v1999, %v1997
        %v2024 = vpack.c.b16 %v2002, %v2000
        %v2025 = vpack.c.b16 %v2003, %v2001
        %v2026 = vpack.c.b16 %v2006, %v2004
        %v2027 = vpack.c.b16 %v2007, %v2005
        %v2028 = vpack.c.b16 %v2010, %v2008
        %v2029 = vpack.c.b16 %v2011, %v2009
        %v2030 = vpack.c.b16 %v2014, %v2012
        %v2031 = vpack.c.b16 %v2015, %v2013
        %2048 = vmatprep.subr.bf16.mxu0 %v2017
        %2049 = vmatpush1.bf16.msra.mxu0 %v2016
        %2050 = vmatprep.subr.bf16.mxu0 %v2019
        %2051 = vmatpush1.bf16.msra.mxu0 %v2018
        %2052 = vmatprep.subr.bf16.mxu0 %v2021
        %2053 = vmatpush1.bf16.msra.mxu0 %v2020
        %2054 = vmatprep.subr.bf16.mxu0 %v2023
        %2055 = vmatpush1.bf16.msra.mxu0 %v2022
        %2056 = vmatprep.subr.bf16.mxu0 %v2025
        %2057 = vmatpush1.bf16.msra.mxu0 %v2024
        %2058 = vmatprep.subr.bf16.mxu0 %v2027
        %2059 = vmatpush1.bf16.msra.mxu0 %v2026
        %2060 = vmatprep.subr.bf16.mxu0 %v2029
        %2061 = vmatpush1.bf16.msra.mxu0 %v2028
        %2062 = vmatprep.subr.bf16.mxu0 %v2031
        %2063 = vmatpush1.bf16.msra.mxu0 %v2030
        %2064 = vmatprep.subr.bf16.mxu0 0
        %2065 = vmatpush1.bf16.msra.mxu0 0
        %2066 = vmatprep.subr.bf16.mxu0 0
        %2067 = vmatpush1.bf16.msra.mxu0 0
        %2068 = vmatprep.subr.bf16.mxu0 0
        %2069 = vmatpush1.bf16.msra.mxu0 0
        %2070 = vmatprep.subr.bf16.mxu0 0
        %2071 = vmatpush1.bf16.msra.mxu0 0
        %2072 = vmatprep.subr.bf16.mxu0 0
        %2073 = vmatpush1.bf16.msra.mxu0 0
        %2074 = vmatprep.subr.bf16.mxu0 0
        %2075 = vmatpush1.bf16.msra.mxu0 0
        %2076 = vmatprep.subr.bf16.mxu0 0
        %2077 = vmatpush1.bf16.msra.mxu0 0
        %2078 = vmatprep.subr.bf16.mxu0 0
        %2079 = vmatpush1.bf16.msra.mxu0 0
        %2080 = vmatprep.mubr.bf16.mxu0 0
        %2081 = vmatmul.mubr.bf16.gmra.mrb[0].mxu0 %v1966
        %v2082 = vpop.f32.mrb[0].mxu0
        %v2083 = vadd.f32 0.0, %v2082
        %v2084 = vpop.f32.mrb[0].mxu0
        %v2085 = vadd.f32 0.0, %v2084
        %v2086 = vpop.f32.mrb[0].mxu0
        %v2087 = vpop.f32.mrb[0].mxu0
        %2088 = vdwg.mxu0
        %s2089 = scalar_lea.vmem %s4, 1280
        %v2090 = vld [vmem:[%s2089] sm:$0xff]
        %v2091 = vld [vmem:[%s2089 + $0x8] sm:$0xff]
        %v2092 = vld [vmem:[%s2089 + $0x10] sm:$0xff]
        %v2093 = vld [vmem:[%s2089 + $0x18] sm:$0xff]
        %v2094 = vld [vmem:[%s2089 + $0x20] sm:$0xff]
        %v2095 = vld [vmem:[%s2089 + $0x28] sm:$0xff]
        %v2096 = vld [vmem:[%s2089 + $0x30] sm:$0xff]
        %v2097 = vld [vmem:[%s2089 + $0x38] sm:$0xff]
        %v2098 = vld [vmem:[%s2089 + $0x40] sm:$0xff]
        %v2099 = vld [vmem:[%s2089 + $0x48] sm:$0xff]
        %v2100 = vld [vmem:[%s2089 + $0x50] sm:$0xff]
        %v2101 = vld [vmem:[%s2089 + $0x58] sm:$0xff]
        %v2102 = vld [vmem:[%s2089 + $0x60] sm:$0xff]
        %v2103 = vld [vmem:[%s2089 + $0x68] sm:$0xff]
        %v2104 = vld [vmem:[%s2089 + $0x70] sm:$0xff]
        %v2105 = vld [vmem:[%s2089 + $0x78] sm:$0xff]
        %s2106 = scalar_lea.vmem %s4, 1408
        %v2107 = vld [vmem:[%s2106] sm:$0xff]
        %v2108 = vld [vmem:[%s2106 + $0x8] sm:$0xff]
        %v2109 = vld [vmem:[%s2106 + $0x10] sm:$0xff]
        %v2110 = vld [vmem:[%s2106 + $0x18] sm:$0xff]
        %v2111 = vld [vmem:[%s2106 + $0x20] sm:$0xff]
        %v2112 = vld [vmem:[%s2106 + $0x28] sm:$0xff]
        %v2113 = vld [vmem:[%s2106 + $0x30] sm:$0xff]
        %v2114 = vld [vmem:[%s2106 + $0x38] sm:$0xff]
        %v2115 = vld [vmem:[%s2106 + $0x40] sm:$0xff]
        %v2116 = vld [vmem:[%s2106 + $0x48] sm:$0xff]
        %v2117 = vld [vmem:[%s2106 + $0x50] sm:$0xff]
        %v2118 = vld [vmem:[%s2106 + $0x58] sm:$0xff]
        %v2119 = vld [vmem:[%s2106 + $0x60] sm:$0xff]
        %v2120 = vld [vmem:[%s2106 + $0x68] sm:$0xff]
        %v2121 = vld [vmem:[%s2106 + $0x70] sm:$0xff]
        %v2122 = vld [vmem:[%s2106 + $0x78] sm:$0xff]
        %v2123 = vrot.slane %v1300, 6
        %v2141 = vunpack.c.l.b16 %v2107
        %v2142 = vunpack.c.h.b16 %v2107
        %v2143 = vunpack.c.l.b16 %v2108
        %v2144 = vunpack.c.h.b16 %v2108
        %v2145 = vunpack.c.l.b16 %v2109
        %v2146 = vunpack.c.h.b16 %v2109
        %v2147 = vunpack.c.l.b16 %v2110
        %v2148 = vunpack.c.h.b16 %v2110
        %v2149 = vunpack.c.l.b16 %v2111
        %v2150 = vunpack.c.h.b16 %v2111
        %v2151 = vunpack.c.l.b16 %v2112
        %v2152 = vunpack.c.h.b16 %v2112
        %v2153 = vunpack.c.l.b16 %v2113
        %v2154 = vunpack.c.h.b16 %v2113
        %v2155 = vunpack.c.l.b16 %v2114
        %v2156 = vunpack.c.h.b16 %v2114
        %v2157 = vunpack.c.l.b16 %v2115
        %v2158 = vunpack.c.h.b16 %v2115
        %v2159 = vunpack.c.l.b16 %v2116
        %v2160 = vunpack.c.h.b16 %v2116
        %v2161 = vunpack.c.l.b16 %v2117
        %v2162 = vunpack.c.h.b16 %v2117
        %v2163 = vunpack.c.l.b16 %v2118
        %v2164 = vunpack.c.h.b16 %v2118
        %v2165 = vunpack.c.l.b16 %v2119
        %v2166 = vunpack.c.h.b16 %v2119
        %v2167 = vunpack.c.l.b16 %v2120
        %v2168 = vunpack.c.h.b16 %v2120
        %v2169 = vunpack.c.l.b16 %v2121
        %v2170 = vunpack.c.h.b16 %v2121
        %v2171 = vunpack.c.l.b16 %v2122
        %v2172 = vunpack.c.h.b16 %v2122
        %v2173 = vpack.c.b16 %v2143, %v2141
        %v2174 = vpack.c.b16 %v2144, %v2142
        %v2175 = vpack.c.b16 %v2147, %v2145
        %v2176 = vpack.c.b16 %v2148, %v2146
        %v2177 = vpack.c.b16 %v2151, %v2149
        %v2178 = vpack.c.b16 %v2152, %v2150
        %v2179 = vpack.c.b16 %v2155, %v2153
        %v2180 = vpack.c.b16 %v2156, %v2154
        %v2181 = vpack.c.b16 %v2159, %v2157
        %v2182 = vpack.c.b16 %v2160, %v2158
        %v2183 = vpack.c.b16 %v2163, %v2161
        %v2184 = vpack.c.b16 %v2164, %v2162
        %v2185 = vpack.c.b16 %v2167, %v2165
        %v2186 = vpack.c.b16 %v2168, %v2166
        %v2187 = vpack.c.b16 %v2171, %v2169
        %v2188 = vpack.c.b16 %v2172, %v2170
        %2205 = vmatprep.subr.bf16.mxu0 %v2174
        %2206 = vmatpush1.bf16.msra.mxu0 %v2173
        %2207 = vmatprep.subr.bf16.mxu0 %v2176
        %2208 = vmatpush1.bf16.msra.mxu0 %v2175
        %2209 = vmatprep.subr.bf16.mxu0 %v2178
        %2210 = vmatpush1.bf16.msra.mxu0 %v2177
        %2211 = vmatprep.subr.bf16.mxu0 %v2180
        %2212 = vmatpush1.bf16.msra.mxu0 %v2179
        %2213 = vmatprep.subr.bf16.mxu0 %v2182
        %2214 = vmatpush1.bf16.msra.mxu0 %v2181
        %2215 = vmatprep.subr.bf16.mxu0 %v2184
        %2216 = vmatpush1.bf16.msra.mxu0 %v2183
        %2217 = vmatprep.subr.bf16.mxu0 %v2186
        %2218 = vmatpush1.bf16.msra.mxu0 %v2185
        %2219 = vmatprep.subr.bf16.mxu0 %v2188
        %2220 = vmatpush1.bf16.msra.mxu0 %v2187
        %2221 = vmatprep.subr.bf16.mxu0 0
        %2222 = vmatpush1.bf16.msra.mxu0 0
        %2223 = vmatprep.subr.bf16.mxu0 0
        %2224 = vmatpush1.bf16.msra.mxu0 0
        %2225 = vmatprep.subr.bf16.mxu0 0
        %2226 = vmatpush1.bf16.msra.mxu0 0
        %2227 = vmatprep.subr.bf16.mxu0 0
        %2228 = vmatpush1.bf16.msra.mxu0 0
        %2229 = vmatprep.subr.bf16.mxu0 0
        %2230 = vmatpush1.bf16.msra.mxu0 0
        %2231 = vmatprep.subr.bf16.mxu0 0
        %2232 = vmatpush1.bf16.msra.mxu0 0
        %2233 = vmatprep.subr.bf16.mxu0 0
        %2234 = vmatpush1.bf16.msra.mxu0 0
        %2235 = vmatprep.subr.bf16.mxu0 0
        %2236 = vmatpush1.bf16.msra.mxu0 0
        %2237 = vmatprep.mubr.bf16.mxu0 0
        %2238 = vmatmul.mubr.bf16.gmra.mrb[0].mxu0 %v2123
        %v2239 = vpop.f32.mrb[0].mxu0
        %v2240 = vadd.f32 0.0, %v2239
        %v2241 = vpop.f32.mrb[0].mxu0
        %v2242 = vadd.f32 0.0, %v2241
        %v2243 = vpop.f32.mrb[0].mxu0
        %v2244 = vpop.f32.mrb[0].mxu0
        %2245 = vdwg.mxu0
        %s2246 = scalar_lea.vmem %s4, 1536
        %v2247 = vld [vmem:[%s2246] sm:$0xff]
        %v2248 = vld [vmem:[%s2246 + $0x8] sm:$0xff]
        %v2249 = vld [vmem:[%s2246 + $0x10] sm:$0xff]
        %v2250 = vld [vmem:[%s2246 + $0x18] sm:$0xff]
        %v2251 = vld [vmem:[%s2246 + $0x20] sm:$0xff]
        %v2252 = vld [vmem:[%s2246 + $0x28] sm:$0xff]
        %v2253 = vld [vmem:[%s2246 + $0x30] sm:$0xff]
        %v2254 = vld [vmem:[%s2246 + $0x38] sm:$0xff]
        %v2255 = vld [vmem:[%s2246 + $0x40] sm:$0xff]
        %v2256 = vld [vmem:[%s2246 + $0x48] sm:$0xff]
        %v2257 = vld [vmem:[%s2246 + $0x50] sm:$0xff]
        %v2258 = vld [vmem:[%s2246 + $0x58] sm:$0xff]
        %v2259 = vld [vmem:[%s2246 + $0x60] sm:$0xff]
        %v2260 = vld [vmem:[%s2246 + $0x68] sm:$0xff]
        %v2261 = vld [vmem:[%s2246 + $0x70] sm:$0xff]
        %v2262 = vld [vmem:[%s2246 + $0x78] sm:$0xff]
        %s2263 = scalar_lea.vmem %s4, 1664
        %v2264 = vld [vmem:[%s2263] sm:$0xff]
        %v2265 = vld [vmem:[%s2263 + $0x8] sm:$0xff]
        %v2266 = vld [vmem:[%s2263 + $0x10] sm:$0xff]
        %v2267 = vld [vmem:[%s2263 + $0x18] sm:$0xff]
        %v2268 = vld [vmem:[%s2263 + $0x20] sm:$0xff]
        %v2269 = vld [vmem:[%s2263 + $0x28] sm:$0xff]
        %v2270 = vld [vmem:[%s2263 + $0x30] sm:$0xff]
        %v2271 = vld [vmem:[%s2263 + $0x38] sm:$0xff]
        %v2272 = vld [vmem:[%s2263 + $0x40] sm:$0xff]
        %v2273 = vld [vmem:[%s2263 + $0x48] sm:$0xff]
        %v2274 = vld [vmem:[%s2263 + $0x50] sm:$0xff]
        %v2275 = vld [vmem:[%s2263 + $0x58] sm:$0xff]
        %v2276 = vld [vmem:[%s2263 + $0x60] sm:$0xff]
        %v2277 = vld [vmem:[%s2263 + $0x68] sm:$0xff]
        %v2278 = vld [vmem:[%s2263 + $0x70] sm:$0xff]
        %v2279 = vld [vmem:[%s2263 + $0x78] sm:$0xff]
        %v2281 = vrot.slane %v1301, 2
        %v2299 = vunpack.c.l.b16 %v2264
        %v2300 = vunpack.c.h.b16 %v2264
        %v2301 = vunpack.c.l.b16 %v2265
        %v2302 = vunpack.c.h.b16 %v2265
        %v2303 = vunpack.c.l.b16 %v2266
        %v2304 = vunpack.c.h.b16 %v2266
        %v2305 = vunpack.c.l.b16 %v2267
        %v2306 = vunpack.c.h.b16 %v2267
        %v2307 = vunpack.c.l.b16 %v2268
        %v2308 = vunpack.c.h.b16 %v2268
        %v2309 = vunpack.c.l.b16 %v2269
        %v2310 = vunpack.c.h.b16 %v2269
        %v2311 = vunpack.c.l.b16 %v2270
        %v2312 = vunpack.c.h.b16 %v2270
        %v2313 = vunpack.c.l.b16 %v2271
        %v2314 = vunpack.c.h.b16 %v2271
        %v2315 = vunpack.c.l.b16 %v2272
        %v2316 = vunpack.c.h.b16 %v2272
        %v2317 = vunpack.c.l.b16 %v2273
        %v2318 = vunpack.c.h.b16 %v2273
        %v2319 = vunpack.c.l.b16 %v2274
        %v2320 = vunpack.c.h.b16 %v2274
        %v2321 = vunpack.c.l.b16 %v2275
        %v2322 = vunpack.c.h.b16 %v2275
        %v2323 = vunpack.c.l.b16 %v2276
        %v2324 = vunpack.c.h.b16 %v2276
        %v2325 = vunpack.c.l.b16 %v2277
        %v2326 = vunpack.c.h.b16 %v2277
        %v2327 = vunpack.c.l.b16 %v2278
        %v2328 = vunpack.c.h.b16 %v2278
        %v2329 = vunpack.c.l.b16 %v2279
        %v2330 = vunpack.c.h.b16 %v2279
        %v2331 = vpack.c.b16 %v2301, %v2299
        %v2332 = vpack.c.b16 %v2302, %v2300
        %v2333 = vpack.c.b16 %v2305, %v2303
        %v2334 = vpack.c.b16 %v2306, %v2304
        %v2335 = vpack.c.b16 %v2309, %v2307
        %v2336 = vpack.c.b16 %v2310, %v2308
        %v2337 = vpack.c.b16 %v2313, %v2311
        %v2338 = vpack.c.b16 %v2314, %v2312
        %v2339 = vpack.c.b16 %v2317, %v2315
        %v2340 = vpack.c.b16 %v2318, %v2316
        %v2341 = vpack.c.b16 %v2321, %v2319
        %v2342 = vpack.c.b16 %v2322, %v2320
        %v2343 = vpack.c.b16 %v2325, %v2323
        %v2344 = vpack.c.b16 %v2326, %v2324
        %v2345 = vpack.c.b16 %v2329, %v2327
        %v2346 = vpack.c.b16 %v2330, %v2328
        %2363 = vmatprep.subr.bf16.mxu0 %v2332
        %2364 = vmatpush1.bf16.msra.mxu0 %v2331
        %2365 = vmatprep.subr.bf16.mxu0 %v2334
        %2366 = vmatpush1.bf16.msra.mxu0 %v2333
        %2367 = vmatprep.subr.bf16.mxu0 %v2336
        %2368 = vmatpush1.bf16.msra.mxu0 %v2335
        %2369 = vmatprep.subr.bf16.mxu0 %v2338
        %2370 = vmatpush1.bf16.msra.mxu0 %v2337
        %2371 = vmatprep.subr.bf16.mxu0 %v2340
        %2372 = vmatpush1.bf16.msra.mxu0 %v2339
        %2373 = vmatprep.subr.bf16.mxu0 %v2342
        %2374 = vmatpush1.bf16.msra.mxu0 %v2341
        %2375 = vmatprep.subr.bf16.mxu0 %v2344
        %2376 = vmatpush1.bf16.msra.mxu0 %v2343
        %2377 = vmatprep.subr.bf16.mxu0 %v2346
        %2378 = vmatpush1.bf16.msra.mxu0 %v2345
        %2379 = vmatprep.subr.bf16.mxu0 0
        %2380 = vmatpush1.bf16.msra.mxu0 0
        %2381 = vmatprep.subr.bf16.mxu0 0
        %2382 = vmatpush1.bf16.msra.mxu0 0
        %2383 = vmatprep.subr.bf16.mxu0 0
        %2384 = vmatpush1.bf16.msra.mxu0 0
        %2385 = vmatprep.subr.bf16.mxu0 0
        %2386 = vmatpush1.bf16.msra.mxu0 0
        %2387 = vmatprep.subr.bf16.mxu0 0
        %2388 = vmatpush1.bf16.msra.mxu0 0
        %2389 = vmatprep.subr.bf16.mxu0 0
        %2390 = vmatpush1.bf16.msra.mxu0 0
        %2391 = vmatprep.subr.bf16.mxu0 0
        %2392 = vmatpush1.bf16.msra.mxu0 0
        %2393 = vmatprep.subr.bf16.mxu0 0
        %2394 = vmatpush1.bf16.msra.mxu0 0
        %2395 = vmatprep.mubr.bf16.mxu0 0
        %2396 = vmatmul.mubr.bf16.gmra.mrb[0].mxu0 %v2281
        %v2397 = vpop.f32.mrb[0].mxu0
        %v2398 = vadd.f32 0.0, %v2397
        %v2399 = vpop.f32.mrb[0].mxu0
        %v2400 = vadd.f32 0.0, %v2399
        %v2401 = vpop.f32.mrb[0].mxu0
        %v2402 = vpop.f32.mrb[0].mxu0
        %2403 = vdwg.mxu0
        %s2404 = scalar_lea.vmem %s4, 1792
        %v2405 = vld [vmem:[%s2404] sm:$0xff]
        %v2406 = vld [vmem:[%s2404 + $0x8] sm:$0xff]
        %v2407 = vld [vmem:[%s2404 + $0x10] sm:$0xff]
        %v2408 = vld [vmem:[%s2404 + $0x18] sm:$0xff]
        %v2409 = vld [vmem:[%s2404 + $0x20] sm:$0xff]
        %v2410 = vld [vmem:[%s2404 + $0x28] sm:$0xff]
        %v2411 = vld [vmem:[%s2404 + $0x30] sm:$0xff]
        %v2412 = vld [vmem:[%s2404 + $0x38] sm:$0xff]
        %v2413 = vld [vmem:[%s2404 + $0x40] sm:$0xff]
        %v2414 = vld [vmem:[%s2404 + $0x48] sm:$0xff]
        %v2415 = vld [vmem:[%s2404 + $0x50] sm:$0xff]
        %v2416 = vld [vmem:[%s2404 + $0x58] sm:$0xff]
        %v2417 = vld [vmem:[%s2404 + $0x60] sm:$0xff]
        %v2418 = vld [vmem:[%s2404 + $0x68] sm:$0xff]
        %v2419 = vld [vmem:[%s2404 + $0x70] sm:$0xff]
        %v2420 = vld [vmem:[%s2404 + $0x78] sm:$0xff]
        %s2421 = scalar_lea.vmem %s4, 1920
        %v2422 = vld [vmem:[%s2421] sm:$0xff]
        %v2423 = vld [vmem:[%s2421 + $0x8] sm:$0xff]
        %v2424 = vld [vmem:[%s2421 + $0x10] sm:$0xff]
        %v2425 = vld [vmem:[%s2421 + $0x18] sm:$0xff]
        %v2426 = vld [vmem:[%s2421 + $0x20] sm:$0xff]
        %v2427 = vld [vmem:[%s2421 + $0x28] sm:$0xff]
        %v2428 = vld [vmem:[%s2421 + $0x30] sm:$0xff]
        %v2429 = vld [vmem:[%s2421 + $0x38] sm:$0xff]
        %v2430 = vld [vmem:[%s2421 + $0x40] sm:$0xff]
        %v2431 = vld [vmem:[%s2421 + $0x48] sm:$0xff]
        %v2432 = vld [vmem:[%s2421 + $0x50] sm:$0xff]
        %v2433 = vld [vmem:[%s2421 + $0x58] sm:$0xff]
        %v2434 = vld [vmem:[%s2421 + $0x60] sm:$0xff]
        %v2435 = vld [vmem:[%s2421 + $0x68] sm:$0xff]
        %v2436 = vld [vmem:[%s2421 + $0x70] sm:$0xff]
        %v2437 = vld [vmem:[%s2421 + $0x78] sm:$0xff]
        %v2438 = vrot.slane %v1301, 6
        %v2456 = vunpack.c.l.b16 %v2422
        %v2457 = vunpack.c.h.b16 %v2422
        %v2458 = vunpack.c.l.b16 %v2423
        %v2459 = vunpack.c.h.b16 %v2423
        %v2460 = vunpack.c.l.b16 %v2424
        %v2461 = vunpack.c.h.b16 %v2424
        %v2462 = vunpack.c.l.b16 %v2425
        %v2463 = vunpack.c.h.b16 %v2425
        %v2464 = vunpack.c.l.b16 %v2426
        %v2465 = vunpack.c.h.b16 %v2426
        %v2466 = vunpack.c.l.b16 %v2427
        %v2467 = vunpack.c.h.b16 %v2427
        %v2468 = vunpack.c.l.b16 %v2428
        %v2469 = vunpack.c.h.b16 %v2428
        %v2470 = vunpack.c.l.b16 %v2429
        %v2471 = vunpack.c.h.b16 %v2429
        %v2472 = vunpack.c.l.b16 %v2430
        %v2473 = vunpack.c.h.b16 %v2430
        %v2474 = vunpack.c.l.b16 %v2431
        %v2475 = vunpack.c.h.b16 %v2431
        %v2476 = vunpack.c.l.b16 %v2432
        %v2477 = vunpack.c.h.b16 %v2432
        %v2478 = vunpack.c.l.b16 %v2433
        %v2479 = vunpack.c.h.b16 %v2433
        %v2480 = vunpack.c.l.b16 %v2434
        %v2481 = vunpack.c.h.b16 %v2434
        %v2482 = vunpack.c.l.b16 %v2435
        %v2483 = vunpack.c.h.b16 %v2435
        %v2484 = vunpack.c.l.b16 %v2436
        %v2485 = vunpack.c.h.b16 %v2436
        %v2486 = vunpack.c.l.b16 %v2437
        %v2487 = vunpack.c.h.b16 %v2437
        %v2488 = vpack.c.b16 %v2458, %v2456
        %v2489 = vpack.c.b16 %v2459, %v2457
        %v2490 = vpack.c.b16 %v2462, %v2460
        %v2491 = vpack.c.b16 %v2463, %v2461
        %v2492 = vpack.c.b16 %v2466, %v2464
        %v2493 = vpack.c.b16 %v2467, %v2465
        %v2494 = vpack.c.b16 %v2470, %v2468
        %v2495 = vpack.c.b16 %v2471, %v2469
        %v2496 = vpack.c.b16 %v2474, %v2472
        %v2497 = vpack.c.b16 %v2475, %v2473
        %v2498 = vpack.c.b16 %v2478, %v2476
        %v2499 = vpack.c.b16 %v2479, %v2477
        %v2500 = vpack.c.b16 %v2482, %v2480
        %v2501 = vpack.c.b16 %v2483, %v2481
        %v2502 = vpack.c.b16 %v2486, %v2484
        %v2503 = vpack.c.b16 %v2487, %v2485
        %2520 = vmatprep.subr.bf16.mxu0 %v2489
        %2521 = vmatpush1.bf16.msra.mxu0 %v2488
        %2522 = vmatprep.subr.bf16.mxu0 %v2491
        %2523 = vmatpush1.bf16.msra.mxu0 %v2490
        %2524 = vmatprep.subr.bf16.mxu0 %v2493
        %2525 = vmatpush1.bf16.msra.mxu0 %v2492
        %2526 = vmatprep.subr.bf16.mxu0 %v2495
        %2527 = vmatpush1.bf16.msra.mxu0 %v2494
        %2528 = vmatprep.subr.bf16.mxu0 %v2497
        %2529 = vmatpush1.bf16.msra.mxu0 %v2496
        %2530 = vmatprep.subr.bf16.mxu0 %v2499
        %2531 = vmatpush1.bf16.msra.mxu0 %v2498
        %2532 = vmatprep.subr.bf16.mxu0 %v2501
        %2533 = vmatpush1.bf16.msra.mxu0 %v2500
        %2534 = vmatprep.subr.bf16.mxu0 %v2503
        %2535 = vmatpush1.bf16.msra.mxu0 %v2502
        %2536 = vmatprep.subr.bf16.mxu0 0
        %2537 = vmatpush1.bf16.msra.mxu0 0
        %2538 = vmatprep.subr.bf16.mxu0 0
        %2539 = vmatpush1.bf16.msra.mxu0 0
        %2540 = vmatprep.subr.bf16.mxu0 0
        %2541 = vmatpush1.bf16.msra.mxu0 0
        %2542 = vmatprep.subr.bf16.mxu0 0
        %2543 = vmatpush1.bf16.msra.mxu0 0
        %2544 = vmatprep.subr.bf16.mxu0 0
        %2545 = vmatpush1.bf16.msra.mxu0 0
        %2546 = vmatprep.subr.bf16.mxu0 0
        %2547 = vmatpush1.bf16.msra.mxu0 0
        %2548 = vmatprep.subr.bf16.mxu0 0
        %2549 = vmatpush1.bf16.msra.mxu0 0
        %2550 = vmatprep.subr.bf16.mxu0 0
        %2551 = vmatpush1.bf16.msra.mxu0 0
        %2552 = vmatprep.mubr.bf16.mxu0 0
        %2553 = vmatmul.mubr.bf16.gmra.mrb[0].mxu0 %v2438
        %v2554 = vpop.f32.mrb[0].mxu0
        %v2555 = vadd.f32 0.0, %v2554
        %v2556 = vpop.f32.mrb[0].mxu0
        %v2557 = vadd.f32 0.0, %v2556
        %v2558 = vpop.f32.mrb[0].mxu0
        %v2559 = vpop.f32.mrb[0].mxu0
        %2560 = vdwg.mxu0
        %v2577 = vunpack.c.l.b16 %v1302
        %v2578 = vunpack.c.h.b16 %v1302
        %v2579 = vunpack.c.l.b16 %v1303
        %v2580 = vunpack.c.h.b16 %v1303
        %v2581 = vunpack.c.l.b16 %v1304
        %v2582 = vunpack.c.h.b16 %v1304
        %v2583 = vunpack.c.l.b16 %v1305
        %v2584 = vunpack.c.h.b16 %v1305
        %v2585 = vunpack.c.l.b16 %v1306
        %v2586 = vunpack.c.h.b16 %v1306
        %v2587 = vunpack.c.l.b16 %v1307
        %v2588 = vunpack.c.h.b16 %v1307
        %v2589 = vunpack.c.l.b16 %v1308
        %v2590 = vunpack.c.h.b16 %v1308
        %v2591 = vunpack.c.l.b16 %v1309
        %v2592 = vunpack.c.h.b16 %v1309
        %v2593 = vunpack.c.l.b16 %v1310
        %v2594 = vunpack.c.h.b16 %v1310
        %v2595 = vunpack.c.l.b16 %v1311
        %v2596 = vunpack.c.h.b16 %v1311
        %v2597 = vunpack.c.l.b16 %v1312
        %v2598 = vunpack.c.h.b16 %v1312
        %v2599 = vunpack.c.l.b16 %v1313
        %v2600 = vunpack.c.h.b16 %v1313
        %v2601 = vunpack.c.l.b16 %v1314
        %v2602 = vunpack.c.h.b16 %v1314
        %v2603 = vunpack.c.l.b16 %v1315
        %v2604 = vunpack.c.h.b16 %v1315
        %v2605 = vunpack.c.l.b16 %v1316
        %v2606 = vunpack.c.h.b16 %v1316
        %v2607 = vunpack.c.l.b16 %v1317
        %v2608 = vunpack.c.h.b16 %v1317
        %v2609 = vpack.c.b16 %v2579, %v2577
        %v2610 = vpack.c.b16 %v2580, %v2578
        %v2611 = vpack.c.b16 %v2583, %v2581
        %v2612 = vpack.c.b16 %v2584, %v2582
        %v2613 = vpack.c.b16 %v2587, %v2585
        %v2614 = vpack.c.b16 %v2588, %v2586
        %v2615 = vpack.c.b16 %v2591, %v2589
        %v2616 = vpack.c.b16 %v2592, %v2590
        %v2617 = vpack.c.b16 %v2595, %v2593
        %v2618 = vpack.c.b16 %v2596, %v2594
        %v2619 = vpack.c.b16 %v2599, %v2597
        %v2620 = vpack.c.b16 %v2600, %v2598
        %v2621 = vpack.c.b16 %v2603, %v2601
        %v2622 = vpack.c.b16 %v2604, %v2602
        %v2623 = vpack.c.b16 %v2607, %v2605
        %v2624 = vpack.c.b16 %v2608, %v2606
        %2641 = vmatprep.subr.bf16.mxu0 %v2610
        %2642 = vmatpush1.bf16.msra.mxu0 %v2609
        %2643 = vmatprep.subr.bf16.mxu0 %v2612
        %2644 = vmatpush1.bf16.msra.mxu0 %v2611
        %2645 = vmatprep.subr.bf16.mxu0 %v2614
        %2646 = vmatpush1.bf16.msra.mxu0 %v2613
        %2647 = vmatprep.subr.bf16.mxu0 %v2616
        %2648 = vmatpush1.bf16.msra.mxu0 %v2615
        %2649 = vmatprep.subr.bf16.mxu0 %v2618
        %2650 = vmatpush1.bf16.msra.mxu0 %v2617
        %2651 = vmatprep.subr.bf16.mxu0 %v2620
        %2652 = vmatpush1.bf16.msra.mxu0 %v2619
        %2653 = vmatprep.subr.bf16.mxu0 %v2622
        %2654 = vmatpush1.bf16.msra.mxu0 %v2621
        %2655 = vmatprep.subr.bf16.mxu0 %v2624
        %2656 = vmatpush1.bf16.msra.mxu0 %v2623
        %2657 = vmatprep.subr.bf16.mxu0 0
        %2658 = vmatpush1.bf16.msra.mxu0 0
        %2659 = vmatprep.subr.bf16.mxu0 0
        %2660 = vmatpush1.bf16.msra.mxu0 0
        %2661 = vmatprep.subr.bf16.mxu0 0
        %2662 = vmatpush1.bf16.msra.mxu0 0
        %2663 = vmatprep.subr.bf16.mxu0 0
        %2664 = vmatpush1.bf16.msra.mxu0 0
        %2665 = vmatprep.subr.bf16.mxu0 0
        %2666 = vmatpush1.bf16.msra.mxu0 0
        %2667 = vmatprep.subr.bf16.mxu0 0
        %2668 = vmatpush1.bf16.msra.mxu0 0
        %2669 = vmatprep.subr.bf16.mxu0 0
        %2670 = vmatpush1.bf16.msra.mxu0 0
        %2671 = vmatprep.subr.bf16.mxu0 0
        %2672 = vmatpush1.bf16.msra.mxu0 0
        %2673 = vmatprep.mubr.bf16.mxu0 0
        %2674 = vmatmul.mubr.bf16.gmra.mrb[0].mxu0 %v1298
        %v2675 = vpop.f32.mrb[0].mxu0
        %v2676 = vadd.f32 %v1453, %v2675
        %v2677 = vpop.f32.mrb[0].mxu0
        %v2678 = vadd.f32 %v1455, %v2677
        %v2679 = vpop.f32.mrb[0].mxu0
        %v2680 = vpop.f32.mrb[0].mxu0
        %2681 = vdwg.mxu0
        %v2682 = vrot.slane %v1298, 4
        %v2700 = vunpack.c.l.b16 %v1460
        %v2701 = vunpack.c.h.b16 %v1460
        %v2702 = vunpack.c.l.b16 %v1461
        %v2703 = vunpack.c.h.b16 %v1461
        %v2704 = vunpack.c.l.b16 %v1462
        %v2705 = vunpack.c.h.b16 %v1462
        %v2706 = vunpack.c.l.b16 %v1463
        %v2707 = vunpack.c.h.b16 %v1463
        %v2708 = vunpack.c.l.b16 %v1464
        %v2709 = vunpack.c.h.b16 %v1464
        %v2710 = vunpack.c.l.b16 %v1465
        %v2711 = vunpack.c.h.b16 %v1465
        %v2712 = vunpack.c.l.b16 %v1466
        %v2713 = vunpack.c.h.b16 %v1466
        %v2714 = vunpack.c.l.b16 %v1467
        %v2715 = vunpack.c.h.b16 %v1467
        %v2716 = vunpack.c.l.b16 %v1468
        %v2717 = vunpack.c.h.b16 %v1468
        %v2718 = vunpack.c.l.b16 %v1469
        %v2719 = vunpack.c.h.b16 %v1469
        %v2720 = vunpack.c.l.b16 %v1470
        %v2721 = vunpack.c.h.b16 %v1470
        %v2722 = vunpack.c.l.b16 %v1471
        %v2723 = vunpack.c.h.b16 %v1471
        %v2724 = vunpack.c.l.b16 %v1472
        %v2725 = vunpack.c.h.b16 %v1472
        %v2726 = vunpack.c.l.b16 %v1473
        %v2727 = vunpack.c.h.b16 %v1473
        %v2728 = vunpack.c.l.b16 %v1474
        %v2729 = vunpack.c.h.b16 %v1474
        %v2730 = vunpack.c.l.b16 %v1475
        %v2731 = vunpack.c.h.b16 %v1475
        %v2732 = vpack.c.b16 %v2702, %v2700
        %v2733 = vpack.c.b16 %v2703, %v2701
        %v2734 = vpack.c.b16 %v2706, %v2704
        %v2735 = vpack.c.b16 %v2707, %v2705
        %v2736 = vpack.c.b16 %v2710, %v2708
        %v2737 = vpack.c.b16 %v2711, %v2709
        %v2738 = vpack.c.b16 %v2714, %v2712
        %v2739 = vpack.c.b16 %v2715, %v2713
        %v2740 = vpack.c.b16 %v2718, %v2716
        %v2741 = vpack.c.b16 %v2719, %v2717
        %v2742 = vpack.c.b16 %v2722, %v2720
        %v2743 = vpack.c.b16 %v2723, %v2721
        %v2744 = vpack.c.b16 %v2726, %v2724
        %v2745 = vpack.c.b16 %v2727, %v2725
        %v2746 = vpack.c.b16 %v2730, %v2728
        %v2747 = vpack.c.b16 %v2731, %v2729
        %2764 = vmatprep.subr.bf16.mxu0 %v2733
        %2765 = vmatpush1.bf16.msra.mxu0 %v2732
        %2766 = vmatprep.subr.bf16.mxu0 %v2735
        %2767 = vmatpush1.bf16.msra.mxu0 %v2734
        %2768 = vmatprep.subr.bf16.mxu0 %v2737
        %2769 = vmatpush1.bf16.msra.mxu0 %v2736
        %2770 = vmatprep.subr.bf16.mxu0 %v2739
        %2771 = vmatpush1.bf16.msra.mxu0 %v2738
        %2772 = vmatprep.subr.bf16.mxu0 %v2741
        %2773 = vmatpush1.bf16.msra.mxu0 %v2740
        %2774 = vmatprep.subr.bf16.mxu0 %v2743
        %2775 = vmatpush1.bf16.msra.mxu0 %v2742
        %2776 = vmatprep.subr.bf16.mxu0 %v2745
        %2777 = vmatpush1.bf16.msra.mxu0 %v2744
        %2778 = vmatprep.subr.bf16.mxu0 %v2747
        %2779 = vmatpush1.bf16.msra.mxu0 %v2746
        %2780 = vmatprep.subr.bf16.mxu0 0
        %2781 = vmatpush1.bf16.msra.mxu0 0
        %2782 = vmatprep.subr.bf16.mxu0 0
        %2783 = vmatpush1.bf16.msra.mxu0 0
        %2784 = vmatprep.subr.bf16.mxu0 0
        %2785 = vmatpush1.bf16.msra.mxu0 0
        %2786 = vmatprep.subr.bf16.mxu0 0
        %2787 = vmatpush1.bf16.msra.mxu0 0
        %2788 = vmatprep.subr.bf16.mxu0 0
        %2789 = vmatpush1.bf16.msra.mxu0 0
        %2790 = vmatprep.subr.bf16.mxu0 0
        %2791 = vmatpush1.bf16.msra.mxu0 0
        %2792 = vmatprep.subr.bf16.mxu0 0
        %2793 = vmatpush1.bf16.msra.mxu0 0
        %2794 = vmatprep.subr.bf16.mxu0 0
        %2795 = vmatpush1.bf16.msra.mxu0 0
        %2796 = vmatprep.mubr.bf16.mxu0 0
        %2797 = vmatmul.mubr.bf16.gmra.mrb[0].mxu0 %v2682
        %v2798 = vpop.f32.mrb[0].mxu0
        %v2799 = vadd.f32 %v1610, %v2798
        %v2800 = vpop.f32.mrb[0].mxu0
        %v2801 = vadd.f32 %v1612, %v2800
        %v2802 = vpop.f32.mrb[0].mxu0
        %v2803 = vpop.f32.mrb[0].mxu0
        %2804 = vdwg.mxu0
        %v2821 = vunpack.c.l.b16 %v1617
        %v2822 = vunpack.c.h.b16 %v1617
        %v2823 = vunpack.c.l.b16 %v1618
        %v2824 = vunpack.c.h.b16 %v1618
        %v2825 = vunpack.c.l.b16 %v1619
        %v2826 = vunpack.c.h.b16 %v1619
        %v2827 = vunpack.c.l.b16 %v1620
        %v2828 = vunpack.c.h.b16 %v1620
        %v2829 = vunpack.c.l.b16 %v1621
        %v2830 = vunpack.c.h.b16 %v1621
        %v2831 = vunpack.c.l.b16 %v1622
        %v2832 = vunpack.c.h.b16 %v1622
        %v2833 = vunpack.c.l.b16 %v1623
        %v2834 = vunpack.c.h.b16 %v1623
        %v2835 = vunpack.c.l.b16 %v1624
        %v2836 = vunpack.c.h.b16 %v1624
        %v2837 = vunpack.c.l.b16 %v1625
        %v2838 = vunpack.c.h.b16 %v1625
        %v2839 = vunpack.c.l.b16 %v1626
        %v2840 = vunpack.c.h.b16 %v1626
        %v2841 = vunpack.c.l.b16 %v1627
        %v2842 = vunpack.c.h.b16 %v1627
        %v2843 = vunpack.c.l.b16 %v1628
        %v2844 = vunpack.c.h.b16 %v1628
        %v2845 = vunpack.c.l.b16 %v1629
        %v2846 = vunpack.c.h.b16 %v1629
        %v2847 = vunpack.c.l.b16 %v1630
        %v2848 = vunpack.c.h.b16 %v1630
        %v2849 = vunpack.c.l.b16 %v1631
        %v2850 = vunpack.c.h.b16 %v1631
        %v2851 = vunpack.c.l.b16 %v1632
        %v2852 = vunpack.c.h.b16 %v1632
        %v2853 = vpack.c.b16 %v2823, %v2821
        %v2854 = vpack.c.b16 %v2824, %v2822
        %v2855 = vpack.c.b16 %v2827, %v2825
        %v2856 = vpack.c.b16 %v2828, %v2826
        %v2857 = vpack.c.b16 %v2831, %v2829
        %v2858 = vpack.c.b16 %v2832, %v2830
        %v2859 = vpack.c.b16 %v2835, %v2833
        %v2860 = vpack.c.b16 %v2836, %v2834
        %v2861 = vpack.c.b16 %v2839, %v2837
        %v2862 = vpack.c.b16 %v2840, %v2838
        %v2863 = vpack.c.b16 %v2843, %v2841
        %v2864 = vpack.c.b16 %v2844, %v2842
        %v2865 = vpack.c.b16 %v2847, %v2845
        %v2866 = vpack.c.b16 %v2848, %v2846
        %v2867 = vpack.c.b16 %v2851, %v2849
        %v2868 = vpack.c.b16 %v2852, %v2850
        %2885 = vmatprep.subr.bf16.mxu0 %v2854
        %2886 = vmatpush1.bf16.msra.mxu0 %v2853
        %2887 = vmatprep.subr.bf16.mxu0 %v2856
        %2888 = vmatpush1.bf16.msra.mxu0 %v2855
        %2889 = vmatprep.subr.bf16.mxu0 %v2858
        %2890 = vmatpush1.bf16.msra.mxu0 %v2857
        %2891 = vmatprep.subr.bf16.mxu0 %v2860
        %2892 = vmatpush1.bf16.msra.mxu0 %v2859
        %2893 = vmatprep.subr.bf16.mxu0 %v2862
        %2894 = vmatpush1.bf16.msra.mxu0 %v2861
        %2895 = vmatprep.subr.bf16.mxu0 %v2864
        %2896 = vmatpush1.bf16.msra.mxu0 %v2863
        %2897 = vmatprep.subr.bf16.mxu0 %v2866
        %2898 = vmatpush1.bf16.msra.mxu0 %v2865
        %2899 = vmatprep.subr.bf16.mxu0 %v2868
        %2900 = vmatpush1.bf16.msra.mxu0 %v2867
        %2901 = vmatprep.subr.bf16.mxu0 0
        %2902 = vmatpush1.bf16.msra.mxu0 0
        %2903 = vmatprep.subr.bf16.mxu0 0
        %2904 = vmatpush1.bf16.msra.mxu0 0
        %2905 = vmatprep.subr.bf16.mxu0 0
        %2906 = vmatpush1.bf16.msra.mxu0 0
        %2907 = vmatprep.subr.bf16.mxu0 0
        %2908 = vmatpush1.bf16.msra.mxu0 0
        %2909 = vmatprep.subr.bf16.mxu0 0
        %2910 = vmatpush1.bf16.msra.mxu0 0
        %2911 = vmatprep.subr.bf16.mxu0 0
        %2912 = vmatpush1.bf16.msra.mxu0 0
        %2913 = vmatprep.subr.bf16.mxu0 0
        %2914 = vmatpush1.bf16.msra.mxu0 0
        %2915 = vmatprep.subr.bf16.mxu0 0
        %2916 = vmatpush1.bf16.msra.mxu0 0
        %2917 = vmatprep.mubr.bf16.mxu0 0
        %2918 = vmatmul.mubr.bf16.gmra.mrb[0].mxu0 %v1299
        %v2919 = vpop.f32.mrb[0].mxu0
        %v2920 = vadd.f32 %v1768, %v2919
        %v2921 = vpop.f32.mrb[0].mxu0
        %v2922 = vadd.f32 %v1770, %v2921
        %v2923 = vpop.f32.mrb[0].mxu0
        %v2924 = vpop.f32.mrb[0].mxu0
        %2925 = vdwg.mxu0
        %v2926 = vrot.slane %v1299, 4
        %v2944 = vunpack.c.l.b16 %v1775
        %v2945 = vunpack.c.h.b16 %v1775
        %v2946 = vunpack.c.l.b16 %v1776
        %v2947 = vunpack.c.h.b16 %v1776
        %v2948 = vunpack.c.l.b16 %v1777
        %v2949 = vunpack.c.h.b16 %v1777
        %v2950 = vunpack.c.l.b16 %v1778
        %v2951 = vunpack.c.h.b16 %v1778
        %v2952 = vunpack.c.l.b16 %v1779
        %v2953 = vunpack.c.h.b16 %v1779
        %v2954 = vunpack.c.l.b16 %v1780
        %v2955 = vunpack.c.h.b16 %v1780
        %v2956 = vunpack.c.l.b16 %v1781
        %v2957 = vunpack.c.h.b16 %v1781
        %v2958 = vunpack.c.l.b16 %v1782
        %v2959 = vunpack.c.h.b16 %v1782
        %v2960 = vunpack.c.l.b16 %v1783
        %v2961 = vunpack.c.h.b16 %v1783
        %v2962 = vunpack.c.l.b16 %v1784
        %v2963 = vunpack.c.h.b16 %v1784
        %v2964 = vunpack.c.l.b16 %v1785
        %v2965 = vunpack.c.h.b16 %v1785
        %v2966 = vunpack.c.l.b16 %v1786
        %v2967 = vunpack.c.h.b16 %v1786
        %v2968 = vunpack.c.l.b16 %v1787
        %v2969 = vunpack.c.h.b16 %v1787
        %v2970 = vunpack.c.l.b16 %v1788
        %v2971 = vunpack.c.h.b16 %v1788
        %v2972 = vunpack.c.l.b16 %v1789
        %v2973 = vunpack.c.h.b16 %v1789
        %v2974 = vunpack.c.l.b16 %v1790
        %v2975 = vunpack.c.h.b16 %v1790
        %v2976 = vpack.c.b16 %v2946, %v2944
        %v2977 = vpack.c.b16 %v2947, %v2945
        %v2978 = vpack.c.b16 %v2950, %v2948
        %v2979 = vpack.c.b16 %v2951, %v2949
        %v2980 = vpack.c.b16 %v2954, %v2952
        %v2981 = vpack.c.b16 %v2955, %v2953
        %v2982 = vpack.c.b16 %v2958, %v2956
        %v2983 = vpack.c.b16 %v2959, %v2957
        %v2984 = vpack.c.b16 %v2962, %v2960
        %v2985 = vpack.c.b16 %v2963, %v2961
        %v2986 = vpack.c.b16 %v2966, %v2964
        %v2987 = vpack.c.b16 %v2967, %v2965
        %v2988 = vpack.c.b16 %v2970, %v2968
        %v2989 = vpack.c.b16 %v2971, %v2969
        %v2990 = vpack.c.b16 %v2974, %v2972
        %v2991 = vpack.c.b16 %v2975, %v2973
        %3008 = vmatprep.subr.bf16.mxu0 %v2977
        %3009 = vmatpush1.bf16.msra.mxu0 %v2976
        %3010 = vmatprep.subr.bf16.mxu0 %v2979
        %3011 = vmatpush1.bf16.msra.mxu0 %v2978
        %3012 = vmatprep.subr.bf16.mxu0 %v2981
        %3013 = vmatpush1.bf16.msra.mxu0 %v2980
        %3014 = vmatprep.subr.bf16.mxu0 %v2983
        %3015 = vmatpush1.bf16.msra.mxu0 %v2982
        %3016 = vmatprep.subr.bf16.mxu0 %v2985
        %3017 = vmatpush1.bf16.msra.mxu0 %v2984
        %3018 = vmatprep.subr.bf16.mxu0 %v2987
        %3019 = vmatpush1.bf16.msra.mxu0 %v2986
        %3020 = vmatprep.subr.bf16.mxu0 %v2989
        %3021 = vmatpush1.bf16.msra.mxu0 %v2988
        %3022 = vmatprep.subr.bf16.mxu0 %v2991
        %3023 = vmatpush1.bf16.msra.mxu0 %v2990
        %3024 = vmatprep.subr.bf16.mxu0 0
        %3025 = vmatpush1.bf16.msra.mxu0 0
        %3026 = vmatprep.subr.bf16.mxu0 0
        %3027 = vmatpush1.bf16.msra.mxu0 0
        %3028 = vmatprep.subr.bf16.mxu0 0
        %3029 = vmatpush1.bf16.msra.mxu0 0
        %3030 = vmatprep.subr.bf16.mxu0 0
        %3031 = vmatpush1.bf16.msra.mxu0 0
        %3032 = vmatprep.subr.bf16.mxu0 0
        %3033 = vmatpush1.bf16.msra.mxu0 0
        %3034 = vmatprep.subr.bf16.mxu0 0
        %3035 = vmatpush1.bf16.msra.mxu0 0
        %3036 = vmatprep.subr.bf16.mxu0 0
        %3037 = vmatpush1.bf16.msra.mxu0 0
        %3038 = vmatprep.subr.bf16.mxu0 0
        %3039 = vmatpush1.bf16.msra.mxu0 0
        %3040 = vmatprep.mubr.bf16.mxu0 0
        %3041 = vmatmul.mubr.bf16.gmra.mrb[0].mxu0 %v2926
        %v3042 = vpop.f32.mrb[0].mxu0
        %v3043 = vadd.f32 %v1925, %v3042
        %v3044 = vpop.f32.mrb[0].mxu0
        %v3045 = vadd.f32 %v1927, %v3044
        %v3046 = vpop.f32.mrb[0].mxu0
        %v3047 = vpop.f32.mrb[0].mxu0
        %3048 = vdwg.mxu0
        %v3065 = vunpack.c.l.b16 %v1932
        %v3066 = vunpack.c.h.b16 %v1932
        %v3067 = vunpack.c.l.b16 %v1933
        %v3068 = vunpack.c.h.b16 %v1933
        %v3069 = vunpack.c.l.b16 %v1934
        %v3070 = vunpack.c.h.b16 %v1934
        %v3071 = vunpack.c.l.b16 %v1935
        %v3072 = vunpack.c.h.b16 %v1935
        %v3073 = vunpack.c.l.b16 %v1936
        %v3074 = vunpack.c.h.b16 %v1936
        %v3075 = vunpack.c.l.b16 %v1937
        %v3076 = vunpack.c.h.b16 %v1937
        %v3077 = vunpack.c.l.b16 %v1938
        %v3078 = vunpack.c.h.b16 %v1938
        %v3079 = vunpack.c.l.b16 %v1939
        %v3080 = vunpack.c.h.b16 %v1939
        %v3081 = vunpack.c.l.b16 %v1940
        %v3082 = vunpack.c.h.b16 %v1940
        %v3083 = vunpack.c.l.b16 %v1941
        %v3084 = vunpack.c.h.b16 %v1941
        %v3085 = vunpack.c.l.b16 %v1942
        %v3086 = vunpack.c.h.b16 %v1942
        %v3087 = vunpack.c.l.b16 %v1943
        %v3088 = vunpack.c.h.b16 %v1943
        %v3089 = vunpack.c.l.b16 %v1944
        %v3090 = vunpack.c.h.b16 %v1944
        %v3091 = vunpack.c.l.b16 %v1945
        %v3092 = vunpack.c.h.b16 %v1945
        %v3093 = vunpack.c.l.b16 %v1946
        %v3094 = vunpack.c.h.b16 %v1946
        %v3095 = vunpack.c.l.b16 %v1947
        %v3096 = vunpack.c.h.b16 %v1947
        %v3097 = vpack.c.b16 %v3067, %v3065
        %v3098 = vpack.c.b16 %v3068, %v3066
        %v3099 = vpack.c.b16 %v3071, %v3069
        %v3100 = vpack.c.b16 %v3072, %v3070
        %v3101 = vpack.c.b16 %v3075, %v3073
        %v3102 = vpack.c.b16 %v3076, %v3074
        %v3103 = vpack.c.b16 %v3079, %v3077
        %v3104 = vpack.c.b16 %v3080, %v3078
        %v3105 = vpack.c.b16 %v3083, %v3081
        %v3106 = vpack.c.b16 %v3084, %v3082
        %v3107 = vpack.c.b16 %v3087, %v3085
        %v3108 = vpack.c.b16 %v3088, %v3086
        %v3109 = vpack.c.b16 %v3091, %v3089
        %v3110 = vpack.c.b16 %v3092, %v3090
        %v3111 = vpack.c.b16 %v3095, %v3093
        %v3112 = vpack.c.b16 %v3096, %v3094
        %3129 = vmatprep.subr.bf16.mxu0 %v3098
        %3130 = vmatpush1.bf16.msra.mxu0 %v3097
        %3131 = vmatprep.subr.bf16.mxu0 %v3100
        %3132 = vmatpush1.bf16.msra.mxu0 %v3099
        %3133 = vmatprep.subr.bf16.mxu0 %v3102
        %3134 = vmatpush1.bf16.msra.mxu0 %v3101
        %3135 = vmatprep.subr.bf16.mxu0 %v3104
        %3136 = vmatpush1.bf16.msra.mxu0 %v3103
        %3137 = vmatprep.subr.bf16.mxu0 %v3106
        %3138 = vmatpush1.bf16.msra.mxu0 %v3105
        %3139 = vmatprep.subr.bf16.mxu0 %v3108
        %3140 = vmatpush1.bf16.msra.mxu0 %v3107
        %3141 = vmatprep.subr.bf16.mxu0 %v3110
        %3142 = vmatpush1.bf16.msra.mxu0 %v3109
        %3143 = vmatprep.subr.bf16.mxu0 %v3112
        %3144 = vmatpush1.bf16.msra.mxu0 %v3111
        %3145 = vmatprep.subr.bf16.mxu0 0
        %3146 = vmatpush1.bf16.msra.mxu0 0
        %3147 = vmatprep.subr.bf16.mxu0 0
        %3148 = vmatpush1.bf16.msra.mxu0 0
        %3149 = vmatprep.subr.bf16.mxu0 0
        %3150 = vmatpush1.bf16.msra.mxu0 0
        %3151 = vmatprep.subr.bf16.mxu0 0
        %3152 = vmatpush1.bf16.msra.mxu0 0
        %3153 = vmatprep.subr.bf16.mxu0 0
        %3154 = vmatpush1.bf16.msra.mxu0 0
        %3155 = vmatprep.subr.bf16.mxu0 0
        %3156 = vmatpush1.bf16.msra.mxu0 0
        %3157 = vmatprep.subr.bf16.mxu0 0
        %3158 = vmatpush1.bf16.msra.mxu0 0
        %3159 = vmatprep.subr.bf16.mxu0 0
        %3160 = vmatpush1.bf16.msra.mxu0 0
        %3161 = vmatprep.mubr.bf16.mxu0 0
        %3162 = vmatmul.mubr.bf16.gmra.mrb[0].mxu0 %v1300
        %v3163 = vpop.f32.mrb[0].mxu0
        %v3164 = vadd.f32 %v2083, %v3163
        %v3165 = vpop.f32.mrb[0].mxu0
        %v3166 = vadd.f32 %v2085, %v3165
        %v3167 = vpop.f32.mrb[0].mxu0
        %v3168 = vpop.f32.mrb[0].mxu0
        %3169 = vdwg.mxu0
        %v3170 = vrot.slane %v1300, 4
        %v3188 = vunpack.c.l.b16 %v2090
        %v3189 = vunpack.c.h.b16 %v2090
        %v3190 = vunpack.c.l.b16 %v2091
        %v3191 = vunpack.c.h.b16 %v2091
        %v3192 = vunpack.c.l.b16 %v2092
        %v3193 = vunpack.c.h.b16 %v2092
        %v3194 = vunpack.c.l.b16 %v2093
        %v3195 = vunpack.c.h.b16 %v2093
        %v3196 = vunpack.c.l.b16 %v2094
        %v3197 = vunpack.c.h.b16 %v2094
        %v3198 = vunpack.c.l.b16 %v2095
        %v3199 = vunpack.c.h.b16 %v2095
        %v3200 = vunpack.c.l.b16 %v2096
        %v3201 = vunpack.c.h.b16 %v2096
        %v3202 = vunpack.c.l.b16 %v2097
        %v3203 = vunpack.c.h.b16 %v2097
        %v3204 = vunpack.c.l.b16 %v2098
        %v3205 = vunpack.c.h.b16 %v2098
        %v3206 = vunpack.c.l.b16 %v2099
        %v3207 = vunpack.c.h.b16 %v2099
        %v3208 = vunpack.c.l.b16 %v2100
        %v3209 = vunpack.c.h.b16 %v2100
        %v3210 = vunpack.c.l.b16 %v2101
        %v3211 = vunpack.c.h.b16 %v2101
        %v3212 = vunpack.c.l.b16 %v2102
        %v3213 = vunpack.c.h.b16 %v2102
        %v3214 = vunpack.c.l.b16 %v2103
        %v3215 = vunpack.c.h.b16 %v2103
        %v3216 = vunpack.c.l.b16 %v2104
        %v3217 = vunpack.c.h.b16 %v2104
        %v3218 = vunpack.c.l.b16 %v2105
        %v3219 = vunpack.c.h.b16 %v2105
        %v3220 = vpack.c.b16 %v3190, %v3188
        %v3221 = vpack.c.b16 %v3191, %v3189
        %v3222 = vpack.c.b16 %v3194, %v3192
        %v3223 = vpack.c.b16 %v3195, %v3193
        %v3224 = vpack.c.b16 %v3198, %v3196
        %v3225 = vpack.c.b16 %v3199, %v3197
        %v3226 = vpack.c.b16 %v3202, %v3200
        %v3227 = vpack.c.b16 %v3203, %v3201
        %v3228 = vpack.c.b16 %v3206, %v3204
        %v3229 = vpack.c.b16 %v3207, %v3205
        %v3230 = vpack.c.b16 %v3210, %v3208
        %v3231 = vpack.c.b16 %v3211, %v3209
        %v3232 = vpack.c.b16 %v3214, %v3212
        %v3233 = vpack.c.b16 %v3215, %v3213
        %v3234 = vpack.c.b16 %v3218, %v3216
        %v3235 = vpack.c.b16 %v3219, %v3217
        %3252 = vmatprep.subr.bf16.mxu0 %v3221
        %3253 = vmatpush1.bf16.msra.mxu0 %v3220
        %3254 = vmatprep.subr.bf16.mxu0 %v3223
        %3255 = vmatpush1.bf16.msra.mxu0 %v3222
        %3256 = vmatprep.subr.bf16.mxu0 %v3225
        %3257 = vmatpush1.bf16.msra.mxu0 %v3224
        %3258 = vmatprep.subr.bf16.mxu0 %v3227
        %3259 = vmatpush1.bf16.msra.mxu0 %v3226
        %3260 = vmatprep.subr.bf16.mxu0 %v3229
        %3261 = vmatpush1.bf16.msra.mxu0 %v3228
        %3262 = vmatprep.subr.bf16.mxu0 %v3231
        %3263 = vmatpush1.bf16.msra.mxu0 %v3230
        %3264 = vmatprep.subr.bf16.mxu0 %v3233
        %3265 = vmatpush1.bf16.msra.mxu0 %v3232
        %3266 = vmatprep.subr.bf16.mxu0 %v3235
        %3267 = vmatpush1.bf16.msra.mxu0 %v3234
        %3268 = vmatprep.subr.bf16.mxu0 0
        %3269 = vmatpush1.bf16.msra.mxu0 0
        %3270 = vmatprep.subr.bf16.mxu0 0
        %3271 = vmatpush1.bf16.msra.mxu0 0
        %3272 = vmatprep.subr.bf16.mxu0 0
        %3273 = vmatpush1.bf16.msra.mxu0 0
        %3274 = vmatprep.subr.bf16.mxu0 0
        %3275 = vmatpush1.bf16.msra.mxu0 0
        %3276 = vmatprep.subr.bf16.mxu0 0
        %3277 = vmatpush1.bf16.msra.mxu0 0
        %3278 = vmatprep.subr.bf16.mxu0 0
        %3279 = vmatpush1.bf16.msra.mxu0 0
        %3280 = vmatprep.subr.bf16.mxu0 0
        %3281 = vmatpush1.bf16.msra.mxu0 0
        %3282 = vmatprep.subr.bf16.mxu0 0
        %3283 = vmatpush1.bf16.msra.mxu0 0
        %3284 = vmatprep.mubr.bf16.mxu0 0
        %3285 = vmatmul.mubr.bf16.gmra.mrb[0].mxu0 %v3170
        %v3286 = vpop.f32.mrb[0].mxu0
        %v3287 = vadd.f32 %v2240, %v3286
        %v3288 = vpop.f32.mrb[0].mxu0
        %v3289 = vadd.f32 %v2242, %v3288
        %v3290 = vpop.f32.mrb[0].mxu0
        %v3291 = vpop.f32.mrb[0].mxu0
        %3292 = vdwg.mxu0
        %v3309 = vunpack.c.l.b16 %v2247
        %v3310 = vunpack.c.h.b16 %v2247
        %v3311 = vunpack.c.l.b16 %v2248
        %v3312 = vunpack.c.h.b16 %v2248
        %v3313 = vunpack.c.l.b16 %v2249
        %v3314 = vunpack.c.h.b16 %v2249
        %v3315 = vunpack.c.l.b16 %v2250
        %v3316 = vunpack.c.h.b16 %v2250
        %v3317 = vunpack.c.l.b16 %v2251
        %v3318 = vunpack.c.h.b16 %v2251
        %v3319 = vunpack.c.l.b16 %v2252
        %v3320 = vunpack.c.h.b16 %v2252
        %v3321 = vunpack.c.l.b16 %v2253
        %v3322 = vunpack.c.h.b16 %v2253
        %v3323 = vunpack.c.l.b16 %v2254
        %v3324 = vunpack.c.h.b16 %v2254
        %v3325 = vunpack.c.l.b16 %v2255
        %v3326 = vunpack.c.h.b16 %v2255
        %v3327 = vunpack.c.l.b16 %v2256
        %v3328 = vunpack.c.h.b16 %v2256
        %v3329 = vunpack.c.l.b16 %v2257
        %v3330 = vunpack.c.h.b16 %v2257
        %v3331 = vunpack.c.l.b16 %v2258
        %v3332 = vunpack.c.h.b16 %v2258
        %v3333 = vunpack.c.l.b16 %v2259
        %v3334 = vunpack.c.h.b16 %v2259
        %v3335 = vunpack.c.l.b16 %v2260
        %v3336 = vunpack.c.h.b16 %v2260
        %v3337 = vunpack.c.l.b16 %v2261
        %v3338 = vunpack.c.h.b16 %v2261
        %v3339 = vunpack.c.l.b16 %v2262
        %v3340 = vunpack.c.h.b16 %v2262
        %v3341 = vpack.c.b16 %v3311, %v3309
        %v3342 = vpack.c.b16 %v3312, %v3310
        %v3343 = vpack.c.b16 %v3315, %v3313
        %v3344 = vpack.c.b16 %v3316, %v3314
        %v3345 = vpack.c.b16 %v3319, %v3317
        %v3346 = vpack.c.b16 %v3320, %v3318
        %v3347 = vpack.c.b16 %v3323, %v3321
        %v3348 = vpack.c.b16 %v3324, %v3322
        %v3349 = vpack.c.b16 %v3327, %v3325
        %v3350 = vpack.c.b16 %v3328, %v3326
        %v3351 = vpack.c.b16 %v3331, %v3329
        %v3352 = vpack.c.b16 %v3332, %v3330
        %v3353 = vpack.c.b16 %v3335, %v3333
        %v3354 = vpack.c.b16 %v3336, %v3334
        %v3355 = vpack.c.b16 %v3339, %v3337
        %v3356 = vpack.c.b16 %v3340, %v3338
        %3373 = vmatprep.subr.bf16.mxu0 %v3342
        %3374 = vmatpush1.bf16.msra.mxu0 %v3341
        %3375 = vmatprep.subr.bf16.mxu0 %v3344
        %3376 = vmatpush1.bf16.msra.mxu0 %v3343
        %3377 = vmatprep.subr.bf16.mxu0 %v3346
        %3378 = vmatpush1.bf16.msra.mxu0 %v3345
        %3379 = vmatprep.subr.bf16.mxu0 %v3348
        %3380 = vmatpush1.bf16.msra.mxu0 %v3347
        %3381 = vmatprep.subr.bf16.mxu0 %v3350
        %3382 = vmatpush1.bf16.msra.mxu0 %v3349
        %3383 = vmatprep.subr.bf16.mxu0 %v3352
        %3384 = vmatpush1.bf16.msra.mxu0 %v3351
        %3385 = vmatprep.subr.bf16.mxu0 %v3354
        %3386 = vmatpush1.bf16.msra.mxu0 %v3353
        %3387 = vmatprep.subr.bf16.mxu0 %v3356
        %3388 = vmatpush1.bf16.msra.mxu0 %v3355
        %3389 = vmatprep.subr.bf16.mxu0 0
        %3390 = vmatpush1.bf16.msra.mxu0 0
        %3391 = vmatprep.subr.bf16.mxu0 0
        %3392 = vmatpush1.bf16.msra.mxu0 0
        %3393 = vmatprep.subr.bf16.mxu0 0
        %3394 = vmatpush1.bf16.msra.mxu0 0
        %3395 = vmatprep.subr.bf16.mxu0 0
        %3396 = vmatpush1.bf16.msra.mxu0 0
        %3397 = vmatprep.subr.bf16.mxu0 0
        %3398 = vmatpush1.bf16.msra.mxu0 0
        %3399 = vmatprep.subr.bf16.mxu0 0
        %3400 = vmatpush1.bf16.msra.mxu0 0
        %3401 = vmatprep.subr.bf16.mxu0 0
        %3402 = vmatpush1.bf16.msra.mxu0 0
        %3403 = vmatprep.subr.bf16.mxu0 0
        %3404 = vmatpush1.bf16.msra.mxu0 0
        %3405 = vmatprep.mubr.bf16.mxu0 0
        %3406 = vmatmul.mubr.bf16.gmra.mrb[0].mxu0 %v1301
        %v3407 = vpop.f32.mrb[0].mxu0
        %v3408 = vadd.f32 %v2398, %v3407
        %v3409 = vpop.f32.mrb[0].mxu0
        %v3410 = vadd.f32 %v2400, %v3409
        %v3411 = vpop.f32.mrb[0].mxu0
        %v3412 = vpop.f32.mrb[0].mxu0
        %3413 = vdwg.mxu0
        %v3414 = vrot.slane %v1301, 4
        %v3432 = vunpack.c.l.b16 %v2405
        %v3433 = vunpack.c.h.b16 %v2405
        %v3434 = vunpack.c.l.b16 %v2406
        %v3435 = vunpack.c.h.b16 %v2406
        %v3436 = vunpack.c.l.b16 %v2407
        %v3437 = vunpack.c.h.b16 %v2407
        %v3438 = vunpack.c.l.b16 %v2408
        %v3439 = vunpack.c.h.b16 %v2408
        %v3440 = vunpack.c.l.b16 %v2409
        %v3441 = vunpack.c.h.b16 %v2409
        %v3442 = vunpack.c.l.b16 %v2410
        %v3443 = vunpack.c.h.b16 %v2410
        %v3444 = vunpack.c.l.b16 %v2411
        %v3445 = vunpack.c.h.b16 %v2411
        %v3446 = vunpack.c.l.b16 %v2412
        %v3447 = vunpack.c.h.b16 %v2412
        %v3448 = vunpack.c.l.b16 %v2413
        %v3449 = vunpack.c.h.b16 %v2413
        %v3450 = vunpack.c.l.b16 %v2414
        %v3451 = vunpack.c.h.b16 %v2414
        %v3452 = vunpack.c.l.b16 %v2415
        %v3453 = vunpack.c.h.b16 %v2415
        %v3454 = vunpack.c.l.b16 %v2416
        %v3455 = vunpack.c.h.b16 %v2416
        %v3456 = vunpack.c.l.b16 %v2417
        %v3457 = vunpack.c.h.b16 %v2417
        %v3458 = vunpack.c.l.b16 %v2418
        %v3459 = vunpack.c.h.b16 %v2418
        %v3460 = vunpack.c.l.b16 %v2419
        %v3461 = vunpack.c.h.b16 %v2419
        %v3462 = vunpack.c.l.b16 %v2420
        %v3463 = vunpack.c.h.b16 %v2420
        %v3464 = vpack.c.b16 %v3434, %v3432
        %v3465 = vpack.c.b16 %v3435, %v3433
        %v3466 = vpack.c.b16 %v3438, %v3436
        %v3467 = vpack.c.b16 %v3439, %v3437
        %v3468 = vpack.c.b16 %v3442, %v3440
        %v3469 = vpack.c.b16 %v3443, %v3441
        %v3470 = vpack.c.b16 %v3446, %v3444
        %v3471 = vpack.c.b16 %v3447, %v3445
        %v3472 = vpack.c.b16 %v3450, %v3448
        %v3473 = vpack.c.b16 %v3451, %v3449
        %v3474 = vpack.c.b16 %v3454, %v3452
        %v3475 = vpack.c.b16 %v3455, %v3453
        %v3476 = vpack.c.b16 %v3458, %v3456
        %v3477 = vpack.c.b16 %v3459, %v3457
        %v3478 = vpack.c.b16 %v3462, %v3460
        %v3479 = vpack.c.b16 %v3463, %v3461
        %3496 = vmatprep.subr.bf16.mxu0 %v3465
        %3497 = vmatpush1.bf16.msra.mxu0 %v3464
        %3498 = vmatprep.subr.bf16.mxu0 %v3467
        %3499 = vmatpush1.bf16.msra.mxu0 %v3466
        %3500 = vmatprep.subr.bf16.mxu0 %v3469
        %3501 = vmatpush1.bf16.msra.mxu0 %v3468
        %3502 = vmatprep.subr.bf16.mxu0 %v3471
        %3503 = vmatpush1.bf16.msra.mxu0 %v3470
        %3504 = vmatprep.subr.bf16.mxu0 %v3473
        %3505 = vmatpush1.bf16.msra.mxu0 %v3472
        %3506 = vmatprep.subr.bf16.mxu0 %v3475
        %3507 = vmatpush1.bf16.msra.mxu0 %v3474
        %3508 = vmatprep.subr.bf16.mxu0 %v3477
        %3509 = vmatpush1.bf16.msra.mxu0 %v3476
        %3510 = vmatprep.subr.bf16.mxu0 %v3479
        %3511 = vmatpush1.bf16.msra.mxu0 %v3478
        %3512 = vmatprep.subr.bf16.mxu0 0
        %3513 = vmatpush1.bf16.msra.mxu0 0
        %3514 = vmatprep.subr.bf16.mxu0 0
        %3515 = vmatpush1.bf16.msra.mxu0 0
        %3516 = vmatprep.subr.bf16.mxu0 0
        %3517 = vmatpush1.bf16.msra.mxu0 0
        %3518 = vmatprep.subr.bf16.mxu0 0
        %3519 = vmatpush1.bf16.msra.mxu0 0
        %3520 = vmatprep.subr.bf16.mxu0 0
        %3521 = vmatpush1.bf16.msra.mxu0 0
        %3522 = vmatprep.subr.bf16.mxu0 0
        %3523 = vmatpush1.bf16.msra.mxu0 0
        %3524 = vmatprep.subr.bf16.mxu0 0
        %3525 = vmatpush1.bf16.msra.mxu0 0
        %3526 = vmatprep.subr.bf16.mxu0 0
        %3527 = vmatpush1.bf16.msra.mxu0 0
        %3528 = vmatprep.mubr.bf16.mxu0 0
        %3529 = vmatmul.mubr.bf16.gmra.mrb[0].mxu0 %v3414
        %v3530 = vpop.f32.mrb[0].mxu0
        %v3531 = vadd.f32 %v2555, %v3530
        %v3532 = vpop.f32.mrb[0].mxu0
        %v3533 = vadd.f32 %v2557, %v3532
        %v3534 = vpop.f32.mrb[0].mxu0
        %v3535 = vpop.f32.mrb[0].mxu0
        %3536 = vdwg.mxu0
        %v3537 = vadd.f32 %v2676, %v2799
        %v3538 = vadd.f32 %v2678, %v2801
        %v3539 = vadd.f32 %v2920, %v3043
        %v3540 = vadd.f32 %v2922, %v3045
        %v3541 = vadd.f32 %v3164, %v3287
        %v3542 = vadd.f32 %v3166, %v3289
        %v3543 = vadd.f32 %v3408, %v3531
        %v3544 = vadd.f32 %v3410, %v3533
        %v3545 = vadd.f32 %v3537, %v3539
        %v3546 = vadd.f32 %v3538, %v3540
        %v3547 = vadd.f32 %v3541, %v3543
        %v3548 = vadd.f32 %v3542, %v3544
        %v3549 = vadd.f32 %v3545, %v3547
        %v3550 = vadd.f32 %v3546, %v3548
        %v3551 = vld [vmem:[%s5] sm:$0x3]
        %v3553 = vlaneseq
        %v3554 = vshrl.u32 %v3553, 7
        %v3555 = vsub.s32 0, %v3554
        %v3556 = vrot.slane %v3551, %v3555
        %v3557 = vlaneseq
        %v3558 = vshrl.u32 %v3557, 7
        %v3559 = vsub.s32 1, %v3558
        %v3560 = vrot.slane %v3551, %v3559
        %v3563 = vadd.f32 %v3549, %v3556
        %v3564 = vadd.f32 %v3550, %v3560
        %v3565 = vmax.f32 %v3563, 0.0
        %v3566 = vmax.f32 %v3564, 0.0
        %v3567 = vpack.c.bf16 %v3565, %v3565
        %v3568 = vpack.c.bf16 %v3566, %v3566
        %v3569 = vld [vmem:[%s6] sm:$0xf]
        %v3570 = vld [vmem:[%s6 + $0x4] sm:$0xf]
        %v3571 = vld [vmem:[%s6 + $0x8] sm:$0xf]
        %v3572 = vld [vmem:[%s6 + $0xc] sm:$0xf]
        %v3573 = vld [vmem:[%s6 + $0x10] sm:$0xf]
        %v3574 = vld [vmem:[%s6 + $0x14] sm:$0xf]
        %v3575 = vld [vmem:[%s6 + $0x18] sm:$0xf]
        %v3576 = vld [vmem:[%s6 + $0x1c] sm:$0xf]
        %v3577 = vld [vmem:[%s6 + $0x20] sm:$0xf]
        %v3578 = vld [vmem:[%s6 + $0x24] sm:$0xf]
        %v3579 = vld [vmem:[%s6 + $0x28] sm:$0xf]
        %v3580 = vld [vmem:[%s6 + $0x2c] sm:$0xf]
        %v3581 = vld [vmem:[%s6 + $0x30] sm:$0xf]
        %v3582 = vld [vmem:[%s6 + $0x34] sm:$0xf]
        %v3583 = vld [vmem:[%s6 + $0x38] sm:$0xf]
        %v3584 = vld [vmem:[%s6 + $0x3c] sm:$0xf]
        %v3585 = vld [vmem:[%s6 + $0x40] sm:$0xf]
        %v3586 = vld [vmem:[%s6 + $0x44] sm:$0xf]
        %v3587 = vld [vmem:[%s6 + $0x48] sm:$0xf]
        %v3588 = vld [vmem:[%s6 + $0x4c] sm:$0xf]
        %v3589 = vld [vmem:[%s6 + $0x50] sm:$0xf]
        %v3590 = vld [vmem:[%s6 + $0x54] sm:$0xf]
        %v3591 = vld [vmem:[%s6 + $0x58] sm:$0xf]
        %v3592 = vld [vmem:[%s6 + $0x5c] sm:$0xf]
        %v3593 = vld [vmem:[%s6 + $0x60] sm:$0xf]
        %v3594 = vld [vmem:[%s6 + $0x64] sm:$0xf]
        %v3595 = vld [vmem:[%s6 + $0x68] sm:$0xf]
        %v3596 = vld [vmem:[%s6 + $0x6c] sm:$0xf]
        %v3597 = vld [vmem:[%s6 + $0x70] sm:$0xf]
        %v3598 = vld [vmem:[%s6 + $0x74] sm:$0xf]
        %v3599 = vld [vmem:[%s6 + $0x78] sm:$0xf]
        %v3600 = vld [vmem:[%s6 + $0x7c] sm:$0xf]
        %s3601 = scalar_lea.vmem %s6, 128
        %v3602 = vld [vmem:[%s3601] sm:$0xf]
        %v3603 = vld [vmem:[%s3601 + $0x4] sm:$0xf]
        %v3604 = vld [vmem:[%s3601 + $0x8] sm:$0xf]
        %v3605 = vld [vmem:[%s3601 + $0xc] sm:$0xf]
        %v3606 = vld [vmem:[%s3601 + $0x10] sm:$0xf]
        %v3607 = vld [vmem:[%s3601 + $0x14] sm:$0xf]
        %v3608 = vld [vmem:[%s3601 + $0x18] sm:$0xf]
        %v3609 = vld [vmem:[%s3601 + $0x1c] sm:$0xf]
        %v3610 = vld [vmem:[%s3601 + $0x20] sm:$0xf]
        %v3611 = vld [vmem:[%s3601 + $0x24] sm:$0xf]
        %v3612 = vld [vmem:[%s3601 + $0x28] sm:$0xf]
        %v3613 = vld [vmem:[%s3601 + $0x2c] sm:$0xf]
        %v3614 = vld [vmem:[%s3601 + $0x30] sm:$0xf]
        %v3615 = vld [vmem:[%s3601 + $0x34] sm:$0xf]
        %v3616 = vld [vmem:[%s3601 + $0x38] sm:$0xf]
        %v3617 = vld [vmem:[%s3601 + $0x3c] sm:$0xf]
        %v3618 = vld [vmem:[%s3601 + $0x40] sm:$0xf]
        %v3619 = vld [vmem:[%s3601 + $0x44] sm:$0xf]
        %v3620 = vld [vmem:[%s3601 + $0x48] sm:$0xf]
        %v3621 = vld [vmem:[%s3601 + $0x4c] sm:$0xf]
        %v3622 = vld [vmem:[%s3601 + $0x50] sm:$0xf]
        %v3623 = vld [vmem:[%s3601 + $0x54] sm:$0xf]
        %v3624 = vld [vmem:[%s3601 + $0x58] sm:$0xf]
        %v3625 = vld [vmem:[%s3601 + $0x5c] sm:$0xf]
        %v3626 = vld [vmem:[%s3601 + $0x60] sm:$0xf]
        %v3627 = vld [vmem:[%s3601 + $0x64] sm:$0xf]
        %v3628 = vld [vmem:[%s3601 + $0x68] sm:$0xf]
        %v3629 = vld [vmem:[%s3601 + $0x6c] sm:$0xf]
        %v3630 = vld [vmem:[%s3601 + $0x70] sm:$0xf]
        %v3631 = vld [vmem:[%s3601 + $0x74] sm:$0xf]
        %v3632 = vld [vmem:[%s3601 + $0x78] sm:$0xf]
        %v3633 = vld [vmem:[%s3601 + $0x7c] sm:$0xf]
        %v3635 = vshrl.u32 %v3567, 16
        %v3638 = vshrl.u32 %v3568, 16
        %v3674 = vunpack.c.l.b16 %v3602
        %v3675 = vunpack.c.l.b16 %v3603
        %v3676 = vunpack.c.l.b16 %v3604
        %v3677 = vunpack.c.l.b16 %v3605
        %v3678 = vunpack.c.l.b16 %v3606
        %v3679 = vunpack.c.l.b16 %v3607
        %v3680 = vunpack.c.l.b16 %v3608
        %v3681 = vunpack.c.l.b16 %v3609
        %v3682 = vunpack.c.l.b16 %v3610
        %v3683 = vunpack.c.l.b16 %v3611
        %v3684 = vunpack.c.l.b16 %v3612
        %v3685 = vunpack.c.l.b16 %v3613
        %v3686 = vunpack.c.l.b16 %v3614
        %v3687 = vunpack.c.l.b16 %v3615
        %v3688 = vunpack.c.l.b16 %v3616
        %v3689 = vunpack.c.l.b16 %v3617
        %v3690 = vunpack.c.l.b16 %v3618
        %v3691 = vunpack.c.l.b16 %v3619
        %v3692 = vunpack.c.l.b16 %v3620
        %v3693 = vunpack.c.l.b16 %v3621
        %v3694 = vunpack.c.l.b16 %v3622
        %v3695 = vunpack.c.l.b16 %v3623
        %v3696 = vunpack.c.l.b16 %v3624
        %v3697 = vunpack.c.l.b16 %v3625
        %v3698 = vunpack.c.l.b16 %v3626
        %v3699 = vunpack.c.l.b16 %v3627
        %v3700 = vunpack.c.l.b16 %v3628
        %v3701 = vunpack.c.l.b16 %v3629
        %v3702 = vunpack.c.l.b16 %v3630
        %v3703 = vunpack.c.l.b16 %v3631
        %v3704 = vunpack.c.l.b16 %v3632
        %v3705 = vunpack.c.l.b16 %v3633
        %v3706 = vpack.c.b16 %v3675, %v3674
        %v3707 = vpack.c.b16 %v3677, %v3676
        %v3708 = vpack.c.b16 %v3679, %v3678
        %v3709 = vpack.c.b16 %v3681, %v3680
        %v3710 = vpack.c.b16 %v3683, %v3682
        %v3711 = vpack.c.b16 %v3685, %v3684
        %v3712 = vpack.c.b16 %v3687, %v3686
        %v3713 = vpack.c.b16 %v3689, %v3688
        %v3714 = vpack.c.b16 %v3691, %v3690
        %v3715 = vpack.c.b16 %v3693, %v3692
        %v3716 = vpack.c.b16 %v3695, %v3694
        %v3717 = vpack.c.b16 %v3697, %v3696
        %v3718 = vpack.c.b16 %v3699, %v3698
        %v3719 = vpack.c.b16 %v3701, %v3700
        %v3720 = vpack.c.b16 %v3703, %v3702
        %v3721 = vpack.c.b16 %v3705, %v3704
        %3738 = vmatprep.subr.bf16.mxu0 0
        %3739 = vmatpush1.bf16.msra.mxu0 %v3706
        %3740 = vmatprep.subr.bf16.mxu0 0
        %3741 = vmatpush1.bf16.msra.mxu0 %v3707
        %3742 = vmatprep.subr.bf16.mxu0 0
        %3743 = vmatpush1.bf16.msra.mxu0 %v3708
        %3744 = vmatprep.subr.bf16.mxu0 0
        %3745 = vmatpush1.bf16.msra.mxu0 %v3709
        %3746 = vmatprep.subr.bf16.mxu0 0
        %3747 = vmatpush1.bf16.msra.mxu0 %v3710
        %3748 = vmatprep.subr.bf16.mxu0 0
        %3749 = vmatpush1.bf16.msra.mxu0 %v3711
        %3750 = vmatprep.subr.bf16.mxu0 0
        %3751 = vmatpush1.bf16.msra.mxu0 %v3712
        %3752 = vmatprep.subr.bf16.mxu0 0
        %3753 = vmatpush1.bf16.msra.mxu0 %v3713
        %3754 = vmatprep.subr.bf16.mxu0 0
        %3755 = vmatpush1.bf16.msra.mxu0 %v3714
        %3756 = vmatprep.subr.bf16.mxu0 0
        %3757 = vmatpush1.bf16.msra.mxu0 %v3715
        %3758 = vmatprep.subr.bf16.mxu0 0
        %3759 = vmatpush1.bf16.msra.mxu0 %v3716
        %3760 = vmatprep.subr.bf16.mxu0 0
        %3761 = vmatpush1.bf16.msra.mxu0 %v3717
        %3762 = vmatprep.subr.bf16.mxu0 0
        %3763 = vmatpush1.bf16.msra.mxu0 %v3718
        %3764 = vmatprep.subr.bf16.mxu0 0
        %3765 = vmatpush1.bf16.msra.mxu0 %v3719
        %3766 = vmatprep.subr.bf16.mxu0 0
        %3767 = vmatpush1.bf16.msra.mxu0 %v3720
        %3768 = vmatprep.subr.bf16.mxu0 0
        %3769 = vmatpush1.bf16.msra.mxu0 %v3721
        %3770 = vmatprep.mubr.bf16.mxu0 %v3638
        %3771 = vmatmul.mubr.bf16.gmra.mrb[0].mxu0 %v3635
        %v3772 = vpop.f32.mrb[0].mxu0
        %v3773 = vadd.f32 0.0, %v3772
        %v3774 = vpop.f32.mrb[0].mxu0
        %v3775 = vpop.f32.mrb[0].mxu0
        %v3776 = vpop.f32.mrb[0].mxu0
        %3777 = vdwg.mxu0
        %s3778 = scalar_lea.vmem %s6, 256
        %v3779 = vld [vmem:[%s3778] sm:$0xf]
        %v3780 = vld [vmem:[%s3778 + $0x4] sm:$0xf]
        %v3781 = vld [vmem:[%s3778 + $0x8] sm:$0xf]
        %v3782 = vld [vmem:[%s3778 + $0xc] sm:$0xf]
        %v3783 = vld [vmem:[%s3778 + $0x10] sm:$0xf]
        %v3784 = vld [vmem:[%s3778 + $0x14] sm:$0xf]
        %v3785 = vld [vmem:[%s3778 + $0x18] sm:$0xf]
        %v3786 = vld [vmem:[%s3778 + $0x1c] sm:$0xf]
        %v3787 = vld [vmem:[%s3778 + $0x20] sm:$0xf]
        %v3788 = vld [vmem:[%s3778 + $0x24] sm:$0xf]
        %v3789 = vld [vmem:[%s3778 + $0x28] sm:$0xf]
        %v3790 = vld [vmem:[%s3778 + $0x2c] sm:$0xf]
        %v3791 = vld [vmem:[%s3778 + $0x30] sm:$0xf]
        %v3792 = vld [vmem:[%s3778 + $0x34] sm:$0xf]
        %v3793 = vld [vmem:[%s3778 + $0x38] sm:$0xf]
        %v3794 = vld [vmem:[%s3778 + $0x3c] sm:$0xf]
        %v3795 = vld [vmem:[%s3778 + $0x40] sm:$0xf]
        %v3796 = vld [vmem:[%s3778 + $0x44] sm:$0xf]
        %v3797 = vld [vmem:[%s3778 + $0x48] sm:$0xf]
        %v3798 = vld [vmem:[%s3778 + $0x4c] sm:$0xf]
        %v3799 = vld [vmem:[%s3778 + $0x50] sm:$0xf]
        %v3800 = vld [vmem:[%s3778 + $0x54] sm:$0xf]
        %v3801 = vld [vmem:[%s3778 + $0x58] sm:$0xf]
        %v3802 = vld [vmem:[%s3778 + $0x5c] sm:$0xf]
        %v3803 = vld [vmem:[%s3778 + $0x60] sm:$0xf]
        %v3804 = vld [vmem:[%s3778 + $0x64] sm:$0xf]
        %v3805 = vld [vmem:[%s3778 + $0x68] sm:$0xf]
        %v3806 = vld [vmem:[%s3778 + $0x6c] sm:$0xf]
        %v3807 = vld [vmem:[%s3778 + $0x70] sm:$0xf]
        %v3808 = vld [vmem:[%s3778 + $0x74] sm:$0xf]
        %v3809 = vld [vmem:[%s3778 + $0x78] sm:$0xf]
        %v3810 = vld [vmem:[%s3778 + $0x7c] sm:$0xf]
        %s3811 = scalar_lea.vmem %s6, 384
        %v3812 = vld [vmem:[%s3811] sm:$0xf]
        %v3813 = vld [vmem:[%s3811 + $0x4] sm:$0xf]
        %v3814 = vld [vmem:[%s3811 + $0x8] sm:$0xf]
        %v3815 = vld [vmem:[%s3811 + $0xc] sm:$0xf]
        %v3816 = vld [vmem:[%s3811 + $0x10] sm:$0xf]
        %v3817 = vld [vmem:[%s3811 + $0x14] sm:$0xf]
        %v3818 = vld [vmem:[%s3811 + $0x18] sm:$0xf]
        %v3819 = vld [vmem:[%s3811 + $0x1c] sm:$0xf]
        %v3820 = vld [vmem:[%s3811 + $0x20] sm:$0xf]
        %v3821 = vld [vmem:[%s3811 + $0x24] sm:$0xf]
        %v3822 = vld [vmem:[%s3811 + $0x28] sm:$0xf]
        %v3823 = vld [vmem:[%s3811 + $0x2c] sm:$0xf]
        %v3824 = vld [vmem:[%s3811 + $0x30] sm:$0xf]
        %v3825 = vld [vmem:[%s3811 + $0x34] sm:$0xf]
        %v3826 = vld [vmem:[%s3811 + $0x38] sm:$0xf]
        %v3827 = vld [vmem:[%s3811 + $0x3c] sm:$0xf]
        %v3828 = vld [vmem:[%s3811 + $0x40] sm:$0xf]
        %v3829 = vld [vmem:[%s3811 + $0x44] sm:$0xf]
        %v3830 = vld [vmem:[%s3811 + $0x48] sm:$0xf]
        %v3831 = vld [vmem:[%s3811 + $0x4c] sm:$0xf]
        %v3832 = vld [vmem:[%s3811 + $0x50] sm:$0xf]
        %v3833 = vld [vmem:[%s3811 + $0x54] sm:$0xf]
        %v3834 = vld [vmem:[%s3811 + $0x58] sm:$0xf]
        %v3835 = vld [vmem:[%s3811 + $0x5c] sm:$0xf]
        %v3836 = vld [vmem:[%s3811 + $0x60] sm:$0xf]
        %v3837 = vld [vmem:[%s3811 + $0x64] sm:$0xf]
        %v3838 = vld [vmem:[%s3811 + $0x68] sm:$0xf]
        %v3839 = vld [vmem:[%s3811 + $0x6c] sm:$0xf]
        %v3840 = vld [vmem:[%s3811 + $0x70] sm:$0xf]
        %v3841 = vld [vmem:[%s3811 + $0x74] sm:$0xf]
        %v3842 = vld [vmem:[%s3811 + $0x78] sm:$0xf]
        %v3843 = vld [vmem:[%s3811 + $0x7c] sm:$0xf]
        %v3844 = vrot.slane %v3635, 1
        %v3845 = vrot.slane %v3638, 1
        %v3880 = vunpack.c.l.b16 %v3812
        %v3881 = vunpack.c.l.b16 %v3813
        %v3882 = vunpack.c.l.b16 %v3814
        %v3883 = vunpack.c.l.b16 %v3815
        %v3884 = vunpack.c.l.b16 %v3816
        %v3885 = vunpack.c.l.b16 %v3817
        %v3886 = vunpack.c.l.b16 %v3818
        %v3887 = vunpack.c.l.b16 %v3819
        %v3888 = vunpack.c.l.b16 %v3820
        %v3889 = vunpack.c.l.b16 %v3821
        %v3890 = vunpack.c.l.b16 %v3822
        %v3891 = vunpack.c.l.b16 %v3823
        %v3892 = vunpack.c.l.b16 %v3824
        %v3893 = vunpack.c.l.b16 %v3825
        %v3894 = vunpack.c.l.b16 %v3826
        %v3895 = vunpack.c.l.b16 %v3827
        %v3896 = vunpack.c.l.b16 %v3828
        %v3897 = vunpack.c.l.b16 %v3829
        %v3898 = vunpack.c.l.b16 %v3830
        %v3899 = vunpack.c.l.b16 %v3831
        %v3900 = vunpack.c.l.b16 %v3832
        %v3901 = vunpack.c.l.b16 %v3833
        %v3902 = vunpack.c.l.b16 %v3834
        %v3903 = vunpack.c.l.b16 %v3835
        %v3904 = vunpack.c.l.b16 %v3836
        %v3905 = vunpack.c.l.b16 %v3837
        %v3906 = vunpack.c.l.b16 %v3838
        %v3907 = vunpack.c.l.b16 %v3839
        %v3908 = vunpack.c.l.b16 %v3840
        %v3909 = vunpack.c.l.b16 %v3841
        %v3910 = vunpack.c.l.b16 %v3842
        %v3911 = vunpack.c.l.b16 %v3843
        %v3912 = vpack.c.b16 %v3881, %v3880
        %v3913 = vpack.c.b16 %v3883, %v3882
        %v3914 = vpack.c.b16 %v3885, %v3884
        %v3915 = vpack.c.b16 %v3887, %v3886
        %v3916 = vpack.c.b16 %v3889, %v3888
        %v3917 = vpack.c.b16 %v3891, %v3890
        %v3918 = vpack.c.b16 %v3893, %v3892
        %v3919 = vpack.c.b16 %v3895, %v3894
        %v3920 = vpack.c.b16 %v3897, %v3896
        %v3921 = vpack.c.b16 %v3899, %v3898
        %v3922 = vpack.c.b16 %v3901, %v3900
        %v3923 = vpack.c.b16 %v3903, %v3902
        %v3924 = vpack.c.b16 %v3905, %v3904
        %v3925 = vpack.c.b16 %v3907, %v3906
        %v3926 = vpack.c.b16 %v3909, %v3908
        %v3927 = vpack.c.b16 %v3911, %v3910
        %3944 = vmatprep.subr.bf16.mxu0 0
        %3945 = vmatpush1.bf16.msra.mxu0 %v3912
        %3946 = vmatprep.subr.bf16.mxu0 0
        %3947 = vmatpush1.bf16.msra.mxu0 %v3913
        %3948 = vmatprep.subr.bf16.mxu0 0
        %3949 = vmatpush1.bf16.msra.mxu0 %v3914
        %3950 = vmatprep.subr.bf16.mxu0 0
        %3951 = vmatpush1.bf16.msra.mxu0 %v3915
        %3952 = vmatprep.subr.bf16.mxu0 0
        %3953 = vmatpush1.bf16.msra.mxu0 %v3916
        %3954 = vmatprep.subr.bf16.mxu0 0
        %3955 = vmatpush1.bf16.msra.mxu0 %v3917
        %3956 = vmatprep.subr.bf16.mxu0 0
        %3957 = vmatpush1.bf16.msra.mxu0 %v3918
        %3958 = vmatprep.subr.bf16.mxu0 0
        %3959 = vmatpush1.bf16.msra.mxu0 %v3919
        %3960 = vmatprep.subr.bf16.mxu0 0
        %3961 = vmatpush1.bf16.msra.mxu0 %v3920
        %3962 = vmatprep.subr.bf16.mxu0 0
        %3963 = vmatpush1.bf16.msra.mxu0 %v3921
        %3964 = vmatprep.subr.bf16.mxu0 0
        %3965 = vmatpush1.bf16.msra.mxu0 %v3922
        %3966 = vmatprep.subr.bf16.mxu0 0
        %3967 = vmatpush1.bf16.msra.mxu0 %v3923
        %3968 = vmatprep.subr.bf16.mxu0 0
        %3969 = vmatpush1.bf16.msra.mxu0 %v3924
        %3970 = vmatprep.subr.bf16.mxu0 0
        %3971 = vmatpush1.bf16.msra.mxu0 %v3925
        %3972 = vmatprep.subr.bf16.mxu0 0
        %3973 = vmatpush1.bf16.msra.mxu0 %v3926
        %3974 = vmatprep.subr.bf16.mxu0 0
        %3975 = vmatpush1.bf16.msra.mxu0 %v3927
        %3976 = vmatprep.mubr.bf16.mxu0 %v3845
        %3977 = vmatmul.mubr.bf16.gmra.mrb[0].mxu0 %v3844
        %v3978 = vpop.f32.mrb[0].mxu0
        %v3979 = vadd.f32 0.0, %v3978
        %v3980 = vpop.f32.mrb[0].mxu0
        %v3981 = vpop.f32.mrb[0].mxu0
        %v3982 = vpop.f32.mrb[0].mxu0
        %3983 = vdwg.mxu0
        %v4016 = vunpack.c.l.b16 %v3569
        %v4017 = vunpack.c.l.b16 %v3570
        %v4018 = vunpack.c.l.b16 %v3571
        %v4019 = vunpack.c.l.b16 %v3572
        %v4020 = vunpack.c.l.b16 %v3573
        %v4021 = vunpack.c.l.b16 %v3574
        %v4022 = vunpack.c.l.b16 %v3575
        %v4023 = vunpack.c.l.b16 %v3576
        %v4024 = vunpack.c.l.b16 %v3577
        %v4025 = vunpack.c.l.b16 %v3578
        %v4026 = vunpack.c.l.b16 %v3579
        %v4027 = vunpack.c.l.b16 %v3580
        %v4028 = vunpack.c.l.b16 %v3581
        %v4029 = vunpack.c.l.b16 %v3582
        %v4030 = vunpack.c.l.b16 %v3583
        %v4031 = vunpack.c.l.b16 %v3584
        %v4032 = vunpack.c.l.b16 %v3585
        %v4033 = vunpack.c.l.b16 %v3586
        %v4034 = vunpack.c.l.b16 %v3587
        %v4035 = vunpack.c.l.b16 %v3588
        %v4036 = vunpack.c.l.b16 %v3589
        %v4037 = vunpack.c.l.b16 %v3590
        %v4038 = vunpack.c.l.b16 %v3591
        %v4039 = vunpack.c.l.b16 %v3592
        %v4040 = vunpack.c.l.b16 %v3593
        %v4041 = vunpack.c.l.b16 %v3594
        %v4042 = vunpack.c.l.b16 %v3595
        %v4043 = vunpack.c.l.b16 %v3596
        %v4044 = vunpack.c.l.b16 %v3597
        %v4045 = vunpack.c.l.b16 %v3598
        %v4046 = vunpack.c.l.b16 %v3599
        %v4047 = vunpack.c.l.b16 %v3600
        %v4048 = vpack.c.b16 %v4017, %v4016
        %v4049 = vpack.c.b16 %v4019, %v4018
        %v4050 = vpack.c.b16 %v4021, %v4020
        %v4051 = vpack.c.b16 %v4023, %v4022
        %v4052 = vpack.c.b16 %v4025, %v4024
        %v4053 = vpack.c.b16 %v4027, %v4026
        %v4054 = vpack.c.b16 %v4029, %v4028
        %v4055 = vpack.c.b16 %v4031, %v4030
        %v4056 = vpack.c.b16 %v4033, %v4032
        %v4057 = vpack.c.b16 %v4035, %v4034
        %v4058 = vpack.c.b16 %v4037, %v4036
        %v4059 = vpack.c.b16 %v4039, %v4038
        %v4060 = vpack.c.b16 %v4041, %v4040
        %v4061 = vpack.c.b16 %v4043, %v4042
        %v4062 = vpack.c.b16 %v4045, %v4044
        %v4063 = vpack.c.b16 %v4047, %v4046
        %4080 = vmatprep.subr.bf16.mxu0 0
        %4081 = vmatpush1.bf16.msra.mxu0 %v4048
        %4082 = vmatprep.subr.bf16.mxu0 0
        %4083 = vmatpush1.bf16.msra.mxu0 %v4049
        %4084 = vmatprep.subr.bf16.mxu0 0
        %4085 = vmatpush1.bf16.msra.mxu0 %v4050
        %4086 = vmatprep.subr.bf16.mxu0 0
        %4087 = vmatpush1.bf16.msra.mxu0 %v4051
        %4088 = vmatprep.subr.bf16.mxu0 0
        %4089 = vmatpush1.bf16.msra.mxu0 %v4052
        %4090 = vmatprep.subr.bf16.mxu0 0
        %4091 = vmatpush1.bf16.msra.mxu0 %v4053
        %4092 = vmatprep.subr.bf16.mxu0 0
        %4093 = vmatpush1.bf16.msra.mxu0 %v4054
        %4094 = vmatprep.subr.bf16.mxu0 0
        %4095 = vmatpush1.bf16.msra.mxu0 %v4055
        %4096 = vmatprep.subr.bf16.mxu0 0
        %4097 = vmatpush1.bf16.msra.mxu0 %v4056
        %4098 = vmatprep.subr.bf16.mxu0 0
        %4099 = vmatpush1.bf16.msra.mxu0 %v4057
        %4100 = vmatprep.subr.bf16.mxu0 0
        %4101 = vmatpush1.bf16.msra.mxu0 %v4058
        %4102 = vmatprep.subr.bf16.mxu0 0
        %4103 = vmatpush1.bf16.msra.mxu0 %v4059
        %4104 = vmatprep.subr.bf16.mxu0 0
        %4105 = vmatpush1.bf16.msra.mxu0 %v4060
        %4106 = vmatprep.subr.bf16.mxu0 0
        %4107 = vmatpush1.bf16.msra.mxu0 %v4061
        %4108 = vmatprep.subr.bf16.mxu0 0
        %4109 = vmatpush1.bf16.msra.mxu0 %v4062
        %4110 = vmatprep.subr.bf16.mxu0 0
        %4111 = vmatpush1.bf16.msra.mxu0 %v4063
        %4112 = vmatprep.mubr.bf16.mxu0 %v3568
        %4113 = vmatmul.mubr.bf16.gmra.mrb[0].mxu0 %v3567
        %v4114 = vpop.f32.mrb[0].mxu0
        %v4115 = vadd.f32 %v3773, %v4114
        %v4116 = vpop.f32.mrb[0].mxu0
        %v4117 = vpop.f32.mrb[0].mxu0
        %v4118 = vpop.f32.mrb[0].mxu0
        %4119 = vdwg.mxu0
        %v4122 = vrot.slane %v3567, 1
        %v4123 = vrot.slane %v3568, 1
        %v4158 = vunpack.c.l.b16 %v3779
        %v4159 = vunpack.c.l.b16 %v3780
        %v4160 = vunpack.c.l.b16 %v3781
        %v4161 = vunpack.c.l.b16 %v3782
        %v4162 = vunpack.c.l.b16 %v3783
        %v4163 = vunpack.c.l.b16 %v3784
        %v4164 = vunpack.c.l.b16 %v3785
        %v4165 = vunpack.c.l.b16 %v3786
        %v4166 = vunpack.c.l.b16 %v3787
        %v4167 = vunpack.c.l.b16 %v3788
        %v4168 = vunpack.c.l.b16 %v3789
        %v4169 = vunpack.c.l.b16 %v3790
        %v4170 = vunpack.c.l.b16 %v3791
        %v4171 = vunpack.c.l.b16 %v3792
        %v4172 = vunpack.c.l.b16 %v3793
        %v4173 = vunpack.c.l.b16 %v3794
        %v4174 = vunpack.c.l.b16 %v3795
        %v4175 = vunpack.c.l.b16 %v3796
        %v4176 = vunpack.c.l.b16 %v3797
        %v4177 = vunpack.c.l.b16 %v3798
        %v4178 = vunpack.c.l.b16 %v3799
        %v4179 = vunpack.c.l.b16 %v3800
        %v4180 = vunpack.c.l.b16 %v3801
        %v4181 = vunpack.c.l.b16 %v3802
        %v4182 = vunpack.c.l.b16 %v3803
        %v4183 = vunpack.c.l.b16 %v3804
        %v4184 = vunpack.c.l.b16 %v3805
        %v4185 = vunpack.c.l.b16 %v3806
        %v4186 = vunpack.c.l.b16 %v3807
        %v4187 = vunpack.c.l.b16 %v3808
        %v4188 = vunpack.c.l.b16 %v3809
        %v4189 = vunpack.c.l.b16 %v3810
        %v4190 = vpack.c.b16 %v4159, %v4158
        %v4191 = vpack.c.b16 %v4161, %v4160
        %v4192 = vpack.c.b16 %v4163, %v4162
        %v4193 = vpack.c.b16 %v4165, %v4164
        %v4194 = vpack.c.b16 %v4167, %v4166
        %v4195 = vpack.c.b16 %v4169, %v4168
        %v4196 = vpack.c.b16 %v4171, %v4170
        %v4197 = vpack.c.b16 %v4173, %v4172
        %v4198 = vpack.c.b16 %v4175, %v4174
        %v4199 = vpack.c.b16 %v4177, %v4176
        %v4200 = vpack.c.b16 %v4179, %v4178
        %v4201 = vpack.c.b16 %v4181, %v4180
        %v4202 = vpack.c.b16 %v4183, %v4182
        %v4203 = vpack.c.b16 %v4185, %v4184
        %v4204 = vpack.c.b16 %v4187, %v4186
        %v4205 = vpack.c.b16 %v4189, %v4188
        %4222 = vmatprep.subr.bf16.mxu0 0
        %4223 = vmatpush1.bf16.msra.mxu0 %v4190
        %4224 = vmatprep.subr.bf16.mxu0 0
        %4225 = vmatpush1.bf16.msra.mxu0 %v4191
        %4226 = vmatprep.subr.bf16.mxu0 0
        %4227 = vmatpush1.bf16.msra.mxu0 %v4192
        %4228 = vmatprep.subr.bf16.mxu0 0
        %4229 = vmatpush1.bf16.msra.mxu0 %v4193
        %4230 = vmatprep.subr.bf16.mxu0 0
        %4231 = vmatpush1.bf16.msra.mxu0 %v4194
        %4232 = vmatprep.subr.bf16.mxu0 0
        %4233 = vmatpush1.bf16.msra.mxu0 %v4195
        %4234 = vmatprep.subr.bf16.mxu0 0
        %4235 = vmatpush1.bf16.msra.mxu0 %v4196
        %4236 = vmatprep.subr.bf16.mxu0 0
        %4237 = vmatpush1.bf16.msra.mxu0 %v4197
        %4238 = vmatprep.subr.bf16.mxu0 0
        %4239 = vmatpush1.bf16.msra.mxu0 %v4198
        %4240 = vmatprep.subr.bf16.mxu0 0
        %4241 = vmatpush1.bf16.msra.mxu0 %v4199
        %4242 = vmatprep.subr.bf16.mxu0 0
        %4243 = vmatpush1.bf16.msra.mxu0 %v4200
        %4244 = vmatprep.subr.bf16.mxu0 0
        %4245 = vmatpush1.bf16.msra.mxu0 %v4201
        %4246 = vmatprep.subr.bf16.mxu0 0
        %4247 = vmatpush1.bf16.msra.mxu0 %v4202
        %4248 = vmatprep.subr.bf16.mxu0 0
        %4249 = vmatpush1.bf16.msra.mxu0 %v4203
        %4250 = vmatprep.subr.bf16.mxu0 0
        %4251 = vmatpush1.bf16.msra.mxu0 %v4204
        %4252 = vmatprep.subr.bf16.mxu0 0
        %4253 = vmatpush1.bf16.msra.mxu0 %v4205
        %4254 = vmatprep.mubr.bf16.mxu0 %v4123
        %4255 = vmatmul.mubr.bf16.gmra.mrb[0].mxu0 %v4122
        %v4256 = vpop.f32.mrb[0].mxu0
        %v4257 = vadd.f32 %v3979, %v4256
        %v4258 = vpop.f32.mrb[0].mxu0
        %v4259 = vpop.f32.mrb[0].mxu0
        %v4260 = vpop.f32.mrb[0].mxu0
        %4261 = vdwg.mxu0
        %v4262 = vadd.f32 %v4115, %v4257
        %v4263 = vld [vmem:[%s7] sm:$0x1]
        %v4264 = vadd.f32 %v4262, %v4263
        %4265 = vst [vmem:[%s300] sm:$0x1] %v4264
        %s4266 = sand.u32 %s203, 1
        %s4267 = scalar_lea.sflag [#allocation3], %s4266
        %s4268 = sand.u32 %s203, 1
        %s4269 = scalar_lea.vmem [#allocation2], %s4268
        // Predicated region
        $region53: #{multi_encoder_forward.5} parent=51 // pred_check
          %p4270 = pneg %p213
        $region54: #{multi_encoder_forward.5} parent=51 // pred_check_branch
          %4272 = sbr.rel (%p4270) target = $region56
        $region55: #{multi_encoder_forward.5} parent=51 // pred_region
          %s4274 = ssub.s32 16, 16
          %4275 = vsyncadd %s4267, %s4274
          %s4276 = smul.addr %s22, 16
          %s4277 = scalar_lea.hbm %s8, %s4276
          %s4279 = sshll.u32 %s4269, 4
          %s4280 = int_to_ptr.vmem [resolvable:$true] %s4279
          %4282 = dma.vmem_to_hbm [thread:$0]  %s4280, 16, %s4277, %s4267
        $region56: #{multi_encoder_forward.5} parent=51 // pred_fallthru
          _
      $region52: #{multi_encoder_forward.5} parent=5 // pred_fallthru
        _
      %p4283 = scmp.le.s32.totalorder 2, %s17
      // Predicated region
      $region57: #{multi_encoder_forward.5} parent=5 // pred_check
        %p4284 = pneg %p4283
      $region58: #{multi_encoder_forward.5} parent=5 // pred_check_branch
        %4286 = sbr.rel (%p4284) target = $region60
      $region59: #{multi_encoder_forward.5} parent=5 // pred_region
        %s4287 = ssub.s32 %s17, 2
        // Predicated region
        $region61: #{multi_encoder_forward.5} parent=59 // pred_check
          %p4288 = pneg %p219
        $region62: #{multi_encoder_forward.5} parent=59 // pred_check_branch
          %4290 = sbr.rel (%p4288) target = $region64
        $region63: #{multi_encoder_forward.5} parent=59 // pred_region
          %s4291 = sand.u32 %s204, 1
          %s4292 = scalar_lea.sflag [#allocation3], %s4291
          %s4293 = sand.u32 %s204, 1
          %s4294 = scalar_lea.vmem [#allocation2], %s4293
          %4295 = dma.done %s4292, 16
        $region64: #{multi_encoder_forward.5} parent=59 // pred_fallthru
          _
      $region60: #{multi_encoder_forward.5} parent=5 // pred_fallthru
        _
    $region6: #{multi_encoder_forward.5} parent=1 // loop_footer
      %s21 = sadd.s32 1, %s17
    $region7: #{multi_encoder_forward.5} parent=1 // loop_footer_branch
      %16 = sbr.rel target = $region3
    $region8: #{multi_encoder_forward.5} parent=1 // loop_exit
      _
    %4296 = vsyncpa [#allocation3], 1
    %s4297 = scalar_lea.sflag [#allocation3], 1
    %4298 = vsyncpa %s4297, 1

</llo_original>
